<compile_context>
chip_gen: v7x
topology: tpu7x:2x2x1
jax: 0.10.0
libtpu: 0.0.40
codegen_flags: <defaults>
</compile_context>

<pallas_src>
import functools

import numpy as np
import jax
import jax.numpy as jnp
from jax import lax
from jax.experimental import pallas as pl
from jax.experimental.pallas import tpu as pltpu


# ---------------------------------------------------------------------------
# Fused Pallas kernel: conv1 -> relu -> conv2 -> relu -> fc3 -> relu -> fc4
# Row layout of x8 inside one batch tile of tb images:
#   row = y_block * tb + image           (y_block in 0..10, 11*tb rows)
#   lane = x_block*256 + (y%8)*32 + (x%8)*4 + channel   (2816 lanes)
# ---------------------------------------------------------------------------
def _dqn_kernel(x8_ref, w1p_ref, b1_ref, w2c_ref, b2_ref,
                w3b_ref, b3_ref, w4_ref, b4_ref, o_ref, *, tb):
    f32 = jnp.float32
    bf16 = jnp.bfloat16
    r1 = 10 * tb                        # conv1 output rows (t, image)
    r2 = 9 * tb                         # conv2 output rows (oy2, image)

    b1 = b1_ref[...]                    # (1, 128), hoisted out of the loop
    h2 = jnp.zeros((r2, 288), f32)
    for b2 in range(5):                 # pair of conv1 output x-column groups
        c0 = 512 * b2                   # 3 consecutive x-blocks (768 lanes)
        acc = jnp.dot(x8_ref[0:r1, c0:c0 + 768], w1p_ref[0],
                      preferred_element_type=f32)
        acc = acc + jnp.dot(x8_ref[tb:tb + r1, c0:c0 + 768], w1p_ref[1],
                            preferred_element_type=f32)
        h1 = jnp.maximum(acc + b1, 0.0).astype(bf16)        # (r1, 128)
        # K-stack the two conv2 y-shifts: lanes 0..127 = shift 0, 128..255 = 1
        h1c = jnp.concatenate([h1[0:r2, :], h1[tb:tb + r2, :]], axis=1)
        h2 = h2 + jnp.dot(h1c, w2c_ref[b2], preferred_element_type=f32)
    h2 = jnp.maximum(h2 + b2_ref[...], 0.0).astype(bf16)     # (r2, 288)

    # fc3: each image's 9 conv2 rows are contiguous aligned slices of h2.
    h3 = jnp.zeros((tb, 256), f32)
    for oy2 in range(9):
        h3 = h3 + jnp.dot(h2[oy2 * tb:(oy2 + 1) * tb, :], w3b_ref[oy2],
                          preferred_element_type=f32)
    h3 = jnp.maximum(h3 + b3_ref[...], 0.0).astype(bf16)     # (tb, 256)

    q = jnp.dot(h3, w4_ref[...], preferred_element_type=f32) + b4_ref[...]
    o_ref[...] = q                                            # (tb, 128)


# ---------------------------------------------------------------------------
# One-time parameter preparation (host side): fold im2col / NCHW flatten into
# banded weight matrices, cast matmul weights to bf16, pad head to 128 lanes.
# ---------------------------------------------------------------------------
def prepare_params(params, num_actions):
    w1 = np.asarray(params["w1"], np.float32)   # (16, 4, 8, 8)
    b1 = np.asarray(params["b1"], np.float32)
    w2 = np.asarray(params["w2"], np.float32)   # (32, 16, 4, 4)
    b2 = np.asarray(params["b2"], np.float32)
    w3 = np.asarray(params["w3"], np.float32)   # (256, 2592)
    b3 = np.asarray(params["b3"], np.float32)
    w4 = np.asarray(params["w4"], np.float32)   # (A, 256)
    b4 = np.asarray(params["b4"], np.float32)

    # conv1 band weights: w1p[dv] is (768, 128)
    #   input lanes : t_rel*256 + ry*32 + rx*4 + c   (3 consecutive x/8 blocks)
    #   output lanes: u*64 + (p1*2+q1)*16 + c1       (2 conv1 output columns)
    w1p = np.zeros((2, 768, 128), np.float32)
    for dv in range(2):
        for u in range(2):
            for dw in range(2):
                t_rel = u + dw
                for p1 in range(2):
                    for q1 in range(2):
                        col0 = u * 64 + (p1 * 2 + q1) * 16
                        for ry in range(8):
                            i = 8 * dv + ry - 4 * p1
                            if not 0 <= i < 8:
                                continue
                            for rx in range(8):
                                j = 8 * dw + rx - 4 * q1
                                if not 0 <= j < 8:
                                    continue
                                row0 = t_rel * 256 + ry * 32 + rx * 4
                                w1p[dv, row0:row0 + 4, col0:col0 + 16] += \
                                    w1[:, :, i, j].T

    # conv2 band weights, K-stacked over the y-shift di: (5, 256, 288).
    # rows = di*128 + u*64 + (p1*2+q1)*16 + c1, cols = ox2*32 + c2.
    w2full = np.zeros((2, 640, 288), np.float32)
    for di in range(2):
        for dj in range(2):
            for p1 in range(2):
                for q1 in range(2):
                    i2, j2 = 2 * di + p1, 2 * dj + q1
                    wslice = w2[:, :, i2, j2].T               # (c1, c2)
                    for ox2 in range(9):
                        bcol = ox2 + dj                        # = 2*b2 + u
                        r0 = bcol * 64 + (p1 * 2 + q1) * 16
                        c0 = ox2 * 32
                        w2full[di, r0:r0 + 16, c0:c0 + 32] += wslice
    w2b = w2full.reshape(2, 5, 128, 288)
    w2c = np.concatenate([w2b[0], w2b[1]], axis=1)            # (5, 256, 288)

    # fc3 weight blocks: (9, 288, 256) consuming the (ox2, c2) lane layout of
    # one conv2 output row oy2 each (NCHW flatten folded in).
    w3r = w3.reshape(256, 32, 9, 9)                           # (m, c2, oy2, ox2)
    w3b = np.zeros((9, 288, 256), np.float32)
    for oy2 in range(9):
        w3b[oy2] = w3r[:, :, oy2, :].transpose(2, 1, 0).reshape(288, 256)

    w4p = np.zeros((256, 128), np.float32)
    w4p[:, :num_actions] = w4.T
    b4v = np.zeros((1, 128), np.float32)
    b4v[0, :num_actions] = b4

    bf16 = jnp.bfloat16
    return {
        "w1p": jnp.asarray(w1p, bf16),
        "b1p": jnp.asarray(np.tile(b1, 8)[None, :]),          # (1, 128) f32
        "w2c": jnp.asarray(w2c, bf16),
        "b2v": jnp.asarray(np.tile(b2, 9)[None, :]),          # (1, 288) f32
        "w3b": jnp.asarray(w3b, bf16),
        "b3v": jnp.asarray(b3[None, :]),                      # (1, 256) f32
        "w4p": jnp.asarray(w4p, bf16),
        "b4v": jnp.asarray(b4v),                              # (1, 128) f32
    }


# ---------------------------------------------------------------------------
# BlockSpec helpers
# ---------------------------------------------------------------------------
def _const_spec(shape):
    """Weight/bias spec: constant block index; single-buffer if supported."""
    ndim = len(shape)
    index_map = lambda i: (0,) * ndim
    try:
        return pl.BlockSpec(shape, index_map, pipeline_mode=pl.Buffered(1))
    except Exception:  # pipeline_mode / Buffered not available in this jax
        return pl.BlockSpec(shape, index_map)


def _pick_tb(n):
    # tb must be a multiple of 16 so every in-kernel bf16 row slice (offsets
    # tb, oy2*tb) is sublane-tile aligned.  32 for big batches; 16 keeps
    # grid_n >= 2 for batches of 17..32 (v7x dual TensorCore).
    return 32 if n > 32 else 16


# ---------------------------------------------------------------------------
# Forward pass
# ---------------------------------------------------------------------------
@functools.partial(jax.jit, static_argnames=("num_actions",))
def dqn_forward(pp, x, num_actions):
    n = x.shape[0]
    tb = _pick_tb(n)
    npad = -(-n // tb) * tb
    grid_n = npad // tb
    rblk = 11 * tb                      # input rows per batch tile

    # Input layout plumbing (same byte count as the input, bf16):
    # rows = (tile, y//8, image), lanes = (x//8)*256 + (y%8)*32 + (x%8)*4 + c.
    xb = jnp.pad(x.astype(jnp.bfloat16),
                 ((0, npad - n), (0, 0), (0, 4), (0, 4)))     # (npad,4,88,88)
    xb = xb.reshape(grid_n, tb, 4, 11, 8, 11, 8)
    xb = xb.transpose(0, 3, 1, 5, 4, 6, 2)     # (g, yb, img, xb, yr, xr, c)
    x8 = xb.reshape(grid_n * rblk, 2816)

    macs = grid_n * (10 * (10 * tb) * 768 * 128      # conv1
                     + 5 * (9 * tb) * 256 * 288      # conv2
                     + 9 * tb * 288 * 256            # fc3
                     + tb * 256 * 128)               # fc4
    wbytes = sum(int(v.size) * v.dtype.itemsize for v in pp.values())
    cost = pl.CostEstimate(flops=2 * macs, transcendentals=0,
                           bytes_accessed=int(x8.size) * 2 + wbytes
                           + npad * 128 * 4)

    out = pl.pallas_call(
        functools.partial(_dqn_kernel, tb=tb),
        out_shape=jax.ShapeDtypeStruct((npad, 128), jnp.float32),
        grid_spec=pltpu.PrefetchScalarGridSpec(
            num_scalar_prefetch=0,
            grid=(grid_n,),
            in_specs=[
                pl.BlockSpec((rblk, 2816), lambda i: (i, 0)),
                _const_spec((2, 768, 128)),
                _const_spec((1, 128)),
                _const_spec((5, 256, 288)),
                _const_spec((1, 288)),
                _const_spec((9, 288, 256)),
                _const_spec((1, 256)),
                _const_spec((256, 128)),
                _const_spec((1, 128)),
            ],
            out_specs=pl.BlockSpec((tb, 128), lambda i: (i, 0)),
        ),
        compiler_params=pltpu.CompilerParams(
            dimension_semantics=("parallel",),
            vmem_limit_bytes=40 * 1024 * 1024),
        cost_estimate=cost,
    )(x8, pp["w1p"], pp["b1p"], pp["w2c"], pp["b2v"],
      pp["w3b"], pp["b3v"], pp["w4p"], pp["b4v"])

    return out[:n, :num_actions]


# ---------------------------------------------------------------------------
# Pure-JAX reference (for the correctness check)
# ---------------------------------------------------------------------------
def _ref_conv(x, w, b, stride):
    y = lax.conv_general_dilated(
        x, w, (stride, stride), "VALID",
        dimension_numbers=("NCHW", "OIHW", "NCHW"))
    return jax.nn.relu(y + b[None, :, None, None])


def reference_forward(params, x):
    h = _ref_conv(x, params["w1"], params["b1"], 4)
    h = _ref_conv(h, params["w2"], params["b2"], 2)
    h = h.reshape(h.shape[0], -1)
    h = jax.nn.relu(h @ params["w3"].T + params["b3"])
    return h @ params["w4"].T + params["b4"]


# ---------------------------------------------------------------------------
if __name__ == "__main__":
    num_actions = 6
    num_frames = 4
    batch = 2

    key = jax.random.PRNGKey(0)
    ks = jax.random.split(key, 9)

    def init(k, shape, fan_in):
        return jax.random.normal(k, shape, jnp.float32) / jnp.sqrt(
            jnp.asarray(fan_in, jnp.float32))

    params = {
        "w1": init(ks[0], (16, num_frames, 8, 8), num_frames * 8 * 8),
        "b1": init(ks[1], (16,), num_frames * 8 * 8),
        "w2": init(ks[2], (32, 16, 4, 4), 16 * 4 * 4),
        "b2": init(ks[3], (32,), 16 * 4 * 4),
        "w3": init(ks[4], (256, 2592), 2592),   # torch Linear: (out, in)
        "b3": init(ks[5], (256,), 2592),
        "w4": init(ks[6], (num_actions, 256), 256),
        "b4": init(ks[7], (num_actions,), 256),
    }

    # 84x84 spatial is required by Linear(2592, 256) in the module.
    x = jax.random.normal(ks[8], (batch, num_frames, 84, 84), jnp.float32)

    pp = prepare_params(params, num_actions)
    q = jax.block_until_ready(dqn_forward(pp, x, num_actions))
    assert q.shape == (batch, num_actions), q.shape

    q_ref = reference_forward(params, x)
    rel_err = float(jnp.max(jnp.abs(q - q_ref))
                    / (jnp.max(jnp.abs(q_ref)) + 1e-9))
    assert rel_err < 5e-2, f"mismatch vs reference (rel err {rel_err:.4f})"

    # TODO(synk): epsilon_greedy action sampling (host numpy RNG) is host-side
    # glue, not a kernel; greedy choice is jnp.argmax(q, axis=-1).
    print("KERNEL_OK")
</pallas_src>

<mosaic_0001>
module attributes {stable_mosaic.version = 11 : i64} {
  func.func @_dqn_kernel(%arg0: i32, %arg1: memref<176x2816xbf16, #tpu.memory_space<vmem>>, %arg2: memref<2x768x128xbf16, #tpu.memory_space<vmem>>, %arg3: memref<1x128xf32, #tpu.memory_space<vmem>>, %arg4: memref<5x256x288xbf16, #tpu.memory_space<vmem>>, %arg5: memref<1x288xf32, #tpu.memory_space<vmem>>, %arg6: memref<9x288x256xbf16, #tpu.memory_space<vmem>>, %arg7: memref<1x256xf32, #tpu.memory_space<vmem>>, %arg8: memref<256x128xbf16, #tpu.memory_space<vmem>>, %arg9: memref<1x128xf32, #tpu.memory_space<vmem>>, %arg10: memref<16x128xf32, #tpu.memory_space<vmem>>) attributes {dimension_semantics = [#tpu.dimension_semantics<parallel>], iteration_bounds = array<i64: 1>, scalar_prefetch = 0 : i64, scratch_operands = 0 : i64, tpu.core_type = #tpu.core_type<tc>, window_params = [{transform_indices = @transform_0, window_bounds = array<i64: 176, 2816>}, {pipeline_mode = #tpu.pipeline_mode<synchronous>, transform_indices = @transform_1, window_bounds = array<i64: 2, 768, 128>}, {pipeline_mode = #tpu.pipeline_mode<synchronous>, transform_indices = @transform_2, window_bounds = array<i64: 1, 128>}, {pipeline_mode = #tpu.pipeline_mode<synchronous>, transform_indices = @transform_3, window_bounds = array<i64: 5, 256, 288>}, {pipeline_mode = #tpu.pipeline_mode<synchronous>, transform_indices = @transform_4, window_bounds = array<i64: 1, 288>}, {pipeline_mode = #tpu.pipeline_mode<synchronous>, transform_indices = @transform_5, window_bounds = array<i64: 9, 288, 256>}, {pipeline_mode = #tpu.pipeline_mode<synchronous>, transform_indices = @transform_6, window_bounds = array<i64: 1, 256>}, {pipeline_mode = #tpu.pipeline_mode<synchronous>, transform_indices = @transform_7, window_bounds = array<i64: 256, 128>}, {pipeline_mode = #tpu.pipeline_mode<synchronous>, transform_indices = @transform_8, window_bounds = array<i64: 1, 128>}, {transform_indices = @transform_9, window_bounds = array<i64: 16, 128>}]} {
    %c0 = arith.constant 0 : index
    %c0_0 = arith.constant 0 : index
    %0 = vector.load %arg3[%c0, %c0_0] : memref<1x128xf32, #tpu.memory_space<vmem>>, vector<1x128xf32>
    %cst = arith.constant 0.000000e+00 : f32
    %1 = vector.broadcast %cst : f32 to vector<144x288xf32>
    %c0_1 = arith.constant 0 : index
    %c0_2 = arith.constant 0 : index
    %2 = vector.load %arg1[%c0_1, %c0_2] : memref<176x2816xbf16, #tpu.memory_space<vmem>>, vector<160x768xbf16>
    %c0_3 = arith.constant 0 : index
    %c0_4 = arith.constant 0 : index
    %c0_5 = arith.constant 0 : index
    %3 = vector.load %arg2[%c0_3, %c0_4, %c0_5] : memref<2x768x128xbf16, #tpu.memory_space<vmem>>, vector<1x768x128xbf16>
    %4 = vector.shape_cast %3 : vector<1x768x128xbf16> to vector<768x128xbf16>
    %cst_6 = arith.constant dense<0.000000e+00> : vector<160x128xf32>
    %5 = tpu.matmul %2, %4, %cst_6 {dimension_numbers = #tpu.dot_dimension_numbers<[1], [0], [0], [1], [0, 0, 1, 1], [], []>} : vector<160x768xbf16>, vector<768x128xbf16>, vector<160x128xf32> -> vector<160x128xf32>
    %c16 = arith.constant 16 : index
    %c0_7 = arith.constant 0 : index
    %6 = vector.load %arg1[%c16, %c0_7] : memref<176x2816xbf16, #tpu.memory_space<vmem>>, vector<160x768xbf16>
    %c1 = arith.constant 1 : index
    %c0_8 = arith.constant 0 : index
    %c0_9 = arith.constant 0 : index
    %7 = vector.load %arg2[%c1, %c0_8, %c0_9] : memref<2x768x128xbf16, #tpu.memory_space<vmem>>, vector<1x768x128xbf16>
    %8 = vector.shape_cast %7 : vector<1x768x128xbf16> to vector<768x128xbf16>
    %cst_10 = arith.constant dense<0.000000e+00> : vector<160x128xf32>
    %9 = tpu.matmul %6, %8, %cst_10 {dimension_numbers = #tpu.dot_dimension_numbers<[1], [0], [0], [1], [0, 0, 1, 1], [], []>} : vector<160x768xbf16>, vector<768x128xbf16>, vector<160x128xf32> -> vector<160x128xf32>
    %10 = arith.addf %5, %9 : vector<160x128xf32>
    %11 = vector.broadcast %0 : vector<1x128xf32> to vector<160x128xf32>
    %12 = arith.addf %10, %11 : vector<160x128xf32>
    %cst_11 = arith.constant 0.000000e+00 : f32
    %13 = vector.broadcast %cst_11 : f32 to vector<160x128xf32>
    %14 = arith.maximumf %12, %13 : vector<160x128xf32>
    %15 = arith.truncf %14 : vector<160x128xf32> to vector<160x128xbf16>
    %16 = vector.extract_strided_slice %15 {offsets = [0, 0], sizes = [144, 128], strides = [1, 1]} : vector<160x128xbf16> to vector<144x128xbf16>
    %17 = vector.extract_strided_slice %15 {offsets = [16, 0], sizes = [144, 128], strides = [1, 1]} : vector<160x128xbf16> to vector<144x128xbf16>
    %18 = tpu.concatenate %16, %17 in 1 : vector<144x128xbf16>, vector<144x128xbf16> -> vector<144x256xbf16>
    %c0_12 = arith.constant 0 : index
    %c0_13 = arith.constant 0 : index
    %c0_14 = arith.constant 0 : index
    %19 = vector.load %arg4[%c0_12, %c0_13, %c0_14] : memref<5x256x288xbf16, #tpu.memory_space<vmem>>, vector<1x256x288xbf16>
    %20 = vector.shape_cast %19 : vector<1x256x288xbf16> to vector<256x288xbf16>
    %cst_15 = arith.constant dense<0.000000e+00> : vector<144x288xf32>
    %21 = tpu.matmul %18, %20, %cst_15 {dimension_numbers = #tpu.dot_dimension_numbers<[1], [0], [0], [1], [0, 0, 1, 1], [], []>} : vector<144x256xbf16>, vector<256x288xbf16>, vector<144x288xf32> -> vector<144x288xf32>
    %22 = arith.addf %1, %21 : vector<144x288xf32>
    %c0_16 = arith.constant 0 : index
    %c512 = arith.constant 512 : index
    %23 = vector.load %arg1[%c0_16, %c512] : memref<176x2816xbf16, #tpu.memory_space<vmem>>, vector<160x768xbf16>
    %c0_17 = arith.constant 0 : index
    %c0_18 = arith.constant 0 : index
    %c0_19 = arith.constant 0 : index
    %24 = vector.load %arg2[%c0_17, %c0_18, %c0_19] : memref<2x768x128xbf16, #tpu.memory_space<vmem>>, vector<1x768x128xbf16>
    %25 = vector.shape_cast %24 : vector<1x768x128xbf16> to vector<768x128xbf16>
    %cst_20 = arith.constant dense<0.000000e+00> : vector<160x128xf32>
    %26 = tpu.matmul %23, %25, %cst_20 {dimension_numbers = #tpu.dot_dimension_numbers<[1], [0], [0], [1], [0, 0, 1, 1], [], []>} : vector<160x768xbf16>, vector<768x128xbf16>, vector<160x128xf32> -> vector<160x128xf32>
    %c16_21 = arith.constant 16 : index
    %c512_22 = arith.constant 512 : index
    %27 = vector.load %arg1[%c16_21, %c512_22] : memref<176x2816xbf16, #tpu.memory_space<vmem>>, vector<160x768xbf16>
    %c1_23 = arith.constant 1 : index
    %c0_24 = arith.constant 0 : index
    %c0_25 = arith.constant 0 : index
    %28 = vector.load %arg2[%c1_23, %c0_24, %c0_25] : memref<2x768x128xbf16, #tpu.memory_space<vmem>>, vector<1x768x128xbf16>
    %29 = vector.shape_cast %28 : vector<1x768x128xbf16> to vector<768x128xbf16>
    %cst_26 = arith.constant dense<0.000000e+00> : vector<160x128xf32>
    %30 = tpu.matmul %27, %29, %cst_26 {dimension_numbers = #tpu.dot_dimension_numbers<[1], [0], [0], [1], [0, 0, 1, 1], [], []>} : vector<160x768xbf16>, vector<768x128xbf16>, vector<160x128xf32> -> vector<160x128xf32>
    %31 = arith.addf %26, %30 : vector<160x128xf32>
    %32 = vector.broadcast %0 : vector<1x128xf32> to vector<160x128xf32>
    %33 = arith.addf %31, %32 : vector<160x128xf32>
    %cst_27 = arith.constant 0.000000e+00 : f32
    %34 = vector.broadcast %cst_27 : f32 to vector<160x128xf32>
    %35 = arith.maximumf %33, %34 : vector<160x128xf32>
    %36 = arith.truncf %35 : vector<160x128xf32> to vector<160x128xbf16>
    %37 = vector.extract_strided_slice %36 {offsets = [0, 0], sizes = [144, 128], strides = [1, 1]} : vector<160x128xbf16> to vector<144x128xbf16>
    %38 = vector.extract_strided_slice %36 {offsets = [16, 0], sizes = [144, 128], strides = [1, 1]} : vector<160x128xbf16> to vector<144x128xbf16>
    %39 = tpu.concatenate %37, %38 in 1 : vector<144x128xbf16>, vector<144x128xbf16> -> vector<144x256xbf16>
    %c1_28 = arith.constant 1 : index
    %c0_29 = arith.constant 0 : index
    %c0_30 = arith.constant 0 : index
    %40 = vector.load %arg4[%c1_28, %c0_29, %c0_30] : memref<5x256x288xbf16, #tpu.memory_space<vmem>>, vector<1x256x288xbf16>
    %41 = vector.shape_cast %40 : vector<1x256x288xbf16> to vector<256x288xbf16>
    %cst_31 = arith.constant dense<0.000000e+00> : vector<144x288xf32>
    %42 = tpu.matmul %39, %41, %cst_31 {dimension_numbers = #tpu.dot_dimension_numbers<[1], [0], [0], [1], [0, 0, 1, 1], [], []>} : vector<144x256xbf16>, vector<256x288xbf16>, vector<144x288xf32> -> vector<144x288xf32>
    %43 = arith.addf %22, %42 : vector<144x288xf32>
    %c0_32 = arith.constant 0 : index
    %c1024 = arith.constant 1024 : index
    %44 = vector.load %arg1[%c0_32, %c1024] : memref<176x2816xbf16, #tpu.memory_space<vmem>>, vector<160x768xbf16>
    %c0_33 = arith.constant 0 : index
    %c0_34 = arith.constant 0 : index
    %c0_35 = arith.constant 0 : index
    %45 = vector.load %arg2[%c0_33, %c0_34, %c0_35] : memref<2x768x128xbf16, #tpu.memory_space<vmem>>, vector<1x768x128xbf16>
    %46 = vector.shape_cast %45 : vector<1x768x128xbf16> to vector<768x128xbf16>
    %cst_36 = arith.constant dense<0.000000e+00> : vector<160x128xf32>
    %47 = tpu.matmul %44, %46, %cst_36 {dimension_numbers = #tpu.dot_dimension_numbers<[1], [0], [0], [1], [0, 0, 1, 1], [], []>} : vector<160x768xbf16>, vector<768x128xbf16>, vector<160x128xf32> -> vector<160x128xf32>
    %c16_37 = arith.constant 16 : index
    %c1024_38 = arith.constant 1024 : index
    %48 = vector.load %arg1[%c16_37, %c1024_38] : memref<176x2816xbf16, #tpu.memory_space<vmem>>, vector<160x768xbf16>
    %c1_39 = arith.constant 1 : index
    %c0_40 = arith.constant 0 : index
    %c0_41 = arith.constant 0 : index
    %49 = vector.load %arg2[%c1_39, %c0_40, %c0_41] : memref<2x768x128xbf16, #tpu.memory_space<vmem>>, vector<1x768x128xbf16>
    %50 = vector.shape_cast %49 : vector<1x768x128xbf16> to vector<768x128xbf16>
    %cst_42 = arith.constant dense<0.000000e+00> : vector<160x128xf32>
    %51 = tpu.matmul %48, %50, %cst_42 {dimension_numbers = #tpu.dot_dimension_numbers<[1], [0], [0], [1], [0, 0, 1, 1], [], []>} : vector<160x768xbf16>, vector<768x128xbf16>, vector<160x128xf32> -> vector<160x128xf32>
    %52 = arith.addf %47, %51 : vector<160x128xf32>
    %53 = vector.broadcast %0 : vector<1x128xf32> to vector<160x128xf32>
    %54 = arith.addf %52, %53 : vector<160x128xf32>
    %cst_43 = arith.constant 0.000000e+00 : f32
    %55 = vector.broadcast %cst_43 : f32 to vector<160x128xf32>
    %56 = arith.maximumf %54, %55 : vector<160x128xf32>
    %57 = arith.truncf %56 : vector<160x128xf32> to vector<160x128xbf16>
    %58 = vector.extract_strided_slice %57 {offsets = [0, 0], sizes = [144, 128], strides = [1, 1]} : vector<160x128xbf16> to vector<144x128xbf16>
    %59 = vector.extract_strided_slice %57 {offsets = [16, 0], sizes = [144, 128], strides = [1, 1]} : vector<160x128xbf16> to vector<144x128xbf16>
    %60 = tpu.concatenate %58, %59 in 1 : vector<144x128xbf16>, vector<144x128xbf16> -> vector<144x256xbf16>
    %c2 = arith.constant 2 : index
    %c0_44 = arith.constant 0 : index
    %c0_45 = arith.constant 0 : index
    %61 = vector.load %arg4[%c2, %c0_44, %c0_45] : memref<5x256x288xbf16, #tpu.memory_space<vmem>>, vector<1x256x288xbf16>
    %62 = vector.shape_cast %61 : vector<1x256x288xbf16> to vector<256x288xbf16>
    %cst_46 = arith.constant dense<0.000000e+00> : vector<144x288xf32>
    %63 = tpu.matmul %60, %62, %cst_46 {dimension_numbers = #tpu.dot_dimension_numbers<[1], [0], [0], [1], [0, 0, 1, 1], [], []>} : vector<144x256xbf16>, vector<256x288xbf16>, vector<144x288xf32> -> vector<144x288xf32>
    %64 = arith.addf %43, %63 : vector<144x288xf32>
    %c0_47 = arith.constant 0 : index
    %c1536 = arith.constant 1536 : index
    %65 = vector.load %arg1[%c0_47, %c1536] : memref<176x2816xbf16, #tpu.memory_space<vmem>>, vector<160x768xbf16>
    %c0_48 = arith.constant 0 : index
    %c0_49 = arith.constant 0 : index
    %c0_50 = arith.constant 0 : index
    %66 = vector.load %arg2[%c0_48, %c0_49, %c0_50] : memref<2x768x128xbf16, #tpu.memory_space<vmem>>, vector<1x768x128xbf16>
    %67 = vector.shape_cast %66 : vector<1x768x128xbf16> to vector<768x128xbf16>
    %cst_51 = arith.constant dense<0.000000e+00> : vector<160x128xf32>
    %68 = tpu.matmul %65, %67, %cst_51 {dimension_numbers = #tpu.dot_dimension_numbers<[1], [0], [0], [1], [0, 0, 1, 1], [], []>} : vector<160x768xbf16>, vector<768x128xbf16>, vector<160x128xf32> -> vector<160x128xf32>
    %c16_52 = arith.constant 16 : index
    %c1536_53 = arith.constant 1536 : index
    %69 = vector.load %arg1[%c16_52, %c1536_53] : memref<176x2816xbf16, #tpu.memory_space<vmem>>, vector<160x768xbf16>
    %c1_54 = arith.constant 1 : index
    %c0_55 = arith.constant 0 : index
    %c0_56 = arith.constant 0 : index
    %70 = vector.load %arg2[%c1_54, %c0_55, %c0_56] : memref<2x768x128xbf16, #tpu.memory_space<vmem>>, vector<1x768x128xbf16>
    %71 = vector.shape_cast %70 : vector<1x768x128xbf16> to vector<768x128xbf16>
    %cst_57 = arith.constant dense<0.000000e+00> : vector<160x128xf32>
    %72 = tpu.matmul %69, %71, %cst_57 {dimension_numbers = #tpu.dot_dimension_numbers<[1], [0], [0], [1], [0, 0, 1, 1], [], []>} : vector<160x768xbf16>, vector<768x128xbf16>, vector<160x128xf32> -> vector<160x128xf32>
    %73 = arith.addf %68, %72 : vector<160x128xf32>
    %74 = vector.broadcast %0 : vector<1x128xf32> to vector<160x128xf32>
    %75 = arith.addf %73, %74 : vector<160x128xf32>
    %cst_58 = arith.constant 0.000000e+00 : f32
    %76 = vector.broadcast %cst_58 : f32 to vector<160x128xf32>
    %77 = arith.maximumf %75, %76 : vector<160x128xf32>
    %78 = arith.truncf %77 : vector<160x128xf32> to vector<160x128xbf16>
    %79 = vector.extract_strided_slice %78 {offsets = [0, 0], sizes = [144, 128], strides = [1, 1]} : vector<160x128xbf16> to vector<144x128xbf16>
    %80 = vector.extract_strided_slice %78 {offsets = [16, 0], sizes = [144, 128], strides = [1, 1]} : vector<160x128xbf16> to vector<144x128xbf16>
    %81 = tpu.concatenate %79, %80 in 1 : vector<144x128xbf16>, vector<144x128xbf16> -> vector<144x256xbf16>
    %c3 = arith.constant 3 : index
    %c0_59 = arith.constant 0 : index
    %c0_60 = arith.constant 0 : index
    %82 = vector.load %arg4[%c3, %c0_59, %c0_60] : memref<5x256x288xbf16, #tpu.memory_space<vmem>>, vector<1x256x288xbf16>
    %83 = vector.shape_cast %82 : vector<1x256x288xbf16> to vector<256x288xbf16>
    %cst_61 = arith.constant dense<0.000000e+00> : vector<144x288xf32>
    %84 = tpu.matmul %81, %83, %cst_61 {dimension_numbers = #tpu.dot_dimension_numbers<[1], [0], [0], [1], [0, 0, 1, 1], [], []>} : vector<144x256xbf16>, vector<256x288xbf16>, vector<144x288xf32> -> vector<144x288xf32>
    %85 = arith.addf %64, %84 : vector<144x288xf32>
    %c0_62 = arith.constant 0 : index
    %c2048 = arith.constant 2048 : index
    %86 = vector.load %arg1[%c0_62, %c2048] : memref<176x2816xbf16, #tpu.memory_space<vmem>>, vector<160x768xbf16>
    %c0_63 = arith.constant 0 : index
    %c0_64 = arith.constant 0 : index
    %c0_65 = arith.constant 0 : index
    %87 = vector.load %arg2[%c0_63, %c0_64, %c0_65] : memref<2x768x128xbf16, #tpu.memory_space<vmem>>, vector<1x768x128xbf16>
    %88 = vector.shape_cast %87 : vector<1x768x128xbf16> to vector<768x128xbf16>
    %cst_66 = arith.constant dense<0.000000e+00> : vector<160x128xf32>
    %89 = tpu.matmul %86, %88, %cst_66 {dimension_numbers = #tpu.dot_dimension_numbers<[1], [0], [0], [1], [0, 0, 1, 1], [], []>} : vector<160x768xbf16>, vector<768x128xbf16>, vector<160x128xf32> -> vector<160x128xf32>
    %c16_67 = arith.constant 16 : index
    %c2048_68 = arith.constant 2048 : index
    %90 = vector.load %arg1[%c16_67, %c2048_68] : memref<176x2816xbf16, #tpu.memory_space<vmem>>, vector<160x768xbf16>
    %c1_69 = arith.constant 1 : index
    %c0_70 = arith.constant 0 : index
    %c0_71 = arith.constant 0 : index
    %91 = vector.load %arg2[%c1_69, %c0_70, %c0_71] : memref<2x768x128xbf16, #tpu.memory_space<vmem>>, vector<1x768x128xbf16>
    %92 = vector.shape_cast %91 : vector<1x768x128xbf16> to vector<768x128xbf16>
    %cst_72 = arith.constant dense<0.000000e+00> : vector<160x128xf32>
    %93 = tpu.matmul %90, %92, %cst_72 {dimension_numbers = #tpu.dot_dimension_numbers<[1], [0], [0], [1], [0, 0, 1, 1], [], []>} : vector<160x768xbf16>, vector<768x128xbf16>, vector<160x128xf32> -> vector<160x128xf32>
    %94 = arith.addf %89, %93 : vector<160x128xf32>
    %95 = vector.broadcast %0 : vector<1x128xf32> to vector<160x128xf32>
    %96 = arith.addf %94, %95 : vector<160x128xf32>
    %cst_73 = arith.constant 0.000000e+00 : f32
    %97 = vector.broadcast %cst_73 : f32 to vector<160x128xf32>
    %98 = arith.maximumf %96, %97 : vector<160x128xf32>
    %99 = arith.truncf %98 : vector<160x128xf32> to vector<160x128xbf16>
    %100 = vector.extract_strided_slice %99 {offsets = [0, 0], sizes = [144, 128], strides = [1, 1]} : vector<160x128xbf16> to vector<144x128xbf16>
    %101 = vector.extract_strided_slice %99 {offsets = [16, 0], sizes = [144, 128], strides = [1, 1]} : vector<160x128xbf16> to vector<144x128xbf16>
    %102 = tpu.concatenate %100, %101 in 1 : vector<144x128xbf16>, vector<144x128xbf16> -> vector<144x256xbf16>
    %c4 = arith.constant 4 : index
    %c0_74 = arith.constant 0 : index
    %c0_75 = arith.constant 0 : index
    %103 = vector.load %arg4[%c4, %c0_74, %c0_75] : memref<5x256x288xbf16, #tpu.memory_space<vmem>>, vector<1x256x288xbf16>
    %104 = vector.shape_cast %103 : vector<1x256x288xbf16> to vector<256x288xbf16>
    %cst_76 = arith.constant dense<0.000000e+00> : vector<144x288xf32>
    %105 = tpu.matmul %102, %104, %cst_76 {dimension_numbers = #tpu.dot_dimension_numbers<[1], [0], [0], [1], [0, 0, 1, 1], [], []>} : vector<144x256xbf16>, vector<256x288xbf16>, vector<144x288xf32> -> vector<144x288xf32>
    %106 = arith.addf %85, %105 : vector<144x288xf32>
    %c0_77 = arith.constant 0 : index
    %c0_78 = arith.constant 0 : index
    %107 = vector.load %arg5[%c0_77, %c0_78] : memref<1x288xf32, #tpu.memory_space<vmem>>, vector<1x288xf32>
    %108 = vector.broadcast %107 : vector<1x288xf32> to vector<144x288xf32>
    %109 = arith.addf %106, %108 : vector<144x288xf32>
    %cst_79 = arith.constant 0.000000e+00 : f32
    %110 = vector.broadcast %cst_79 : f32 to vector<144x288xf32>
    %111 = arith.maximumf %109, %110 : vector<144x288xf32>
    %112 = arith.truncf %111 : vector<144x288xf32> to vector<144x288xbf16>
    %cst_80 = arith.constant 0.000000e+00 : f32
    %113 = vector.broadcast %cst_80 : f32 to vector<16x256xf32>
    %114 = vector.extract_strided_slice %112 {offsets = [0, 0], sizes = [16, 288], strides = [1, 1]} : vector<144x288xbf16> to vector<16x288xbf16>
    %c0_81 = arith.constant 0 : index
    %c0_82 = arith.constant 0 : index
    %c0_83 = arith.constant 0 : index
    %115 = vector.load %arg6[%c0_81, %c0_82, %c0_83] : memref<9x288x256xbf16, #tpu.memory_space<vmem>>, vector<1x288x256xbf16>
    %116 = vector.shape_cast %115 : vector<1x288x256xbf16> to vector<288x256xbf16>
    %cst_84 = arith.constant dense<0.000000e+00> : vector<16x256xf32>
    %117 = tpu.matmul %114, %116, %cst_84 {dimension_numbers = #tpu.dot_dimension_numbers<[1], [0], [0], [1], [0, 0, 1, 1], [], []>} : vector<16x288xbf16>, vector<288x256xbf16>, vector<16x256xf32> -> vector<16x256xf32>
    %118 = arith.addf %113, %117 : vector<16x256xf32>
    %119 = vector.extract_strided_slice %112 {offsets = [16, 0], sizes = [16, 288], strides = [1, 1]} : vector<144x288xbf16> to vector<16x288xbf16>
    %c1_85 = arith.constant 1 : index
    %c0_86 = arith.constant 0 : index
    %c0_87 = arith.constant 0 : index
    %120 = vector.load %arg6[%c1_85, %c0_86, %c0_87] : memref<9x288x256xbf16, #tpu.memory_space<vmem>>, vector<1x288x256xbf16>
    %121 = vector.shape_cast %120 : vector<1x288x256xbf16> to vector<288x256xbf16>
    %cst_88 = arith.constant dense<0.000000e+00> : vector<16x256xf32>
    %122 = tpu.matmul %119, %121, %cst_88 {dimension_numbers = #tpu.dot_dimension_numbers<[1], [0], [0], [1], [0, 0, 1, 1], [], []>} : vector<16x288xbf16>, vector<288x256xbf16>, vector<16x256xf32> -> vector<16x256xf32>
    %123 = arith.addf %118, %122 : vector<16x256xf32>
    %124 = vector.extract_strided_slice %112 {offsets = [32, 0], sizes = [16, 288], strides = [1, 1]} : vector<144x288xbf16> to vector<16x288xbf16>
    %c2_89 = arith.constant 2 : index
    %c0_90 = arith.constant 0 : index
    %c0_91 = arith.constant 0 : index
    %125 = vector.load %arg6[%c2_89, %c0_90, %c0_91] : memref<9x288x256xbf16, #tpu.memory_space<vmem>>, vector<1x288x256xbf16>
    %126 = vector.shape_cast %125 : vector<1x288x256xbf16> to vector<288x256xbf16>
    %cst_92 = arith.constant dense<0.000000e+00> : vector<16x256xf32>
    %127 = tpu.matmul %124, %126, %cst_92 {dimension_numbers = #tpu.dot_dimension_numbers<[1], [0], [0], [1], [0, 0, 1, 1], [], []>} : vector<16x288xbf16>, vector<288x256xbf16>, vector<16x256xf32> -> vector<16x256xf32>
    %128 = arith.addf %123, %127 : vector<16x256xf32>
    %129 = vector.extract_strided_slice %112 {offsets = [48, 0], sizes = [16, 288], strides = [1, 1]} : vector<144x288xbf16> to vector<16x288xbf16>
    %c3_93 = arith.constant 3 : index
    %c0_94 = arith.constant 0 : index
    %c0_95 = arith.constant 0 : index
    %130 = vector.load %arg6[%c3_93, %c0_94, %c0_95] : memref<9x288x256xbf16, #tpu.memory_space<vmem>>, vector<1x288x256xbf16>
    %131 = vector.shape_cast %130 : vector<1x288x256xbf16> to vector<288x256xbf16>
    %cst_96 = arith.constant dense<0.000000e+00> : vector<16x256xf32>
    %132 = tpu.matmul %129, %131, %cst_96 {dimension_numbers = #tpu.dot_dimension_numbers<[1], [0], [0], [1], [0, 0, 1, 1], [], []>} : vector<16x288xbf16>, vector<288x256xbf16>, vector<16x256xf32> -> vector<16x256xf32>
    %133 = arith.addf %128, %132 : vector<16x256xf32>
    %134 = vector.extract_strided_slice %112 {offsets = [64, 0], sizes = [16, 288], strides = [1, 1]} : vector<144x288xbf16> to vector<16x288xbf16>
    %c4_97 = arith.constant 4 : index
    %c0_98 = arith.constant 0 : index
    %c0_99 = arith.constant 0 : index
    %135 = vector.load %arg6[%c4_97, %c0_98, %c0_99] : memref<9x288x256xbf16, #tpu.memory_space<vmem>>, vector<1x288x256xbf16>
    %136 = vector.shape_cast %135 : vector<1x288x256xbf16> to vector<288x256xbf16>
    %cst_100 = arith.constant dense<0.000000e+00> : vector<16x256xf32>
    %137 = tpu.matmul %134, %136, %cst_100 {dimension_numbers = #tpu.dot_dimension_numbers<[1], [0], [0], [1], [0, 0, 1, 1], [], []>} : vector<16x288xbf16>, vector<288x256xbf16>, vector<16x256xf32> -> vector<16x256xf32>
    %138 = arith.addf %133, %137 : vector<16x256xf32>
    %139 = vector.extract_strided_slice %112 {offsets = [80, 0], sizes = [16, 288], strides = [1, 1]} : vector<144x288xbf16> to vector<16x288xbf16>
    %c5 = arith.constant 5 : index
    %c0_101 = arith.constant 0 : index
    %c0_102 = arith.constant 0 : index
    %140 = vector.load %arg6[%c5, %c0_101, %c0_102] : memref<9x288x256xbf16, #tpu.memory_space<vmem>>, vector<1x288x256xbf16>
    %141 = vector.shape_cast %140 : vector<1x288x256xbf16> to vector<288x256xbf16>
    %cst_103 = arith.constant dense<0.000000e+00> : vector<16x256xf32>
    %142 = tpu.matmul %139, %141, %cst_103 {dimension_numbers = #tpu.dot_dimension_numbers<[1], [0], [0], [1], [0, 0, 1, 1], [], []>} : vector<16x288xbf16>, vector<288x256xbf16>, vector<16x256xf32> -> vector<16x256xf32>
    %143 = arith.addf %138, %142 : vector<16x256xf32>
    %144 = vector.extract_strided_slice %112 {offsets = [96, 0], sizes = [16, 288], strides = [1, 1]} : vector<144x288xbf16> to vector<16x288xbf16>
    %c6 = arith.constant 6 : index
    %c0_104 = arith.constant 0 : index
    %c0_105 = arith.constant 0 : index
    %145 = vector.load %arg6[%c6, %c0_104, %c0_105] : memref<9x288x256xbf16, #tpu.memory_space<vmem>>, vector<1x288x256xbf16>
    %146 = vector.shape_cast %145 : vector<1x288x256xbf16> to vector<288x256xbf16>
    %cst_106 = arith.constant dense<0.000000e+00> : vector<16x256xf32>
    %147 = tpu.matmul %144, %146, %cst_106 {dimension_numbers = #tpu.dot_dimension_numbers<[1], [0], [0], [1], [0, 0, 1, 1], [], []>} : vector<16x288xbf16>, vector<288x256xbf16>, vector<16x256xf32> -> vector<16x256xf32>
    %148 = arith.addf %143, %147 : vector<16x256xf32>
    %149 = vector.extract_strided_slice %112 {offsets = [112, 0], sizes = [16, 288], strides = [1, 1]} : vector<144x288xbf16> to vector<16x288xbf16>
    %c7 = arith.constant 7 : index
    %c0_107 = arith.constant 0 : index
    %c0_108 = arith.constant 0 : index
    %150 = vector.load %arg6[%c7, %c0_107, %c0_108] : memref<9x288x256xbf16, #tpu.memory_space<vmem>>, vector<1x288x256xbf16>
    %151 = vector.shape_cast %150 : vector<1x288x256xbf16> to vector<288x256xbf16>
    %cst_109 = arith.constant dense<0.000000e+00> : vector<16x256xf32>
    %152 = tpu.matmul %149, %151, %cst_109 {dimension_numbers = #tpu.dot_dimension_numbers<[1], [0], [0], [1], [0, 0, 1, 1], [], []>} : vector<16x288xbf16>, vector<288x256xbf16>, vector<16x256xf32> -> vector<16x256xf32>
    %153 = arith.addf %148, %152 : vector<16x256xf32>
    %154 = vector.extract_strided_slice %112 {offsets = [128, 0], sizes = [16, 288], strides = [1, 1]} : vector<144x288xbf16> to vector<16x288xbf16>
    %c8 = arith.constant 8 : index
    %c0_110 = arith.constant 0 : index
    %c0_111 = arith.constant 0 : index
    %155 = vector.load %arg6[%c8, %c0_110, %c0_111] : memref<9x288x256xbf16, #tpu.memory_space<vmem>>, vector<1x288x256xbf16>
    %156 = vector.shape_cast %155 : vector<1x288x256xbf16> to vector<288x256xbf16>
    %cst_112 = arith.constant dense<0.000000e+00> : vector<16x256xf32>
    %157 = tpu.matmul %154, %156, %cst_112 {dimension_numbers = #tpu.dot_dimension_numbers<[1], [0], [0], [1], [0, 0, 1, 1], [], []>} : vector<16x288xbf16>, vector<288x256xbf16>, vector<16x256xf32> -> vector<16x256xf32>
    %158 = arith.addf %153, %157 : vector<16x256xf32>
    %c0_113 = arith.constant 0 : index
    %c0_114 = arith.constant 0 : index
    %159 = vector.load %arg7[%c0_113, %c0_114] : memref<1x256xf32, #tpu.memory_space<vmem>>, vector<1x256xf32>
    %160 = vector.broadcast %159 : vector<1x256xf32> to vector<16x256xf32>
    %161 = arith.addf %158, %160 : vector<16x256xf32>
    %cst_115 = arith.constant 0.000000e+00 : f32
    %162 = vector.broadcast %cst_115 : f32 to vector<16x256xf32>
    %163 = arith.maximumf %161, %162 : vector<16x256xf32>
    %164 = arith.truncf %163 : vector<16x256xf32> to vector<16x256xbf16>
    %c0_116 = arith.constant 0 : index
    %c0_117 = arith.constant 0 : index
    %165 = vector.load %arg8[%c0_116, %c0_117] : memref<256x128xbf16, #tpu.memory_space<vmem>>, vector<256x128xbf16>
    %cst_118 = arith.constant dense<0.000000e+00> : vector<16x128xf32>
    %166 = tpu.matmul %164, %165, %cst_118 {dimension_numbers = #tpu.dot_dimension_numbers<[1], [0], [0], [1], [0, 0, 1, 1], [], []>} : vector<16x256xbf16>, vector<256x128xbf16>, vector<16x128xf32> -> vector<16x128xf32>
    %c0_119 = arith.constant 0 : index
    %c0_120 = arith.constant 0 : index
    %167 = vector.load %arg9[%c0_119, %c0_120] : memref<1x128xf32, #tpu.memory_space<vmem>>, vector<1x128xf32>
    %168 = vector.broadcast %167 : vector<1x128xf32> to vector<16x128xf32>
    %169 = arith.addf %166, %168 : vector<16x128xf32>
    %c0_121 = arith.constant 0 : index
    %c0_122 = arith.constant 0 : index
    %170 = vector.load %arg10[%c0_121, %c0_122] : memref<16x128xf32, #tpu.memory_space<vmem>>, vector<16x128xf32>
    tpu.vector_store %arg10[%c0_121, %c0_122], %169 {strides = array<i32>} : memref<16x128xf32, #tpu.memory_space<vmem>>, vector<16x128xf32>,
    return
  }
  func.func @transform_0(%arg0: i32) -> (i32, i32) {
    %c0_i32 = arith.constant 0 : i32
    %c0_i32_0 = arith.constant 0 : i32
    return %arg0, %c0_i32 : i32, i32
  }
  func.func @transform_1(%arg0: i32) -> (i32, i32, i32) {
    %c0_i32 = arith.constant 0 : i32
    %c0_i32_0 = arith.constant 0 : i32
    %c0_i32_1 = arith.constant 0 : i32
    %c0_i32_2 = arith.constant 0 : i32
    return %c0_i32, %c0_i32_0, %c0_i32_1 : i32, i32, i32
  }
  func.func @transform_2(%arg0: i32) -> (i32, i32) {
    %c0_i32 = arith.constant 0 : i32
    %c0_i32_0 = arith.constant 0 : i32
    %c0_i32_1 = arith.constant 0 : i32
    return %c0_i32, %c0_i32_0 : i32, i32
  }
  func.func @transform_3(%arg0: i32) -> (i32, i32, i32) {
    %c0_i32 = arith.constant 0 : i32
    %c0_i32_0 = arith.constant 0 : i32
    %c0_i32_1 = arith.constant 0 : i32
    %c0_i32_2 = arith.constant 0 : i32
    return %c0_i32, %c0_i32_0, %c0_i32_1 : i32, i32, i32
  }
  func.func @transform_4(%arg0: i32) -> (i32, i32) {
    %c0_i32 = arith.constant 0 : i32
    %c0_i32_0 = arith.constant 0 : i32
    %c0_i32_1 = arith.constant 0 : i32
    return %c0_i32, %c0_i32_0 : i32, i32
  }
  func.func @transform_5(%arg0: i32) -> (i32, i32, i32) {
    %c0_i32 = arith.constant 0 : i32
    %c0_i32_0 = arith.constant 0 : i32
    %c0_i32_1 = arith.constant 0 : i32
    %c0_i32_2 = arith.constant 0 : i32
    return %c0_i32, %c0_i32_0, %c0_i32_1 : i32, i32, i32
  }
  func.func @transform_6(%arg0: i32) -> (i32, i32) {
    %c0_i32 = arith.constant 0 : i32
    %c0_i32_0 = arith.constant 0 : i32
    %c0_i32_1 = arith.constant 0 : i32
    return %c0_i32, %c0_i32_0 : i32, i32
  }
  func.func @transform_7(%arg0: i32) -> (i32, i32) {
    %c0_i32 = arith.constant 0 : i32
    %c0_i32_0 = arith.constant 0 : i32
    %c0_i32_1 = arith.constant 0 : i32
    return %c0_i32, %c0_i32_0 : i32, i32
  }
  func.func @transform_8(%arg0: i32) -> (i32, i32) {
    %c0_i32 = arith.constant 0 : i32
    %c0_i32_0 = arith.constant 0 : i32
    %c0_i32_1 = arith.constant 0 : i32
    return %c0_i32, %c0_i32_0 : i32, i32
  }
  func.func @transform_9(%arg0: i32) -> (i32, i32) {
    %c0_i32 = arith.constant 0 : i32
    %c0_i32_0 = arith.constant 0 : i32
    return %arg0, %c0_i32 : i32, i32
  }
}

</mosaic_0001>

<llo_original>
// kernel: dqn_forward.1
$region0: #{dqn_forward.1}
  #allocation0 [shape = 'u32[]', space=smem, size = 0x4, offset = 0x4, fixed_abs, tag = 'smem constant byte address 0x4 - core index']
  #allocation1 [shape = 'u32[144,128]{1,0:T(1,128)}', space=vmem, size = 0x12000, scoped, tag = 'internal scratch']
  %s0 = inlined_call_operand.vmem [shape: bf16[176,2816], index: 0, kind: input, shape index: {}]
  %s1 = inlined_call_operand.vmem [shape: bf16[2,768,128], index: 1, kind: input, shape index: {}]
  %s2 = inlined_call_operand.vmem [shape: f32[1,128], index: 2, kind: input, shape index: {}]
  %s3 = inlined_call_operand.vmem [shape: bf16[5,256,288], index: 3, kind: input, shape index: {}]
  %s4 = inlined_call_operand.vmem [shape: f32[1,288], index: 4, kind: input, shape index: {}]
  %s5 = inlined_call_operand.vmem [shape: bf16[9,288,256], index: 5, kind: input, shape index: {}]
  %s6 = inlined_call_operand.vmem [shape: f32[1,256], index: 6, kind: input, shape index: {}]
  %s7 = inlined_call_operand.vmem [shape: bf16[256,128], index: 7, kind: input, shape index: {}]
  %s8 = inlined_call_operand.vmem [shape: f32[1,128], index: 8, kind: input, shape index: {}]
  %s9 = inlined_call_operand.vmem [shape: f32[16,128], index: 9, kind: output, shape index: {}]
  %s10 = sld [smem:[#allocation0]]
  $region46: #{dqn_forward.1} parent=0
    _
  %s12 = ssub.s32 1, %s10
  %s13 = scalar_select 0, %s12, %s10
  // Predicated region
  $region2: #{dqn_forward.1} parent=0 // pred_check
    _
  $region3: #{dqn_forward.1} parent=0 // pred_check_branch
    %15 = sbr.rel (0) target = $region5
  $region4: #{dqn_forward.1} parent=0 // pred_region
    _
  $region5: #{dqn_forward.1} parent=0 // pred_fallthru
    _
  // Predicated region
  $region6: #{dqn_forward.1} parent=0 // pred_check
    _
  $region7: #{dqn_forward.1} parent=0 // pred_check_branch
    %17 = sbr.rel (0) target = $region9
  $region8: #{dqn_forward.1} parent=0 // pred_region
    _
  $region9: #{dqn_forward.1} parent=0 // pred_fallthru
    _
  // Predicated region
  $region10: #{dqn_forward.1} parent=0 // pred_check
    _
  $region11: #{dqn_forward.1} parent=0 // pred_check_branch
    %19 = sbr.rel (0) target = $region13
  $region12: #{dqn_forward.1} parent=0 // pred_region
    _
  $region13: #{dqn_forward.1} parent=0 // pred_fallthru
    _
  // Predicated region
  $region14: #{dqn_forward.1} parent=0 // pred_check
    _
  $region15: #{dqn_forward.1} parent=0 // pred_check_branch
    %21 = sbr.rel (0) target = $region17
  $region16: #{dqn_forward.1} parent=0 // pred_region
    _
  $region17: #{dqn_forward.1} parent=0 // pred_fallthru
    _
  // Predicated region
  $region18: #{dqn_forward.1} parent=0 // pred_check
    _
  $region19: #{dqn_forward.1} parent=0 // pred_check_branch
    %23 = sbr.rel (0) target = $region21
  $region20: #{dqn_forward.1} parent=0 // pred_region
    _
  $region21: #{dqn_forward.1} parent=0 // pred_fallthru
    _
  // Predicated region
  $region22: #{dqn_forward.1} parent=0 // pred_check
    _
  $region23: #{dqn_forward.1} parent=0 // pred_check_branch
    %25 = sbr.rel (0) target = $region25
  $region24: #{dqn_forward.1} parent=0 // pred_region
    _
  $region25: #{dqn_forward.1} parent=0 // pred_fallthru
    _
  // Predicated region
  $region26: #{dqn_forward.1} parent=0 // pred_check
    _
  $region27: #{dqn_forward.1} parent=0 // pred_check_branch
    %27 = sbr.rel (0) target = $region29
  $region28: #{dqn_forward.1} parent=0 // pred_region
    _
  $region29: #{dqn_forward.1} parent=0 // pred_fallthru
    _
  // Predicated region
  $region30: #{dqn_forward.1} parent=0 // pred_check
    _
  $region31: #{dqn_forward.1} parent=0 // pred_check_branch
    %29 = sbr.rel (0) target = $region33
  $region32: #{dqn_forward.1} parent=0 // pred_region
    _
  $region33: #{dqn_forward.1} parent=0 // pred_fallthru
    _
  // Predicated region
  $region34: #{dqn_forward.1} parent=0 // pred_check
    _
  $region35: #{dqn_forward.1} parent=0 // pred_check_branch
    %31 = sbr.rel (0) target = $region37
  $region36: #{dqn_forward.1} parent=0 // pred_region
    _
  $region37: #{dqn_forward.1} parent=0 // pred_fallthru
    _
  %v33 = vld [vmem:[%s2] sm:$0x1]
  %v34 = vld [vmem:[%s0] sm:$0xff]
  %v35 = vld [vmem:[%s0 + $0x8] sm:$0xff]
  %v36 = vld [vmem:[%s0 + $0x10] sm:$0xff]
  %v37 = vld [vmem:[%s0 + $0x58] sm:$0xff]
  %v38 = vld [vmem:[%s0 + $0x60] sm:$0xff]
  %v39 = vld [vmem:[%s0 + $0x68] sm:$0xff]
  %v40 = vld [vmem:[%s0 + $0xb0] sm:$0xff]
  %v41 = vld [vmem:[%s0 + $0xb8] sm:$0xff]
  %v42 = vld [vmem:[%s0 + $0xc0] sm:$0xff]
  %v43 = vld [vmem:[%s0 + $0x108] sm:$0xff]
  %v44 = vld [vmem:[%s0 + $0x110] sm:$0xff]
  %v45 = vld [vmem:[%s0 + $0x118] sm:$0xff]
  %v46 = vld [vmem:[%s0 + $0x160] sm:$0xff]
  %v47 = vld [vmem:[%s0 + $0x168] sm:$0xff]
  %v48 = vld [vmem:[%s0 + $0x170] sm:$0xff]
  %v49 = vld [vmem:[%s0 + $0x1b8] sm:$0xff]
  %v50 = vld [vmem:[%s0 + $0x1c0] sm:$0xff]
  %v51 = vld [vmem:[%s0 + $0x1c8] sm:$0xff]
  %v52 = vld [vmem:[%s0 + $0x210] sm:$0xff]
  %v53 = vld [vmem:[%s0 + $0x218] sm:$0xff]
  %v54 = vld [vmem:[%s0 + $0x220] sm:$0xff]
  %v55 = vld [vmem:[%s0 + $0x268] sm:$0xff]
  %v56 = vld [vmem:[%s0 + $0x270] sm:$0xff]
  %v57 = vld [vmem:[%s0 + $0x278] sm:$0xff]
  %v58 = vld [vmem:[%s0 + $0x2c0] sm:$0xff]
  %v59 = vld [vmem:[%s0 + $0x2c8] sm:$0xff]
  %v60 = vld [vmem:[%s0 + $0x2d0] sm:$0xff]
  %v61 = vld [vmem:[%s0 + $0x318] sm:$0xff]
  %v62 = vld [vmem:[%s0 + $0x320] sm:$0xff]
  %v63 = vld [vmem:[%s0 + $0x328] sm:$0xff]
  %v64 = vld [vmem:[%s0 + $0x370] sm:$0xff]
  %v65 = vld [vmem:[%s0 + $0x378] sm:$0xff]
  %v66 = vld [vmem:[%s0 + $0x380] sm:$0xff]
  %v67 = vld [vmem:[%s0 + $0x3c8] sm:$0xff]
  %v68 = vld [vmem:[%s0 + $0x3d0] sm:$0xff]
  %v69 = vld [vmem:[%s0 + $0x3d8] sm:$0xff]
  %v70 = vld [vmem:[%s0 + $0x420] sm:$0xff]
  %v71 = vld [vmem:[%s0 + $0x428] sm:$0xff]
  %v72 = vld [vmem:[%s0 + $0x430] sm:$0xff]
  %v73 = vld [vmem:[%s0 + $0x478] sm:$0xff]
  %v74 = vld [vmem:[%s0 + $0x480] sm:$0xff]
  %v75 = vld [vmem:[%s0 + $0x488] sm:$0xff]
  %v76 = vld [vmem:[%s0 + $0x4d0] sm:$0xff]
  %v77 = vld [vmem:[%s0 + $0x4d8] sm:$0xff]
  %v78 = vld [vmem:[%s0 + $0x4e0] sm:$0xff]
  %v79 = vld [vmem:[%s0 + $0x528] sm:$0xff]
  %v80 = vld [vmem:[%s0 + $0x530] sm:$0xff]
  %v81 = vld [vmem:[%s0 + $0x538] sm:$0xff]
  %v82 = vld [vmem:[%s0 + $0x580] sm:$0xff]
  %v83 = vld [vmem:[%s0 + $0x588] sm:$0xff]
  %v84 = vld [vmem:[%s0 + $0x590] sm:$0xff]
  %v85 = vld [vmem:[%s0 + $0x5d8] sm:$0xff]
  %v86 = vld [vmem:[%s0 + $0x5e0] sm:$0xff]
  %v87 = vld [vmem:[%s0 + $0x5e8] sm:$0xff]
  %v88 = vld [vmem:[%s0 + $0x630] sm:$0xff]
  %v89 = vld [vmem:[%s0 + $0x638] sm:$0xff]
  %v90 = vld [vmem:[%s0 + $0x640] sm:$0xff]
  %v91 = vld [vmem:[%s0 + $0x688] sm:$0xff]
  %v92 = vld [vmem:[%s0 + $0x690] sm:$0xff]
  %v93 = vld [vmem:[%s0 + $0x698] sm:$0xff]
  %v94 = vld [vmem:[%s1] sm:$0xf]
  %v95 = vld [vmem:[%s1 + $0x4] sm:$0xf]
  %v96 = vld [vmem:[%s1 + $0x8] sm:$0xf]
  %v97 = vld [vmem:[%s1 + $0xc] sm:$0xf]
  %v98 = vld [vmem:[%s1 + $0x10] sm:$0xf]
  %v99 = vld [vmem:[%s1 + $0x14] sm:$0xf]
  %v100 = vld [vmem:[%s1 + $0x18] sm:$0xf]
  %v101 = vld [vmem:[%s1 + $0x1c] sm:$0xf]
  %v102 = vld [vmem:[%s1 + $0x20] sm:$0xf]
  %v103 = vld [vmem:[%s1 + $0x24] sm:$0xf]
  %v104 = vld [vmem:[%s1 + $0x28] sm:$0xf]
  %v105 = vld [vmem:[%s1 + $0x2c] sm:$0xf]
  %v106 = vld [vmem:[%s1 + $0x30] sm:$0xf]
  %v107 = vld [vmem:[%s1 + $0x34] sm:$0xf]
  %v108 = vld [vmem:[%s1 + $0x38] sm:$0xf]
  %v109 = vld [vmem:[%s1 + $0x3c] sm:$0xf]
  %v110 = vld [vmem:[%s1 + $0x40] sm:$0xf]
  %v111 = vld [vmem:[%s1 + $0x44] sm:$0xf]
  %v112 = vld [vmem:[%s1 + $0x48] sm:$0xf]
  %v113 = vld [vmem:[%s1 + $0x4c] sm:$0xf]
  %v114 = vld [vmem:[%s1 + $0x50] sm:$0xf]
  %v115 = vld [vmem:[%s1 + $0x54] sm:$0xf]
  %v116 = vld [vmem:[%s1 + $0x58] sm:$0xf]
  %v117 = vld [vmem:[%s1 + $0x5c] sm:$0xf]
  %v118 = vld [vmem:[%s1 + $0x60] sm:$0xf]
  %v119 = vld [vmem:[%s1 + $0x64] sm:$0xf]
  %v120 = vld [vmem:[%s1 + $0x68] sm:$0xf]
  %v121 = vld [vmem:[%s1 + $0x6c] sm:$0xf]
  %v122 = vld [vmem:[%s1 + $0x70] sm:$0xf]
  %v123 = vld [vmem:[%s1 + $0x74] sm:$0xf]
  %v124 = vld [vmem:[%s1 + $0x78] sm:$0xf]
  %v125 = vld [vmem:[%s1 + $0x7c] sm:$0xf]
  %v126 = vld [vmem:[%s1 + $0x80] sm:$0xf]
  %v127 = vld [vmem:[%s1 + $0x84] sm:$0xf]
  %v128 = vld [vmem:[%s1 + $0x88] sm:$0xf]
  %v129 = vld [vmem:[%s1 + $0x8c] sm:$0xf]
  %v130 = vld [vmem:[%s1 + $0x90] sm:$0xf]
  %v131 = vld [vmem:[%s1 + $0x94] sm:$0xf]
  %v132 = vld [vmem:[%s1 + $0x98] sm:$0xf]
  %v133 = vld [vmem:[%s1 + $0x9c] sm:$0xf]
  %v134 = vld [vmem:[%s1 + $0xa0] sm:$0xf]
  %v135 = vld [vmem:[%s1 + $0xa4] sm:$0xf]
  %v136 = vld [vmem:[%s1 + $0xa8] sm:$0xf]
  %v137 = vld [vmem:[%s1 + $0xac] sm:$0xf]
  %v138 = vld [vmem:[%s1 + $0xb0] sm:$0xf]
  %v139 = vld [vmem:[%s1 + $0xb4] sm:$0xf]
  %v140 = vld [vmem:[%s1 + $0xb8] sm:$0xf]
  %v141 = vld [vmem:[%s1 + $0xbc] sm:$0xf]
  %v142 = vld [vmem:[%s1 + $0xc0] sm:$0xf]
  %v143 = vld [vmem:[%s1 + $0xc4] sm:$0xf]
  %v144 = vld [vmem:[%s1 + $0xc8] sm:$0xf]
  %v145 = vld [vmem:[%s1 + $0xcc] sm:$0xf]
  %v146 = vld [vmem:[%s1 + $0xd0] sm:$0xf]
  %v147 = vld [vmem:[%s1 + $0xd4] sm:$0xf]
  %v148 = vld [vmem:[%s1 + $0xd8] sm:$0xf]
  %v149 = vld [vmem:[%s1 + $0xdc] sm:$0xf]
  %v150 = vld [vmem:[%s1 + $0xe0] sm:$0xf]
  %v151 = vld [vmem:[%s1 + $0xe4] sm:$0xf]
  %v152 = vld [vmem:[%s1 + $0xe8] sm:$0xf]
  %v153 = vld [vmem:[%s1 + $0xec] sm:$0xf]
  %v154 = vld [vmem:[%s1 + $0xf0] sm:$0xf]
  %v155 = vld [vmem:[%s1 + $0xf4] sm:$0xf]
  %v156 = vld [vmem:[%s1 + $0xf8] sm:$0xf]
  %v157 = vld [vmem:[%s1 + $0xfc] sm:$0xf]
  %v158 = vld [vmem:[%s1 + $0x100] sm:$0xf]
  %v159 = vld [vmem:[%s1 + $0x104] sm:$0xf]
  %v160 = vld [vmem:[%s1 + $0x108] sm:$0xf]
  %v161 = vld [vmem:[%s1 + $0x10c] sm:$0xf]
  %v162 = vld [vmem:[%s1 + $0x110] sm:$0xf]
  %v163 = vld [vmem:[%s1 + $0x114] sm:$0xf]
  %v164 = vld [vmem:[%s1 + $0x118] sm:$0xf]
  %v165 = vld [vmem:[%s1 + $0x11c] sm:$0xf]
  %v166 = vld [vmem:[%s1 + $0x120] sm:$0xf]
  %v167 = vld [vmem:[%s1 + $0x124] sm:$0xf]
  %v168 = vld [vmem:[%s1 + $0x128] sm:$0xf]
  %v169 = vld [vmem:[%s1 + $0x12c] sm:$0xf]
  %v170 = vld [vmem:[%s1 + $0x130] sm:$0xf]
  %v171 = vld [vmem:[%s1 + $0x134] sm:$0xf]
  %v172 = vld [vmem:[%s1 + $0x138] sm:$0xf]
  %v173 = vld [vmem:[%s1 + $0x13c] sm:$0xf]
  %v174 = vld [vmem:[%s1 + $0x140] sm:$0xf]
  %v175 = vld [vmem:[%s1 + $0x144] sm:$0xf]
  %v176 = vld [vmem:[%s1 + $0x148] sm:$0xf]
  %v177 = vld [vmem:[%s1 + $0x14c] sm:$0xf]
  %v178 = vld [vmem:[%s1 + $0x150] sm:$0xf]
  %v179 = vld [vmem:[%s1 + $0x154] sm:$0xf]
  %v180 = vld [vmem:[%s1 + $0x158] sm:$0xf]
  %v181 = vld [vmem:[%s1 + $0x15c] sm:$0xf]
  %v182 = vld [vmem:[%s1 + $0x160] sm:$0xf]
  %v183 = vld [vmem:[%s1 + $0x164] sm:$0xf]
  %v184 = vld [vmem:[%s1 + $0x168] sm:$0xf]
  %v185 = vld [vmem:[%s1 + $0x16c] sm:$0xf]
  %v186 = vld [vmem:[%s1 + $0x170] sm:$0xf]
  %v187 = vld [vmem:[%s1 + $0x174] sm:$0xf]
  %v188 = vld [vmem:[%s1 + $0x178] sm:$0xf]
  %v189 = vld [vmem:[%s1 + $0x17c] sm:$0xf]
  %v190 = vld [vmem:[%s0 + $0x6e0] sm:$0xff]
  %v191 = vld [vmem:[%s0 + $0x6e8] sm:$0xff]
  %v192 = vld [vmem:[%s0 + $0x6f0] sm:$0xff]
  %v193 = vld [vmem:[%s0 + $0x738] sm:$0xff]
  %v194 = vld [vmem:[%s0 + $0x740] sm:$0xff]
  %v195 = vld [vmem:[%s0 + $0x748] sm:$0xff]
  %s196 = scalar_lea.vmem %s1, 384
  %v197 = vld [vmem:[%s196] sm:$0xf]
  %v198 = vld [vmem:[%s196 + $0x4] sm:$0xf]
  %v199 = vld [vmem:[%s196 + $0x8] sm:$0xf]
  %v200 = vld [vmem:[%s196 + $0xc] sm:$0xf]
  %v201 = vld [vmem:[%s196 + $0x10] sm:$0xf]
  %v202 = vld [vmem:[%s196 + $0x14] sm:$0xf]
  %v203 = vld [vmem:[%s196 + $0x18] sm:$0xf]
  %v204 = vld [vmem:[%s196 + $0x1c] sm:$0xf]
  %v205 = vld [vmem:[%s196 + $0x20] sm:$0xf]
  %v206 = vld [vmem:[%s196 + $0x24] sm:$0xf]
  %v207 = vld [vmem:[%s196 + $0x28] sm:$0xf]
  %v208 = vld [vmem:[%s196 + $0x2c] sm:$0xf]
  %v209 = vld [vmem:[%s196 + $0x30] sm:$0xf]
  %v210 = vld [vmem:[%s196 + $0x34] sm:$0xf]
  %v211 = vld [vmem:[%s196 + $0x38] sm:$0xf]
  %v212 = vld [vmem:[%s196 + $0x3c] sm:$0xf]
  %v213 = vld [vmem:[%s196 + $0x40] sm:$0xf]
  %v214 = vld [vmem:[%s196 + $0x44] sm:$0xf]
  %v215 = vld [vmem:[%s196 + $0x48] sm:$0xf]
  %v216 = vld [vmem:[%s196 + $0x4c] sm:$0xf]
  %v217 = vld [vmem:[%s196 + $0x50] sm:$0xf]
  %v218 = vld [vmem:[%s196 + $0x54] sm:$0xf]
  %v219 = vld [vmem:[%s196 + $0x58] sm:$0xf]
  %v220 = vld [vmem:[%s196 + $0x5c] sm:$0xf]
  %v221 = vld [vmem:[%s196 + $0x60] sm:$0xf]
  %v222 = vld [vmem:[%s196 + $0x64] sm:$0xf]
  %v223 = vld [vmem:[%s196 + $0x68] sm:$0xf]
  %v224 = vld [vmem:[%s196 + $0x6c] sm:$0xf]
  %v225 = vld [vmem:[%s196 + $0x70] sm:$0xf]
  %v226 = vld [vmem:[%s196 + $0x74] sm:$0xf]
  %v227 = vld [vmem:[%s196 + $0x78] sm:$0xf]
  %v228 = vld [vmem:[%s196 + $0x7c] sm:$0xf]
  %v229 = vld [vmem:[%s196 + $0x80] sm:$0xf]
  %v230 = vld [vmem:[%s196 + $0x84] sm:$0xf]
  %v231 = vld [vmem:[%s196 + $0x88] sm:$0xf]
  %v232 = vld [vmem:[%s196 + $0x8c] sm:$0xf]
  %v233 = vld [vmem:[%s196 + $0x90] sm:$0xf]
  %v234 = vld [vmem:[%s196 + $0x94] sm:$0xf]
  %v235 = vld [vmem:[%s196 + $0x98] sm:$0xf]
  %v236 = vld [vmem:[%s196 + $0x9c] sm:$0xf]
  %v237 = vld [vmem:[%s196 + $0xa0] sm:$0xf]
  %v238 = vld [vmem:[%s196 + $0xa4] sm:$0xf]
  %v239 = vld [vmem:[%s196 + $0xa8] sm:$0xf]
  %v240 = vld [vmem:[%s196 + $0xac] sm:$0xf]
  %v241 = vld [vmem:[%s196 + $0xb0] sm:$0xf]
  %v242 = vld [vmem:[%s196 + $0xb4] sm:$0xf]
  %v243 = vld [vmem:[%s196 + $0xb8] sm:$0xf]
  %v244 = vld [vmem:[%s196 + $0xbc] sm:$0xf]
  %v245 = vld [vmem:[%s196 + $0xc0] sm:$0xf]
  %v246 = vld [vmem:[%s196 + $0xc4] sm:$0xf]
  %v247 = vld [vmem:[%s196 + $0xc8] sm:$0xf]
  %v248 = vld [vmem:[%s196 + $0xcc] sm:$0xf]
  %v249 = vld [vmem:[%s196 + $0xd0] sm:$0xf]
  %v250 = vld [vmem:[%s196 + $0xd4] sm:$0xf]
  %v251 = vld [vmem:[%s196 + $0xd8] sm:$0xf]
  %v252 = vld [vmem:[%s196 + $0xdc] sm:$0xf]
  %v253 = vld [vmem:[%s196 + $0xe0] sm:$0xf]
  %v254 = vld [vmem:[%s196 + $0xe4] sm:$0xf]
  %v255 = vld [vmem:[%s196 + $0xe8] sm:$0xf]
  %v256 = vld [vmem:[%s196 + $0xec] sm:$0xf]
  %v257 = vld [vmem:[%s196 + $0xf0] sm:$0xf]
  %v258 = vld [vmem:[%s196 + $0xf4] sm:$0xf]
  %v259 = vld [vmem:[%s196 + $0xf8] sm:$0xf]
  %v260 = vld [vmem:[%s196 + $0xfc] sm:$0xf]
  %v261 = vld [vmem:[%s196 + $0x100] sm:$0xf]
  %v262 = vld [vmem:[%s196 + $0x104] sm:$0xf]
  %v263 = vld [vmem:[%s196 + $0x108] sm:$0xf]
  %v264 = vld [vmem:[%s196 + $0x10c] sm:$0xf]
  %v265 = vld [vmem:[%s196 + $0x110] sm:$0xf]
  %v266 = vld [vmem:[%s196 + $0x114] sm:$0xf]
  %v267 = vld [vmem:[%s196 + $0x118] sm:$0xf]
  %v268 = vld [vmem:[%s196 + $0x11c] sm:$0xf]
  %v269 = vld [vmem:[%s196 + $0x120] sm:$0xf]
  %v270 = vld [vmem:[%s196 + $0x124] sm:$0xf]
  %v271 = vld [vmem:[%s196 + $0x128] sm:$0xf]
  %v272 = vld [vmem:[%s196 + $0x12c] sm:$0xf]
  %v273 = vld [vmem:[%s196 + $0x130] sm:$0xf]
  %v274 = vld [vmem:[%s196 + $0x134] sm:$0xf]
  %v275 = vld [vmem:[%s196 + $0x138] sm:$0xf]
  %v276 = vld [vmem:[%s196 + $0x13c] sm:$0xf]
  %v277 = vld [vmem:[%s196 + $0x140] sm:$0xf]
  %v278 = vld [vmem:[%s196 + $0x144] sm:$0xf]
  %v279 = vld [vmem:[%s196 + $0x148] sm:$0xf]
  %v280 = vld [vmem:[%s196 + $0x14c] sm:$0xf]
  %v281 = vld [vmem:[%s196 + $0x150] sm:$0xf]
  %v282 = vld [vmem:[%s196 + $0x154] sm:$0xf]
  %v283 = vld [vmem:[%s196 + $0x158] sm:$0xf]
  %v284 = vld [vmem:[%s196 + $0x15c] sm:$0xf]
  %v285 = vld [vmem:[%s196 + $0x160] sm:$0xf]
  %v286 = vld [vmem:[%s196 + $0x164] sm:$0xf]
  %v287 = vld [vmem:[%s196 + $0x168] sm:$0xf]
  %v288 = vld [vmem:[%s196 + $0x16c] sm:$0xf]
  %v289 = vld [vmem:[%s196 + $0x170] sm:$0xf]
  %v290 = vld [vmem:[%s196 + $0x174] sm:$0xf]
  %v291 = vld [vmem:[%s196 + $0x178] sm:$0xf]
  %v292 = vld [vmem:[%s196 + $0x17c] sm:$0xf]
  %v353 = vunpack.c.l.b16 %v40
  %v354 = vunpack.c.h.b16 %v40
  %v355 = vunpack.c.l.b16 %v41
  %v356 = vunpack.c.h.b16 %v41
  %v357 = vunpack.c.l.b16 %v42
  %v358 = vunpack.c.h.b16 %v42
  %v359 = vunpack.c.l.b16 %v43
  %v360 = vunpack.c.h.b16 %v43
  %v361 = vunpack.c.l.b16 %v44
  %v362 = vunpack.c.h.b16 %v44
  %v363 = vunpack.c.l.b16 %v45
  %v364 = vunpack.c.h.b16 %v45
  %v365 = vunpack.c.l.b16 %v46
  %v366 = vunpack.c.h.b16 %v46
  %v367 = vunpack.c.l.b16 %v47
  %v368 = vunpack.c.h.b16 %v47
  %v369 = vunpack.c.l.b16 %v48
  %v370 = vunpack.c.h.b16 %v48
  %v371 = vunpack.c.l.b16 %v49
  %v372 = vunpack.c.h.b16 %v49
  %v373 = vunpack.c.l.b16 %v50
  %v374 = vunpack.c.h.b16 %v50
  %v375 = vunpack.c.l.b16 %v51
  %v376 = vunpack.c.h.b16 %v51
  %v377 = vunpack.c.l.b16 %v52
  %v378 = vunpack.c.h.b16 %v52
  %v379 = vunpack.c.l.b16 %v53
  %v380 = vunpack.c.h.b16 %v53
  %v381 = vunpack.c.l.b16 %v54
  %v382 = vunpack.c.h.b16 %v54
  %v383 = vunpack.c.l.b16 %v55
  %v384 = vunpack.c.h.b16 %v55
  %v385 = vunpack.c.l.b16 %v56
  %v386 = vunpack.c.h.b16 %v56
  %v387 = vunpack.c.l.b16 %v57
  %v388 = vunpack.c.h.b16 %v57
  %v389 = vunpack.c.l.b16 %v58
  %v390 = vunpack.c.h.b16 %v58
  %v391 = vunpack.c.l.b16 %v59
  %v392 = vunpack.c.h.b16 %v59
  %v393 = vunpack.c.l.b16 %v60
  %v394 = vunpack.c.h.b16 %v60
  %v395 = vunpack.c.l.b16 %v61
  %v396 = vunpack.c.h.b16 %v61
  %v397 = vunpack.c.l.b16 %v62
  %v398 = vunpack.c.h.b16 %v62
  %v399 = vunpack.c.l.b16 %v63
  %v400 = vunpack.c.h.b16 %v63
  %v401 = vunpack.c.l.b16 %v64
  %v402 = vunpack.c.h.b16 %v64
  %v403 = vunpack.c.l.b16 %v65
  %v404 = vunpack.c.h.b16 %v65
  %v405 = vunpack.c.l.b16 %v66
  %v406 = vunpack.c.h.b16 %v66
  %v407 = vunpack.c.l.b16 %v67
  %v408 = vunpack.c.h.b16 %v67
  %v409 = vunpack.c.l.b16 %v68
  %v410 = vunpack.c.h.b16 %v68
  %v411 = vunpack.c.l.b16 %v69
  %v412 = vunpack.c.h.b16 %v69
  %v413 = vunpack.c.l.b16 %v70
  %v414 = vunpack.c.h.b16 %v70
  %v415 = vunpack.c.l.b16 %v71
  %v416 = vunpack.c.h.b16 %v71
  %v417 = vunpack.c.l.b16 %v72
  %v418 = vunpack.c.h.b16 %v72
  %v419 = vunpack.c.l.b16 %v73
  %v420 = vunpack.c.h.b16 %v73
  %v421 = vunpack.c.l.b16 %v74
  %v422 = vunpack.c.h.b16 %v74
  %v423 = vunpack.c.l.b16 %v75
  %v424 = vunpack.c.h.b16 %v75
  %v425 = vunpack.c.l.b16 %v76
  %v426 = vunpack.c.h.b16 %v76
  %v427 = vunpack.c.l.b16 %v77
  %v428 = vunpack.c.h.b16 %v77
  %v429 = vunpack.c.l.b16 %v78
  %v430 = vunpack.c.h.b16 %v78
  %v431 = vunpack.c.l.b16 %v79
  %v432 = vunpack.c.h.b16 %v79
  %v433 = vunpack.c.l.b16 %v80
  %v434 = vunpack.c.h.b16 %v80
  %v435 = vunpack.c.l.b16 %v81
  %v436 = vunpack.c.h.b16 %v81
  %v437 = vunpack.c.l.b16 %v82
  %v438 = vunpack.c.h.b16 %v82
  %v439 = vunpack.c.l.b16 %v83
  %v440 = vunpack.c.h.b16 %v83
  %v441 = vunpack.c.l.b16 %v84
  %v442 = vunpack.c.h.b16 %v84
  %v443 = vunpack.c.l.b16 %v85
  %v444 = vunpack.c.h.b16 %v85
  %v445 = vunpack.c.l.b16 %v86
  %v446 = vunpack.c.h.b16 %v86
  %v447 = vunpack.c.l.b16 %v87
  %v448 = vunpack.c.h.b16 %v87
  %v449 = vunpack.c.l.b16 %v88
  %v450 = vunpack.c.h.b16 %v88
  %v451 = vunpack.c.l.b16 %v89
  %v452 = vunpack.c.h.b16 %v89
  %v453 = vunpack.c.l.b16 %v90
  %v454 = vunpack.c.h.b16 %v90
  %v455 = vunpack.c.l.b16 %v91
  %v456 = vunpack.c.h.b16 %v91
  %v457 = vunpack.c.l.b16 %v92
  %v458 = vunpack.c.h.b16 %v92
  %v459 = vunpack.c.l.b16 %v93
  %v460 = vunpack.c.h.b16 %v93
  %v461 = vunpack.c.l.b16 %v190
  %v462 = vunpack.c.h.b16 %v190
  %v463 = vunpack.c.l.b16 %v191
  %v464 = vunpack.c.h.b16 %v191
  %v465 = vunpack.c.l.b16 %v192
  %v466 = vunpack.c.h.b16 %v192
  %v467 = vunpack.c.l.b16 %v193
  %v468 = vunpack.c.h.b16 %v193
  %v469 = vunpack.c.l.b16 %v194
  %v470 = vunpack.c.h.b16 %v194
  %v471 = vunpack.c.l.b16 %v195
  %v472 = vunpack.c.h.b16 %v195
  %v473 = vpack.c.b16 %v359, %v353
  %v474 = vpack.c.b16 %v360, %v354
  %v475 = vpack.c.b16 %v361, %v355
  %v476 = vpack.c.b16 %v362, %v356
  %v477 = vpack.c.b16 %v363, %v357
  %v478 = vpack.c.b16 %v364, %v358
  %v479 = vpack.c.b16 %v371, %v365
  %v480 = vpack.c.b16 %v372, %v366
  %v481 = vpack.c.b16 %v373, %v367
  %v482 = vpack.c.b16 %v374, %v368
  %v483 = vpack.c.b16 %v375, %v369
  %v484 = vpack.c.b16 %v376, %v370
  %v485 = vpack.c.b16 %v383, %v377
  %v486 = vpack.c.b16 %v384, %v378
  %v487 = vpack.c.b16 %v385, %v379
  %v488 = vpack.c.b16 %v386, %v380
  %v489 = vpack.c.b16 %v387, %v381
  %v490 = vpack.c.b16 %v388, %v382
  %v491 = vpack.c.b16 %v395, %v389
  %v492 = vpack.c.b16 %v396, %v390
  %v493 = vpack.c.b16 %v397, %v391
  %v494 = vpack.c.b16 %v398, %v392
  %v495 = vpack.c.b16 %v399, %v393
  %v496 = vpack.c.b16 %v400, %v394
  %v497 = vpack.c.b16 %v407, %v401
  %v498 = vpack.c.b16 %v408, %v402
  %v499 = vpack.c.b16 %v409, %v403
  %v500 = vpack.c.b16 %v410, %v404
  %v501 = vpack.c.b16 %v411, %v405
  %v502 = vpack.c.b16 %v412, %v406
  %v503 = vpack.c.b16 %v419, %v413
  %v504 = vpack.c.b16 %v420, %v414
  %v505 = vpack.c.b16 %v421, %v415
  %v506 = vpack.c.b16 %v422, %v416
  %v507 = vpack.c.b16 %v423, %v417
  %v508 = vpack.c.b16 %v424, %v418
  %v509 = vpack.c.b16 %v431, %v425
  %v510 = vpack.c.b16 %v432, %v426
  %v511 = vpack.c.b16 %v433, %v427
  %v512 = vpack.c.b16 %v434, %v428
  %v513 = vpack.c.b16 %v435, %v429
  %v514 = vpack.c.b16 %v436, %v430
  %v515 = vpack.c.b16 %v443, %v437
  %v516 = vpack.c.b16 %v444, %v438
  %v517 = vpack.c.b16 %v445, %v439
  %v518 = vpack.c.b16 %v446, %v440
  %v519 = vpack.c.b16 %v447, %v441
  %v520 = vpack.c.b16 %v448, %v442
  %v521 = vpack.c.b16 %v455, %v449
  %v522 = vpack.c.b16 %v456, %v450
  %v523 = vpack.c.b16 %v457, %v451
  %v524 = vpack.c.b16 %v458, %v452
  %v525 = vpack.c.b16 %v459, %v453
  %v526 = vpack.c.b16 %v460, %v454
  %v527 = vpack.c.b16 %v467, %v461
  %v528 = vpack.c.b16 %v468, %v462
  %v529 = vpack.c.b16 %v469, %v463
  %v530 = vpack.c.b16 %v470, %v464
  %v531 = vpack.c.b16 %v471, %v465
  %v532 = vpack.c.b16 %v472, %v466
  %v689 = vunpack.c.l.b16 %v197
  %v690 = vunpack.c.l.b16 %v198
  %v691 = vunpack.c.l.b16 %v199
  %v692 = vunpack.c.l.b16 %v200
  %v693 = vunpack.c.l.b16 %v201
  %v694 = vunpack.c.l.b16 %v202
  %v695 = vunpack.c.l.b16 %v203
  %v696 = vunpack.c.l.b16 %v204
  %v697 = vunpack.c.l.b16 %v205
  %v698 = vunpack.c.l.b16 %v206
  %v699 = vunpack.c.l.b16 %v207
  %v700 = vunpack.c.l.b16 %v208
  %v701 = vunpack.c.l.b16 %v209
  %v702 = vunpack.c.l.b16 %v210
  %v703 = vunpack.c.l.b16 %v211
  %v704 = vunpack.c.l.b16 %v212
  %v705 = vunpack.c.l.b16 %v213
  %v706 = vunpack.c.l.b16 %v214
  %v707 = vunpack.c.l.b16 %v215
  %v708 = vunpack.c.l.b16 %v216
  %v709 = vunpack.c.l.b16 %v217
  %v710 = vunpack.c.l.b16 %v218
  %v711 = vunpack.c.l.b16 %v219
  %v712 = vunpack.c.l.b16 %v220
  %v713 = vunpack.c.l.b16 %v221
  %v714 = vunpack.c.l.b16 %v222
  %v715 = vunpack.c.l.b16 %v223
  %v716 = vunpack.c.l.b16 %v224
  %v717 = vunpack.c.l.b16 %v225
  %v718 = vunpack.c.l.b16 %v226
  %v719 = vunpack.c.l.b16 %v227
  %v720 = vunpack.c.l.b16 %v228
  %v721 = vunpack.c.l.b16 %v229
  %v722 = vunpack.c.l.b16 %v230
  %v723 = vunpack.c.l.b16 %v231
  %v724 = vunpack.c.l.b16 %v232
  %v725 = vunpack.c.l.b16 %v233
  %v726 = vunpack.c.l.b16 %v234
  %v727 = vunpack.c.l.b16 %v235
  %v728 = vunpack.c.l.b16 %v236
  %v729 = vunpack.c.l.b16 %v237
  %v730 = vunpack.c.l.b16 %v238
  %v731 = vunpack.c.l.b16 %v239
  %v732 = vunpack.c.l.b16 %v240
  %v733 = vunpack.c.l.b16 %v241
  %v734 = vunpack.c.l.b16 %v242
  %v735 = vunpack.c.l.b16 %v243
  %v736 = vunpack.c.l.b16 %v244
  %v737 = vunpack.c.l.b16 %v245
  %v738 = vunpack.c.l.b16 %v246
  %v739 = vunpack.c.l.b16 %v247
  %v740 = vunpack.c.l.b16 %v248
  %v741 = vunpack.c.l.b16 %v249
  %v742 = vunpack.c.l.b16 %v250
  %v743 = vunpack.c.l.b16 %v251
  %v744 = vunpack.c.l.b16 %v252
  %v745 = vunpack.c.l.b16 %v253
  %v746 = vunpack.c.l.b16 %v254
  %v747 = vunpack.c.l.b16 %v255
  %v748 = vunpack.c.l.b16 %v256
  %v749 = vunpack.c.l.b16 %v257
  %v750 = vunpack.c.l.b16 %v258
  %v751 = vunpack.c.l.b16 %v259
  %v752 = vunpack.c.l.b16 %v260
  %v753 = vunpack.c.l.b16 %v261
  %v754 = vunpack.c.l.b16 %v262
  %v755 = vunpack.c.l.b16 %v263
  %v756 = vunpack.c.l.b16 %v264
  %v757 = vunpack.c.l.b16 %v265
  %v758 = vunpack.c.l.b16 %v266
  %v759 = vunpack.c.l.b16 %v267
  %v760 = vunpack.c.l.b16 %v268
  %v761 = vunpack.c.l.b16 %v269
  %v762 = vunpack.c.l.b16 %v270
  %v763 = vunpack.c.l.b16 %v271
  %v764 = vunpack.c.l.b16 %v272
  %v765 = vunpack.c.l.b16 %v273
  %v766 = vunpack.c.l.b16 %v274
  %v767 = vunpack.c.l.b16 %v275
  %v768 = vunpack.c.l.b16 %v276
  %v769 = vunpack.c.l.b16 %v277
  %v770 = vunpack.c.l.b16 %v278
  %v771 = vunpack.c.l.b16 %v279
  %v772 = vunpack.c.l.b16 %v280
  %v773 = vunpack.c.l.b16 %v281
  %v774 = vunpack.c.l.b16 %v282
  %v775 = vunpack.c.l.b16 %v283
  %v776 = vunpack.c.l.b16 %v284
  %v777 = vunpack.c.l.b16 %v285
  %v778 = vunpack.c.l.b16 %v286
  %v779 = vunpack.c.l.b16 %v287
  %v780 = vunpack.c.l.b16 %v288
  %v781 = vunpack.c.l.b16 %v289
  %v782 = vunpack.c.l.b16 %v290
  %v783 = vunpack.c.l.b16 %v291
  %v784 = vunpack.c.l.b16 %v292
  %v785 = vpack.c.b16 %v690, %v689
  %v786 = vpack.c.b16 %v692, %v691
  %v787 = vpack.c.b16 %v694, %v693
  %v788 = vpack.c.b16 %v696, %v695
  %v789 = vpack.c.b16 %v698, %v697
  %v790 = vpack.c.b16 %v700, %v699
  %v791 = vpack.c.b16 %v702, %v701
  %v792 = vpack.c.b16 %v704, %v703
  %v793 = vpack.c.b16 %v706, %v705
  %v794 = vpack.c.b16 %v708, %v707
  %v795 = vpack.c.b16 %v710, %v709
  %v796 = vpack.c.b16 %v712, %v711
  %v797 = vpack.c.b16 %v714, %v713
  %v798 = vpack.c.b16 %v716, %v715
  %v799 = vpack.c.b16 %v718, %v717
  %v800 = vpack.c.b16 %v720, %v719
  %v801 = vpack.c.b16 %v722, %v721
  %v802 = vpack.c.b16 %v724, %v723
  %v803 = vpack.c.b16 %v726, %v725
  %v804 = vpack.c.b16 %v728, %v727
  %v805 = vpack.c.b16 %v730, %v729
  %v806 = vpack.c.b16 %v732, %v731
  %v807 = vpack.c.b16 %v734, %v733
  %v808 = vpack.c.b16 %v736, %v735
  %v809 = vpack.c.b16 %v738, %v737
  %v810 = vpack.c.b16 %v740, %v739
  %v811 = vpack.c.b16 %v742, %v741
  %v812 = vpack.c.b16 %v744, %v743
  %v813 = vpack.c.b16 %v746, %v745
  %v814 = vpack.c.b16 %v748, %v747
  %v815 = vpack.c.b16 %v750, %v749
  %v816 = vpack.c.b16 %v752, %v751
  %v817 = vpack.c.b16 %v754, %v753
  %v818 = vpack.c.b16 %v756, %v755
  %v819 = vpack.c.b16 %v758, %v757
  %v820 = vpack.c.b16 %v760, %v759
  %v821 = vpack.c.b16 %v762, %v761
  %v822 = vpack.c.b16 %v764, %v763
  %v823 = vpack.c.b16 %v766, %v765
  %v824 = vpack.c.b16 %v768, %v767
  %v825 = vpack.c.b16 %v770, %v769
  %v826 = vpack.c.b16 %v772, %v771
  %v827 = vpack.c.b16 %v774, %v773
  %v828 = vpack.c.b16 %v776, %v775
  %v829 = vpack.c.b16 %v778, %v777
  %v830 = vpack.c.b16 %v780, %v779
  %v831 = vpack.c.b16 %v782, %v781
  %v832 = vpack.c.b16 %v784, %v783
  %881 = vmatprep.subr.bf16.mxu0 0
  %882 = vmatpush1.bf16.msra.mxu0 %v785
  %883 = vmatprep.subr.bf16.mxu0 0
  %884 = vmatpush1.bf16.msra.mxu0 %v786
  %885 = vmatprep.subr.bf16.mxu0 0
  %886 = vmatpush1.bf16.msra.mxu0 %v787
  %887 = vmatprep.subr.bf16.mxu0 0
  %888 = vmatpush1.bf16.msra.mxu0 %v788
  %889 = vmatprep.subr.bf16.mxu0 0
  %890 = vmatpush1.bf16.msra.mxu0 %v789
  %891 = vmatprep.subr.bf16.mxu0 0
  %892 = vmatpush1.bf16.msra.mxu0 %v790
  %893 = vmatprep.subr.bf16.mxu0 0
  %894 = vmatpush1.bf16.msra.mxu0 %v791
  %895 = vmatprep.subr.bf16.mxu0 0
  %896 = vmatpush1.bf16.msra.mxu0 %v792
  %897 = vmatprep.subr.bf16.mxu0 0
  %898 = vmatpush1.bf16.msra.mxu0 %v793
  %899 = vmatprep.subr.bf16.mxu0 0
  %900 = vmatpush1.bf16.msra.mxu0 %v794
  %901 = vmatprep.subr.bf16.mxu0 0
  %902 = vmatpush1.bf16.msra.mxu0 %v795
  %903 = vmatprep.subr.bf16.mxu0 0
  %904 = vmatpush1.bf16.msra.mxu0 %v796
  %905 = vmatprep.subr.bf16.mxu0 0
  %906 = vmatpush1.bf16.msra.mxu0 %v797
  %907 = vmatprep.subr.bf16.mxu0 0
  %908 = vmatpush1.bf16.msra.mxu0 %v798
  %909 = vmatprep.subr.bf16.mxu0 0
  %910 = vmatpush1.bf16.msra.mxu0 %v799
  %911 = vmatprep.subr.bf16.mxu0 0
  %912 = vmatpush1.bf16.msra.mxu0 %v800
  %913 = vmatprep.mubr.bf16.mxu0 %v474
  %914 = vmatmul.mubr.bf16.gmra.mrb[0].mxu0 %v473
  %v915 = vpop.f32.mrb[0].mxu0
  %v916 = vadd.f32 0.0, %v915
  %v917 = vpop.f32.mrb[0].mxu0
  %v918 = vpop.f32.mrb[0].mxu0
  %v919 = vadd.f32 0.0, %v918
  %v920 = vpop.f32.mrb[0].mxu0
  %921 = vmatprep.mubr.bf16.mxu0 %v480
  %922 = vmatmul.mubr.bf16.gmra.mrb[0].mxu0 %v479
  %v923 = vpop.f32.mrb[0].mxu0
  %v924 = vadd.f32 0.0, %v923
  %v925 = vpop.f32.mrb[0].mxu0
  %v926 = vpop.f32.mrb[0].mxu0
  %v927 = vadd.f32 0.0, %v926
  %v928 = vpop.f32.mrb[0].mxu0
  %929 = vmatprep.mubr.bf16.mxu0 %v486
  %930 = vmatmul.mubr.bf16.gmra.mrb[0].mxu0 %v485
  %v931 = vpop.f32.mrb[0].mxu0
  %v932 = vadd.f32 0.0, %v931
  %v933 = vpop.f32.mrb[0].mxu0
  %v934 = vpop.f32.mrb[0].mxu0
  %v935 = vadd.f32 0.0, %v934
  %v936 = vpop.f32.mrb[0].mxu0
  %937 = vmatprep.mubr.bf16.mxu0 %v492
  %938 = vmatmul.mubr.bf16.gmra.mrb[0].mxu0 %v491
  %v939 = vpop.f32.mrb[0].mxu0
  %v940 = vadd.f32 0.0, %v939
  %v941 = vpop.f32.mrb[0].mxu0
  %v942 = vpop.f32.mrb[0].mxu0
  %v943 = vadd.f32 0.0, %v942
  %v944 = vpop.f32.mrb[0].mxu0
  %945 = vmatprep.mubr.bf16.mxu0 %v498
  %946 = vmatmul.mubr.bf16.gmra.mrb[0].mxu0 %v497
  %v947 = vpop.f32.mrb[0].mxu0
  %v948 = vadd.f32 0.0, %v947
  %v949 = vpop.f32.mrb[0].mxu0
  %v950 = vpop.f32.mrb[0].mxu0
  %v951 = vadd.f32 0.0, %v950
  %v952 = vpop.f32.mrb[0].mxu0
  %953 = vmatprep.mubr.bf16.mxu0 %v504
  %954 = vmatmul.mubr.bf16.gmra.mrb[0].mxu0 %v503
  %v955 = vpop.f32.mrb[0].mxu0
  %v956 = vadd.f32 0.0, %v955
  %v957 = vpop.f32.mrb[0].mxu0
  %v958 = vpop.f32.mrb[0].mxu0
  %v959 = vadd.f32 0.0, %v958
  %v960 = vpop.f32.mrb[0].mxu0
  %961 = vmatprep.mubr.bf16.mxu0 %v510
  %962 = vmatmul.mubr.bf16.gmra.mrb[0].mxu0 %v509
  %v963 = vpop.f32.mrb[0].mxu0
  %v964 = vadd.f32 0.0, %v963
  %v965 = vpop.f32.mrb[0].mxu0
  %v966 = vpop.f32.mrb[0].mxu0
  %v967 = vadd.f32 0.0, %v966
  %v968 = vpop.f32.mrb[0].mxu0
  %969 = vmatprep.mubr.bf16.mxu0 %v516
  %970 = vmatmul.mubr.bf16.gmra.mrb[0].mxu0 %v515
  %v971 = vpop.f32.mrb[0].mxu0
  %v972 = vadd.f32 0.0, %v971
  %v973 = vpop.f32.mrb[0].mxu0
  %v974 = vpop.f32.mrb[0].mxu0
  %v975 = vadd.f32 0.0, %v974
  %v976 = vpop.f32.mrb[0].mxu0
  %977 = vmatprep.mubr.bf16.mxu0 %v522
  %978 = vmatmul.mubr.bf16.gmra.mrb[0].mxu0 %v521
  %v979 = vpop.f32.mrb[0].mxu0
  %v980 = vadd.f32 0.0, %v979
  %v981 = vpop.f32.mrb[0].mxu0
  %v982 = vpop.f32.mrb[0].mxu0
  %v983 = vadd.f32 0.0, %v982
  %v984 = vpop.f32.mrb[0].mxu0
  %985 = vmatprep.mubr.bf16.mxu0 %v528
  %986 = vmatmul.mubr.bf16.gmra.mrb[0].mxu0 %v527
  %v987 = vpop.f32.mrb[0].mxu0
  %v988 = vadd.f32 0.0, %v987
  %v989 = vpop.f32.mrb[0].mxu0
  %v990 = vpop.f32.mrb[0].mxu0
  %v991 = vadd.f32 0.0, %v990
  %v992 = vpop.f32.mrb[0].mxu0
  %993 = vdwg.mxu0
  %994 = vmatprep.subr.bf16.mxu0 0
  %995 = vmatpush1.bf16.msra.mxu0 %v801
  %996 = vmatprep.subr.bf16.mxu0 0
  %997 = vmatpush1.bf16.msra.mxu0 %v802
  %998 = vmatprep.subr.bf16.mxu0 0
  %999 = vmatpush1.bf16.msra.mxu0 %v803
  %1000 = vmatprep.subr.bf16.mxu0 0
  %1001 = vmatpush1.bf16.msra.mxu0 %v804
  %1002 = vmatprep.subr.bf16.mxu0 0
  %1003 = vmatpush1.bf16.msra.mxu0 %v805
  %1004 = vmatprep.subr.bf16.mxu0 0
  %1005 = vmatpush1.bf16.msra.mxu0 %v806
  %1006 = vmatprep.subr.bf16.mxu0 0
  %1007 = vmatpush1.bf16.msra.mxu0 %v807
  %1008 = vmatprep.subr.bf16.mxu0 0
  %1009 = vmatpush1.bf16.msra.mxu0 %v808
  %1010 = vmatprep.subr.bf16.mxu0 0
  %1011 = vmatpush1.bf16.msra.mxu0 %v809
  %1012 = vmatprep.subr.bf16.mxu0 0
  %1013 = vmatpush1.bf16.msra.mxu0 %v810
  %1014 = vmatprep.subr.bf16.mxu0 0
  %1015 = vmatpush1.bf16.msra.mxu0 %v811
  %1016 = vmatprep.subr.bf16.mxu0 0
  %1017 = vmatpush1.bf16.msra.mxu0 %v812
  %1018 = vmatprep.subr.bf16.mxu0 0
  %1019 = vmatpush1.bf16.msra.mxu0 %v813
  %1020 = vmatprep.subr.bf16.mxu0 0
  %1021 = vmatpush1.bf16.msra.mxu0 %v814
  %1022 = vmatprep.subr.bf16.mxu0 0
  %1023 = vmatpush1.bf16.msra.mxu0 %v815
  %1024 = vmatprep.subr.bf16.mxu0 0
  %1025 = vmatpush1.bf16.msra.mxu0 %v816
  %1026 = vmatprep.mubr.bf16.mxu0 %v476
  %1027 = vmatmul.mubr.bf16.gmra.mrb[0].mxu0 %v475
  %v1028 = vpop.f32.mrb[0].mxu0
  %v1029 = vadd.f32 %v916, %v1028
  %v1030 = vpop.f32.mrb[0].mxu0
  %v1031 = vpop.f32.mrb[0].mxu0
  %v1032 = vadd.f32 %v919, %v1031
  %v1033 = vpop.f32.mrb[0].mxu0
  %1034 = vmatprep.mubr.bf16.mxu0 %v482
  %1035 = vmatmul.mubr.bf16.gmra.mrb[0].mxu0 %v481
  %v1036 = vpop.f32.mrb[0].mxu0
  %v1037 = vadd.f32 %v924, %v1036
  %v1038 = vpop.f32.mrb[0].mxu0
  %v1039 = vpop.f32.mrb[0].mxu0
  %v1040 = vadd.f32 %v927, %v1039
  %v1041 = vpop.f32.mrb[0].mxu0
  %1042 = vmatprep.mubr.bf16.mxu0 %v488
  %1043 = vmatmul.mubr.bf16.gmra.mrb[0].mxu0 %v487
  %v1044 = vpop.f32.mrb[0].mxu0
  %v1045 = vadd.f32 %v932, %v1044
  %v1046 = vpop.f32.mrb[0].mxu0
  %v1047 = vpop.f32.mrb[0].mxu0
  %v1048 = vadd.f32 %v935, %v1047
  %v1049 = vpop.f32.mrb[0].mxu0
  %1050 = vmatprep.mubr.bf16.mxu0 %v494
  %1051 = vmatmul.mubr.bf16.gmra.mrb[0].mxu0 %v493
  %v1052 = vpop.f32.mrb[0].mxu0
  %v1053 = vadd.f32 %v940, %v1052
  %v1054 = vpop.f32.mrb[0].mxu0
  %v1055 = vpop.f32.mrb[0].mxu0
  %v1056 = vadd.f32 %v943, %v1055
  %v1057 = vpop.f32.mrb[0].mxu0
  %1058 = vmatprep.mubr.bf16.mxu0 %v500
  %1059 = vmatmul.mubr.bf16.gmra.mrb[0].mxu0 %v499
  %v1060 = vpop.f32.mrb[0].mxu0
  %v1061 = vadd.f32 %v948, %v1060
  %v1062 = vpop.f32.mrb[0].mxu0
  %v1063 = vpop.f32.mrb[0].mxu0
  %v1064 = vadd.f32 %v951, %v1063
  %v1065 = vpop.f32.mrb[0].mxu0
  %1066 = vmatprep.mubr.bf16.mxu0 %v506
  %1067 = vmatmul.mubr.bf16.gmra.mrb[0].mxu0 %v505
  %v1068 = vpop.f32.mrb[0].mxu0
  %v1069 = vadd.f32 %v956, %v1068
  %v1070 = vpop.f32.mrb[0].mxu0
  %v1071 = vpop.f32.mrb[0].mxu0
  %v1072 = vadd.f32 %v959, %v1071
  %v1073 = vpop.f32.mrb[0].mxu0
  %1074 = vmatprep.mubr.bf16.mxu0 %v512
  %1075 = vmatmul.mubr.bf16.gmra.mrb[0].mxu0 %v511
  %v1076 = vpop.f32.mrb[0].mxu0
  %v1077 = vadd.f32 %v964, %v1076
  %v1078 = vpop.f32.mrb[0].mxu0
  %v1079 = vpop.f32.mrb[0].mxu0
  %v1080 = vadd.f32 %v967, %v1079
  %v1081 = vpop.f32.mrb[0].mxu0
  %1082 = vmatprep.mubr.bf16.mxu0 %v518
  %1083 = vmatmul.mubr.bf16.gmra.mrb[0].mxu0 %v517
  %v1084 = vpop.f32.mrb[0].mxu0
  %v1085 = vadd.f32 %v972, %v1084
  %v1086 = vpop.f32.mrb[0].mxu0
  %v1087 = vpop.f32.mrb[0].mxu0
  %v1088 = vadd.f32 %v975, %v1087
  %v1089 = vpop.f32.mrb[0].mxu0
  %1090 = vmatprep.mubr.bf16.mxu0 %v524
  %1091 = vmatmul.mubr.bf16.gmra.mrb[0].mxu0 %v523
  %v1092 = vpop.f32.mrb[0].mxu0
  %v1093 = vadd.f32 %v980, %v1092
  %v1094 = vpop.f32.mrb[0].mxu0
  %v1095 = vpop.f32.mrb[0].mxu0
  %v1096 = vadd.f32 %v983, %v1095
  %v1097 = vpop.f32.mrb[0].mxu0
  %1098 = vmatprep.mubr.bf16.mxu0 %v530
  %1099 = vmatmul.mubr.bf16.gmra.mrb[0].mxu0 %v529
  %v1100 = vpop.f32.mrb[0].mxu0
  %v1101 = vadd.f32 %v988, %v1100
  %v1102 = vpop.f32.mrb[0].mxu0
  %v1103 = vpop.f32.mrb[0].mxu0
  %v1104 = vadd.f32 %v991, %v1103
  %v1105 = vpop.f32.mrb[0].mxu0
  %1106 = vdwg.mxu0
  %1107 = vmatprep.subr.bf16.mxu0 0
  %1108 = vmatpush1.bf16.msra.mxu0 %v817
  %1109 = vmatprep.subr.bf16.mxu0 0
  %1110 = vmatpush1.bf16.msra.mxu0 %v818
  %1111 = vmatprep.subr.bf16.mxu0 0
  %1112 = vmatpush1.bf16.msra.mxu0 %v819
  %1113 = vmatprep.subr.bf16.mxu0 0
  %1114 = vmatpush1.bf16.msra.mxu0 %v820
  %1115 = vmatprep.subr.bf16.mxu0 0
  %1116 = vmatpush1.bf16.msra.mxu0 %v821
  %1117 = vmatprep.subr.bf16.mxu0 0
  %1118 = vmatpush1.bf16.msra.mxu0 %v822
  %1119 = vmatprep.subr.bf16.mxu0 0
  %1120 = vmatpush1.bf16.msra.mxu0 %v823
  %1121 = vmatprep.subr.bf16.mxu0 0
  %1122 = vmatpush1.bf16.msra.mxu0 %v824
  %1123 = vmatprep.subr.bf16.mxu0 0
  %1124 = vmatpush1.bf16.msra.mxu0 %v825
  %1125 = vmatprep.subr.bf16.mxu0 0
  %1126 = vmatpush1.bf16.msra.mxu0 %v826
  %1127 = vmatprep.subr.bf16.mxu0 0
  %1128 = vmatpush1.bf16.msra.mxu0 %v827
  %1129 = vmatprep.subr.bf16.mxu0 0
  %1130 = vmatpush1.bf16.msra.mxu0 %v828
  %1131 = vmatprep.subr.bf16.mxu0 0
  %1132 = vmatpush1.bf16.msra.mxu0 %v829
  %1133 = vmatprep.subr.bf16.mxu0 0
  %1134 = vmatpush1.bf16.msra.mxu0 %v830
  %1135 = vmatprep.subr.bf16.mxu0 0
  %1136 = vmatpush1.bf16.msra.mxu0 %v831
  %1137 = vmatprep.subr.bf16.mxu0 0
  %1138 = vmatpush1.bf16.msra.mxu0 %v832
  %1139 = vmatprep.mubr.bf16.mxu0 %v478
  %1140 = vmatmul.mubr.bf16.gmra.mrb[0].mxu0 %v477
  %v1141 = vpop.f32.mrb[0].mxu0
  %v1142 = vadd.f32 %v1029, %v1141
  %v1143 = vpop.f32.mrb[0].mxu0
  %v1144 = vpop.f32.mrb[0].mxu0
  %v1145 = vadd.f32 %v1032, %v1144
  %v1146 = vpop.f32.mrb[0].mxu0
  %1147 = vmatprep.mubr.bf16.mxu0 %v484
  %1148 = vmatmul.mubr.bf16.gmra.mrb[0].mxu0 %v483
  %v1149 = vpop.f32.mrb[0].mxu0
  %v1150 = vadd.f32 %v1037, %v1149
  %v1151 = vpop.f32.mrb[0].mxu0
  %v1152 = vpop.f32.mrb[0].mxu0
  %v1153 = vadd.f32 %v1040, %v1152
  %v1154 = vpop.f32.mrb[0].mxu0
  %1155 = vmatprep.mubr.bf16.mxu0 %v490
  %1156 = vmatmul.mubr.bf16.gmra.mrb[0].mxu0 %v489
  %v1157 = vpop.f32.mrb[0].mxu0
  %v1158 = vadd.f32 %v1045, %v1157
  %v1159 = vpop.f32.mrb[0].mxu0
  %v1160 = vpop.f32.mrb[0].mxu0
  %v1161 = vadd.f32 %v1048, %v1160
  %v1162 = vpop.f32.mrb[0].mxu0
  %1163 = vmatprep.mubr.bf16.mxu0 %v496
  %1164 = vmatmul.mubr.bf16.gmra.mrb[0].mxu0 %v495
  %v1165 = vpop.f32.mrb[0].mxu0
  %v1166 = vadd.f32 %v1053, %v1165
  %v1167 = vpop.f32.mrb[0].mxu0
  %v1168 = vpop.f32.mrb[0].mxu0
  %v1169 = vadd.f32 %v1056, %v1168
  %v1170 = vpop.f32.mrb[0].mxu0
  %1171 = vmatprep.mubr.bf16.mxu0 %v502
  %1172 = vmatmul.mubr.bf16.gmra.mrb[0].mxu0 %v501
  %v1173 = vpop.f32.mrb[0].mxu0
  %v1174 = vadd.f32 %v1061, %v1173
  %v1175 = vpop.f32.mrb[0].mxu0
  %v1176 = vpop.f32.mrb[0].mxu0
  %v1177 = vadd.f32 %v1064, %v1176
  %v1178 = vpop.f32.mrb[0].mxu0
  %1179 = vmatprep.mubr.bf16.mxu0 %v508
  %1180 = vmatmul.mubr.bf16.gmra.mrb[0].mxu0 %v507
  %v1181 = vpop.f32.mrb[0].mxu0
  %v1182 = vadd.f32 %v1069, %v1181
  %v1183 = vpop.f32.mrb[0].mxu0
  %v1184 = vpop.f32.mrb[0].mxu0
  %v1185 = vadd.f32 %v1072, %v1184
  %v1186 = vpop.f32.mrb[0].mxu0
  %1187 = vmatprep.mubr.bf16.mxu0 %v514
  %1188 = vmatmul.mubr.bf16.gmra.mrb[0].mxu0 %v513
  %v1189 = vpop.f32.mrb[0].mxu0
  %v1190 = vadd.f32 %v1077, %v1189
  %v1191 = vpop.f32.mrb[0].mxu0
  %v1192 = vpop.f32.mrb[0].mxu0
  %v1193 = vadd.f32 %v1080, %v1192
  %v1194 = vpop.f32.mrb[0].mxu0
  %1195 = vmatprep.mubr.bf16.mxu0 %v520
  %1196 = vmatmul.mubr.bf16.gmra.mrb[0].mxu0 %v519
  %v1197 = vpop.f32.mrb[0].mxu0
  %v1198 = vadd.f32 %v1085, %v1197
  %v1199 = vpop.f32.mrb[0].mxu0
  %v1200 = vpop.f32.mrb[0].mxu0
  %v1201 = vadd.f32 %v1088, %v1200
  %v1202 = vpop.f32.mrb[0].mxu0
  %1203 = vmatprep.mubr.bf16.mxu0 %v526
  %1204 = vmatmul.mubr.bf16.gmra.mrb[0].mxu0 %v525
  %v1205 = vpop.f32.mrb[0].mxu0
  %v1206 = vadd.f32 %v1093, %v1205
  %v1207 = vpop.f32.mrb[0].mxu0
  %v1208 = vpop.f32.mrb[0].mxu0
  %v1209 = vadd.f32 %v1096, %v1208
  %v1210 = vpop.f32.mrb[0].mxu0
  %1211 = vmatprep.mubr.bf16.mxu0 %v532
  %1212 = vmatmul.mubr.bf16.gmra.mrb[0].mxu0 %v531
  %v1213 = vpop.f32.mrb[0].mxu0
  %v1214 = vadd.f32 %v1101, %v1213
  %v1215 = vpop.f32.mrb[0].mxu0
  %v1216 = vpop.f32.mrb[0].mxu0
  %v1217 = vadd.f32 %v1104, %v1216
  %v1218 = vpop.f32.mrb[0].mxu0
  %1219 = vdwg.mxu0
  %v1226 = vunpack.c.l.b16 %v34
  %v1227 = vunpack.c.h.b16 %v34
  %v1228 = vunpack.c.l.b16 %v35
  %v1229 = vunpack.c.h.b16 %v35
  %v1230 = vunpack.c.l.b16 %v36
  %v1231 = vunpack.c.h.b16 %v36
  %v1232 = vunpack.c.l.b16 %v37
  %v1233 = vunpack.c.h.b16 %v37
  %v1234 = vunpack.c.l.b16 %v38
  %v1235 = vunpack.c.h.b16 %v38
  %v1236 = vunpack.c.l.b16 %v39
  %v1237 = vunpack.c.h.b16 %v39
  %v1238 = vpack.c.b16 %v1232, %v1226
  %v1239 = vpack.c.b16 %v1233, %v1227
  %v1240 = vpack.c.b16 %v1234, %v1228
  %v1241 = vpack.c.b16 %v1235, %v1229
  %v1242 = vpack.c.b16 %v1236, %v1230
  %v1243 = vpack.c.b16 %v1237, %v1231
  %v1346 = vunpack.c.l.b16 %v94
  %v1347 = vunpack.c.l.b16 %v95
  %v1348 = vunpack.c.l.b16 %v96
  %v1349 = vunpack.c.l.b16 %v97
  %v1350 = vunpack.c.l.b16 %v98
  %v1351 = vunpack.c.l.b16 %v99
  %v1352 = vunpack.c.l.b16 %v100
  %v1353 = vunpack.c.l.b16 %v101
  %v1354 = vunpack.c.l.b16 %v102
  %v1355 = vunpack.c.l.b16 %v103
  %v1356 = vunpack.c.l.b16 %v104
  %v1357 = vunpack.c.l.b16 %v105
  %v1358 = vunpack.c.l.b16 %v106
  %v1359 = vunpack.c.l.b16 %v107
  %v1360 = vunpack.c.l.b16 %v108
  %v1361 = vunpack.c.l.b16 %v109
  %v1362 = vunpack.c.l.b16 %v110
  %v1363 = vunpack.c.l.b16 %v111
  %v1364 = vunpack.c.l.b16 %v112
  %v1365 = vunpack.c.l.b16 %v113
  %v1366 = vunpack.c.l.b16 %v114
  %v1367 = vunpack.c.l.b16 %v115
  %v1368 = vunpack.c.l.b16 %v116
  %v1369 = vunpack.c.l.b16 %v117
  %v1370 = vunpack.c.l.b16 %v118
  %v1371 = vunpack.c.l.b16 %v119
  %v1372 = vunpack.c.l.b16 %v120
  %v1373 = vunpack.c.l.b16 %v121
  %v1374 = vunpack.c.l.b16 %v122
  %v1375 = vunpack.c.l.b16 %v123
  %v1376 = vunpack.c.l.b16 %v124
  %v1377 = vunpack.c.l.b16 %v125
  %v1378 = vunpack.c.l.b16 %v126
  %v1379 = vunpack.c.l.b16 %v127
  %v1380 = vunpack.c.l.b16 %v128
  %v1381 = vunpack.c.l.b16 %v129
  %v1382 = vunpack.c.l.b16 %v130
  %v1383 = vunpack.c.l.b16 %v131
  %v1384 = vunpack.c.l.b16 %v132
  %v1385 = vunpack.c.l.b16 %v133
  %v1386 = vunpack.c.l.b16 %v134
  %v1387 = vunpack.c.l.b16 %v135
  %v1388 = vunpack.c.l.b16 %v136
  %v1389 = vunpack.c.l.b16 %v137
  %v1390 = vunpack.c.l.b16 %v138
  %v1391 = vunpack.c.l.b16 %v139
  %v1392 = vunpack.c.l.b16 %v140
  %v1393 = vunpack.c.l.b16 %v141
  %v1394 = vunpack.c.l.b16 %v142
  %v1395 = vunpack.c.l.b16 %v143
  %v1396 = vunpack.c.l.b16 %v144
  %v1397 = vunpack.c.l.b16 %v145
  %v1398 = vunpack.c.l.b16 %v146
  %v1399 = vunpack.c.l.b16 %v147
  %v1400 = vunpack.c.l.b16 %v148
  %v1401 = vunpack.c.l.b16 %v149
  %v1402 = vunpack.c.l.b16 %v150
  %v1403 = vunpack.c.l.b16 %v151
  %v1404 = vunpack.c.l.b16 %v152
  %v1405 = vunpack.c.l.b16 %v153
  %v1406 = vunpack.c.l.b16 %v154
  %v1407 = vunpack.c.l.b16 %v155
  %v1408 = vunpack.c.l.b16 %v156
  %v1409 = vunpack.c.l.b16 %v157
  %v1410 = vunpack.c.l.b16 %v158
  %v1411 = vunpack.c.l.b16 %v159
  %v1412 = vunpack.c.l.b16 %v160
  %v1413 = vunpack.c.l.b16 %v161
  %v1414 = vunpack.c.l.b16 %v162
  %v1415 = vunpack.c.l.b16 %v163
  %v1416 = vunpack.c.l.b16 %v164
  %v1417 = vunpack.c.l.b16 %v165
  %v1418 = vunpack.c.l.b16 %v166
  %v1419 = vunpack.c.l.b16 %v167
  %v1420 = vunpack.c.l.b16 %v168
  %v1421 = vunpack.c.l.b16 %v169
  %v1422 = vunpack.c.l.b16 %v170
  %v1423 = vunpack.c.l.b16 %v171
  %v1424 = vunpack.c.l.b16 %v172
  %v1425 = vunpack.c.l.b16 %v173
  %v1426 = vunpack.c.l.b16 %v174
  %v1427 = vunpack.c.l.b16 %v175
  %v1428 = vunpack.c.l.b16 %v176
  %v1429 = vunpack.c.l.b16 %v177
  %v1430 = vunpack.c.l.b16 %v178
  %v1431 = vunpack.c.l.b16 %v179
  %v1432 = vunpack.c.l.b16 %v180
  %v1433 = vunpack.c.l.b16 %v181
  %v1434 = vunpack.c.l.b16 %v182
  %v1435 = vunpack.c.l.b16 %v183
  %v1436 = vunpack.c.l.b16 %v184
  %v1437 = vunpack.c.l.b16 %v185
  %v1438 = vunpack.c.l.b16 %v186
  %v1439 = vunpack.c.l.b16 %v187
  %v1440 = vunpack.c.l.b16 %v188
  %v1441 = vunpack.c.l.b16 %v189
  %v1442 = vpack.c.b16 %v1347, %v1346
  %v1443 = vpack.c.b16 %v1349, %v1348
  %v1444 = vpack.c.b16 %v1351, %v1350
  %v1445 = vpack.c.b16 %v1353, %v1352
  %v1446 = vpack.c.b16 %v1355, %v1354
  %v1447 = vpack.c.b16 %v1357, %v1356
  %v1448 = vpack.c.b16 %v1359, %v1358
  %v1449 = vpack.c.b16 %v1361, %v1360
  %v1450 = vpack.c.b16 %v1363, %v1362
  %v1451 = vpack.c.b16 %v1365, %v1364
  %v1452 = vpack.c.b16 %v1367, %v1366
  %v1453 = vpack.c.b16 %v1369, %v1368
  %v1454 = vpack.c.b16 %v1371, %v1370
  %v1455 = vpack.c.b16 %v1373, %v1372
  %v1456 = vpack.c.b16 %v1375, %v1374
  %v1457 = vpack.c.b16 %v1377, %v1376
  %v1458 = vpack.c.b16 %v1379, %v1378
  %v1459 = vpack.c.b16 %v1381, %v1380
  %v1460 = vpack.c.b16 %v1383, %v1382
  %v1461 = vpack.c.b16 %v1385, %v1384
  %v1462 = vpack.c.b16 %v1387, %v1386
  %v1463 = vpack.c.b16 %v1389, %v1388
  %v1464 = vpack.c.b16 %v1391, %v1390
  %v1465 = vpack.c.b16 %v1393, %v1392
  %v1466 = vpack.c.b16 %v1395, %v1394
  %v1467 = vpack.c.b16 %v1397, %v1396
  %v1468 = vpack.c.b16 %v1399, %v1398
  %v1469 = vpack.c.b16 %v1401, %v1400
  %v1470 = vpack.c.b16 %v1403, %v1402
  %v1471 = vpack.c.b16 %v1405, %v1404
  %v1472 = vpack.c.b16 %v1407, %v1406
  %v1473 = vpack.c.b16 %v1409, %v1408
  %v1474 = vpack.c.b16 %v1411, %v1410
  %v1475 = vpack.c.b16 %v1413, %v1412
  %v1476 = vpack.c.b16 %v1415, %v1414
  %v1477 = vpack.c.b16 %v1417, %v1416
  %v1478 = vpack.c.b16 %v1419, %v1418
  %v1479 = vpack.c.b16 %v1421, %v1420
  %v1480 = vpack.c.b16 %v1423, %v1422
  %v1481 = vpack.c.b16 %v1425, %v1424
  %v1482 = vpack.c.b16 %v1427, %v1426
  %v1483 = vpack.c.b16 %v1429, %v1428
  %v1484 = vpack.c.b16 %v1431, %v1430
  %v1485 = vpack.c.b16 %v1433, %v1432
  %v1486 = vpack.c.b16 %v1435, %v1434
  %v1487 = vpack.c.b16 %v1437, %v1436
  %v1488 = vpack.c.b16 %v1439, %v1438
  %v1489 = vpack.c.b16 %v1441, %v1440
  %1538 = vmatprep.subr.bf16.mxu0 0
  %1539 = vmatpush1.bf16.msra.mxu0 %v1442
  %1540 = vmatprep.subr.bf16.mxu0 0
  %1541 = vmatpush1.bf16.msra.mxu0 %v1443
  %1542 = vmatprep.subr.bf16.mxu0 0
  %1543 = vmatpush1.bf16.msra.mxu0 %v1444
  %1544 = vmatprep.subr.bf16.mxu0 0
  %1545 = vmatpush1.bf16.msra.mxu0 %v1445
  %1546 = vmatprep.subr.bf16.mxu0 0
  %1547 = vmatpush1.bf16.msra.mxu0 %v1446
  %1548 = vmatprep.subr.bf16.mxu0 0
  %1549 = vmatpush1.bf16.msra.mxu0 %v1447
  %1550 = vmatprep.subr.bf16.mxu0 0
  %1551 = vmatpush1.bf16.msra.mxu0 %v1448
  %1552 = vmatprep.subr.bf16.mxu0 0
  %1553 = vmatpush1.bf16.msra.mxu0 %v1449
  %1554 = vmatprep.subr.bf16.mxu0 0
  %1555 = vmatpush1.bf16.msra.mxu0 %v1450
  %1556 = vmatprep.subr.bf16.mxu0 0
  %1557 = vmatpush1.bf16.msra.mxu0 %v1451
  %1558 = vmatprep.subr.bf16.mxu0 0
  %1559 = vmatpush1.bf16.msra.mxu0 %v1452
  %1560 = vmatprep.subr.bf16.mxu0 0
  %1561 = vmatpush1.bf16.msra.mxu0 %v1453
  %1562 = vmatprep.subr.bf16.mxu0 0
  %1563 = vmatpush1.bf16.msra.mxu0 %v1454
  %1564 = vmatprep.subr.bf16.mxu0 0
  %1565 = vmatpush1.bf16.msra.mxu0 %v1455
  %1566 = vmatprep.subr.bf16.mxu0 0
  %1567 = vmatpush1.bf16.msra.mxu0 %v1456
  %1568 = vmatprep.subr.bf16.mxu0 0
  %1569 = vmatpush1.bf16.msra.mxu0 %v1457
  %1570 = vmatprep.mubr.bf16.mxu0 %v1239
  %1571 = vmatmul.mubr.bf16.gmra.mrb[0].mxu0 %v1238
  %v1572 = vpop.f32.mrb[0].mxu0
  %v1573 = vadd.f32 %v1142, %v1572
  %v1574 = vpop.f32.mrb[0].mxu0
  %v1575 = vpop.f32.mrb[0].mxu0
  %v1576 = vadd.f32 %v1145, %v1575
  %v1577 = vpop.f32.mrb[0].mxu0
  %1578 = vmatprep.mubr.bf16.mxu0 %v474
  %1579 = vmatmul.mubr.bf16.gmra.mrb[0].mxu0 %v473
  %v1580 = vpop.f32.mrb[0].mxu0
  %v1581 = vadd.f32 %v1150, %v1580
  %v1582 = vpop.f32.mrb[0].mxu0
  %v1583 = vpop.f32.mrb[0].mxu0
  %v1584 = vadd.f32 %v1153, %v1583
  %v1585 = vpop.f32.mrb[0].mxu0
  %1586 = vmatprep.mubr.bf16.mxu0 %v480
  %1587 = vmatmul.mubr.bf16.gmra.mrb[0].mxu0 %v479
  %v1588 = vpop.f32.mrb[0].mxu0
  %v1589 = vadd.f32 %v1158, %v1588
  %v1590 = vpop.f32.mrb[0].mxu0
  %v1591 = vpop.f32.mrb[0].mxu0
  %v1592 = vadd.f32 %v1161, %v1591
  %v1593 = vpop.f32.mrb[0].mxu0
  %1594 = vmatprep.mubr.bf16.mxu0 %v486
  %1595 = vmatmul.mubr.bf16.gmra.mrb[0].mxu0 %v485
  %v1596 = vpop.f32.mrb[0].mxu0
  %v1597 = vadd.f32 %v1166, %v1596
  %v1598 = vpop.f32.mrb[0].mxu0
  %v1599 = vpop.f32.mrb[0].mxu0
  %v1600 = vadd.f32 %v1169, %v1599
  %v1601 = vpop.f32.mrb[0].mxu0
  %1602 = vmatprep.mubr.bf16.mxu0 %v492
  %1603 = vmatmul.mubr.bf16.gmra.mrb[0].mxu0 %v491
  %v1604 = vpop.f32.mrb[0].mxu0
  %v1605 = vadd.f32 %v1174, %v1604
  %v1606 = vpop.f32.mrb[0].mxu0
  %v1607 = vpop.f32.mrb[0].mxu0
  %v1608 = vadd.f32 %v1177, %v1607
  %v1609 = vpop.f32.mrb[0].mxu0
  %1610 = vmatprep.mubr.bf16.mxu0 %v498
  %1611 = vmatmul.mubr.bf16.gmra.mrb[0].mxu0 %v497
  %v1612 = vpop.f32.mrb[0].mxu0
  %v1613 = vadd.f32 %v1182, %v1612
  %v1614 = vpop.f32.mrb[0].mxu0
  %v1615 = vpop.f32.mrb[0].mxu0
  %v1616 = vadd.f32 %v1185, %v1615
  %v1617 = vpop.f32.mrb[0].mxu0
  %1618 = vmatprep.mubr.bf16.mxu0 %v504
  %1619 = vmatmul.mubr.bf16.gmra.mrb[0].mxu0 %v503
  %v1620 = vpop.f32.mrb[0].mxu0
  %v1621 = vadd.f32 %v1190, %v1620
  %v1622 = vpop.f32.mrb[0].mxu0
  %v1623 = vpop.f32.mrb[0].mxu0
  %v1624 = vadd.f32 %v1193, %v1623
  %v1625 = vpop.f32.mrb[0].mxu0
  %1626 = vmatprep.mubr.bf16.mxu0 %v510
  %1627 = vmatmul.mubr.bf16.gmra.mrb[0].mxu0 %v509
  %v1628 = vpop.f32.mrb[0].mxu0
  %v1629 = vadd.f32 %v1198, %v1628
  %v1630 = vpop.f32.mrb[0].mxu0
  %v1631 = vpop.f32.mrb[0].mxu0
  %v1632 = vadd.f32 %v1201, %v1631
  %v1633 = vpop.f32.mrb[0].mxu0
  %1634 = vmatprep.mubr.bf16.mxu0 %v516
  %1635 = vmatmul.mubr.bf16.gmra.mrb[0].mxu0 %v515
  %v1636 = vpop.f32.mrb[0].mxu0
  %v1637 = vadd.f32 %v1206, %v1636
  %v1638 = vpop.f32.mrb[0].mxu0
  %v1639 = vpop.f32.mrb[0].mxu0
  %v1640 = vadd.f32 %v1209, %v1639
  %v1641 = vpop.f32.mrb[0].mxu0
  %1642 = vmatprep.mubr.bf16.mxu0 %v522
  %1643 = vmatmul.mubr.bf16.gmra.mrb[0].mxu0 %v521
  %v1644 = vpop.f32.mrb[0].mxu0
  %v1645 = vadd.f32 %v1214, %v1644
  %v1646 = vpop.f32.mrb[0].mxu0
  %v1647 = vpop.f32.mrb[0].mxu0
  %v1648 = vadd.f32 %v1217, %v1647
  %v1649 = vpop.f32.mrb[0].mxu0
  %1650 = vdwg.mxu0
  %1651 = vmatprep.subr.bf16.mxu0 0
  %1652 = vmatpush1.bf16.msra.mxu0 %v1458
  %1653 = vmatprep.subr.bf16.mxu0 0
  %1654 = vmatpush1.bf16.msra.mxu0 %v1459
  %1655 = vmatprep.subr.bf16.mxu0 0
  %1656 = vmatpush1.bf16.msra.mxu0 %v1460
  %1657 = vmatprep.subr.bf16.mxu0 0
  %1658 = vmatpush1.bf16.msra.mxu0 %v1461
  %1659 = vmatprep.subr.bf16.mxu0 0
  %1660 = vmatpush1.bf16.msra.mxu0 %v1462
  %1661 = vmatprep.subr.bf16.mxu0 0
  %1662 = vmatpush1.bf16.msra.mxu0 %v1463
  %1663 = vmatprep.subr.bf16.mxu0 0
  %1664 = vmatpush1.bf16.msra.mxu0 %v1464
  %1665 = vmatprep.subr.bf16.mxu0 0
  %1666 = vmatpush1.bf16.msra.mxu0 %v1465
  %1667 = vmatprep.subr.bf16.mxu0 0
  %1668 = vmatpush1.bf16.msra.mxu0 %v1466
  %1669 = vmatprep.subr.bf16.mxu0 0
  %1670 = vmatpush1.bf16.msra.mxu0 %v1467
  %1671 = vmatprep.subr.bf16.mxu0 0
  %1672 = vmatpush1.bf16.msra.mxu0 %v1468
  %1673 = vmatprep.subr.bf16.mxu0 0
  %1674 = vmatpush1.bf16.msra.mxu0 %v1469
  %1675 = vmatprep.subr.bf16.mxu0 0
  %1676 = vmatpush1.bf16.msra.mxu0 %v1470
  %1677 = vmatprep.subr.bf16.mxu0 0
  %1678 = vmatpush1.bf16.msra.mxu0 %v1471
  %1679 = vmatprep.subr.bf16.mxu0 0
  %1680 = vmatpush1.bf16.msra.mxu0 %v1472
  %1681 = vmatprep.subr.bf16.mxu0 0
  %1682 = vmatpush1.bf16.msra.mxu0 %v1473
  %1683 = vmatprep.mubr.bf16.mxu0 %v1241
  %1684 = vmatmul.mubr.bf16.gmra.mrb[0].mxu0 %v1240
  %v1685 = vpop.f32.mrb[0].mxu0
  %v1686 = vadd.f32 %v1573, %v1685
  %v1687 = vpop.f32.mrb[0].mxu0
  %v1688 = vpop.f32.mrb[0].mxu0
  %v1689 = vadd.f32 %v1576, %v1688
  %v1690 = vpop.f32.mrb[0].mxu0
  %1691 = vmatprep.mubr.bf16.mxu0 %v476
  %1692 = vmatmul.mubr.bf16.gmra.mrb[0].mxu0 %v475
  %v1693 = vpop.f32.mrb[0].mxu0
  %v1694 = vadd.f32 %v1581, %v1693
  %v1695 = vpop.f32.mrb[0].mxu0
  %v1696 = vpop.f32.mrb[0].mxu0
  %v1697 = vadd.f32 %v1584, %v1696
  %v1698 = vpop.f32.mrb[0].mxu0
  %1699 = vmatprep.mubr.bf16.mxu0 %v482
  %1700 = vmatmul.mubr.bf16.gmra.mrb[0].mxu0 %v481
  %v1701 = vpop.f32.mrb[0].mxu0
  %v1702 = vadd.f32 %v1589, %v1701
  %v1703 = vpop.f32.mrb[0].mxu0
  %v1704 = vpop.f32.mrb[0].mxu0
  %v1705 = vadd.f32 %v1592, %v1704
  %v1706 = vpop.f32.mrb[0].mxu0
  %1707 = vmatprep.mubr.bf16.mxu0 %v488
  %1708 = vmatmul.mubr.bf16.gmra.mrb[0].mxu0 %v487
  %v1709 = vpop.f32.mrb[0].mxu0
  %v1710 = vadd.f32 %v1597, %v1709
  %v1711 = vpop.f32.mrb[0].mxu0
  %v1712 = vpop.f32.mrb[0].mxu0
  %v1713 = vadd.f32 %v1600, %v1712
  %v1714 = vpop.f32.mrb[0].mxu0
  %1715 = vmatprep.mubr.bf16.mxu0 %v494
  %1716 = vmatmul.mubr.bf16.gmra.mrb[0].mxu0 %v493
  %v1717 = vpop.f32.mrb[0].mxu0
  %v1718 = vadd.f32 %v1605, %v1717
  %v1719 = vpop.f32.mrb[0].mxu0
  %v1720 = vpop.f32.mrb[0].mxu0
  %v1721 = vadd.f32 %v1608, %v1720
  %v1722 = vpop.f32.mrb[0].mxu0
  %1723 = vmatprep.mubr.bf16.mxu0 %v500
  %1724 = vmatmul.mubr.bf16.gmra.mrb[0].mxu0 %v499
  %v1725 = vpop.f32.mrb[0].mxu0
  %v1726 = vadd.f32 %v1613, %v1725
  %v1727 = vpop.f32.mrb[0].mxu0
  %v1728 = vpop.f32.mrb[0].mxu0
  %v1729 = vadd.f32 %v1616, %v1728
  %v1730 = vpop.f32.mrb[0].mxu0
  %1731 = vmatprep.mubr.bf16.mxu0 %v506
  %1732 = vmatmul.mubr.bf16.gmra.mrb[0].mxu0 %v505
  %v1733 = vpop.f32.mrb[0].mxu0
  %v1734 = vadd.f32 %v1621, %v1733
  %v1735 = vpop.f32.mrb[0].mxu0
  %v1736 = vpop.f32.mrb[0].mxu0
  %v1737 = vadd.f32 %v1624, %v1736
  %v1738 = vpop.f32.mrb[0].mxu0
  %1739 = vmatprep.mubr.bf16.mxu0 %v512
  %1740 = vmatmul.mubr.bf16.gmra.mrb[0].mxu0 %v511
  %v1741 = vpop.f32.mrb[0].mxu0
  %v1742 = vadd.f32 %v1629, %v1741
  %v1743 = vpop.f32.mrb[0].mxu0
  %v1744 = vpop.f32.mrb[0].mxu0
  %v1745 = vadd.f32 %v1632, %v1744
  %v1746 = vpop.f32.mrb[0].mxu0
  %1747 = vmatprep.mubr.bf16.mxu0 %v518
  %1748 = vmatmul.mubr.bf16.gmra.mrb[0].mxu0 %v517
  %v1749 = vpop.f32.mrb[0].mxu0
  %v1750 = vadd.f32 %v1637, %v1749
  %v1751 = vpop.f32.mrb[0].mxu0
  %v1752 = vpop.f32.mrb[0].mxu0
  %v1753 = vadd.f32 %v1640, %v1752
  %v1754 = vpop.f32.mrb[0].mxu0
  %1755 = vmatprep.mubr.bf16.mxu0 %v524
  %1756 = vmatmul.mubr.bf16.gmra.mrb[0].mxu0 %v523
  %v1757 = vpop.f32.mrb[0].mxu0
  %v1758 = vadd.f32 %v1645, %v1757
  %v1759 = vpop.f32.mrb[0].mxu0
  %v1760 = vpop.f32.mrb[0].mxu0
  %v1761 = vadd.f32 %v1648, %v1760
  %v1762 = vpop.f32.mrb[0].mxu0
  %1763 = vdwg.mxu0
  %1764 = vmatprep.subr.bf16.mxu0 0
  %1765 = vmatpush1.bf16.msra.mxu0 %v1474
  %1766 = vmatprep.subr.bf16.mxu0 0
  %1767 = vmatpush1.bf16.msra.mxu0 %v1475
  %1768 = vmatprep.subr.bf16.mxu0 0
  %1769 = vmatpush1.bf16.msra.mxu0 %v1476
  %1770 = vmatprep.subr.bf16.mxu0 0
  %1771 = vmatpush1.bf16.msra.mxu0 %v1477
  %1772 = vmatprep.subr.bf16.mxu0 0
  %1773 = vmatpush1.bf16.msra.mxu0 %v1478
  %1774 = vmatprep.subr.bf16.mxu0 0
  %1775 = vmatpush1.bf16.msra.mxu0 %v1479
  %1776 = vmatprep.subr.bf16.mxu0 0
  %1777 = vmatpush1.bf16.msra.mxu0 %v1480
  %1778 = vmatprep.subr.bf16.mxu0 0
  %1779 = vmatpush1.bf16.msra.mxu0 %v1481
  %1780 = vmatprep.subr.bf16.mxu0 0
  %1781 = vmatpush1.bf16.msra.mxu0 %v1482
  %1782 = vmatprep.subr.bf16.mxu0 0
  %1783 = vmatpush1.bf16.msra.mxu0 %v1483
  %1784 = vmatprep.subr.bf16.mxu0 0
  %1785 = vmatpush1.bf16.msra.mxu0 %v1484
  %1786 = vmatprep.subr.bf16.mxu0 0
  %1787 = vmatpush1.bf16.msra.mxu0 %v1485
  %1788 = vmatprep.subr.bf16.mxu0 0
  %1789 = vmatpush1.bf16.msra.mxu0 %v1486
  %1790 = vmatprep.subr.bf16.mxu0 0
  %1791 = vmatpush1.bf16.msra.mxu0 %v1487
  %1792 = vmatprep.subr.bf16.mxu0 0
  %1793 = vmatpush1.bf16.msra.mxu0 %v1488
  %1794 = vmatprep.subr.bf16.mxu0 0
  %1795 = vmatpush1.bf16.msra.mxu0 %v1489
  %1796 = vmatprep.mubr.bf16.mxu0 %v1243
  %1797 = vmatmul.mubr.bf16.gmra.mrb[0].mxu0 %v1242
  %v1798 = vpop.f32.mrb[0].mxu0
  %v1799 = vadd.f32 %v1686, %v1798
  %v1800 = vpop.f32.mrb[0].mxu0
  %v1801 = vpop.f32.mrb[0].mxu0
  %v1802 = vadd.f32 %v1689, %v1801
  %v1803 = vpop.f32.mrb[0].mxu0
  %1804 = vmatprep.mubr.bf16.mxu0 %v478
  %1805 = vmatmul.mubr.bf16.gmra.mrb[0].mxu0 %v477
  %v1806 = vpop.f32.mrb[0].mxu0
  %v1807 = vadd.f32 %v1694, %v1806
  %v1808 = vpop.f32.mrb[0].mxu0
  %v1809 = vpop.f32.mrb[0].mxu0
  %v1810 = vadd.f32 %v1697, %v1809
  %v1811 = vpop.f32.mrb[0].mxu0
  %1812 = vmatprep.mubr.bf16.mxu0 %v484
  %1813 = vmatmul.mubr.bf16.gmra.mrb[0].mxu0 %v483
  %v1814 = vpop.f32.mrb[0].mxu0
  %v1815 = vadd.f32 %v1702, %v1814
  %v1816 = vpop.f32.mrb[0].mxu0
  %v1817 = vpop.f32.mrb[0].mxu0
  %v1818 = vadd.f32 %v1705, %v1817
  %v1819 = vpop.f32.mrb[0].mxu0
  %1820 = vmatprep.mubr.bf16.mxu0 %v490
  %1821 = vmatmul.mubr.bf16.gmra.mrb[0].mxu0 %v489
  %v1822 = vpop.f32.mrb[0].mxu0
  %v1823 = vadd.f32 %v1710, %v1822
  %v1824 = vpop.f32.mrb[0].mxu0
  %v1825 = vpop.f32.mrb[0].mxu0
  %v1826 = vadd.f32 %v1713, %v1825
  %v1827 = vpop.f32.mrb[0].mxu0
  %1828 = vmatprep.mubr.bf16.mxu0 %v496
  %1829 = vmatmul.mubr.bf16.gmra.mrb[0].mxu0 %v495
  %v1830 = vpop.f32.mrb[0].mxu0
  %v1831 = vadd.f32 %v1718, %v1830
  %v1832 = vpop.f32.mrb[0].mxu0
  %v1833 = vpop.f32.mrb[0].mxu0
  %v1834 = vadd.f32 %v1721, %v1833
  %v1835 = vpop.f32.mrb[0].mxu0
  %1836 = vmatprep.mubr.bf16.mxu0 %v502
  %1837 = vmatmul.mubr.bf16.gmra.mrb[0].mxu0 %v501
  %v1838 = vpop.f32.mrb[0].mxu0
  %v1839 = vadd.f32 %v1726, %v1838
  %v1840 = vpop.f32.mrb[0].mxu0
  %v1841 = vpop.f32.mrb[0].mxu0
  %v1842 = vadd.f32 %v1729, %v1841
  %v1843 = vpop.f32.mrb[0].mxu0
  %1844 = vmatprep.mubr.bf16.mxu0 %v508
  %1845 = vmatmul.mubr.bf16.gmra.mrb[0].mxu0 %v507
  %v1846 = vpop.f32.mrb[0].mxu0
  %v1847 = vadd.f32 %v1734, %v1846
  %v1848 = vpop.f32.mrb[0].mxu0
  %v1849 = vpop.f32.mrb[0].mxu0
  %v1850 = vadd.f32 %v1737, %v1849
  %v1851 = vpop.f32.mrb[0].mxu0
  %1852 = vmatprep.mubr.bf16.mxu0 %v514
  %1853 = vmatmul.mubr.bf16.gmra.mrb[0].mxu0 %v513
  %v1854 = vpop.f32.mrb[0].mxu0
  %v1855 = vadd.f32 %v1742, %v1854
  %v1856 = vpop.f32.mrb[0].mxu0
  %v1857 = vpop.f32.mrb[0].mxu0
  %v1858 = vadd.f32 %v1745, %v1857
  %v1859 = vpop.f32.mrb[0].mxu0
  %1860 = vmatprep.mubr.bf16.mxu0 %v520
  %1861 = vmatmul.mubr.bf16.gmra.mrb[0].mxu0 %v519
  %v1862 = vpop.f32.mrb[0].mxu0
  %v1863 = vadd.f32 %v1750, %v1862
  %v1864 = vpop.f32.mrb[0].mxu0
  %v1865 = vpop.f32.mrb[0].mxu0
  %v1866 = vadd.f32 %v1753, %v1865
  %v1867 = vpop.f32.mrb[0].mxu0
  %1868 = vmatprep.mubr.bf16.mxu0 %v526
  %1869 = vmatmul.mubr.bf16.gmra.mrb[0].mxu0 %v525
  %v1870 = vpop.f32.mrb[0].mxu0
  %v1871 = vadd.f32 %v1758, %v1870
  %v1872 = vpop.f32.mrb[0].mxu0
  %v1873 = vpop.f32.mrb[0].mxu0
  %v1874 = vadd.f32 %v1761, %v1873
  %v1875 = vpop.f32.mrb[0].mxu0
  %1876 = vdwg.mxu0
  %v1878 = vlaneseq
  %v1879 = vshrl.u32 %v1878, 7
  %v1880 = vsub.s32 0, %v1879
  %v1881 = vrot.slane %v33, %v1880
  %v1883 = vadd.f32 %v1799, %v1881
  %v1884 = vadd.f32 %v1802, %v1881
  %v1885 = vadd.f32 %v1807, %v1881
  %v1886 = vadd.f32 %v1810, %v1881
  %v1887 = vadd.f32 %v1815, %v1881
  %v1888 = vadd.f32 %v1818, %v1881
  %v1889 = vadd.f32 %v1823, %v1881
  %v1890 = vadd.f32 %v1826, %v1881
  %v1891 = vadd.f32 %v1831, %v1881
  %v1892 = vadd.f32 %v1834, %v1881
  %v1893 = vadd.f32 %v1839, %v1881
  %v1894 = vadd.f32 %v1842, %v1881
  %v1895 = vadd.f32 %v1847, %v1881
  %v1896 = vadd.f32 %v1850, %v1881
  %v1897 = vadd.f32 %v1855, %v1881
  %v1898 = vadd.f32 %v1858, %v1881
  %v1899 = vadd.f32 %v1863, %v1881
  %v1900 = vadd.f32 %v1866, %v1881
  %v1901 = vadd.f32 %v1871, %v1881
  %v1902 = vadd.f32 %v1874, %v1881
  %v1903 = vmax.f32 %v1883, 0.0
  %v1904 = vmax.f32 %v1884, 0.0
  %v1905 = vmax.f32 %v1885, 0.0
  %v1906 = vmax.f32 %v1886, 0.0
  %v1907 = vmax.f32 %v1887, 0.0
  %v1908 = vmax.f32 %v1888, 0.0
  %v1909 = vmax.f32 %v1889, 0.0
  %v1910 = vmax.f32 %v1890, 0.0
  %v1911 = vmax.f32 %v1891, 0.0
  %v1912 = vmax.f32 %v1892, 0.0
  %v1913 = vmax.f32 %v1893, 0.0
  %v1914 = vmax.f32 %v1894, 0.0
  %v1915 = vmax.f32 %v1895, 0.0
  %v1916 = vmax.f32 %v1896, 0.0
  %v1917 = vmax.f32 %v1897, 0.0
  %v1918 = vmax.f32 %v1898, 0.0
  %v1919 = vmax.f32 %v1899, 0.0
  %v1920 = vmax.f32 %v1900, 0.0
  %v1921 = vmax.f32 %v1901, 0.0
  %v1922 = vmax.f32 %v1902, 0.0
  %v1923 = vpack.c.bf16 %v1904, %v1903
  %v1924 = vpack.c.bf16 %v1906, %v1905
  %v1925 = vpack.c.bf16 %v1908, %v1907
  %v1926 = vpack.c.bf16 %v1910, %v1909
  %v1927 = vpack.c.bf16 %v1912, %v1911
  %v1928 = vpack.c.bf16 %v1914, %v1913
  %v1929 = vpack.c.bf16 %v1916, %v1915
  %v1930 = vpack.c.bf16 %v1918, %v1917
  %v1931 = vpack.c.bf16 %v1920, %v1919
  %v1932 = vpack.c.bf16 %v1922, %v1921
  %v1933 = vld [vmem:[%s3] sm:$0xff]
  %v1934 = vld [vmem:[%s3 + $0x8] sm:$0xf]
  %v1935 = vld [vmem:[%s3 + $0xc] sm:$0xff]
  %v1936 = vld [vmem:[%s3 + $0x14] sm:$0xf]
  %v1937 = vld [vmem:[%s3 + $0x18] sm:$0xff]
  %v1938 = vld [vmem:[%s3 + $0x20] sm:$0xf]
  %v1939 = vld [vmem:[%s3 + $0x24] sm:$0xff]
  %v1940 = vld [vmem:[%s3 + $0x2c] sm:$0xf]
  %v1941 = vld [vmem:[%s3 + $0x30] sm:$0xff]
  %v1942 = vld [vmem:[%s3 + $0x38] sm:$0xf]
  %v1943 = vld [vmem:[%s3 + $0x3c] sm:$0xff]
  %v1944 = vld [vmem:[%s3 + $0x44] sm:$0xf]
  %v1945 = vld [vmem:[%s3 + $0x48] sm:$0xff]
  %v1946 = vld [vmem:[%s3 + $0x50] sm:$0xf]
  %v1947 = vld [vmem:[%s3 + $0x54] sm:$0xff]
  %v1948 = vld [vmem:[%s3 + $0x5c] sm:$0xf]
  %v1949 = vld [vmem:[%s3 + $0x60] sm:$0xff]
  %v1950 = vld [vmem:[%s3 + $0x68] sm:$0xf]
  %v1951 = vld [vmem:[%s3 + $0x6c] sm:$0xff]
  %v1952 = vld [vmem:[%s3 + $0x74] sm:$0xf]
  %v1953 = vld [vmem:[%s3 + $0x78] sm:$0xff]
  %v1954 = vld [vmem:[%s3 + $0x80] sm:$0xf]
  %v1955 = vld [vmem:[%s3 + $0x84] sm:$0xff]
  %v1956 = vld [vmem:[%s3 + $0x8c] sm:$0xf]
  %v1957 = vld [vmem:[%s3 + $0x90] sm:$0xff]
  %v1958 = vld [vmem:[%s3 + $0x98] sm:$0xf]
  %v1959 = vld [vmem:[%s3 + $0x9c] sm:$0xff]
  %v1960 = vld [vmem:[%s3 + $0xa4] sm:$0xf]
  %v1961 = vld [vmem:[%s3 + $0xa8] sm:$0xff]
  %v1962 = vld [vmem:[%s3 + $0xb0] sm:$0xf]
  %v1963 = vld [vmem:[%s3 + $0xb4] sm:$0xff]
  %v1964 = vld [vmem:[%s3 + $0xbc] sm:$0xf]
  %v1965 = vld [vmem:[%s3 + $0xc0] sm:$0xff]
  %v1966 = vld [vmem:[%s3 + $0xc8] sm:$0xf]
  %v1967 = vld [vmem:[%s3 + $0xcc] sm:$0xff]
  %v1968 = vld [vmem:[%s3 + $0xd4] sm:$0xf]
  %v1969 = vld [vmem:[%s3 + $0xd8] sm:$0xff]
  %v1970 = vld [vmem:[%s3 + $0xe0] sm:$0xf]
  %v1971 = vld [vmem:[%s3 + $0xe4] sm:$0xff]
  %v1972 = vld [vmem:[%s3 + $0xec] sm:$0xf]
  %v1973 = vld [vmem:[%s3 + $0xf0] sm:$0xff]
  %v1974 = vld [vmem:[%s3 + $0xf8] sm:$0xf]
  %v1975 = vld [vmem:[%s3 + $0xfc] sm:$0xff]
  %v1976 = vld [vmem:[%s3 + $0x104] sm:$0xf]
  %v1977 = vld [vmem:[%s3 + $0x108] sm:$0xff]
  %v1978 = vld [vmem:[%s3 + $0x110] sm:$0xf]
  %v1979 = vld [vmem:[%s3 + $0x114] sm:$0xff]
  %v1980 = vld [vmem:[%s3 + $0x11c] sm:$0xf]
  %v1981 = vld [vmem:[%s3 + $0x120] sm:$0xff]
  %v1982 = vld [vmem:[%s3 + $0x128] sm:$0xf]
  %v1983 = vld [vmem:[%s3 + $0x12c] sm:$0xff]
  %v1984 = vld [vmem:[%s3 + $0x134] sm:$0xf]
  %v1985 = vld [vmem:[%s3 + $0x138] sm:$0xff]
  %v1986 = vld [vmem:[%s3 + $0x140] sm:$0xf]
  %v1987 = vld [vmem:[%s3 + $0x144] sm:$0xff]
  %v1988 = vld [vmem:[%s3 + $0x14c] sm:$0xf]
  %v1989 = vld [vmem:[%s3 + $0x150] sm:$0xff]
  %v1990 = vld [vmem:[%s3 + $0x158] sm:$0xf]
  %v1991 = vld [vmem:[%s3 + $0x15c] sm:$0xff]
  %v1992 = vld [vmem:[%s3 + $0x164] sm:$0xf]
  %v1993 = vld [vmem:[%s3 + $0x168] sm:$0xff]
  %v1994 = vld [vmem:[%s3 + $0x170] sm:$0xf]
  %v1995 = vld [vmem:[%s3 + $0x174] sm:$0xff]
  %v1996 = vld [vmem:[%s3 + $0x17c] sm:$0xf]
  %v1997 = vld [vmem:[%s0 + $0x10] sm:$0xff]
  %v1998 = vld [vmem:[%s0 + $0x18] sm:$0xff]
  %v1999 = vld [vmem:[%s0 + $0x20] sm:$0xff]
  %v2000 = vld [vmem:[%s0 + $0x68] sm:$0xff]
  %v2001 = vld [vmem:[%s0 + $0x70] sm:$0xff]
  %v2002 = vld [vmem:[%s0 + $0x78] sm:$0xff]
  %v2003 = vld [vmem:[%s0 + $0xc0] sm:$0xff]
  %v2004 = vld [vmem:[%s0 + $0xc8] sm:$0xff]
  %v2005 = vld [vmem:[%s0 + $0xd0] sm:$0xff]
  %v2006 = vld [vmem:[%s0 + $0x118] sm:$0xff]
  %v2007 = vld [vmem:[%s0 + $0x120] sm:$0xff]
  %v2008 = vld [vmem:[%s0 + $0x128] sm:$0xff]
  %v2009 = vld [vmem:[%s0 + $0x170] sm:$0xff]
  %v2010 = vld [vmem:[%s0 + $0x178] sm:$0xff]
  %v2011 = vld [vmem:[%s0 + $0x180] sm:$0xff]
  %v2012 = vld [vmem:[%s0 + $0x1c8] sm:$0xff]
  %v2013 = vld [vmem:[%s0 + $0x1d0] sm:$0xff]
  %v2014 = vld [vmem:[%s0 + $0x1d8] sm:$0xff]
  %v2015 = vld [vmem:[%s0 + $0x220] sm:$0xff]
  %v2016 = vld [vmem:[%s0 + $0x228] sm:$0xff]
  %v2017 = vld [vmem:[%s0 + $0x230] sm:$0xff]
  %v2018 = vld [vmem:[%s0 + $0x278] sm:$0xff]
  %v2019 = vld [vmem:[%s0 + $0x280] sm:$0xff]
  %v2020 = vld [vmem:[%s0 + $0x288] sm:$0xff]
  %v2021 = vld [vmem:[%s0 + $0x2d0] sm:$0xff]
  %v2022 = vld [vmem:[%s0 + $0x2d8] sm:$0xff]
  %v2023 = vld [vmem:[%s0 + $0x2e0] sm:$0xff]
  %v2024 = vld [vmem:[%s0 + $0x328] sm:$0xff]
  %v2025 = vld [vmem:[%s0 + $0x330] sm:$0xff]
  %v2026 = vld [vmem:[%s0 + $0x338] sm:$0xff]
  %v2027 = vld [vmem:[%s0 + $0x380] sm:$0xff]
  %v2028 = vld [vmem:[%s0 + $0x388] sm:$0xff]
  %v2029 = vld [vmem:[%s0 + $0x390] sm:$0xff]
  %v2030 = vld [vmem:[%s0 + $0x3d8] sm:$0xff]
  %v2031 = vld [vmem:[%s0 + $0x3e0] sm:$0xff]
  %v2032 = vld [vmem:[%s0 + $0x3e8] sm:$0xff]
  %v2033 = vld [vmem:[%s0 + $0x430] sm:$0xff]
  %v2034 = vld [vmem:[%s0 + $0x438] sm:$0xff]
  %v2035 = vld [vmem:[%s0 + $0x440] sm:$0xff]
  %v2036 = vld [vmem:[%s0 + $0x488] sm:$0xff]
  %v2037 = vld [vmem:[%s0 + $0x490] sm:$0xff]
  %v2038 = vld [vmem:[%s0 + $0x498] sm:$0xff]
  %v2039 = vld [vmem:[%s0 + $0x4e0] sm:$0xff]
  %v2040 = vld [vmem:[%s0 + $0x4e8] sm:$0xff]
  %v2041 = vld [vmem:[%s0 + $0x4f0] sm:$0xff]
  %v2042 = vld [vmem:[%s0 + $0x538] sm:$0xff]
  %v2043 = vld [vmem:[%s0 + $0x540] sm:$0xff]
  %v2044 = vld [vmem:[%s0 + $0x548] sm:$0xff]
  %v2045 = vld [vmem:[%s0 + $0x590] sm:$0xff]
  %v2046 = vld [vmem:[%s0 + $0x598] sm:$0xff]
  %v2047 = vld [vmem:[%s0 + $0x5a0] sm:$0xff]
  %v2048 = vld [vmem:[%s0 + $0x5e8] sm:$0xff]
  %v2049 = vld [vmem:[%s0 + $0x5f0] sm:$0xff]
  %v2050 = vld [vmem:[%s0 + $0x5f8] sm:$0xff]
  %v2051 = vld [vmem:[%s0 + $0x640] sm:$0xff]
  %v2052 = vld [vmem:[%s0 + $0x648] sm:$0xff]
  %v2053 = vld [vmem:[%s0 + $0x650] sm:$0xff]
  %v2054 = vld [vmem:[%s0 + $0x698] sm:$0xff]
  %v2055 = vld [vmem:[%s0 + $0x6a0] sm:$0xff]
  %v2056 = vld [vmem:[%s0 + $0x6a8] sm:$0xff]
  %v2057 = vld [vmem:[%s0 + $0x6f0] sm:$0xff]
  %v2058 = vld [vmem:[%s0 + $0x6f8] sm:$0xff]
  %v2059 = vld [vmem:[%s0 + $0x700] sm:$0xff]
  %v2060 = vld [vmem:[%s0 + $0x748] sm:$0xff]
  %v2061 = vld [vmem:[%s0 + $0x750] sm:$0xff]
  %v2062 = vld [vmem:[%s0 + $0x758] sm:$0xff]
  %v2123 = vunpack.c.l.b16 %v2003
  %v2124 = vunpack.c.h.b16 %v2003
  %v2125 = vunpack.c.l.b16 %v2004
  %v2126 = vunpack.c.h.b16 %v2004
  %v2127 = vunpack.c.l.b16 %v2005
  %v2128 = vunpack.c.h.b16 %v2005
  %v2129 = vunpack.c.l.b16 %v2006
  %v2130 = vunpack.c.h.b16 %v2006
  %v2131 = vunpack.c.l.b16 %v2007
  %v2132 = vunpack.c.h.b16 %v2007
  %v2133 = vunpack.c.l.b16 %v2008
  %v2134 = vunpack.c.h.b16 %v2008
  %v2135 = vunpack.c.l.b16 %v2009
  %v2136 = vunpack.c.h.b16 %v2009
  %v2137 = vunpack.c.l.b16 %v2010
  %v2138 = vunpack.c.h.b16 %v2010
  %v2139 = vunpack.c.l.b16 %v2011
  %v2140 = vunpack.c.h.b16 %v2011
  %v2141 = vunpack.c.l.b16 %v2012
  %v2142 = vunpack.c.h.b16 %v2012
  %v2143 = vunpack.c.l.b16 %v2013
  %v2144 = vunpack.c.h.b16 %v2013
  %v2145 = vunpack.c.l.b16 %v2014
  %v2146 = vunpack.c.h.b16 %v2014
  %v2147 = vunpack.c.l.b16 %v2015
  %v2148 = vunpack.c.h.b16 %v2015
  %v2149 = vunpack.c.l.b16 %v2016
  %v2150 = vunpack.c.h.b16 %v2016
  %v2151 = vunpack.c.l.b16 %v2017
  %v2152 = vunpack.c.h.b16 %v2017
  %v2153 = vunpack.c.l.b16 %v2018
  %v2154 = vunpack.c.h.b16 %v2018
  %v2155 = vunpack.c.l.b16 %v2019
  %v2156 = vunpack.c.h.b16 %v2019
  %v2157 = vunpack.c.l.b16 %v2020
  %v2158 = vunpack.c.h.b16 %v2020
  %v2159 = vunpack.c.l.b16 %v2021
  %v2160 = vunpack.c.h.b16 %v2021
  %v2161 = vunpack.c.l.b16 %v2022
  %v2162 = vunpack.c.h.b16 %v2022
  %v2163 = vunpack.c.l.b16 %v2023
  %v2164 = vunpack.c.h.b16 %v2023
  %v2165 = vunpack.c.l.b16 %v2024
  %v2166 = vunpack.c.h.b16 %v2024
  %v2167 = vunpack.c.l.b16 %v2025
  %v2168 = vunpack.c.h.b16 %v2025
  %v2169 = vunpack.c.l.b16 %v2026
  %v2170 = vunpack.c.h.b16 %v2026
  %v2171 = vunpack.c.l.b16 %v2027
  %v2172 = vunpack.c.h.b16 %v2027
  %v2173 = vunpack.c.l.b16 %v2028
  %v2174 = vunpack.c.h.b16 %v2028
  %v2175 = vunpack.c.l.b16 %v2029
  %v2176 = vunpack.c.h.b16 %v2029
  %v2177 = vunpack.c.l.b16 %v2030
  %v2178 = vunpack.c.h.b16 %v2030
  %v2179 = vunpack.c.l.b16 %v2031
  %v2180 = vunpack.c.h.b16 %v2031
  %v2181 = vunpack.c.l.b16 %v2032
  %v2182 = vunpack.c.h.b16 %v2032
  %v2183 = vunpack.c.l.b16 %v2033
  %v2184 = vunpack.c.h.b16 %v2033
  %v2185 = vunpack.c.l.b16 %v2034
  %v2186 = vunpack.c.h.b16 %v2034
  %v2187 = vunpack.c.l.b16 %v2035
  %v2188 = vunpack.c.h.b16 %v2035
  %v2189 = vunpack.c.l.b16 %v2036
  %v2190 = vunpack.c.h.b16 %v2036
  %v2191 = vunpack.c.l.b16 %v2037
  %v2192 = vunpack.c.h.b16 %v2037
  %v2193 = vunpack.c.l.b16 %v2038
  %v2194 = vunpack.c.h.b16 %v2038
  %v2195 = vunpack.c.l.b16 %v2039
  %v2196 = vunpack.c.h.b16 %v2039
  %v2197 = vunpack.c.l.b16 %v2040
  %v2198 = vunpack.c.h.b16 %v2040
  %v2199 = vunpack.c.l.b16 %v2041
  %v2200 = vunpack.c.h.b16 %v2041
  %v2201 = vunpack.c.l.b16 %v2042
  %v2202 = vunpack.c.h.b16 %v2042
  %v2203 = vunpack.c.l.b16 %v2043
  %v2204 = vunpack.c.h.b16 %v2043
  %v2205 = vunpack.c.l.b16 %v2044
  %v2206 = vunpack.c.h.b16 %v2044
  %v2207 = vunpack.c.l.b16 %v2045
  %v2208 = vunpack.c.h.b16 %v2045
  %v2209 = vunpack.c.l.b16 %v2046
  %v2210 = vunpack.c.h.b16 %v2046
  %v2211 = vunpack.c.l.b16 %v2047
  %v2212 = vunpack.c.h.b16 %v2047
  %v2213 = vunpack.c.l.b16 %v2048
  %v2214 = vunpack.c.h.b16 %v2048
  %v2215 = vunpack.c.l.b16 %v2049
  %v2216 = vunpack.c.h.b16 %v2049
  %v2217 = vunpack.c.l.b16 %v2050
  %v2218 = vunpack.c.h.b16 %v2050
  %v2219 = vunpack.c.l.b16 %v2051
  %v2220 = vunpack.c.h.b16 %v2051
  %v2221 = vunpack.c.l.b16 %v2052
  %v2222 = vunpack.c.h.b16 %v2052
  %v2223 = vunpack.c.l.b16 %v2053
  %v2224 = vunpack.c.h.b16 %v2053
  %v2225 = vunpack.c.l.b16 %v2054
  %v2226 = vunpack.c.h.b16 %v2054
  %v2227 = vunpack.c.l.b16 %v2055
  %v2228 = vunpack.c.h.b16 %v2055
  %v2229 = vunpack.c.l.b16 %v2056
  %v2230 = vunpack.c.h.b16 %v2056
  %v2231 = vunpack.c.l.b16 %v2057
  %v2232 = vunpack.c.h.b16 %v2057
  %v2233 = vunpack.c.l.b16 %v2058
  %v2234 = vunpack.c.h.b16 %v2058
  %v2235 = vunpack.c.l.b16 %v2059
  %v2236 = vunpack.c.h.b16 %v2059
  %v2237 = vunpack.c.l.b16 %v2060
  %v2238 = vunpack.c.h.b16 %v2060
  %v2239 = vunpack.c.l.b16 %v2061
  %v2240 = vunpack.c.h.b16 %v2061
  %v2241 = vunpack.c.l.b16 %v2062
  %v2242 = vunpack.c.h.b16 %v2062
  %v2243 = vpack.c.b16 %v2129, %v2123
  %v2244 = vpack.c.b16 %v2130, %v2124
  %v2245 = vpack.c.b16 %v2131, %v2125
  %v2246 = vpack.c.b16 %v2132, %v2126
  %v2247 = vpack.c.b16 %v2133, %v2127
  %v2248 = vpack.c.b16 %v2134, %v2128
  %v2249 = vpack.c.b16 %v2141, %v2135
  %v2250 = vpack.c.b16 %v2142, %v2136
  %v2251 = vpack.c.b16 %v2143, %v2137
  %v2252 = vpack.c.b16 %v2144, %v2138
  %v2253 = vpack.c.b16 %v2145, %v2139
  %v2254 = vpack.c.b16 %v2146, %v2140
  %v2255 = vpack.c.b16 %v2153, %v2147
  %v2256 = vpack.c.b16 %v2154, %v2148
  %v2257 = vpack.c.b16 %v2155, %v2149
  %v2258 = vpack.c.b16 %v2156, %v2150
  %v2259 = vpack.c.b16 %v2157, %v2151
  %v2260 = vpack.c.b16 %v2158, %v2152
  %v2261 = vpack.c.b16 %v2165, %v2159
  %v2262 = vpack.c.b16 %v2166, %v2160
  %v2263 = vpack.c.b16 %v2167, %v2161
  %v2264 = vpack.c.b16 %v2168, %v2162
  %v2265 = vpack.c.b16 %v2169, %v2163
  %v2266 = vpack.c.b16 %v2170, %v2164
  %v2267 = vpack.c.b16 %v2177, %v2171
  %v2268 = vpack.c.b16 %v2178, %v2172
  %v2269 = vpack.c.b16 %v2179, %v2173
  %v2270 = vpack.c.b16 %v2180, %v2174
  %v2271 = vpack.c.b16 %v2181, %v2175
  %v2272 = vpack.c.b16 %v2182, %v2176
  %v2273 = vpack.c.b16 %v2189, %v2183
  %v2274 = vpack.c.b16 %v2190, %v2184
  %v2275 = vpack.c.b16 %v2191, %v2185
  %v2276 = vpack.c.b16 %v2192, %v2186
  %v2277 = vpack.c.b16 %v2193, %v2187
  %v2278 = vpack.c.b16 %v2194, %v2188
  %v2279 = vpack.c.b16 %v2201, %v2195
  %v2280 = vpack.c.b16 %v2202, %v2196
  %v2281 = vpack.c.b16 %v2203, %v2197
  %v2282 = vpack.c.b16 %v2204, %v2198
  %v2283 = vpack.c.b16 %v2205, %v2199
  %v2284 = vpack.c.b16 %v2206, %v2200
  %v2285 = vpack.c.b16 %v2213, %v2207
  %v2286 = vpack.c.b16 %v2214, %v2208
  %v2287 = vpack.c.b16 %v2215, %v2209
  %v2288 = vpack.c.b16 %v2216, %v2210
  %v2289 = vpack.c.b16 %v2217, %v2211
  %v2290 = vpack.c.b16 %v2218, %v2212
  %v2291 = vpack.c.b16 %v2225, %v2219
  %v2292 = vpack.c.b16 %v2226, %v2220
  %v2293 = vpack.c.b16 %v2227, %v2221
  %v2294 = vpack.c.b16 %v2228, %v2222
  %v2295 = vpack.c.b16 %v2229, %v2223
  %v2296 = vpack.c.b16 %v2230, %v2224
  %v2297 = vpack.c.b16 %v2237, %v2231
  %v2298 = vpack.c.b16 %v2238, %v2232
  %v2299 = vpack.c.b16 %v2239, %v2233
  %v2300 = vpack.c.b16 %v2240, %v2234
  %v2301 = vpack.c.b16 %v2241, %v2235
  %v2302 = vpack.c.b16 %v2242, %v2236
  %2363 = vmatprep.subr.bf16.mxu0 0
  %2364 = vmatpush1.bf16.msra.mxu0 %v785
  %2365 = vmatprep.subr.bf16.mxu0 0
  %2366 = vmatpush1.bf16.msra.mxu0 %v786
  %2367 = vmatprep.subr.bf16.mxu0 0
  %2368 = vmatpush1.bf16.msra.mxu0 %v787
  %2369 = vmatprep.subr.bf16.mxu0 0
  %2370 = vmatpush1.bf16.msra.mxu0 %v788
  %2371 = vmatprep.subr.bf16.mxu0 0
  %2372 = vmatpush1.bf16.msra.mxu0 %v789
  %2373 = vmatprep.subr.bf16.mxu0 0
  %2374 = vmatpush1.bf16.msra.mxu0 %v790
  %2375 = vmatprep.subr.bf16.mxu0 0
  %2376 = vmatpush1.bf16.msra.mxu0 %v791
  %2377 = vmatprep.subr.bf16.mxu0 0
  %2378 = vmatpush1.bf16.msra.mxu0 %v792
  %2379 = vmatprep.subr.bf16.mxu0 0
  %2380 = vmatpush1.bf16.msra.mxu0 %v793
  %2381 = vmatprep.subr.bf16.mxu0 0
  %2382 = vmatpush1.bf16.msra.mxu0 %v794
  %2383 = vmatprep.subr.bf16.mxu0 0
  %2384 = vmatpush1.bf16.msra.mxu0 %v795
  %2385 = vmatprep.subr.bf16.mxu0 0
  %2386 = vmatpush1.bf16.msra.mxu0 %v796
  %2387 = vmatprep.subr.bf16.mxu0 0
  %2388 = vmatpush1.bf16.msra.mxu0 %v797
  %2389 = vmatprep.subr.bf16.mxu0 0
  %2390 = vmatpush1.bf16.msra.mxu0 %v798
  %2391 = vmatprep.subr.bf16.mxu0 0
  %2392 = vmatpush1.bf16.msra.mxu0 %v799
  %2393 = vmatprep.subr.bf16.mxu0 0
  %2394 = vmatpush1.bf16.msra.mxu0 %v800
  %2395 = vmatprep.mubr.bf16.mxu0 %v2244
  %2396 = vmatmul.mubr.bf16.gmra.mrb[0].mxu0 %v2243
  %v2397 = vpop.f32.mrb[0].mxu0
  %v2398 = vadd.f32 0.0, %v2397
  %v2399 = vpop.f32.mrb[0].mxu0
  %v2400 = vpop.f32.mrb[0].mxu0
  %v2401 = vadd.f32 0.0, %v2400
  %v2402 = vpop.f32.mrb[0].mxu0
  %2403 = vmatprep.mubr.bf16.mxu0 %v2250
  %2404 = vmatmul.mubr.bf16.gmra.mrb[0].mxu0 %v2249
  %v2405 = vpop.f32.mrb[0].mxu0
  %v2406 = vadd.f32 0.0, %v2405
  %v2407 = vpop.f32.mrb[0].mxu0
  %v2408 = vpop.f32.mrb[0].mxu0
  %v2409 = vadd.f32 0.0, %v2408
  %v2410 = vpop.f32.mrb[0].mxu0
  %2411 = vmatprep.mubr.bf16.mxu0 %v2256
  %2412 = vmatmul.mubr.bf16.gmra.mrb[0].mxu0 %v2255
  %v2413 = vpop.f32.mrb[0].mxu0
  %v2414 = vadd.f32 0.0, %v2413
  %v2415 = vpop.f32.mrb[0].mxu0
  %v2416 = vpop.f32.mrb[0].mxu0
  %v2417 = vadd.f32 0.0, %v2416
  %v2418 = vpop.f32.mrb[0].mxu0
  %2419 = vmatprep.mubr.bf16.mxu0 %v2262
  %2420 = vmatmul.mubr.bf16.gmra.mrb[0].mxu0 %v2261
  %v2421 = vpop.f32.mrb[0].mxu0
  %v2422 = vadd.f32 0.0, %v2421
  %v2423 = vpop.f32.mrb[0].mxu0
  %v2424 = vpop.f32.mrb[0].mxu0
  %v2425 = vadd.f32 0.0, %v2424
  %v2426 = vpop.f32.mrb[0].mxu0
  %2427 = vmatprep.mubr.bf16.mxu0 %v2268
  %2428 = vmatmul.mubr.bf16.gmra.mrb[0].mxu0 %v2267
  %v2429 = vpop.f32.mrb[0].mxu0
  %v2430 = vadd.f32 0.0, %v2429
  %v2431 = vpop.f32.mrb[0].mxu0
  %v2432 = vpop.f32.mrb[0].mxu0
  %v2433 = vadd.f32 0.0, %v2432
  %v2434 = vpop.f32.mrb[0].mxu0
  %2435 = vmatprep.mubr.bf16.mxu0 %v2274
  %2436 = vmatmul.mubr.bf16.gmra.mrb[0].mxu0 %v2273
  %v2437 = vpop.f32.mrb[0].mxu0
  %v2438 = vadd.f32 0.0, %v2437
  %v2439 = vpop.f32.mrb[0].mxu0
  %v2440 = vpop.f32.mrb[0].mxu0
  %v2441 = vadd.f32 0.0, %v2440
  %v2442 = vpop.f32.mrb[0].mxu0
  %2443 = vmatprep.mubr.bf16.mxu0 %v2280
  %2444 = vmatmul.mubr.bf16.gmra.mrb[0].mxu0 %v2279
  %v2445 = vpop.f32.mrb[0].mxu0
  %v2446 = vadd.f32 0.0, %v2445
  %v2447 = vpop.f32.mrb[0].mxu0
  %v2448 = vpop.f32.mrb[0].mxu0
  %v2449 = vadd.f32 0.0, %v2448
  %v2450 = vpop.f32.mrb[0].mxu0
  %2451 = vmatprep.mubr.bf16.mxu0 %v2286
  %2452 = vmatmul.mubr.bf16.gmra.mrb[0].mxu0 %v2285
  %v2453 = vpop.f32.mrb[0].mxu0
  %v2454 = vadd.f32 0.0, %v2453
  %v2455 = vpop.f32.mrb[0].mxu0
  %v2456 = vpop.f32.mrb[0].mxu0
  %v2457 = vadd.f32 0.0, %v2456
  %v2458 = vpop.f32.mrb[0].mxu0
  %2459 = vmatprep.mubr.bf16.mxu0 %v2292
  %2460 = vmatmul.mubr.bf16.gmra.mrb[0].mxu0 %v2291
  %v2461 = vpop.f32.mrb[0].mxu0
  %v2462 = vadd.f32 0.0, %v2461
  %v2463 = vpop.f32.mrb[0].mxu0
  %v2464 = vpop.f32.mrb[0].mxu0
  %v2465 = vadd.f32 0.0, %v2464
  %v2466 = vpop.f32.mrb[0].mxu0
  %2467 = vmatprep.mubr.bf16.mxu0 %v2298
  %2468 = vmatmul.mubr.bf16.gmra.mrb[0].mxu0 %v2297
  %v2469 = vpop.f32.mrb[0].mxu0
  %v2470 = vadd.f32 0.0, %v2469
  %v2471 = vpop.f32.mrb[0].mxu0
  %v2472 = vpop.f32.mrb[0].mxu0
  %v2473 = vadd.f32 0.0, %v2472
  %v2474 = vpop.f32.mrb[0].mxu0
  %2475 = vdwg.mxu0
  %2476 = vmatprep.subr.bf16.mxu0 0
  %2477 = vmatpush1.bf16.msra.mxu0 %v801
  %2478 = vmatprep.subr.bf16.mxu0 0
  %2479 = vmatpush1.bf16.msra.mxu0 %v802
  %2480 = vmatprep.subr.bf16.mxu0 0
  %2481 = vmatpush1.bf16.msra.mxu0 %v803
  %2482 = vmatprep.subr.bf16.mxu0 0
  %2483 = vmatpush1.bf16.msra.mxu0 %v804
  %2484 = vmatprep.subr.bf16.mxu0 0
  %2485 = vmatpush1.bf16.msra.mxu0 %v805
  %2486 = vmatprep.subr.bf16.mxu0 0
  %2487 = vmatpush1.bf16.msra.mxu0 %v806
  %2488 = vmatprep.subr.bf16.mxu0 0
  %2489 = vmatpush1.bf16.msra.mxu0 %v807
  %2490 = vmatprep.subr.bf16.mxu0 0
  %2491 = vmatpush1.bf16.msra.mxu0 %v808
  %2492 = vmatprep.subr.bf16.mxu0 0
  %2493 = vmatpush1.bf16.msra.mxu0 %v809
  %2494 = vmatprep.subr.bf16.mxu0 0
  %2495 = vmatpush1.bf16.msra.mxu0 %v810
  %2496 = vmatprep.subr.bf16.mxu0 0
  %2497 = vmatpush1.bf16.msra.mxu0 %v811
  %2498 = vmatprep.subr.bf16.mxu0 0
  %2499 = vmatpush1.bf16.msra.mxu0 %v812
  %2500 = vmatprep.subr.bf16.mxu0 0
  %2501 = vmatpush1.bf16.msra.mxu0 %v813
  %2502 = vmatprep.subr.bf16.mxu0 0
  %2503 = vmatpush1.bf16.msra.mxu0 %v814
  %2504 = vmatprep.subr.bf16.mxu0 0
  %2505 = vmatpush1.bf16.msra.mxu0 %v815
  %2506 = vmatprep.subr.bf16.mxu0 0
  %2507 = vmatpush1.bf16.msra.mxu0 %v816
  %2508 = vmatprep.mubr.bf16.mxu0 %v2246
  %2509 = vmatmul.mubr.bf16.gmra.mrb[0].mxu0 %v2245
  %v2510 = vpop.f32.mrb[0].mxu0
  %v2511 = vadd.f32 %v2398, %v2510
  %v2512 = vpop.f32.mrb[0].mxu0
  %v2513 = vpop.f32.mrb[0].mxu0
  %v2514 = vadd.f32 %v2401, %v2513
  %v2515 = vpop.f32.mrb[0].mxu0
  %2516 = vmatprep.mubr.bf16.mxu0 %v2252
  %2517 = vmatmul.mubr.bf16.gmra.mrb[0].mxu0 %v2251
  %v2518 = vpop.f32.mrb[0].mxu0
  %v2519 = vadd.f32 %v2406, %v2518
  %v2520 = vpop.f32.mrb[0].mxu0
  %v2521 = vpop.f32.mrb[0].mxu0
  %v2522 = vadd.f32 %v2409, %v2521
  %v2523 = vpop.f32.mrb[0].mxu0
  %2524 = vmatprep.mubr.bf16.mxu0 %v2258
  %2525 = vmatmul.mubr.bf16.gmra.mrb[0].mxu0 %v2257
  %v2526 = vpop.f32.mrb[0].mxu0
  %v2527 = vadd.f32 %v2414, %v2526
  %v2528 = vpop.f32.mrb[0].mxu0
  %v2529 = vpop.f32.mrb[0].mxu0
  %v2530 = vadd.f32 %v2417, %v2529
  %v2531 = vpop.f32.mrb[0].mxu0
  %2532 = vmatprep.mubr.bf16.mxu0 %v2264
  %2533 = vmatmul.mubr.bf16.gmra.mrb[0].mxu0 %v2263
  %v2534 = vpop.f32.mrb[0].mxu0
  %v2535 = vadd.f32 %v2422, %v2534
  %v2536 = vpop.f32.mrb[0].mxu0
  %v2537 = vpop.f32.mrb[0].mxu0
  %v2538 = vadd.f32 %v2425, %v2537
  %v2539 = vpop.f32.mrb[0].mxu0
  %2540 = vmatprep.mubr.bf16.mxu0 %v2270
  %2541 = vmatmul.mubr.bf16.gmra.mrb[0].mxu0 %v2269
  %v2542 = vpop.f32.mrb[0].mxu0
  %v2543 = vadd.f32 %v2430, %v2542
  %v2544 = vpop.f32.mrb[0].mxu0
  %v2545 = vpop.f32.mrb[0].mxu0
  %v2546 = vadd.f32 %v2433, %v2545
  %v2547 = vpop.f32.mrb[0].mxu0
  %2548 = vmatprep.mubr.bf16.mxu0 %v2276
  %2549 = vmatmul.mubr.bf16.gmra.mrb[0].mxu0 %v2275
  %v2550 = vpop.f32.mrb[0].mxu0
  %v2551 = vadd.f32 %v2438, %v2550
  %v2552 = vpop.f32.mrb[0].mxu0
  %v2553 = vpop.f32.mrb[0].mxu0
  %v2554 = vadd.f32 %v2441, %v2553
  %v2555 = vpop.f32.mrb[0].mxu0
  %2556 = vmatprep.mubr.bf16.mxu0 %v2282
  %2557 = vmatmul.mubr.bf16.gmra.mrb[0].mxu0 %v2281
  %v2558 = vpop.f32.mrb[0].mxu0
  %v2559 = vadd.f32 %v2446, %v2558
  %v2560 = vpop.f32.mrb[0].mxu0
  %v2561 = vpop.f32.mrb[0].mxu0
  %v2562 = vadd.f32 %v2449, %v2561
  %v2563 = vpop.f32.mrb[0].mxu0
  %2564 = vmatprep.mubr.bf16.mxu0 %v2288
  %2565 = vmatmul.mubr.bf16.gmra.mrb[0].mxu0 %v2287
  %v2566 = vpop.f32.mrb[0].mxu0
  %v2567 = vadd.f32 %v2454, %v2566
  %v2568 = vpop.f32.mrb[0].mxu0
  %v2569 = vpop.f32.mrb[0].mxu0
  %v2570 = vadd.f32 %v2457, %v2569
  %v2571 = vpop.f32.mrb[0].mxu0
  %2572 = vmatprep.mubr.bf16.mxu0 %v2294
  %2573 = vmatmul.mubr.bf16.gmra.mrb[0].mxu0 %v2293
  %v2574 = vpop.f32.mrb[0].mxu0
  %v2575 = vadd.f32 %v2462, %v2574
  %v2576 = vpop.f32.mrb[0].mxu0
  %v2577 = vpop.f32.mrb[0].mxu0
  %v2578 = vadd.f32 %v2465, %v2577
  %v2579 = vpop.f32.mrb[0].mxu0
  %2580 = vmatprep.mubr.bf16.mxu0 %v2300
  %2581 = vmatmul.mubr.bf16.gmra.mrb[0].mxu0 %v2299
  %v2582 = vpop.f32.mrb[0].mxu0
  %v2583 = vadd.f32 %v2470, %v2582
  %v2584 = vpop.f32.mrb[0].mxu0
  %v2585 = vpop.f32.mrb[0].mxu0
  %v2586 = vadd.f32 %v2473, %v2585
  %v2587 = vpop.f32.mrb[0].mxu0
  %2588 = vdwg.mxu0
  %2589 = vmatprep.subr.bf16.mxu0 0
  %2590 = vmatpush1.bf16.msra.mxu0 %v817
  %2591 = vmatprep.subr.bf16.mxu0 0
  %2592 = vmatpush1.bf16.msra.mxu0 %v818
  %2593 = vmatprep.subr.bf16.mxu0 0
  %2594 = vmatpush1.bf16.msra.mxu0 %v819
  %2595 = vmatprep.subr.bf16.mxu0 0
  %2596 = vmatpush1.bf16.msra.mxu0 %v820
  %2597 = vmatprep.subr.bf16.mxu0 0
  %2598 = vmatpush1.bf16.msra.mxu0 %v821
  %2599 = vmatprep.subr.bf16.mxu0 0
  %2600 = vmatpush1.bf16.msra.mxu0 %v822
  %2601 = vmatprep.subr.bf16.mxu0 0
  %2602 = vmatpush1.bf16.msra.mxu0 %v823
  %2603 = vmatprep.subr.bf16.mxu0 0
  %2604 = vmatpush1.bf16.msra.mxu0 %v824
  %2605 = vmatprep.subr.bf16.mxu0 0
  %2606 = vmatpush1.bf16.msra.mxu0 %v825
  %2607 = vmatprep.subr.bf16.mxu0 0
  %2608 = vmatpush1.bf16.msra.mxu0 %v826
  %2609 = vmatprep.subr.bf16.mxu0 0
  %2610 = vmatpush1.bf16.msra.mxu0 %v827
  %2611 = vmatprep.subr.bf16.mxu0 0
  %2612 = vmatpush1.bf16.msra.mxu0 %v828
  %2613 = vmatprep.subr.bf16.mxu0 0
  %2614 = vmatpush1.bf16.msra.mxu0 %v829
  %2615 = vmatprep.subr.bf16.mxu0 0
  %2616 = vmatpush1.bf16.msra.mxu0 %v830
  %2617 = vmatprep.subr.bf16.mxu0 0
  %2618 = vmatpush1.bf16.msra.mxu0 %v831
  %2619 = vmatprep.subr.bf16.mxu0 0
  %2620 = vmatpush1.bf16.msra.mxu0 %v832
  %2621 = vmatprep.mubr.bf16.mxu0 %v2248
  %2622 = vmatmul.mubr.bf16.gmra.mrb[0].mxu0 %v2247
  %v2623 = vpop.f32.mrb[0].mxu0
  %v2624 = vadd.f32 %v2511, %v2623
  %v2625 = vpop.f32.mrb[0].mxu0
  %v2626 = vpop.f32.mrb[0].mxu0
  %v2627 = vadd.f32 %v2514, %v2626
  %v2628 = vpop.f32.mrb[0].mxu0
  %2629 = vmatprep.mubr.bf16.mxu0 %v2254
  %2630 = vmatmul.mubr.bf16.gmra.mrb[0].mxu0 %v2253
  %v2631 = vpop.f32.mrb[0].mxu0
  %v2632 = vadd.f32 %v2519, %v2631
  %v2633 = vpop.f32.mrb[0].mxu0
  %v2634 = vpop.f32.mrb[0].mxu0
  %v2635 = vadd.f32 %v2522, %v2634
  %v2636 = vpop.f32.mrb[0].mxu0
  %2637 = vmatprep.mubr.bf16.mxu0 %v2260
  %2638 = vmatmul.mubr.bf16.gmra.mrb[0].mxu0 %v2259
  %v2639 = vpop.f32.mrb[0].mxu0
  %v2640 = vadd.f32 %v2527, %v2639
  %v2641 = vpop.f32.mrb[0].mxu0
  %v2642 = vpop.f32.mrb[0].mxu0
  %v2643 = vadd.f32 %v2530, %v2642
  %v2644 = vpop.f32.mrb[0].mxu0
  %2645 = vmatprep.mubr.bf16.mxu0 %v2266
  %2646 = vmatmul.mubr.bf16.gmra.mrb[0].mxu0 %v2265
  %v2647 = vpop.f32.mrb[0].mxu0
  %v2648 = vadd.f32 %v2535, %v2647
  %v2649 = vpop.f32.mrb[0].mxu0
  %v2650 = vpop.f32.mrb[0].mxu0
  %v2651 = vadd.f32 %v2538, %v2650
  %v2652 = vpop.f32.mrb[0].mxu0
  %2653 = vmatprep.mubr.bf16.mxu0 %v2272
  %2654 = vmatmul.mubr.bf16.gmra.mrb[0].mxu0 %v2271
  %v2655 = vpop.f32.mrb[0].mxu0
  %v2656 = vadd.f32 %v2543, %v2655
  %v2657 = vpop.f32.mrb[0].mxu0
  %v2658 = vpop.f32.mrb[0].mxu0
  %v2659 = vadd.f32 %v2546, %v2658
  %v2660 = vpop.f32.mrb[0].mxu0
  %2661 = vmatprep.mubr.bf16.mxu0 %v2278
  %2662 = vmatmul.mubr.bf16.gmra.mrb[0].mxu0 %v2277
  %v2663 = vpop.f32.mrb[0].mxu0
  %v2664 = vadd.f32 %v2551, %v2663
  %v2665 = vpop.f32.mrb[0].mxu0
  %v2666 = vpop.f32.mrb[0].mxu0
  %v2667 = vadd.f32 %v2554, %v2666
  %v2668 = vpop.f32.mrb[0].mxu0
  %2669 = vmatprep.mubr.bf16.mxu0 %v2284
  %2670 = vmatmul.mubr.bf16.gmra.mrb[0].mxu0 %v2283
  %v2671 = vpop.f32.mrb[0].mxu0
  %v2672 = vadd.f32 %v2559, %v2671
  %v2673 = vpop.f32.mrb[0].mxu0
  %v2674 = vpop.f32.mrb[0].mxu0
  %v2675 = vadd.f32 %v2562, %v2674
  %v2676 = vpop.f32.mrb[0].mxu0
  %2677 = vmatprep.mubr.bf16.mxu0 %v2290
  %2678 = vmatmul.mubr.bf16.gmra.mrb[0].mxu0 %v2289
  %v2679 = vpop.f32.mrb[0].mxu0
  %v2680 = vadd.f32 %v2567, %v2679
  %v2681 = vpop.f32.mrb[0].mxu0
  %v2682 = vpop.f32.mrb[0].mxu0
  %v2683 = vadd.f32 %v2570, %v2682
  %v2684 = vpop.f32.mrb[0].mxu0
  %2685 = vmatprep.mubr.bf16.mxu0 %v2296
  %2686 = vmatmul.mubr.bf16.gmra.mrb[0].mxu0 %v2295
  %v2687 = vpop.f32.mrb[0].mxu0
  %v2688 = vadd.f32 %v2575, %v2687
  %v2689 = vpop.f32.mrb[0].mxu0
  %v2690 = vpop.f32.mrb[0].mxu0
  %v2691 = vadd.f32 %v2578, %v2690
  %v2692 = vpop.f32.mrb[0].mxu0
  %2693 = vmatprep.mubr.bf16.mxu0 %v2302
  %2694 = vmatmul.mubr.bf16.gmra.mrb[0].mxu0 %v2301
  %v2695 = vpop.f32.mrb[0].mxu0
  %v2696 = vadd.f32 %v2583, %v2695
  %v2697 = vpop.f32.mrb[0].mxu0
  %v2698 = vpop.f32.mrb[0].mxu0
  %v2699 = vadd.f32 %v2586, %v2698
  %v2700 = vpop.f32.mrb[0].mxu0
  %2701 = vdwg.mxu0
  %v2708 = vunpack.c.l.b16 %v1997
  %v2709 = vunpack.c.h.b16 %v1997
  %v2710 = vunpack.c.l.b16 %v1998
  %v2711 = vunpack.c.h.b16 %v1998
  %v2712 = vunpack.c.l.b16 %v1999
  %v2713 = vunpack.c.h.b16 %v1999
  %v2714 = vunpack.c.l.b16 %v2000
  %v2715 = vunpack.c.h.b16 %v2000
  %v2716 = vunpack.c.l.b16 %v2001
  %v2717 = vunpack.c.h.b16 %v2001
  %v2718 = vunpack.c.l.b16 %v2002
  %v2719 = vunpack.c.h.b16 %v2002
  %v2720 = vpack.c.b16 %v2714, %v2708
  %v2721 = vpack.c.b16 %v2715, %v2709
  %v2722 = vpack.c.b16 %v2716, %v2710
  %v2723 = vpack.c.b16 %v2717, %v2711
  %v2724 = vpack.c.b16 %v2718, %v2712
  %v2725 = vpack.c.b16 %v2719, %v2713
  %2732 = vmatprep.subr.bf16.mxu0 0
  %2733 = vmatpush1.bf16.msra.mxu0 %v1442
  %2734 = vmatprep.subr.bf16.mxu0 0
  %2735 = vmatpush1.bf16.msra.mxu0 %v1443
  %2736 = vmatprep.subr.bf16.mxu0 0
  %2737 = vmatpush1.bf16.msra.mxu0 %v1444
  %2738 = vmatprep.subr.bf16.mxu0 0
  %2739 = vmatpush1.bf16.msra.mxu0 %v1445
  %2740 = vmatprep.subr.bf16.mxu0 0
  %2741 = vmatpush1.bf16.msra.mxu0 %v1446
  %2742 = vmatprep.subr.bf16.mxu0 0
  %2743 = vmatpush1.bf16.msra.mxu0 %v1447
  %2744 = vmatprep.subr.bf16.mxu0 0
  %2745 = vmatpush1.bf16.msra.mxu0 %v1448
  %2746 = vmatprep.subr.bf16.mxu0 0
  %2747 = vmatpush1.bf16.msra.mxu0 %v1449
  %2748 = vmatprep.subr.bf16.mxu0 0
  %2749 = vmatpush1.bf16.msra.mxu0 %v1450
  %2750 = vmatprep.subr.bf16.mxu0 0
  %2751 = vmatpush1.bf16.msra.mxu0 %v1451
  %2752 = vmatprep.subr.bf16.mxu0 0
  %2753 = vmatpush1.bf16.msra.mxu0 %v1452
  %2754 = vmatprep.subr.bf16.mxu0 0
  %2755 = vmatpush1.bf16.msra.mxu0 %v1453
  %2756 = vmatprep.subr.bf16.mxu0 0
  %2757 = vmatpush1.bf16.msra.mxu0 %v1454
  %2758 = vmatprep.subr.bf16.mxu0 0
  %2759 = vmatpush1.bf16.msra.mxu0 %v1455
  %2760 = vmatprep.subr.bf16.mxu0 0
  %2761 = vmatpush1.bf16.msra.mxu0 %v1456
  %2762 = vmatprep.subr.bf16.mxu0 0
  %2763 = vmatpush1.bf16.msra.mxu0 %v1457
  %2764 = vmatprep.mubr.bf16.mxu0 %v2721
  %2765 = vmatmul.mubr.bf16.gmra.mrb[0].mxu0 %v2720
  %v2766 = vpop.f32.mrb[0].mxu0
  %v2767 = vadd.f32 %v2624, %v2766
  %v2768 = vpop.f32.mrb[0].mxu0
  %v2769 = vpop.f32.mrb[0].mxu0
  %v2770 = vadd.f32 %v2627, %v2769
  %v2771 = vpop.f32.mrb[0].mxu0
  %2772 = vmatprep.mubr.bf16.mxu0 %v2244
  %2773 = vmatmul.mubr.bf16.gmra.mrb[0].mxu0 %v2243
  %v2774 = vpop.f32.mrb[0].mxu0
  %v2775 = vadd.f32 %v2632, %v2774
  %v2776 = vpop.f32.mrb[0].mxu0
  %v2777 = vpop.f32.mrb[0].mxu0
  %v2778 = vadd.f32 %v2635, %v2777
  %v2779 = vpop.f32.mrb[0].mxu0
  %2780 = vmatprep.mubr.bf16.mxu0 %v2250
  %2781 = vmatmul.mubr.bf16.gmra.mrb[0].mxu0 %v2249
  %v2782 = vpop.f32.mrb[0].mxu0
  %v2783 = vadd.f32 %v2640, %v2782
  %v2784 = vpop.f32.mrb[0].mxu0
  %v2785 = vpop.f32.mrb[0].mxu0
  %v2786 = vadd.f32 %v2643, %v2785
  %v2787 = vpop.f32.mrb[0].mxu0
  %2788 = vmatprep.mubr.bf16.mxu0 %v2256
  %2789 = vmatmul.mubr.bf16.gmra.mrb[0].mxu0 %v2255
  %v2790 = vpop.f32.mrb[0].mxu0
  %v2791 = vadd.f32 %v2648, %v2790
  %v2792 = vpop.f32.mrb[0].mxu0
  %v2793 = vpop.f32.mrb[0].mxu0
  %v2794 = vadd.f32 %v2651, %v2793
  %v2795 = vpop.f32.mrb[0].mxu0
  %2796 = vmatprep.mubr.bf16.mxu0 %v2262
  %2797 = vmatmul.mubr.bf16.gmra.mrb[0].mxu0 %v2261
  %v2798 = vpop.f32.mrb[0].mxu0
  %v2799 = vadd.f32 %v2656, %v2798
  %v2800 = vpop.f32.mrb[0].mxu0
  %v2801 = vpop.f32.mrb[0].mxu0
  %v2802 = vadd.f32 %v2659, %v2801
  %v2803 = vpop.f32.mrb[0].mxu0
  %2804 = vmatprep.mubr.bf16.mxu0 %v2268
  %2805 = vmatmul.mubr.bf16.gmra.mrb[0].mxu0 %v2267
  %v2806 = vpop.f32.mrb[0].mxu0
  %v2807 = vadd.f32 %v2664, %v2806
  %v2808 = vpop.f32.mrb[0].mxu0
  %v2809 = vpop.f32.mrb[0].mxu0
  %v2810 = vadd.f32 %v2667, %v2809
  %v2811 = vpop.f32.mrb[0].mxu0
  %2812 = vmatprep.mubr.bf16.mxu0 %v2274
  %2813 = vmatmul.mubr.bf16.gmra.mrb[0].mxu0 %v2273
  %v2814 = vpop.f32.mrb[0].mxu0
  %v2815 = vadd.f32 %v2672, %v2814
  %v2816 = vpop.f32.mrb[0].mxu0
  %v2817 = vpop.f32.mrb[0].mxu0
  %v2818 = vadd.f32 %v2675, %v2817
  %v2819 = vpop.f32.mrb[0].mxu0
  %2820 = vmatprep.mubr.bf16.mxu0 %v2280
  %2821 = vmatmul.mubr.bf16.gmra.mrb[0].mxu0 %v2279
  %v2822 = vpop.f32.mrb[0].mxu0
  %v2823 = vadd.f32 %v2680, %v2822
  %v2824 = vpop.f32.mrb[0].mxu0
  %v2825 = vpop.f32.mrb[0].mxu0
  %v2826 = vadd.f32 %v2683, %v2825
  %v2827 = vpop.f32.mrb[0].mxu0
  %2828 = vmatprep.mubr.bf16.mxu0 %v2286
  %2829 = vmatmul.mubr.bf16.gmra.mrb[0].mxu0 %v2285
  %v2830 = vpop.f32.mrb[0].mxu0
  %v2831 = vadd.f32 %v2688, %v2830
  %v2832 = vpop.f32.mrb[0].mxu0
  %v2833 = vpop.f32.mrb[0].mxu0
  %v2834 = vadd.f32 %v2691, %v2833
  %v2835 = vpop.f32.mrb[0].mxu0
  %2836 = vmatprep.mubr.bf16.mxu0 %v2292
  %2837 = vmatmul.mubr.bf16.gmra.mrb[0].mxu0 %v2291
  %v2838 = vpop.f32.mrb[0].mxu0
  %v2839 = vadd.f32 %v2696, %v2838
  %v2840 = vpop.f32.mrb[0].mxu0
  %v2841 = vpop.f32.mrb[0].mxu0
  %v2842 = vadd.f32 %v2699, %v2841
  %v2843 = vpop.f32.mrb[0].mxu0
  %2844 = vdwg.mxu0
  %2845 = vmatprep.subr.bf16.mxu0 0
  %2846 = vmatpush1.bf16.msra.mxu0 %v1458
  %2847 = vmatprep.subr.bf16.mxu0 0
  %2848 = vmatpush1.bf16.msra.mxu0 %v1459
  %2849 = vmatprep.subr.bf16.mxu0 0
  %2850 = vmatpush1.bf16.msra.mxu0 %v1460
  %2851 = vmatprep.subr.bf16.mxu0 0
  %2852 = vmatpush1.bf16.msra.mxu0 %v1461
  %2853 = vmatprep.subr.bf16.mxu0 0
  %2854 = vmatpush1.bf16.msra.mxu0 %v1462
  %2855 = vmatprep.subr.bf16.mxu0 0
  %2856 = vmatpush1.bf16.msra.mxu0 %v1463
  %2857 = vmatprep.subr.bf16.mxu0 0
  %2858 = vmatpush1.bf16.msra.mxu0 %v1464
  %2859 = vmatprep.subr.bf16.mxu0 0
  %2860 = vmatpush1.bf16.msra.mxu0 %v1465
  %2861 = vmatprep.subr.bf16.mxu0 0
  %2862 = vmatpush1.bf16.msra.mxu0 %v1466
  %2863 = vmatprep.subr.bf16.mxu0 0
  %2864 = vmatpush1.bf16.msra.mxu0 %v1467
  %2865 = vmatprep.subr.bf16.mxu0 0
  %2866 = vmatpush1.bf16.msra.mxu0 %v1468
  %2867 = vmatprep.subr.bf16.mxu0 0
  %2868 = vmatpush1.bf16.msra.mxu0 %v1469
  %2869 = vmatprep.subr.bf16.mxu0 0
  %2870 = vmatpush1.bf16.msra.mxu0 %v1470
  %2871 = vmatprep.subr.bf16.mxu0 0
  %2872 = vmatpush1.bf16.msra.mxu0 %v1471
  %2873 = vmatprep.subr.bf16.mxu0 0
  %2874 = vmatpush1.bf16.msra.mxu0 %v1472
  %2875 = vmatprep.subr.bf16.mxu0 0
  %2876 = vmatpush1.bf16.msra.mxu0 %v1473
  %2877 = vmatprep.mubr.bf16.mxu0 %v2723
  %2878 = vmatmul.mubr.bf16.gmra.mrb[0].mxu0 %v2722
  %v2879 = vpop.f32.mrb[0].mxu0
  %v2880 = vadd.f32 %v2767, %v2879
  %v2881 = vpop.f32.mrb[0].mxu0
  %v2882 = vpop.f32.mrb[0].mxu0
  %v2883 = vadd.f32 %v2770, %v2882
  %v2884 = vpop.f32.mrb[0].mxu0
  %2885 = vmatprep.mubr.bf16.mxu0 %v2246
  %2886 = vmatmul.mubr.bf16.gmra.mrb[0].mxu0 %v2245
  %v2887 = vpop.f32.mrb[0].mxu0
  %v2888 = vadd.f32 %v2775, %v2887
  %v2889 = vpop.f32.mrb[0].mxu0
  %v2890 = vpop.f32.mrb[0].mxu0
  %v2891 = vadd.f32 %v2778, %v2890
  %v2892 = vpop.f32.mrb[0].mxu0
  %2893 = vmatprep.mubr.bf16.mxu0 %v2252
  %2894 = vmatmul.mubr.bf16.gmra.mrb[0].mxu0 %v2251
  %v2895 = vpop.f32.mrb[0].mxu0
  %v2896 = vadd.f32 %v2783, %v2895
  %v2897 = vpop.f32.mrb[0].mxu0
  %v2898 = vpop.f32.mrb[0].mxu0
  %v2899 = vadd.f32 %v2786, %v2898
  %v2900 = vpop.f32.mrb[0].mxu0
  %2901 = vmatprep.mubr.bf16.mxu0 %v2258
  %2902 = vmatmul.mubr.bf16.gmra.mrb[0].mxu0 %v2257
  %v2903 = vpop.f32.mrb[0].mxu0
  %v2904 = vadd.f32 %v2791, %v2903
  %v2905 = vpop.f32.mrb[0].mxu0
  %v2906 = vpop.f32.mrb[0].mxu0
  %v2907 = vadd.f32 %v2794, %v2906
  %v2908 = vpop.f32.mrb[0].mxu0
  %2909 = vmatprep.mubr.bf16.mxu0 %v2264
  %2910 = vmatmul.mubr.bf16.gmra.mrb[0].mxu0 %v2263
  %v2911 = vpop.f32.mrb[0].mxu0
  %v2912 = vadd.f32 %v2799, %v2911
  %v2913 = vpop.f32.mrb[0].mxu0
  %v2914 = vpop.f32.mrb[0].mxu0
  %v2915 = vadd.f32 %v2802, %v2914
  %v2916 = vpop.f32.mrb[0].mxu0
  %2917 = vmatprep.mubr.bf16.mxu0 %v2270
  %2918 = vmatmul.mubr.bf16.gmra.mrb[0].mxu0 %v2269
  %v2919 = vpop.f32.mrb[0].mxu0
  %v2920 = vadd.f32 %v2807, %v2919
  %v2921 = vpop.f32.mrb[0].mxu0
  %v2922 = vpop.f32.mrb[0].mxu0
  %v2923 = vadd.f32 %v2810, %v2922
  %v2924 = vpop.f32.mrb[0].mxu0
  %2925 = vmatprep.mubr.bf16.mxu0 %v2276
  %2926 = vmatmul.mubr.bf16.gmra.mrb[0].mxu0 %v2275
  %v2927 = vpop.f32.mrb[0].mxu0
  %v2928 = vadd.f32 %v2815, %v2927
  %v2929 = vpop.f32.mrb[0].mxu0
  %v2930 = vpop.f32.mrb[0].mxu0
  %v2931 = vadd.f32 %v2818, %v2930
  %v2932 = vpop.f32.mrb[0].mxu0
  %2933 = vmatprep.mubr.bf16.mxu0 %v2282
  %2934 = vmatmul.mubr.bf16.gmra.mrb[0].mxu0 %v2281
  %v2935 = vpop.f32.mrb[0].mxu0
  %v2936 = vadd.f32 %v2823, %v2935
  %v2937 = vpop.f32.mrb[0].mxu0
  %v2938 = vpop.f32.mrb[0].mxu0
  %v2939 = vadd.f32 %v2826, %v2938
  %v2940 = vpop.f32.mrb[0].mxu0
  %2941 = vmatprep.mubr.bf16.mxu0 %v2288
  %2942 = vmatmul.mubr.bf16.gmra.mrb[0].mxu0 %v2287
  %v2943 = vpop.f32.mrb[0].mxu0
  %v2944 = vadd.f32 %v2831, %v2943
  %v2945 = vpop.f32.mrb[0].mxu0
  %v2946 = vpop.f32.mrb[0].mxu0
  %v2947 = vadd.f32 %v2834, %v2946
  %v2948 = vpop.f32.mrb[0].mxu0
  %2949 = vmatprep.mubr.bf16.mxu0 %v2294
  %2950 = vmatmul.mubr.bf16.gmra.mrb[0].mxu0 %v2293
  %v2951 = vpop.f32.mrb[0].mxu0
  %v2952 = vadd.f32 %v2839, %v2951
  %v2953 = vpop.f32.mrb[0].mxu0
  %v2954 = vpop.f32.mrb[0].mxu0
  %v2955 = vadd.f32 %v2842, %v2954
  %v2956 = vpop.f32.mrb[0].mxu0
  %2957 = vdwg.mxu0
  %2958 = vmatprep.subr.bf16.mxu0 0
  %2959 = vmatpush1.bf16.msra.mxu0 %v1474
  %2960 = vmatprep.subr.bf16.mxu0 0
  %2961 = vmatpush1.bf16.msra.mxu0 %v1475
  %2962 = vmatprep.subr.bf16.mxu0 0
  %2963 = vmatpush1.bf16.msra.mxu0 %v1476
  %2964 = vmatprep.subr.bf16.mxu0 0
  %2965 = vmatpush1.bf16.msra.mxu0 %v1477
  %2966 = vmatprep.subr.bf16.mxu0 0
  %2967 = vmatpush1.bf16.msra.mxu0 %v1478
  %2968 = vmatprep.subr.bf16.mxu0 0
  %2969 = vmatpush1.bf16.msra.mxu0 %v1479
  %2970 = vmatprep.subr.bf16.mxu0 0
  %2971 = vmatpush1.bf16.msra.mxu0 %v1480
  %2972 = vmatprep.subr.bf16.mxu0 0
  %2973 = vmatpush1.bf16.msra.mxu0 %v1481
  %2974 = vmatprep.subr.bf16.mxu0 0
  %2975 = vmatpush1.bf16.msra.mxu0 %v1482
  %2976 = vmatprep.subr.bf16.mxu0 0
  %2977 = vmatpush1.bf16.msra.mxu0 %v1483
  %2978 = vmatprep.subr.bf16.mxu0 0
  %2979 = vmatpush1.bf16.msra.mxu0 %v1484
  %2980 = vmatprep.subr.bf16.mxu0 0
  %2981 = vmatpush1.bf16.msra.mxu0 %v1485
  %2982 = vmatprep.subr.bf16.mxu0 0
  %2983 = vmatpush1.bf16.msra.mxu0 %v1486
  %2984 = vmatprep.subr.bf16.mxu0 0
  %2985 = vmatpush1.bf16.msra.mxu0 %v1487
  %2986 = vmatprep.subr.bf16.mxu0 0
  %2987 = vmatpush1.bf16.msra.mxu0 %v1488
  %2988 = vmatprep.subr.bf16.mxu0 0
  %2989 = vmatpush1.bf16.msra.mxu0 %v1489
  %2990 = vmatprep.mubr.bf16.mxu0 %v2725
  %2991 = vmatmul.mubr.bf16.gmra.mrb[0].mxu0 %v2724
  %v2992 = vpop.f32.mrb[0].mxu0
  %v2993 = vadd.f32 %v2880, %v2992
  %v2994 = vpop.f32.mrb[0].mxu0
  %v2995 = vpop.f32.mrb[0].mxu0
  %v2996 = vadd.f32 %v2883, %v2995
  %v2997 = vpop.f32.mrb[0].mxu0
  %2998 = vmatprep.mubr.bf16.mxu0 %v2248
  %2999 = vmatmul.mubr.bf16.gmra.mrb[0].mxu0 %v2247
  %v3000 = vpop.f32.mrb[0].mxu0
  %v3001 = vadd.f32 %v2888, %v3000
  %v3002 = vpop.f32.mrb[0].mxu0
  %v3003 = vpop.f32.mrb[0].mxu0
  %v3004 = vadd.f32 %v2891, %v3003
  %v3005 = vpop.f32.mrb[0].mxu0
  %3006 = vmatprep.mubr.bf16.mxu0 %v2254
  %3007 = vmatmul.mubr.bf16.gmra.mrb[0].mxu0 %v2253
  %v3008 = vpop.f32.mrb[0].mxu0
  %v3009 = vadd.f32 %v2896, %v3008
  %v3010 = vpop.f32.mrb[0].mxu0
  %v3011 = vpop.f32.mrb[0].mxu0
  %v3012 = vadd.f32 %v2899, %v3011
  %v3013 = vpop.f32.mrb[0].mxu0
  %3014 = vmatprep.mubr.bf16.mxu0 %v2260
  %3015 = vmatmul.mubr.bf16.gmra.mrb[0].mxu0 %v2259
  %v3016 = vpop.f32.mrb[0].mxu0
  %v3017 = vadd.f32 %v2904, %v3016
  %v3018 = vpop.f32.mrb[0].mxu0
  %v3019 = vpop.f32.mrb[0].mxu0
  %v3020 = vadd.f32 %v2907, %v3019
  %v3021 = vpop.f32.mrb[0].mxu0
  %3022 = vmatprep.mubr.bf16.mxu0 %v2266
  %3023 = vmatmul.mubr.bf16.gmra.mrb[0].mxu0 %v2265
  %v3024 = vpop.f32.mrb[0].mxu0
  %v3025 = vadd.f32 %v2912, %v3024
  %v3026 = vpop.f32.mrb[0].mxu0
  %v3027 = vpop.f32.mrb[0].mxu0
  %v3028 = vadd.f32 %v2915, %v3027
  %v3029 = vpop.f32.mrb[0].mxu0
  %3030 = vmatprep.mubr.bf16.mxu0 %v2272
  %3031 = vmatmul.mubr.bf16.gmra.mrb[0].mxu0 %v2271
  %v3032 = vpop.f32.mrb[0].mxu0
  %v3033 = vadd.f32 %v2920, %v3032
  %v3034 = vpop.f32.mrb[0].mxu0
  %v3035 = vpop.f32.mrb[0].mxu0
  %v3036 = vadd.f32 %v2923, %v3035
  %v3037 = vpop.f32.mrb[0].mxu0
  %3038 = vmatprep.mubr.bf16.mxu0 %v2278
  %3039 = vmatmul.mubr.bf16.gmra.mrb[0].mxu0 %v2277
  %v3040 = vpop.f32.mrb[0].mxu0
  %v3041 = vadd.f32 %v2928, %v3040
  %v3042 = vpop.f32.mrb[0].mxu0
  %v3043 = vpop.f32.mrb[0].mxu0
  %v3044 = vadd.f32 %v2931, %v3043
  %v3045 = vpop.f32.mrb[0].mxu0
  %3046 = vmatprep.mubr.bf16.mxu0 %v2284
  %3047 = vmatmul.mubr.bf16.gmra.mrb[0].mxu0 %v2283
  %v3048 = vpop.f32.mrb[0].mxu0
  %v3049 = vadd.f32 %v2936, %v3048
  %v3050 = vpop.f32.mrb[0].mxu0
  %v3051 = vpop.f32.mrb[0].mxu0
  %v3052 = vadd.f32 %v2939, %v3051
  %v3053 = vpop.f32.mrb[0].mxu0
  %3054 = vmatprep.mubr.bf16.mxu0 %v2290
  %3055 = vmatmul.mubr.bf16.gmra.mrb[0].mxu0 %v2289
  %v3056 = vpop.f32.mrb[0].mxu0
  %v3057 = vadd.f32 %v2944, %v3056
  %v3058 = vpop.f32.mrb[0].mxu0
  %v3059 = vpop.f32.mrb[0].mxu0
  %v3060 = vadd.f32 %v2947, %v3059
  %v3061 = vpop.f32.mrb[0].mxu0
  %3062 = vmatprep.mubr.bf16.mxu0 %v2296
  %3063 = vmatmul.mubr.bf16.gmra.mrb[0].mxu0 %v2295
  %v3064 = vpop.f32.mrb[0].mxu0
  %v3065 = vadd.f32 %v2952, %v3064
  %v3066 = vpop.f32.mrb[0].mxu0
  %v3067 = vpop.f32.mrb[0].mxu0
  %v3068 = vadd.f32 %v2955, %v3067
  %v3069 = vpop.f32.mrb[0].mxu0
  %3070 = vdwg.mxu0
  %v3071 = vadd.f32 %v2993, %v1881
  %v3072 = vadd.f32 %v2996, %v1881
  %v3073 = vadd.f32 %v3001, %v1881
  %v3074 = vadd.f32 %v3004, %v1881
  %v3075 = vadd.f32 %v3009, %v1881
  %v3076 = vadd.f32 %v3012, %v1881
  %v3077 = vadd.f32 %v3017, %v1881
  %v3078 = vadd.f32 %v3020, %v1881
  %v3079 = vadd.f32 %v3025, %v1881
  %v3080 = vadd.f32 %v3028, %v1881
  %v3081 = vadd.f32 %v3033, %v1881
  %v3082 = vadd.f32 %v3036, %v1881
  %v3083 = vadd.f32 %v3041, %v1881
  %v3084 = vadd.f32 %v3044, %v1881
  %v3085 = vadd.f32 %v3049, %v1881
  %v3086 = vadd.f32 %v3052, %v1881
  %v3087 = vadd.f32 %v3057, %v1881
  %v3088 = vadd.f32 %v3060, %v1881
  %v3089 = vadd.f32 %v3065, %v1881
  %v3090 = vadd.f32 %v3068, %v1881
  %v3091 = vmax.f32 %v3071, 0.0
  %v3092 = vmax.f32 %v3072, 0.0
  %v3093 = vmax.f32 %v3073, 0.0
  %v3094 = vmax.f32 %v3074, 0.0
  %v3095 = vmax.f32 %v3075, 0.0
  %v3096 = vmax.f32 %v3076, 0.0
  %v3097 = vmax.f32 %v3077, 0.0
  %v3098 = vmax.f32 %v3078, 0.0
  %v3099 = vmax.f32 %v3079, 0.0
  %v3100 = vmax.f32 %v3080, 0.0
  %v3101 = vmax.f32 %v3081, 0.0
  %v3102 = vmax.f32 %v3082, 0.0
  %v3103 = vmax.f32 %v3083, 0.0
  %v3104 = vmax.f32 %v3084, 0.0
  %v3105 = vmax.f32 %v3085, 0.0
  %v3106 = vmax.f32 %v3086, 0.0
  %v3107 = vmax.f32 %v3087, 0.0
  %v3108 = vmax.f32 %v3088, 0.0
  %v3109 = vmax.f32 %v3089, 0.0
  %v3110 = vmax.f32 %v3090, 0.0
  %v3111 = vpack.c.bf16 %v3092, %v3091
  %v3112 = vpack.c.bf16 %v3094, %v3093
  %v3113 = vpack.c.bf16 %v3096, %v3095
  %v3114 = vpack.c.bf16 %v3098, %v3097
  %v3115 = vpack.c.bf16 %v3100, %v3099
  %v3116 = vpack.c.bf16 %v3102, %v3101
  %v3117 = vpack.c.bf16 %v3104, %v3103
  %v3118 = vpack.c.bf16 %v3106, %v3105
  %v3119 = vpack.c.bf16 %v3108, %v3107
  %v3120 = vpack.c.bf16 %v3110, %v3109
  %s3121 = scalar_lea.vmem %s3, 384
  %v3122 = vld [vmem:[%s3121] sm:$0xff]
  %v3123 = vld [vmem:[%s3121 + $0x8] sm:$0xf]
  %v3124 = vld [vmem:[%s3121 + $0xc] sm:$0xff]
  %v3125 = vld [vmem:[%s3121 + $0x14] sm:$0xf]
  %v3126 = vld [vmem:[%s3121 + $0x18] sm:$0xff]
  %v3127 = vld [vmem:[%s3121 + $0x20] sm:$0xf]
  %v3128 = vld [vmem:[%s3121 + $0x24] sm:$0xff]
  %v3129 = vld [vmem:[%s3121 + $0x2c] sm:$0xf]
  %v3130 = vld [vmem:[%s3121 + $0x30] sm:$0xff]
  %v3131 = vld [vmem:[%s3121 + $0x38] sm:$0xf]
  %v3132 = vld [vmem:[%s3121 + $0x3c] sm:$0xff]
  %v3133 = vld [vmem:[%s3121 + $0x44] sm:$0xf]
  %v3134 = vld [vmem:[%s3121 + $0x48] sm:$0xff]
  %v3135 = vld [vmem:[%s3121 + $0x50] sm:$0xf]
  %v3136 = vld [vmem:[%s3121 + $0x54] sm:$0xff]
  %v3137 = vld [vmem:[%s3121 + $0x5c] sm:$0xf]
  %v3138 = vld [vmem:[%s3121 + $0x60] sm:$0xff]
  %v3139 = vld [vmem:[%s3121 + $0x68] sm:$0xf]
  %v3140 = vld [vmem:[%s3121 + $0x6c] sm:$0xff]
  %v3141 = vld [vmem:[%s3121 + $0x74] sm:$0xf]
  %v3142 = vld [vmem:[%s3121 + $0x78] sm:$0xff]
  %v3143 = vld [vmem:[%s3121 + $0x80] sm:$0xf]
  %v3144 = vld [vmem:[%s3121 + $0x84] sm:$0xff]
  %v3145 = vld [vmem:[%s3121 + $0x8c] sm:$0xf]
  %v3146 = vld [vmem:[%s3121 + $0x90] sm:$0xff]
  %v3147 = vld [vmem:[%s3121 + $0x98] sm:$0xf]
  %v3148 = vld [vmem:[%s3121 + $0x9c] sm:$0xff]
  %v3149 = vld [vmem:[%s3121 + $0xa4] sm:$0xf]
  %v3150 = vld [vmem:[%s3121 + $0xa8] sm:$0xff]
  %v3151 = vld [vmem:[%s3121 + $0xb0] sm:$0xf]
  %v3152 = vld [vmem:[%s3121 + $0xb4] sm:$0xff]
  %v3153 = vld [vmem:[%s3121 + $0xbc] sm:$0xf]
  %v3154 = vld [vmem:[%s3121 + $0xc0] sm:$0xff]
  %v3155 = vld [vmem:[%s3121 + $0xc8] sm:$0xf]
  %v3156 = vld [vmem:[%s3121 + $0xcc] sm:$0xff]
  %v3157 = vld [vmem:[%s3121 + $0xd4] sm:$0xf]
  %v3158 = vld [vmem:[%s3121 + $0xd8] sm:$0xff]
  %v3159 = vld [vmem:[%s3121 + $0xe0] sm:$0xf]
  %v3160 = vld [vmem:[%s3121 + $0xe4] sm:$0xff]
  %v3161 = vld [vmem:[%s3121 + $0xec] sm:$0xf]
  %v3162 = vld [vmem:[%s3121 + $0xf0] sm:$0xff]
  %v3163 = vld [vmem:[%s3121 + $0xf8] sm:$0xf]
  %v3164 = vld [vmem:[%s3121 + $0xfc] sm:$0xff]
  %v3165 = vld [vmem:[%s3121 + $0x104] sm:$0xf]
  %v3166 = vld [vmem:[%s3121 + $0x108] sm:$0xff]
  %v3167 = vld [vmem:[%s3121 + $0x110] sm:$0xf]
  %v3168 = vld [vmem:[%s3121 + $0x114] sm:$0xff]
  %v3169 = vld [vmem:[%s3121 + $0x11c] sm:$0xf]
  %v3170 = vld [vmem:[%s3121 + $0x120] sm:$0xff]
  %v3171 = vld [vmem:[%s3121 + $0x128] sm:$0xf]
  %v3172 = vld [vmem:[%s3121 + $0x12c] sm:$0xff]
  %v3173 = vld [vmem:[%s3121 + $0x134] sm:$0xf]
  %v3174 = vld [vmem:[%s3121 + $0x138] sm:$0xff]
  %v3175 = vld [vmem:[%s3121 + $0x140] sm:$0xf]
  %v3176 = vld [vmem:[%s3121 + $0x144] sm:$0xff]
  %v3177 = vld [vmem:[%s3121 + $0x14c] sm:$0xf]
  %v3178 = vld [vmem:[%s3121 + $0x150] sm:$0xff]
  %v3179 = vld [vmem:[%s3121 + $0x158] sm:$0xf]
  %v3180 = vld [vmem:[%s3121 + $0x15c] sm:$0xff]
  %v3181 = vld [vmem:[%s3121 + $0x164] sm:$0xf]
  %v3182 = vld [vmem:[%s3121 + $0x168] sm:$0xff]
  %v3183 = vld [vmem:[%s3121 + $0x170] sm:$0xf]
  %v3184 = vld [vmem:[%s3121 + $0x174] sm:$0xff]
  %v3185 = vld [vmem:[%s3121 + $0x17c] sm:$0xf]
  %v3250 = vunpack.c.l.b16 %v3122
  %v3251 = vunpack.c.h.b16 %v3122
  %v3252 = vunpack.c.l.b16 %v3123
  %v3253 = vunpack.c.l.b16 %v3124
  %v3254 = vunpack.c.h.b16 %v3124
  %v3255 = vunpack.c.l.b16 %v3125
  %v3256 = vunpack.c.l.b16 %v3126
  %v3257 = vunpack.c.h.b16 %v3126
  %v3258 = vunpack.c.l.b16 %v3127
  %v3259 = vunpack.c.l.b16 %v3128
  %v3260 = vunpack.c.h.b16 %v3128
  %v3261 = vunpack.c.l.b16 %v3129
  %v3262 = vunpack.c.l.b16 %v3130
  %v3263 = vunpack.c.h.b16 %v3130
  %v3264 = vunpack.c.l.b16 %v3131
  %v3265 = vunpack.c.l.b16 %v3132
  %v3266 = vunpack.c.h.b16 %v3132
  %v3267 = vunpack.c.l.b16 %v3133
  %v3268 = vunpack.c.l.b16 %v3134
  %v3269 = vunpack.c.h.b16 %v3134
  %v3270 = vunpack.c.l.b16 %v3135
  %v3271 = vunpack.c.l.b16 %v3136
  %v3272 = vunpack.c.h.b16 %v3136
  %v3273 = vunpack.c.l.b16 %v3137
  %v3274 = vunpack.c.l.b16 %v3138
  %v3275 = vunpack.c.h.b16 %v3138
  %v3276 = vunpack.c.l.b16 %v3139
  %v3277 = vunpack.c.l.b16 %v3140
  %v3278 = vunpack.c.h.b16 %v3140
  %v3279 = vunpack.c.l.b16 %v3141
  %v3280 = vunpack.c.l.b16 %v3142
  %v3281 = vunpack.c.h.b16 %v3142
  %v3282 = vunpack.c.l.b16 %v3143
  %v3283 = vunpack.c.l.b16 %v3144
  %v3284 = vunpack.c.h.b16 %v3144
  %v3285 = vunpack.c.l.b16 %v3145
  %v3286 = vunpack.c.l.b16 %v3146
  %v3287 = vunpack.c.h.b16 %v3146
  %v3288 = vunpack.c.l.b16 %v3147
  %v3289 = vunpack.c.l.b16 %v3148
  %v3290 = vunpack.c.h.b16 %v3148
  %v3291 = vunpack.c.l.b16 %v3149
  %v3292 = vunpack.c.l.b16 %v3150
  %v3293 = vunpack.c.h.b16 %v3150
  %v3294 = vunpack.c.l.b16 %v3151
  %v3295 = vunpack.c.l.b16 %v3152
  %v3296 = vunpack.c.h.b16 %v3152
  %v3297 = vunpack.c.l.b16 %v3153
  %v3298 = vunpack.c.l.b16 %v3154
  %v3299 = vunpack.c.h.b16 %v3154
  %v3300 = vunpack.c.l.b16 %v3155
  %v3301 = vunpack.c.l.b16 %v3156
  %v3302 = vunpack.c.h.b16 %v3156
  %v3303 = vunpack.c.l.b16 %v3157
  %v3304 = vunpack.c.l.b16 %v3158
  %v3305 = vunpack.c.h.b16 %v3158
  %v3306 = vunpack.c.l.b16 %v3159
  %v3307 = vunpack.c.l.b16 %v3160
  %v3308 = vunpack.c.h.b16 %v3160
  %v3309 = vunpack.c.l.b16 %v3161
  %v3310 = vunpack.c.l.b16 %v3162
  %v3311 = vunpack.c.h.b16 %v3162
  %v3312 = vunpack.c.l.b16 %v3163
  %v3313 = vunpack.c.l.b16 %v3164
  %v3314 = vunpack.c.h.b16 %v3164
  %v3315 = vunpack.c.l.b16 %v3165
  %v3316 = vunpack.c.l.b16 %v3166
  %v3317 = vunpack.c.h.b16 %v3166
  %v3318 = vunpack.c.l.b16 %v3167
  %v3319 = vunpack.c.l.b16 %v3168
  %v3320 = vunpack.c.h.b16 %v3168
  %v3321 = vunpack.c.l.b16 %v3169
  %v3322 = vunpack.c.l.b16 %v3170
  %v3323 = vunpack.c.h.b16 %v3170
  %v3324 = vunpack.c.l.b16 %v3171
  %v3325 = vunpack.c.l.b16 %v3172
  %v3326 = vunpack.c.h.b16 %v3172
  %v3327 = vunpack.c.l.b16 %v3173
  %v3328 = vunpack.c.l.b16 %v3174
  %v3329 = vunpack.c.h.b16 %v3174
  %v3330 = vunpack.c.l.b16 %v3175
  %v3331 = vunpack.c.l.b16 %v3176
  %v3332 = vunpack.c.h.b16 %v3176
  %v3333 = vunpack.c.l.b16 %v3177
  %v3334 = vunpack.c.l.b16 %v3178
  %v3335 = vunpack.c.h.b16 %v3178
  %v3336 = vunpack.c.l.b16 %v3179
  %v3337 = vunpack.c.l.b16 %v3180
  %v3338 = vunpack.c.h.b16 %v3180
  %v3339 = vunpack.c.l.b16 %v3181
  %v3340 = vunpack.c.l.b16 %v3182
  %v3341 = vunpack.c.h.b16 %v3182
  %v3342 = vunpack.c.l.b16 %v3183
  %v3343 = vunpack.c.l.b16 %v3184
  %v3344 = vunpack.c.h.b16 %v3184
  %v3345 = vunpack.c.l.b16 %v3185
  %v3346 = vpack.c.b16 %v3253, %v3250
  %v3347 = vpack.c.b16 %v3254, %v3251
  %v3348 = vpack.c.b16 %v3255, %v3252
  %v3349 = vpack.c.b16 %v3259, %v3256
  %v3350 = vpack.c.b16 %v3260, %v3257
  %v3351 = vpack.c.b16 %v3261, %v3258
  %v3352 = vpack.c.b16 %v3265, %v3262
  %v3353 = vpack.c.b16 %v3266, %v3263
  %v3354 = vpack.c.b16 %v3267, %v3264
  %v3355 = vpack.c.b16 %v3271, %v3268
  %v3356 = vpack.c.b16 %v3272, %v3269
  %v3357 = vpack.c.b16 %v3273, %v3270
  %v3358 = vpack.c.b16 %v3277, %v3274
  %v3359 = vpack.c.b16 %v3278, %v3275
  %v3360 = vpack.c.b16 %v3279, %v3276
  %v3361 = vpack.c.b16 %v3283, %v3280
  %v3362 = vpack.c.b16 %v3284, %v3281
  %v3363 = vpack.c.b16 %v3285, %v3282
  %v3364 = vpack.c.b16 %v3289, %v3286
  %v3365 = vpack.c.b16 %v3290, %v3287
  %v3366 = vpack.c.b16 %v3291, %v3288
  %v3367 = vpack.c.b16 %v3295, %v3292
  %v3368 = vpack.c.b16 %v3296, %v3293
  %v3369 = vpack.c.b16 %v3297, %v3294
  %v3370 = vpack.c.b16 %v3301, %v3298
  %v3371 = vpack.c.b16 %v3302, %v3299
  %v3372 = vpack.c.b16 %v3303, %v3300
  %v3373 = vpack.c.b16 %v3307, %v3304
  %v3374 = vpack.c.b16 %v3308, %v3305
  %v3375 = vpack.c.b16 %v3309, %v3306
  %v3376 = vpack.c.b16 %v3313, %v3310
  %v3377 = vpack.c.b16 %v3314, %v3311
  %v3378 = vpack.c.b16 %v3315, %v3312
  %v3379 = vpack.c.b16 %v3319, %v3316
  %v3380 = vpack.c.b16 %v3320, %v3317
  %v3381 = vpack.c.b16 %v3321, %v3318
  %v3382 = vpack.c.b16 %v3325, %v3322
  %v3383 = vpack.c.b16 %v3326, %v3323
  %v3384 = vpack.c.b16 %v3327, %v3324
  %v3385 = vpack.c.b16 %v3331, %v3328
  %v3386 = vpack.c.b16 %v3332, %v3329
  %v3387 = vpack.c.b16 %v3333, %v3330
  %v3388 = vpack.c.b16 %v3337, %v3334
  %v3389 = vpack.c.b16 %v3338, %v3335
  %v3390 = vpack.c.b16 %v3339, %v3336
  %v3391 = vpack.c.b16 %v3343, %v3340
  %v3392 = vpack.c.b16 %v3344, %v3341
  %v3393 = vpack.c.b16 %v3345, %v3342
  %3442 = vmatprep.subr.bf16.mxu0 %v3347
  %3443 = vmatpush1.bf16.msra.mxu0 %v3346
  %3444 = vmatprep.subr.bf16.mxu0 %v3350
  %3445 = vmatpush1.bf16.msra.mxu0 %v3349
  %3446 = vmatprep.subr.bf16.mxu0 %v3353
  %3447 = vmatpush1.bf16.msra.mxu0 %v3352
  %3448 = vmatprep.subr.bf16.mxu0 %v3356
  %3449 = vmatpush1.bf16.msra.mxu0 %v3355
  %3450 = vmatprep.subr.bf16.mxu0 %v3359
  %3451 = vmatpush1.bf16.msra.mxu0 %v3358
  %3452 = vmatprep.subr.bf16.mxu0 %v3362
  %3453 = vmatpush1.bf16.msra.mxu0 %v3361
  %3454 = vmatprep.subr.bf16.mxu0 %v3365
  %3455 = vmatpush1.bf16.msra.mxu0 %v3364
  %3456 = vmatprep.subr.bf16.mxu0 %v3368
  %3457 = vmatpush1.bf16.msra.mxu0 %v3367
  %3458 = vmatprep.subr.bf16.mxu0 %v3371
  %3459 = vmatpush1.bf16.msra.mxu0 %v3370
  %3460 = vmatprep.subr.bf16.mxu0 %v3374
  %3461 = vmatpush1.bf16.msra.mxu0 %v3373
  %3462 = vmatprep.subr.bf16.mxu0 %v3377
  %3463 = vmatpush1.bf16.msra.mxu0 %v3376
  %3464 = vmatprep.subr.bf16.mxu0 %v3380
  %3465 = vmatpush1.bf16.msra.mxu0 %v3379
  %3466 = vmatprep.subr.bf16.mxu0 %v3383
  %3467 = vmatpush1.bf16.msra.mxu0 %v3382
  %3468 = vmatprep.subr.bf16.mxu0 %v3386
  %3469 = vmatpush1.bf16.msra.mxu0 %v3385
  %3470 = vmatprep.subr.bf16.mxu0 %v3389
  %3471 = vmatpush1.bf16.msra.mxu0 %v3388
  %3472 = vmatprep.subr.bf16.mxu0 %v3392
  %3473 = vmatpush1.bf16.msra.mxu0 %v3391
  %3474 = vmatprep.mubr.bf16.mxu0 %v3112
  %3475 = vmatmul.mubr.bf16.gmra.mrb[0].mxu0 %v3111
  %v3476 = vpop.f32.mrb[0].mxu0
  %v3477 = vadd.f32 0.0, %v3476
  %v3478 = vpop.f32.mrb[0].mxu0
  %v3479 = vadd.f32 0.0, %v3478
  %v3480 = vpop.f32.mrb[0].mxu0
  %v3481 = vadd.f32 0.0, %v3480
  %v3482 = vpop.f32.mrb[0].mxu0
  %v3483 = vadd.f32 0.0, %v3482
  %3484 = vmatprep.mubr.bf16.mxu0 %v3113
  %3485 = vmatmul.mubr.bf16.gmra.mrb[0].mxu0 %v3112
  %v3486 = vpop.f32.mrb[0].mxu0
  %v3487 = vadd.f32 0.0, %v3486
  %v3488 = vpop.f32.mrb[0].mxu0
  %v3489 = vadd.f32 0.0, %v3488
  %v3490 = vpop.f32.mrb[0].mxu0
  %v3491 = vadd.f32 0.0, %v3490
  %v3492 = vpop.f32.mrb[0].mxu0
  %v3493 = vadd.f32 0.0, %v3492
  %3494 = vmatprep.mubr.bf16.mxu0 %v3114
  %3495 = vmatmul.mubr.bf16.gmra.mrb[0].mxu0 %v3113
  %v3496 = vpop.f32.mrb[0].mxu0
  %v3497 = vadd.f32 0.0, %v3496
  %v3498 = vpop.f32.mrb[0].mxu0
  %v3499 = vadd.f32 0.0, %v3498
  %v3500 = vpop.f32.mrb[0].mxu0
  %v3501 = vadd.f32 0.0, %v3500
  %v3502 = vpop.f32.mrb[0].mxu0
  %v3503 = vadd.f32 0.0, %v3502
  %3504 = vmatprep.mubr.bf16.mxu0 %v3115
  %3505 = vmatmul.mubr.bf16.gmra.mrb[0].mxu0 %v3114
  %v3506 = vpop.f32.mrb[0].mxu0
  %v3507 = vadd.f32 0.0, %v3506
  %v3508 = vpop.f32.mrb[0].mxu0
  %v3509 = vadd.f32 0.0, %v3508
  %v3510 = vpop.f32.mrb[0].mxu0
  %v3511 = vadd.f32 0.0, %v3510
  %v3512 = vpop.f32.mrb[0].mxu0
  %v3513 = vadd.f32 0.0, %v3512
  %3514 = vmatprep.mubr.bf16.mxu0 %v3116
  %3515 = vmatmul.mubr.bf16.gmra.mrb[0].mxu0 %v3115
  %v3516 = vpop.f32.mrb[0].mxu0
  %v3517 = vadd.f32 0.0, %v3516
  %v3518 = vpop.f32.mrb[0].mxu0
  %v3519 = vadd.f32 0.0, %v3518
  %v3520 = vpop.f32.mrb[0].mxu0
  %v3521 = vadd.f32 0.0, %v3520
  %v3522 = vpop.f32.mrb[0].mxu0
  %v3523 = vadd.f32 0.0, %v3522
  %3524 = vmatprep.mubr.bf16.mxu0 %v3117
  %3525 = vmatmul.mubr.bf16.gmra.mrb[0].mxu0 %v3116
  %v3526 = vpop.f32.mrb[0].mxu0
  %v3527 = vadd.f32 0.0, %v3526
  %v3528 = vpop.f32.mrb[0].mxu0
  %v3529 = vadd.f32 0.0, %v3528
  %v3530 = vpop.f32.mrb[0].mxu0
  %v3531 = vadd.f32 0.0, %v3530
  %v3532 = vpop.f32.mrb[0].mxu0
  %v3533 = vadd.f32 0.0, %v3532
  %3534 = vmatprep.mubr.bf16.mxu0 %v3118
  %3535 = vmatmul.mubr.bf16.gmra.mrb[0].mxu0 %v3117
  %v3536 = vpop.f32.mrb[0].mxu0
  %v3537 = vadd.f32 0.0, %v3536
  %v3538 = vpop.f32.mrb[0].mxu0
  %v3539 = vadd.f32 0.0, %v3538
  %v3540 = vpop.f32.mrb[0].mxu0
  %v3541 = vadd.f32 0.0, %v3540
  %v3542 = vpop.f32.mrb[0].mxu0
  %v3543 = vadd.f32 0.0, %v3542
  %3544 = vmatprep.mubr.bf16.mxu0 %v3119
  %3545 = vmatmul.mubr.bf16.gmra.mrb[0].mxu0 %v3118
  %v3546 = vpop.f32.mrb[0].mxu0
  %v3547 = vadd.f32 0.0, %v3546
  %v3548 = vpop.f32.mrb[0].mxu0
  %v3549 = vadd.f32 0.0, %v3548
  %v3550 = vpop.f32.mrb[0].mxu0
  %v3551 = vadd.f32 0.0, %v3550
  %v3552 = vpop.f32.mrb[0].mxu0
  %v3553 = vadd.f32 0.0, %v3552
  %3554 = vmatprep.mubr.bf16.mxu0 %v3120
  %3555 = vmatmul.mubr.bf16.gmra.mrb[0].mxu0 %v3119
  %v3556 = vpop.f32.mrb[0].mxu0
  %v3557 = vadd.f32 0.0, %v3556
  %v3558 = vpop.f32.mrb[0].mxu0
  %v3559 = vadd.f32 0.0, %v3558
  %v3560 = vpop.f32.mrb[0].mxu0
  %v3561 = vadd.f32 0.0, %v3560
  %v3562 = vpop.f32.mrb[0].mxu0
  %v3563 = vadd.f32 0.0, %v3562
  %3564 = vdwg.mxu0
  %3565 = vmatprep.subr.bf16.mxu0 0
  %3566 = vmatpush1.bf16.msra.mxu0 %v3348
  %3567 = vmatprep.subr.bf16.mxu0 0
  %3568 = vmatpush1.bf16.msra.mxu0 %v3351
  %3569 = vmatprep.subr.bf16.mxu0 0
  %3570 = vmatpush1.bf16.msra.mxu0 %v3354
  %3571 = vmatprep.subr.bf16.mxu0 0
  %3572 = vmatpush1.bf16.msra.mxu0 %v3357
  %3573 = vmatprep.subr.bf16.mxu0 0
  %3574 = vmatpush1.bf16.msra.mxu0 %v3360
  %3575 = vmatprep.subr.bf16.mxu0 0
  %3576 = vmatpush1.bf16.msra.mxu0 %v3363
  %3577 = vmatprep.subr.bf16.mxu0 0
  %3578 = vmatpush1.bf16.msra.mxu0 %v3366
  %3579 = vmatprep.subr.bf16.mxu0 0
  %3580 = vmatpush1.bf16.msra.mxu0 %v3369
  %3581 = vmatprep.subr.bf16.mxu0 0
  %3582 = vmatpush1.bf16.msra.mxu0 %v3372
  %3583 = vmatprep.subr.bf16.mxu0 0
  %3584 = vmatpush1.bf16.msra.mxu0 %v3375
  %3585 = vmatprep.subr.bf16.mxu0 0
  %3586 = vmatpush1.bf16.msra.mxu0 %v3378
  %3587 = vmatprep.subr.bf16.mxu0 0
  %3588 = vmatpush1.bf16.msra.mxu0 %v3381
  %3589 = vmatprep.subr.bf16.mxu0 0
  %3590 = vmatpush1.bf16.msra.mxu0 %v3384
  %3591 = vmatprep.subr.bf16.mxu0 0
  %3592 = vmatpush1.bf16.msra.mxu0 %v3387
  %3593 = vmatprep.subr.bf16.mxu0 0
  %3594 = vmatpush1.bf16.msra.mxu0 %v3390
  %3595 = vmatprep.subr.bf16.mxu0 0
  %3596 = vmatpush1.bf16.msra.mxu0 %v3393
  %3597 = vmatprep.mubr.bf16.mxu0 %v3112
  %3598 = vmatmul.mubr.bf16.gmra.mrb[0].mxu0 %v3111
  %v3599 = vpop.f32.mrb[0].mxu0
  %v3600 = vadd.f32 0.0, %v3599
  %v3601 = vpop.f32.mrb[0].mxu0
  %v3602 = vpop.f32.mrb[0].mxu0
  %v3603 = vadd.f32 0.0, %v3602
  %v3604 = vpop.f32.mrb[0].mxu0
  %3605 = vmatprep.mubr.bf16.mxu0 %v3113
  %3606 = vmatmul.mubr.bf16.gmra.mrb[0].mxu0 %v3112
  %v3607 = vpop.f32.mrb[0].mxu0
  %v3608 = vadd.f32 0.0, %v3607
  %v3609 = vpop.f32.mrb[0].mxu0
  %v3610 = vpop.f32.mrb[0].mxu0
  %v3611 = vadd.f32 0.0, %v3610
  %v3612 = vpop.f32.mrb[0].mxu0
  %3613 = vmatprep.mubr.bf16.mxu0 %v3114
  %3614 = vmatmul.mubr.bf16.gmra.mrb[0].mxu0 %v3113
  %v3615 = vpop.f32.mrb[0].mxu0
  %v3616 = vadd.f32 0.0, %v3615
  %v3617 = vpop.f32.mrb[0].mxu0
  %v3618 = vpop.f32.mrb[0].mxu0
  %v3619 = vadd.f32 0.0, %v3618
  %v3620 = vpop.f32.mrb[0].mxu0
  %3621 = vmatprep.mubr.bf16.mxu0 %v3115
  %3622 = vmatmul.mubr.bf16.gmra.mrb[0].mxu0 %v3114
  %v3623 = vpop.f32.mrb[0].mxu0
  %v3624 = vadd.f32 0.0, %v3623
  %v3625 = vpop.f32.mrb[0].mxu0
  %v3626 = vpop.f32.mrb[0].mxu0
  %v3627 = vadd.f32 0.0, %v3626
  %v3628 = vpop.f32.mrb[0].mxu0
  %3629 = vmatprep.mubr.bf16.mxu0 %v3116
  %3630 = vmatmul.mubr.bf16.gmra.mrb[0].mxu0 %v3115
  %v3631 = vpop.f32.mrb[0].mxu0
  %v3632 = vadd.f32 0.0, %v3631
  %v3633 = vpop.f32.mrb[0].mxu0
  %v3634 = vpop.f32.mrb[0].mxu0
  %v3635 = vadd.f32 0.0, %v3634
  %v3636 = vpop.f32.mrb[0].mxu0
  %3637 = vmatprep.mubr.bf16.mxu0 %v3117
  %3638 = vmatmul.mubr.bf16.gmra.mrb[0].mxu0 %v3116
  %v3639 = vpop.f32.mrb[0].mxu0
  %v3640 = vadd.f32 0.0, %v3639
  %v3641 = vpop.f32.mrb[0].mxu0
  %v3642 = vpop.f32.mrb[0].mxu0
  %v3643 = vadd.f32 0.0, %v3642
  %v3644 = vpop.f32.mrb[0].mxu0
  %3645 = vmatprep.mubr.bf16.mxu0 %v3118
  %3646 = vmatmul.mubr.bf16.gmra.mrb[0].mxu0 %v3117
  %v3647 = vpop.f32.mrb[0].mxu0
  %v3648 = vadd.f32 0.0, %v3647
  %v3649 = vpop.f32.mrb[0].mxu0
  %v3650 = vpop.f32.mrb[0].mxu0
  %v3651 = vadd.f32 0.0, %v3650
  %v3652 = vpop.f32.mrb[0].mxu0
  %3653 = vmatprep.mubr.bf16.mxu0 %v3119
  %3654 = vmatmul.mubr.bf16.gmra.mrb[0].mxu0 %v3118
  %v3655 = vpop.f32.mrb[0].mxu0
  %v3656 = vadd.f32 0.0, %v3655
  %v3657 = vpop.f32.mrb[0].mxu0
  %v3658 = vpop.f32.mrb[0].mxu0
  %v3659 = vadd.f32 0.0, %v3658
  %v3660 = vpop.f32.mrb[0].mxu0
  %3661 = vmatprep.mubr.bf16.mxu0 %v3120
  %3662 = vmatmul.mubr.bf16.gmra.mrb[0].mxu0 %v3119
  %v3663 = vpop.f32.mrb[0].mxu0
  %v3664 = vadd.f32 0.0, %v3663
  %v3665 = vpop.f32.mrb[0].mxu0
  %v3666 = vpop.f32.mrb[0].mxu0
  %v3667 = vadd.f32 0.0, %v3666
  %v3668 = vpop.f32.mrb[0].mxu0
  %3669 = vdwg.mxu0
  %v3734 = vunpack.c.l.b16 %v1933
  %v3735 = vunpack.c.h.b16 %v1933
  %v3736 = vunpack.c.l.b16 %v1934
  %v3737 = vunpack.c.l.b16 %v1935
  %v3738 = vunpack.c.h.b16 %v1935
  %v3739 = vunpack.c.l.b16 %v1936
  %v3740 = vunpack.c.l.b16 %v1937
  %v3741 = vunpack.c.h.b16 %v1937
  %v3742 = vunpack.c.l.b16 %v1938
  %v3743 = vunpack.c.l.b16 %v1939
  %v3744 = vunpack.c.h.b16 %v1939
  %v3745 = vunpack.c.l.b16 %v1940
  %v3746 = vunpack.c.l.b16 %v1941
  %v3747 = vunpack.c.h.b16 %v1941
  %v3748 = vunpack.c.l.b16 %v1942
  %v3749 = vunpack.c.l.b16 %v1943
  %v3750 = vunpack.c.h.b16 %v1943
  %v3751 = vunpack.c.l.b16 %v1944
  %v3752 = vunpack.c.l.b16 %v1945
  %v3753 = vunpack.c.h.b16 %v1945
  %v3754 = vunpack.c.l.b16 %v1946
  %v3755 = vunpack.c.l.b16 %v1947
  %v3756 = vunpack.c.h.b16 %v1947
  %v3757 = vunpack.c.l.b16 %v1948
  %v3758 = vunpack.c.l.b16 %v1949
  %v3759 = vunpack.c.h.b16 %v1949
  %v3760 = vunpack.c.l.b16 %v1950
  %v3761 = vunpack.c.l.b16 %v1951
  %v3762 = vunpack.c.h.b16 %v1951
  %v3763 = vunpack.c.l.b16 %v1952
  %v3764 = vunpack.c.l.b16 %v1953
  %v3765 = vunpack.c.h.b16 %v1953
  %v3766 = vunpack.c.l.b16 %v1954
  %v3767 = vunpack.c.l.b16 %v1955
  %v3768 = vunpack.c.h.b16 %v1955
  %v3769 = vunpack.c.l.b16 %v1956
  %v3770 = vunpack.c.l.b16 %v1957
  %v3771 = vunpack.c.h.b16 %v1957
  %v3772 = vunpack.c.l.b16 %v1958
  %v3773 = vunpack.c.l.b16 %v1959
  %v3774 = vunpack.c.h.b16 %v1959
  %v3775 = vunpack.c.l.b16 %v1960
  %v3776 = vunpack.c.l.b16 %v1961
  %v3777 = vunpack.c.h.b16 %v1961
  %v3778 = vunpack.c.l.b16 %v1962
  %v3779 = vunpack.c.l.b16 %v1963
  %v3780 = vunpack.c.h.b16 %v1963
  %v3781 = vunpack.c.l.b16 %v1964
  %v3782 = vunpack.c.l.b16 %v1965
  %v3783 = vunpack.c.h.b16 %v1965
  %v3784 = vunpack.c.l.b16 %v1966
  %v3785 = vunpack.c.l.b16 %v1967
  %v3786 = vunpack.c.h.b16 %v1967
  %v3787 = vunpack.c.l.b16 %v1968
  %v3788 = vunpack.c.l.b16 %v1969
  %v3789 = vunpack.c.h.b16 %v1969
  %v3790 = vunpack.c.l.b16 %v1970
  %v3791 = vunpack.c.l.b16 %v1971
  %v3792 = vunpack.c.h.b16 %v1971
  %v3793 = vunpack.c.l.b16 %v1972
  %v3794 = vunpack.c.l.b16 %v1973
  %v3795 = vunpack.c.h.b16 %v1973
  %v3796 = vunpack.c.l.b16 %v1974
  %v3797 = vunpack.c.l.b16 %v1975
  %v3798 = vunpack.c.h.b16 %v1975
  %v3799 = vunpack.c.l.b16 %v1976
  %v3800 = vunpack.c.l.b16 %v1977
  %v3801 = vunpack.c.h.b16 %v1977
  %v3802 = vunpack.c.l.b16 %v1978
  %v3803 = vunpack.c.l.b16 %v1979
  %v3804 = vunpack.c.h.b16 %v1979
  %v3805 = vunpack.c.l.b16 %v1980
  %v3806 = vunpack.c.l.b16 %v1981
  %v3807 = vunpack.c.h.b16 %v1981
  %v3808 = vunpack.c.l.b16 %v1982
  %v3809 = vunpack.c.l.b16 %v1983
  %v3810 = vunpack.c.h.b16 %v1983
  %v3811 = vunpack.c.l.b16 %v1984
  %v3812 = vunpack.c.l.b16 %v1985
  %v3813 = vunpack.c.h.b16 %v1985
  %v3814 = vunpack.c.l.b16 %v1986
  %v3815 = vunpack.c.l.b16 %v1987
  %v3816 = vunpack.c.h.b16 %v1987
  %v3817 = vunpack.c.l.b16 %v1988
  %v3818 = vunpack.c.l.b16 %v1989
  %v3819 = vunpack.c.h.b16 %v1989
  %v3820 = vunpack.c.l.b16 %v1990
  %v3821 = vunpack.c.l.b16 %v1991
  %v3822 = vunpack.c.h.b16 %v1991
  %v3823 = vunpack.c.l.b16 %v1992
  %v3824 = vunpack.c.l.b16 %v1993
  %v3825 = vunpack.c.h.b16 %v1993
  %v3826 = vunpack.c.l.b16 %v1994
  %v3827 = vunpack.c.l.b16 %v1995
  %v3828 = vunpack.c.h.b16 %v1995
  %v3829 = vunpack.c.l.b16 %v1996
  %v3830 = vpack.c.b16 %v3737, %v3734
  %v3831 = vpack.c.b16 %v3738, %v3735
  %v3832 = vpack.c.b16 %v3739, %v3736
  %v3833 = vpack.c.b16 %v3743, %v3740
  %v3834 = vpack.c.b16 %v3744, %v3741
  %v3835 = vpack.c.b16 %v3745, %v3742
  %v3836 = vpack.c.b16 %v3749, %v3746
  %v3837 = vpack.c.b16 %v3750, %v3747
  %v3838 = vpack.c.b16 %v3751, %v3748
  %v3839 = vpack.c.b16 %v3755, %v3752
  %v3840 = vpack.c.b16 %v3756, %v3753
  %v3841 = vpack.c.b16 %v3757, %v3754
  %v3842 = vpack.c.b16 %v3761, %v3758
  %v3843 = vpack.c.b16 %v3762, %v3759
  %v3844 = vpack.c.b16 %v3763, %v3760
  %v3845 = vpack.c.b16 %v3767, %v3764
  %v3846 = vpack.c.b16 %v3768, %v3765
  %v3847 = vpack.c.b16 %v3769, %v3766
  %v3848 = vpack.c.b16 %v3773, %v3770
  %v3849 = vpack.c.b16 %v3774, %v3771
  %v3850 = vpack.c.b16 %v3775, %v3772
  %v3851 = vpack.c.b16 %v3779, %v3776
  %v3852 = vpack.c.b16 %v3780, %v3777
  %v3853 = vpack.c.b16 %v3781, %v3778
  %v3854 = vpack.c.b16 %v3785, %v3782
  %v3855 = vpack.c.b16 %v3786, %v3783
  %v3856 = vpack.c.b16 %v3787, %v3784
  %v3857 = vpack.c.b16 %v3791, %v3788
  %v3858 = vpack.c.b16 %v3792, %v3789
  %v3859 = vpack.c.b16 %v3793, %v3790
  %v3860 = vpack.c.b16 %v3797, %v3794
  %v3861 = vpack.c.b16 %v3798, %v3795
  %v3862 = vpack.c.b16 %v3799, %v3796
  %v3863 = vpack.c.b16 %v3803, %v3800
  %v3864 = vpack.c.b16 %v3804, %v3801
  %v3865 = vpack.c.b16 %v3805, %v3802
  %v3866 = vpack.c.b16 %v3809, %v3806
  %v3867 = vpack.c.b16 %v3810, %v3807
  %v3868 = vpack.c.b16 %v3811, %v3808
  %v3869 = vpack.c.b16 %v3815, %v3812
  %v3870 = vpack.c.b16 %v3816, %v3813
  %v3871 = vpack.c.b16 %v3817, %v3814
  %v3872 = vpack.c.b16 %v3821, %v3818
  %v3873 = vpack.c.b16 %v3822, %v3819
  %v3874 = vpack.c.b16 %v3823, %v3820
  %v3875 = vpack.c.b16 %v3827, %v3824
  %v3876 = vpack.c.b16 %v3828, %v3825
  %v3877 = vpack.c.b16 %v3829, %v3826
  %3926 = vmatprep.subr.bf16.mxu0 %v3831
  %3927 = vmatpush1.bf16.msra.mxu0 %v3830
  %3928 = vmatprep.subr.bf16.mxu0 %v3834
  %3929 = vmatpush1.bf16.msra.mxu0 %v3833
  %3930 = vmatprep.subr.bf16.mxu0 %v3837
  %3931 = vmatpush1.bf16.msra.mxu0 %v3836
  %3932 = vmatprep.subr.bf16.mxu0 %v3840
  %3933 = vmatpush1.bf16.msra.mxu0 %v3839
  %3934 = vmatprep.subr.bf16.mxu0 %v3843
  %3935 = vmatpush1.bf16.msra.mxu0 %v3842
  %3936 = vmatprep.subr.bf16.mxu0 %v3846
  %3937 = vmatpush1.bf16.msra.mxu0 %v3845
  %3938 = vmatprep.subr.bf16.mxu0 %v3849
  %3939 = vmatpush1.bf16.msra.mxu0 %v3848
  %3940 = vmatprep.subr.bf16.mxu0 %v3852
  %3941 = vmatpush1.bf16.msra.mxu0 %v3851
  %3942 = vmatprep.subr.bf16.mxu0 %v3855
  %3943 = vmatpush1.bf16.msra.mxu0 %v3854
  %3944 = vmatprep.subr.bf16.mxu0 %v3858
  %3945 = vmatpush1.bf16.msra.mxu0 %v3857
  %3946 = vmatprep.subr.bf16.mxu0 %v3861
  %3947 = vmatpush1.bf16.msra.mxu0 %v3860
  %3948 = vmatprep.subr.bf16.mxu0 %v3864
  %3949 = vmatpush1.bf16.msra.mxu0 %v3863
  %3950 = vmatprep.subr.bf16.mxu0 %v3867
  %3951 = vmatpush1.bf16.msra.mxu0 %v3866
  %3952 = vmatprep.subr.bf16.mxu0 %v3870
  %3953 = vmatpush1.bf16.msra.mxu0 %v3869
  %3954 = vmatprep.subr.bf16.mxu0 %v3873
  %3955 = vmatpush1.bf16.msra.mxu0 %v3872
  %3956 = vmatprep.subr.bf16.mxu0 %v3876
  %3957 = vmatpush1.bf16.msra.mxu0 %v3875
  %3958 = vmatprep.mubr.bf16.mxu0 %v1924
  %3959 = vmatmul.mubr.bf16.gmra.mrb[0].mxu0 %v1923
  %v3960 = vpop.f32.mrb[0].mxu0
  %v3961 = vadd.f32 %v3477, %v3960
  %v3962 = vpop.f32.mrb[0].mxu0
  %v3963 = vadd.f32 %v3479, %v3962
  %v3964 = vpop.f32.mrb[0].mxu0
  %v3965 = vadd.f32 %v3481, %v3964
  %v3966 = vpop.f32.mrb[0].mxu0
  %v3967 = vadd.f32 %v3483, %v3966
  %3968 = vmatprep.mubr.bf16.mxu0 %v1925
  %3969 = vmatmul.mubr.bf16.gmra.mrb[0].mxu0 %v1924
  %v3970 = vpop.f32.mrb[0].mxu0
  %v3971 = vadd.f32 %v3487, %v3970
  %v3972 = vpop.f32.mrb[0].mxu0
  %v3973 = vadd.f32 %v3489, %v3972
  %v3974 = vpop.f32.mrb[0].mxu0
  %v3975 = vadd.f32 %v3491, %v3974
  %v3976 = vpop.f32.mrb[0].mxu0
  %v3977 = vadd.f32 %v3493, %v3976
  %3978 = vmatprep.mubr.bf16.mxu0 %v1926
  %3979 = vmatmul.mubr.bf16.gmra.mrb[0].mxu0 %v1925
  %v3980 = vpop.f32.mrb[0].mxu0
  %v3981 = vadd.f32 %v3497, %v3980
  %v3982 = vpop.f32.mrb[0].mxu0
  %v3983 = vadd.f32 %v3499, %v3982
  %v3984 = vpop.f32.mrb[0].mxu0
  %v3985 = vadd.f32 %v3501, %v3984
  %v3986 = vpop.f32.mrb[0].mxu0
  %v3987 = vadd.f32 %v3503, %v3986
  %3988 = vmatprep.mubr.bf16.mxu0 %v1927
  %3989 = vmatmul.mubr.bf16.gmra.mrb[0].mxu0 %v1926
  %v3990 = vpop.f32.mrb[0].mxu0
  %v3991 = vadd.f32 %v3507, %v3990
  %v3992 = vpop.f32.mrb[0].mxu0
  %v3993 = vadd.f32 %v3509, %v3992
  %v3994 = vpop.f32.mrb[0].mxu0
  %v3995 = vadd.f32 %v3511, %v3994
  %v3996 = vpop.f32.mrb[0].mxu0
  %v3997 = vadd.f32 %v3513, %v3996
  %3998 = vmatprep.mubr.bf16.mxu0 %v1928
  %3999 = vmatmul.mubr.bf16.gmra.mrb[0].mxu0 %v1927
  %v4000 = vpop.f32.mrb[0].mxu0
  %v4001 = vadd.f32 %v3517, %v4000
  %v4002 = vpop.f32.mrb[0].mxu0
  %v4003 = vadd.f32 %v3519, %v4002
  %v4004 = vpop.f32.mrb[0].mxu0
  %v4005 = vadd.f32 %v3521, %v4004
  %v4006 = vpop.f32.mrb[0].mxu0
  %v4007 = vadd.f32 %v3523, %v4006
  %4008 = vmatprep.mubr.bf16.mxu0 %v1929
  %4009 = vmatmul.mubr.bf16.gmra.mrb[0].mxu0 %v1928
  %v4010 = vpop.f32.mrb[0].mxu0
  %v4011 = vadd.f32 %v3527, %v4010
  %v4012 = vpop.f32.mrb[0].mxu0
  %v4013 = vadd.f32 %v3529, %v4012
  %v4014 = vpop.f32.mrb[0].mxu0
  %v4015 = vadd.f32 %v3531, %v4014
  %v4016 = vpop.f32.mrb[0].mxu0
  %v4017 = vadd.f32 %v3533, %v4016
  %4018 = vmatprep.mubr.bf16.mxu0 %v1930
  %4019 = vmatmul.mubr.bf16.gmra.mrb[0].mxu0 %v1929
  %v4020 = vpop.f32.mrb[0].mxu0
  %v4021 = vadd.f32 %v3537, %v4020
  %v4022 = vpop.f32.mrb[0].mxu0
  %v4023 = vadd.f32 %v3539, %v4022
  %v4024 = vpop.f32.mrb[0].mxu0
  %v4025 = vadd.f32 %v3541, %v4024
  %v4026 = vpop.f32.mrb[0].mxu0
  %v4027 = vadd.f32 %v3543, %v4026
  %4028 = vmatprep.mubr.bf16.mxu0 %v1931
  %4029 = vmatmul.mubr.bf16.gmra.mrb[0].mxu0 %v1930
  %v4030 = vpop.f32.mrb[0].mxu0
  %v4031 = vadd.f32 %v3547, %v4030
  %v4032 = vpop.f32.mrb[0].mxu0
  %v4033 = vadd.f32 %v3549, %v4032
  %v4034 = vpop.f32.mrb[0].mxu0
  %v4035 = vadd.f32 %v3551, %v4034
  %v4036 = vpop.f32.mrb[0].mxu0
  %v4037 = vadd.f32 %v3553, %v4036
  %4038 = vmatprep.mubr.bf16.mxu0 %v1932
  %4039 = vmatmul.mubr.bf16.gmra.mrb[0].mxu0 %v1931
  %v4040 = vpop.f32.mrb[0].mxu0
  %v4041 = vadd.f32 %v3557, %v4040
  %v4042 = vpop.f32.mrb[0].mxu0
  %v4043 = vadd.f32 %v3559, %v4042
  %v4044 = vpop.f32.mrb[0].mxu0
  %v4045 = vadd.f32 %v3561, %v4044
  %v4046 = vpop.f32.mrb[0].mxu0
  %v4047 = vadd.f32 %v3563, %v4046
  %4048 = vdwg.mxu0
  %4049 = vmatprep.subr.bf16.mxu0 0
  %4050 = vmatpush1.bf16.msra.mxu0 %v3832
  %4051 = vmatprep.subr.bf16.mxu0 0
  %4052 = vmatpush1.bf16.msra.mxu0 %v3835
  %4053 = vmatprep.subr.bf16.mxu0 0
  %4054 = vmatpush1.bf16.msra.mxu0 %v3838
  %4055 = vmatprep.subr.bf16.mxu0 0
  %4056 = vmatpush1.bf16.msra.mxu0 %v3841
  %4057 = vmatprep.subr.bf16.mxu0 0
  %4058 = vmatpush1.bf16.msra.mxu0 %v3844
  %4059 = vmatprep.subr.bf16.mxu0 0
  %4060 = vmatpush1.bf16.msra.mxu0 %v3847
  %4061 = vmatprep.subr.bf16.mxu0 0
  %4062 = vmatpush1.bf16.msra.mxu0 %v3850
  %4063 = vmatprep.subr.bf16.mxu0 0
  %4064 = vmatpush1.bf16.msra.mxu0 %v3853
  %4065 = vmatprep.subr.bf16.mxu0 0
  %4066 = vmatpush1.bf16.msra.mxu0 %v3856
  %4067 = vmatprep.subr.bf16.mxu0 0
  %4068 = vmatpush1.bf16.msra.mxu0 %v3859
  %4069 = vmatprep.subr.bf16.mxu0 0
  %4070 = vmatpush1.bf16.msra.mxu0 %v3862
  %4071 = vmatprep.subr.bf16.mxu0 0
  %4072 = vmatpush1.bf16.msra.mxu0 %v3865
  %4073 = vmatprep.subr.bf16.mxu0 0
  %4074 = vmatpush1.bf16.msra.mxu0 %v3868
  %4075 = vmatprep.subr.bf16.mxu0 0
  %4076 = vmatpush1.bf16.msra.mxu0 %v3871
  %4077 = vmatprep.subr.bf16.mxu0 0
  %4078 = vmatpush1.bf16.msra.mxu0 %v3874
  %4079 = vmatprep.subr.bf16.mxu0 0
  %4080 = vmatpush1.bf16.msra.mxu0 %v3877
  %4081 = vmatprep.mubr.bf16.mxu0 %v1924
  %4082 = vmatmul.mubr.bf16.gmra.mrb[0].mxu0 %v1923
  %v4083 = vpop.f32.mrb[0].mxu0
  %v4084 = vadd.f32 %v3600, %v4083
  %v4085 = vpop.f32.mrb[0].mxu0
  %v4086 = vpop.f32.mrb[0].mxu0
  %v4087 = vadd.f32 %v3603, %v4086
  %v4088 = vpop.f32.mrb[0].mxu0
  %4089 = vmatprep.mubr.bf16.mxu0 %v1925
  %4090 = vmatmul.mubr.bf16.gmra.mrb[0].mxu0 %v1924
  %v4091 = vpop.f32.mrb[0].mxu0
  %v4092 = vadd.f32 %v3608, %v4091
  %v4093 = vpop.f32.mrb[0].mxu0
  %v4094 = vpop.f32.mrb[0].mxu0
  %v4095 = vadd.f32 %v3611, %v4094
  %v4096 = vpop.f32.mrb[0].mxu0
  %4097 = vmatprep.mubr.bf16.mxu0 %v1926
  %4098 = vmatmul.mubr.bf16.gmra.mrb[0].mxu0 %v1925
  %v4099 = vpop.f32.mrb[0].mxu0
  %v4100 = vadd.f32 %v3616, %v4099
  %v4101 = vpop.f32.mrb[0].mxu0
  %v4102 = vpop.f32.mrb[0].mxu0
  %v4103 = vadd.f32 %v3619, %v4102
  %v4104 = vpop.f32.mrb[0].mxu0
  %4105 = vmatprep.mubr.bf16.mxu0 %v1927
  %4106 = vmatmul.mubr.bf16.gmra.mrb[0].mxu0 %v1926
  %v4107 = vpop.f32.mrb[0].mxu0
  %v4108 = vadd.f32 %v3624, %v4107
  %v4109 = vpop.f32.mrb[0].mxu0
  %v4110 = vpop.f32.mrb[0].mxu0
  %v4111 = vadd.f32 %v3627, %v4110
  %v4112 = vpop.f32.mrb[0].mxu0
  %4113 = vmatprep.mubr.bf16.mxu0 %v1928
  %4114 = vmatmul.mubr.bf16.gmra.mrb[0].mxu0 %v1927
  %v4115 = vpop.f32.mrb[0].mxu0
  %v4116 = vadd.f32 %v3632, %v4115
  %v4117 = vpop.f32.mrb[0].mxu0
  %v4118 = vpop.f32.mrb[0].mxu0
  %v4119 = vadd.f32 %v3635, %v4118
  %v4120 = vpop.f32.mrb[0].mxu0
  %4121 = vmatprep.mubr.bf16.mxu0 %v1929
  %4122 = vmatmul.mubr.bf16.gmra.mrb[0].mxu0 %v1928
  %v4123 = vpop.f32.mrb[0].mxu0
  %v4124 = vadd.f32 %v3640, %v4123
  %v4125 = vpop.f32.mrb[0].mxu0
  %v4126 = vpop.f32.mrb[0].mxu0
  %v4127 = vadd.f32 %v3643, %v4126
  %v4128 = vpop.f32.mrb[0].mxu0
  %4129 = vmatprep.mubr.bf16.mxu0 %v1930
  %4130 = vmatmul.mubr.bf16.gmra.mrb[0].mxu0 %v1929
  %v4131 = vpop.f32.mrb[0].mxu0
  %v4132 = vadd.f32 %v3648, %v4131
  %v4133 = vpop.f32.mrb[0].mxu0
  %v4134 = vpop.f32.mrb[0].mxu0
  %v4135 = vadd.f32 %v3651, %v4134
  %v4136 = vpop.f32.mrb[0].mxu0
  %4137 = vmatprep.mubr.bf16.mxu0 %v1931
  %4138 = vmatmul.mubr.bf16.gmra.mrb[0].mxu0 %v1930
  %v4139 = vpop.f32.mrb[0].mxu0
  %v4140 = vadd.f32 %v3656, %v4139
  %v4141 = vpop.f32.mrb[0].mxu0
  %v4142 = vpop.f32.mrb[0].mxu0
  %v4143 = vadd.f32 %v3659, %v4142
  %v4144 = vpop.f32.mrb[0].mxu0
  %4145 = vmatprep.mubr.bf16.mxu0 %v1932
  %4146 = vmatmul.mubr.bf16.gmra.mrb[0].mxu0 %v1931
  %v4147 = vpop.f32.mrb[0].mxu0
  %v4148 = vadd.f32 %v3664, %v4147
  %v4149 = vpop.f32.mrb[0].mxu0
  %v4150 = vpop.f32.mrb[0].mxu0
  %v4151 = vadd.f32 %v3667, %v4150
  %v4152 = vpop.f32.mrb[0].mxu0
  %4153 = vdwg.mxu0
  %v4154 = vld [vmem:[%s0 + $0x20] sm:$0xff]
  %v4155 = vld [vmem:[%s0 + $0x28] sm:$0xff]
  %v4156 = vld [vmem:[%s0 + $0x30] sm:$0xff]
  %v4157 = vld [vmem:[%s0 + $0x78] sm:$0xff]
  %v4158 = vld [vmem:[%s0 + $0x80] sm:$0xff]
  %v4159 = vld [vmem:[%s0 + $0x88] sm:$0xff]
  %v4160 = vld [vmem:[%s0 + $0xd0] sm:$0xff]
  %v4161 = vld [vmem:[%s0 + $0xd8] sm:$0xff]
  %v4162 = vld [vmem:[%s0 + $0xe0] sm:$0xff]
  %v4163 = vld [vmem:[%s0 + $0x128] sm:$0xff]
  %v4164 = vld [vmem:[%s0 + $0x130] sm:$0xff]
  %v4165 = vld [vmem:[%s0 + $0x138] sm:$0xff]
  %v4166 = vld [vmem:[%s0 + $0x180] sm:$0xff]
  %v4167 = vld [vmem:[%s0 + $0x188] sm:$0xff]
  %v4168 = vld [vmem:[%s0 + $0x190] sm:$0xff]
  %v4169 = vld [vmem:[%s0 + $0x1d8] sm:$0xff]
  %v4170 = vld [vmem:[%s0 + $0x1e0] sm:$0xff]
  %v4171 = vld [vmem:[%s0 + $0x1e8] sm:$0xff]
  %v4172 = vld [vmem:[%s0 + $0x230] sm:$0xff]
  %v4173 = vld [vmem:[%s0 + $0x238] sm:$0xff]
  %v4174 = vld [vmem:[%s0 + $0x240] sm:$0xff]
  %v4175 = vld [vmem:[%s0 + $0x288] sm:$0xff]
  %v4176 = vld [vmem:[%s0 + $0x290] sm:$0xff]
  %v4177 = vld [vmem:[%s0 + $0x298] sm:$0xff]
  %v4178 = vld [vmem:[%s0 + $0x2e0] sm:$0xff]
  %v4179 = vld [vmem:[%s0 + $0x2e8] sm:$0xff]
  %v4180 = vld [vmem:[%s0 + $0x2f0] sm:$0xff]
  %v4181 = vld [vmem:[%s0 + $0x338] sm:$0xff]
  %v4182 = vld [vmem:[%s0 + $0x340] sm:$0xff]
  %v4183 = vld [vmem:[%s0 + $0x348] sm:$0xff]
  %v4184 = vld [vmem:[%s0 + $0x390] sm:$0xff]
  %v4185 = vld [vmem:[%s0 + $0x398] sm:$0xff]
  %v4186 = vld [vmem:[%s0 + $0x3a0] sm:$0xff]
  %v4187 = vld [vmem:[%s0 + $0x3e8] sm:$0xff]
  %v4188 = vld [vmem:[%s0 + $0x3f0] sm:$0xff]
  %v4189 = vld [vmem:[%s0 + $0x3f8] sm:$0xff]
  %v4190 = vld [vmem:[%s0 + $0x440] sm:$0xff]
  %v4191 = vld [vmem:[%s0 + $0x448] sm:$0xff]
  %v4192 = vld [vmem:[%s0 + $0x450] sm:$0xff]
  %v4193 = vld [vmem:[%s0 + $0x498] sm:$0xff]
  %v4194 = vld [vmem:[%s0 + $0x4a0] sm:$0xff]
  %v4195 = vld [vmem:[%s0 + $0x4a8] sm:$0xff]
  %v4196 = vld [vmem:[%s0 + $0x4f0] sm:$0xff]
  %v4197 = vld [vmem:[%s0 + $0x4f8] sm:$0xff]
  %v4198 = vld [vmem:[%s0 + $0x500] sm:$0xff]
  %v4199 = vld [vmem:[%s0 + $0x548] sm:$0xff]
  %v4200 = vld [vmem:[%s0 + $0x550] sm:$0xff]
  %v4201 = vld [vmem:[%s0 + $0x558] sm:$0xff]
  %v4202 = vld [vmem:[%s0 + $0x5a0] sm:$0xff]
  %v4203 = vld [vmem:[%s0 + $0x5a8] sm:$0xff]
  %v4204 = vld [vmem:[%s0 + $0x5b0] sm:$0xff]
  %v4205 = vld [vmem:[%s0 + $0x5f8] sm:$0xff]
  %v4206 = vld [vmem:[%s0 + $0x600] sm:$0xff]
  %v4207 = vld [vmem:[%s0 + $0x608] sm:$0xff]
  %v4208 = vld [vmem:[%s0 + $0x650] sm:$0xff]
  %v4209 = vld [vmem:[%s0 + $0x658] sm:$0xff]
  %v4210 = vld [vmem:[%s0 + $0x660] sm:$0xff]
  %v4211 = vld [vmem:[%s0 + $0x6a8] sm:$0xff]
  %v4212 = vld [vmem:[%s0 + $0x6b0] sm:$0xff]
  %v4213 = vld [vmem:[%s0 + $0x6b8] sm:$0xff]
  %v4214 = vld [vmem:[%s0 + $0x700] sm:$0xff]
  %v4215 = vld [vmem:[%s0 + $0x708] sm:$0xff]
  %v4216 = vld [vmem:[%s0 + $0x710] sm:$0xff]
  %v4217 = vld [vmem:[%s0 + $0x758] sm:$0xff]
  %v4218 = vld [vmem:[%s0 + $0x760] sm:$0xff]
  %v4219 = vld [vmem:[%s0 + $0x768] sm:$0xff]
  %v4280 = vunpack.c.l.b16 %v4160
  %v4281 = vunpack.c.h.b16 %v4160
  %v4282 = vunpack.c.l.b16 %v4161
  %v4283 = vunpack.c.h.b16 %v4161
  %v4284 = vunpack.c.l.b16 %v4162
  %v4285 = vunpack.c.h.b16 %v4162
  %v4286 = vunpack.c.l.b16 %v4163
  %v4287 = vunpack.c.h.b16 %v4163
  %v4288 = vunpack.c.l.b16 %v4164
  %v4289 = vunpack.c.h.b16 %v4164
  %v4290 = vunpack.c.l.b16 %v4165
  %v4291 = vunpack.c.h.b16 %v4165
  %v4292 = vunpack.c.l.b16 %v4166
  %v4293 = vunpack.c.h.b16 %v4166
  %v4294 = vunpack.c.l.b16 %v4167
  %v4295 = vunpack.c.h.b16 %v4167
  %v4296 = vunpack.c.l.b16 %v4168
  %v4297 = vunpack.c.h.b16 %v4168
  %v4298 = vunpack.c.l.b16 %v4169
  %v4299 = vunpack.c.h.b16 %v4169
  %v4300 = vunpack.c.l.b16 %v4170
  %v4301 = vunpack.c.h.b16 %v4170
  %v4302 = vunpack.c.l.b16 %v4171
  %v4303 = vunpack.c.h.b16 %v4171
  %v4304 = vunpack.c.l.b16 %v4172
  %v4305 = vunpack.c.h.b16 %v4172
  %v4306 = vunpack.c.l.b16 %v4173
  %v4307 = vunpack.c.h.b16 %v4173
  %v4308 = vunpack.c.l.b16 %v4174
  %v4309 = vunpack.c.h.b16 %v4174
  %v4310 = vunpack.c.l.b16 %v4175
  %v4311 = vunpack.c.h.b16 %v4175
  %v4312 = vunpack.c.l.b16 %v4176
  %v4313 = vunpack.c.h.b16 %v4176
  %v4314 = vunpack.c.l.b16 %v4177
  %v4315 = vunpack.c.h.b16 %v4177
  %v4316 = vunpack.c.l.b16 %v4178
  %v4317 = vunpack.c.h.b16 %v4178
  %v4318 = vunpack.c.l.b16 %v4179
  %v4319 = vunpack.c.h.b16 %v4179
  %v4320 = vunpack.c.l.b16 %v4180
  %v4321 = vunpack.c.h.b16 %v4180
  %v4322 = vunpack.c.l.b16 %v4181
  %v4323 = vunpack.c.h.b16 %v4181
  %v4324 = vunpack.c.l.b16 %v4182
  %v4325 = vunpack.c.h.b16 %v4182
  %v4326 = vunpack.c.l.b16 %v4183
  %v4327 = vunpack.c.h.b16 %v4183
  %v4328 = vunpack.c.l.b16 %v4184
  %v4329 = vunpack.c.h.b16 %v4184
  %v4330 = vunpack.c.l.b16 %v4185
  %v4331 = vunpack.c.h.b16 %v4185
  %v4332 = vunpack.c.l.b16 %v4186
  %v4333 = vunpack.c.h.b16 %v4186
  %v4334 = vunpack.c.l.b16 %v4187
  %v4335 = vunpack.c.h.b16 %v4187
  %v4336 = vunpack.c.l.b16 %v4188
  %v4337 = vunpack.c.h.b16 %v4188
  %v4338 = vunpack.c.l.b16 %v4189
  %v4339 = vunpack.c.h.b16 %v4189
  %v4340 = vunpack.c.l.b16 %v4190
  %v4341 = vunpack.c.h.b16 %v4190
  %v4342 = vunpack.c.l.b16 %v4191
  %v4343 = vunpack.c.h.b16 %v4191
  %v4344 = vunpack.c.l.b16 %v4192
  %v4345 = vunpack.c.h.b16 %v4192
  %v4346 = vunpack.c.l.b16 %v4193
  %v4347 = vunpack.c.h.b16 %v4193
  %v4348 = vunpack.c.l.b16 %v4194
  %v4349 = vunpack.c.h.b16 %v4194
  %v4350 = vunpack.c.l.b16 %v4195
  %v4351 = vunpack.c.h.b16 %v4195
  %v4352 = vunpack.c.l.b16 %v4196
  %v4353 = vunpack.c.h.b16 %v4196
  %v4354 = vunpack.c.l.b16 %v4197
  %v4355 = vunpack.c.h.b16 %v4197
  %v4356 = vunpack.c.l.b16 %v4198
  %v4357 = vunpack.c.h.b16 %v4198
  %v4358 = vunpack.c.l.b16 %v4199
  %v4359 = vunpack.c.h.b16 %v4199
  %v4360 = vunpack.c.l.b16 %v4200
  %v4361 = vunpack.c.h.b16 %v4200
  %v4362 = vunpack.c.l.b16 %v4201
  %v4363 = vunpack.c.h.b16 %v4201
  %v4364 = vunpack.c.l.b16 %v4202
  %v4365 = vunpack.c.h.b16 %v4202
  %v4366 = vunpack.c.l.b16 %v4203
  %v4367 = vunpack.c.h.b16 %v4203
  %v4368 = vunpack.c.l.b16 %v4204
  %v4369 = vunpack.c.h.b16 %v4204
  %v4370 = vunpack.c.l.b16 %v4205
  %v4371 = vunpack.c.h.b16 %v4205
  %v4372 = vunpack.c.l.b16 %v4206
  %v4373 = vunpack.c.h.b16 %v4206
  %v4374 = vunpack.c.l.b16 %v4207
  %v4375 = vunpack.c.h.b16 %v4207
  %v4376 = vunpack.c.l.b16 %v4208
  %v4377 = vunpack.c.h.b16 %v4208
  %v4378 = vunpack.c.l.b16 %v4209
  %v4379 = vunpack.c.h.b16 %v4209
  %v4380 = vunpack.c.l.b16 %v4210
  %v4381 = vunpack.c.h.b16 %v4210
  %v4382 = vunpack.c.l.b16 %v4211
  %v4383 = vunpack.c.h.b16 %v4211
  %v4384 = vunpack.c.l.b16 %v4212
  %v4385 = vunpack.c.h.b16 %v4212
  %v4386 = vunpack.c.l.b16 %v4213
  %v4387 = vunpack.c.h.b16 %v4213
  %v4388 = vunpack.c.l.b16 %v4214
  %v4389 = vunpack.c.h.b16 %v4214
  %v4390 = vunpack.c.l.b16 %v4215
  %v4391 = vunpack.c.h.b16 %v4215
  %v4392 = vunpack.c.l.b16 %v4216
  %v4393 = vunpack.c.h.b16 %v4216
  %v4394 = vunpack.c.l.b16 %v4217
  %v4395 = vunpack.c.h.b16 %v4217
  %v4396 = vunpack.c.l.b16 %v4218
  %v4397 = vunpack.c.h.b16 %v4218
  %v4398 = vunpack.c.l.b16 %v4219
  %v4399 = vunpack.c.h.b16 %v4219
  %v4400 = vpack.c.b16 %v4286, %v4280
  %v4401 = vpack.c.b16 %v4287, %v4281
  %v4402 = vpack.c.b16 %v4288, %v4282
  %v4403 = vpack.c.b16 %v4289, %v4283
  %v4404 = vpack.c.b16 %v4290, %v4284
  %v4405 = vpack.c.b16 %v4291, %v4285
  %v4406 = vpack.c.b16 %v4298, %v4292
  %v4407 = vpack.c.b16 %v4299, %v4293
  %v4408 = vpack.c.b16 %v4300, %v4294
  %v4409 = vpack.c.b16 %v4301, %v4295
  %v4410 = vpack.c.b16 %v4302, %v4296
  %v4411 = vpack.c.b16 %v4303, %v4297
  %v4412 = vpack.c.b16 %v4310, %v4304
  %v4413 = vpack.c.b16 %v4311, %v4305
  %v4414 = vpack.c.b16 %v4312, %v4306
  %v4415 = vpack.c.b16 %v4313, %v4307
  %v4416 = vpack.c.b16 %v4314, %v4308
  %v4417 = vpack.c.b16 %v4315, %v4309
  %v4418 = vpack.c.b16 %v4322, %v4316
  %v4419 = vpack.c.b16 %v4323, %v4317
  %v4420 = vpack.c.b16 %v4324, %v4318
  %v4421 = vpack.c.b16 %v4325, %v4319
  %v4422 = vpack.c.b16 %v4326, %v4320
  %v4423 = vpack.c.b16 %v4327, %v4321
  %v4424 = vpack.c.b16 %v4334, %v4328
  %v4425 = vpack.c.b16 %v4335, %v4329
  %v4426 = vpack.c.b16 %v4336, %v4330
  %v4427 = vpack.c.b16 %v4337, %v4331
  %v4428 = vpack.c.b16 %v4338, %v4332
  %v4429 = vpack.c.b16 %v4339, %v4333
  %v4430 = vpack.c.b16 %v4346, %v4340
  %v4431 = vpack.c.b16 %v4347, %v4341
  %v4432 = vpack.c.b16 %v4348, %v4342
  %v4433 = vpack.c.b16 %v4349, %v4343
  %v4434 = vpack.c.b16 %v4350, %v4344
  %v4435 = vpack.c.b16 %v4351, %v4345
  %v4436 = vpack.c.b16 %v4358, %v4352
  %v4437 = vpack.c.b16 %v4359, %v4353
  %v4438 = vpack.c.b16 %v4360, %v4354
  %v4439 = vpack.c.b16 %v4361, %v4355
  %v4440 = vpack.c.b16 %v4362, %v4356
  %v4441 = vpack.c.b16 %v4363, %v4357
  %v4442 = vpack.c.b16 %v4370, %v4364
  %v4443 = vpack.c.b16 %v4371, %v4365
  %v4444 = vpack.c.b16 %v4372, %v4366
  %v4445 = vpack.c.b16 %v4373, %v4367
  %v4446 = vpack.c.b16 %v4374, %v4368
  %v4447 = vpack.c.b16 %v4375, %v4369
  %v4448 = vpack.c.b16 %v4382, %v4376
  %v4449 = vpack.c.b16 %v4383, %v4377
  %v4450 = vpack.c.b16 %v4384, %v4378
  %v4451 = vpack.c.b16 %v4385, %v4379
  %v4452 = vpack.c.b16 %v4386, %v4380
  %v4453 = vpack.c.b16 %v4387, %v4381
  %v4454 = vpack.c.b16 %v4394, %v4388
  %v4455 = vpack.c.b16 %v4395, %v4389
  %v4456 = vpack.c.b16 %v4396, %v4390
  %v4457 = vpack.c.b16 %v4397, %v4391
  %v4458 = vpack.c.b16 %v4398, %v4392
  %v4459 = vpack.c.b16 %v4399, %v4393
  %4520 = vmatprep.subr.bf16.mxu0 0
  %4521 = vmatpush1.bf16.msra.mxu0 %v785
  %4522 = vmatprep.subr.bf16.mxu0 0
  %4523 = vmatpush1.bf16.msra.mxu0 %v786
  %4524 = vmatprep.subr.bf16.mxu0 0
  %4525 = vmatpush1.bf16.msra.mxu0 %v787
  %4526 = vmatprep.subr.bf16.mxu0 0
  %4527 = vmatpush1.bf16.msra.mxu0 %v788
  %4528 = vmatprep.subr.bf16.mxu0 0
  %4529 = vmatpush1.bf16.msra.mxu0 %v789
  %4530 = vmatprep.subr.bf16.mxu0 0
  %4531 = vmatpush1.bf16.msra.mxu0 %v790
  %4532 = vmatprep.subr.bf16.mxu0 0
  %4533 = vmatpush1.bf16.msra.mxu0 %v791
  %4534 = vmatprep.subr.bf16.mxu0 0
  %4535 = vmatpush1.bf16.msra.mxu0 %v792
  %4536 = vmatprep.subr.bf16.mxu0 0
  %4537 = vmatpush1.bf16.msra.mxu0 %v793
  %4538 = vmatprep.subr.bf16.mxu0 0
  %4539 = vmatpush1.bf16.msra.mxu0 %v794
  %4540 = vmatprep.subr.bf16.mxu0 0
  %4541 = vmatpush1.bf16.msra.mxu0 %v795
  %4542 = vmatprep.subr.bf16.mxu0 0
  %4543 = vmatpush1.bf16.msra.mxu0 %v796
  %4544 = vmatprep.subr.bf16.mxu0 0
  %4545 = vmatpush1.bf16.msra.mxu0 %v797
  %4546 = vmatprep.subr.bf16.mxu0 0
  %4547 = vmatpush1.bf16.msra.mxu0 %v798
  %4548 = vmatprep.subr.bf16.mxu0 0
  %4549 = vmatpush1.bf16.msra.mxu0 %v799
  %4550 = vmatprep.subr.bf16.mxu0 0
  %4551 = vmatpush1.bf16.msra.mxu0 %v800
  %4552 = vmatprep.mubr.bf16.mxu0 %v4401
  %4553 = vmatmul.mubr.bf16.gmra.mrb[0].mxu0 %v4400
  %v4554 = vpop.f32.mrb[0].mxu0
  %v4555 = vadd.f32 0.0, %v4554
  %v4556 = vpop.f32.mrb[0].mxu0
  %v4557 = vpop.f32.mrb[0].mxu0
  %v4558 = vadd.f32 0.0, %v4557
  %v4559 = vpop.f32.mrb[0].mxu0
  %4560 = vmatprep.mubr.bf16.mxu0 %v4407
  %4561 = vmatmul.mubr.bf16.gmra.mrb[0].mxu0 %v4406
  %v4562 = vpop.f32.mrb[0].mxu0
  %v4563 = vadd.f32 0.0, %v4562
  %v4564 = vpop.f32.mrb[0].mxu0
  %v4565 = vpop.f32.mrb[0].mxu0
  %v4566 = vadd.f32 0.0, %v4565
  %v4567 = vpop.f32.mrb[0].mxu0
  %4568 = vmatprep.mubr.bf16.mxu0 %v4413
  %4569 = vmatmul.mubr.bf16.gmra.mrb[0].mxu0 %v4412
  %v4570 = vpop.f32.mrb[0].mxu0
  %v4571 = vadd.f32 0.0, %v4570
  %v4572 = vpop.f32.mrb[0].mxu0
  %v4573 = vpop.f32.mrb[0].mxu0
  %v4574 = vadd.f32 0.0, %v4573
  %v4575 = vpop.f32.mrb[0].mxu0
  %4576 = vmatprep.mubr.bf16.mxu0 %v4419
  %4577 = vmatmul.mubr.bf16.gmra.mrb[0].mxu0 %v4418
  %v4578 = vpop.f32.mrb[0].mxu0
  %v4579 = vadd.f32 0.0, %v4578
  %v4580 = vpop.f32.mrb[0].mxu0
  %v4581 = vpop.f32.mrb[0].mxu0
  %v4582 = vadd.f32 0.0, %v4581
  %v4583 = vpop.f32.mrb[0].mxu0
  %4584 = vmatprep.mubr.bf16.mxu0 %v4425
  %4585 = vmatmul.mubr.bf16.gmra.mrb[0].mxu0 %v4424
  %v4586 = vpop.f32.mrb[0].mxu0
  %v4587 = vadd.f32 0.0, %v4586
  %v4588 = vpop.f32.mrb[0].mxu0
  %v4589 = vpop.f32.mrb[0].mxu0
  %v4590 = vadd.f32 0.0, %v4589
  %v4591 = vpop.f32.mrb[0].mxu0
  %4592 = vmatprep.mubr.bf16.mxu0 %v4431
  %4593 = vmatmul.mubr.bf16.gmra.mrb[0].mxu0 %v4430
  %v4594 = vpop.f32.mrb[0].mxu0
  %v4595 = vadd.f32 0.0, %v4594
  %v4596 = vpop.f32.mrb[0].mxu0
  %v4597 = vpop.f32.mrb[0].mxu0
  %v4598 = vadd.f32 0.0, %v4597
  %v4599 = vpop.f32.mrb[0].mxu0
  %4600 = vmatprep.mubr.bf16.mxu0 %v4437
  %4601 = vmatmul.mubr.bf16.gmra.mrb[0].mxu0 %v4436
  %v4602 = vpop.f32.mrb[0].mxu0
  %v4603 = vadd.f32 0.0, %v4602
  %v4604 = vpop.f32.mrb[0].mxu0
  %v4605 = vpop.f32.mrb[0].mxu0
  %v4606 = vadd.f32 0.0, %v4605
  %v4607 = vpop.f32.mrb[0].mxu0
  %4608 = vmatprep.mubr.bf16.mxu0 %v4443
  %4609 = vmatmul.mubr.bf16.gmra.mrb[0].mxu0 %v4442
  %v4610 = vpop.f32.mrb[0].mxu0
  %v4611 = vadd.f32 0.0, %v4610
  %v4612 = vpop.f32.mrb[0].mxu0
  %v4613 = vpop.f32.mrb[0].mxu0
  %v4614 = vadd.f32 0.0, %v4613
  %v4615 = vpop.f32.mrb[0].mxu0
  %4616 = vmatprep.mubr.bf16.mxu0 %v4449
  %4617 = vmatmul.mubr.bf16.gmra.mrb[0].mxu0 %v4448
  %v4618 = vpop.f32.mrb[0].mxu0
  %v4619 = vadd.f32 0.0, %v4618
  %v4620 = vpop.f32.mrb[0].mxu0
  %v4621 = vpop.f32.mrb[0].mxu0
  %v4622 = vadd.f32 0.0, %v4621
  %v4623 = vpop.f32.mrb[0].mxu0
  %4624 = vmatprep.mubr.bf16.mxu0 %v4455
  %4625 = vmatmul.mubr.bf16.gmra.mrb[0].mxu0 %v4454
  %v4626 = vpop.f32.mrb[0].mxu0
  %v4627 = vadd.f32 0.0, %v4626
  %v4628 = vpop.f32.mrb[0].mxu0
  %v4629 = vpop.f32.mrb[0].mxu0
  %v4630 = vadd.f32 0.0, %v4629
  %v4631 = vpop.f32.mrb[0].mxu0
  %4632 = vdwg.mxu0
  %4633 = vmatprep.subr.bf16.mxu0 0
  %4634 = vmatpush1.bf16.msra.mxu0 %v801
  %4635 = vmatprep.subr.bf16.mxu0 0
  %4636 = vmatpush1.bf16.msra.mxu0 %v802
  %4637 = vmatprep.subr.bf16.mxu0 0
  %4638 = vmatpush1.bf16.msra.mxu0 %v803
  %4639 = vmatprep.subr.bf16.mxu0 0
  %4640 = vmatpush1.bf16.msra.mxu0 %v804
  %4641 = vmatprep.subr.bf16.mxu0 0
  %4642 = vmatpush1.bf16.msra.mxu0 %v805
  %4643 = vmatprep.subr.bf16.mxu0 0
  %4644 = vmatpush1.bf16.msra.mxu0 %v806
  %4645 = vmatprep.subr.bf16.mxu0 0
  %4646 = vmatpush1.bf16.msra.mxu0 %v807
  %4647 = vmatprep.subr.bf16.mxu0 0
  %4648 = vmatpush1.bf16.msra.mxu0 %v808
  %4649 = vmatprep.subr.bf16.mxu0 0
  %4650 = vmatpush1.bf16.msra.mxu0 %v809
  %4651 = vmatprep.subr.bf16.mxu0 0
  %4652 = vmatpush1.bf16.msra.mxu0 %v810
  %4653 = vmatprep.subr.bf16.mxu0 0
  %4654 = vmatpush1.bf16.msra.mxu0 %v811
  %4655 = vmatprep.subr.bf16.mxu0 0
  %4656 = vmatpush1.bf16.msra.mxu0 %v812
  %4657 = vmatprep.subr.bf16.mxu0 0
  %4658 = vmatpush1.bf16.msra.mxu0 %v813
  %4659 = vmatprep.subr.bf16.mxu0 0
  %4660 = vmatpush1.bf16.msra.mxu0 %v814
  %4661 = vmatprep.subr.bf16.mxu0 0
  %4662 = vmatpush1.bf16.msra.mxu0 %v815
  %4663 = vmatprep.subr.bf16.mxu0 0
  %4664 = vmatpush1.bf16.msra.mxu0 %v816
  %4665 = vmatprep.mubr.bf16.mxu0 %v4403
  %4666 = vmatmul.mubr.bf16.gmra.mrb[0].mxu0 %v4402
  %v4667 = vpop.f32.mrb[0].mxu0
  %v4668 = vadd.f32 %v4555, %v4667
  %v4669 = vpop.f32.mrb[0].mxu0
  %v4670 = vpop.f32.mrb[0].mxu0
  %v4671 = vadd.f32 %v4558, %v4670
  %v4672 = vpop.f32.mrb[0].mxu0
  %4673 = vmatprep.mubr.bf16.mxu0 %v4409
  %4674 = vmatmul.mubr.bf16.gmra.mrb[0].mxu0 %v4408
  %v4675 = vpop.f32.mrb[0].mxu0
  %v4676 = vadd.f32 %v4563, %v4675
  %v4677 = vpop.f32.mrb[0].mxu0
  %v4678 = vpop.f32.mrb[0].mxu0
  %v4679 = vadd.f32 %v4566, %v4678
  %v4680 = vpop.f32.mrb[0].mxu0
  %4681 = vmatprep.mubr.bf16.mxu0 %v4415
  %4682 = vmatmul.mubr.bf16.gmra.mrb[0].mxu0 %v4414
  %v4683 = vpop.f32.mrb[0].mxu0
  %v4684 = vadd.f32 %v4571, %v4683
  %v4685 = vpop.f32.mrb[0].mxu0
  %v4686 = vpop.f32.mrb[0].mxu0
  %v4687 = vadd.f32 %v4574, %v4686
  %v4688 = vpop.f32.mrb[0].mxu0
  %4689 = vmatprep.mubr.bf16.mxu0 %v4421
  %4690 = vmatmul.mubr.bf16.gmra.mrb[0].mxu0 %v4420
  %v4691 = vpop.f32.mrb[0].mxu0
  %v4692 = vadd.f32 %v4579, %v4691
  %v4693 = vpop.f32.mrb[0].mxu0
  %v4694 = vpop.f32.mrb[0].mxu0
  %v4695 = vadd.f32 %v4582, %v4694
  %v4696 = vpop.f32.mrb[0].mxu0
  %4697 = vmatprep.mubr.bf16.mxu0 %v4427
  %4698 = vmatmul.mubr.bf16.gmra.mrb[0].mxu0 %v4426
  %v4699 = vpop.f32.mrb[0].mxu0
  %v4700 = vadd.f32 %v4587, %v4699
  %v4701 = vpop.f32.mrb[0].mxu0
  %v4702 = vpop.f32.mrb[0].mxu0
  %v4703 = vadd.f32 %v4590, %v4702
  %v4704 = vpop.f32.mrb[0].mxu0
  %4705 = vmatprep.mubr.bf16.mxu0 %v4433
  %4706 = vmatmul.mubr.bf16.gmra.mrb[0].mxu0 %v4432
  %v4707 = vpop.f32.mrb[0].mxu0
  %v4708 = vadd.f32 %v4595, %v4707
  %v4709 = vpop.f32.mrb[0].mxu0
  %v4710 = vpop.f32.mrb[0].mxu0
  %v4711 = vadd.f32 %v4598, %v4710
  %v4712 = vpop.f32.mrb[0].mxu0
  %4713 = vmatprep.mubr.bf16.mxu0 %v4439
  %4714 = vmatmul.mubr.bf16.gmra.mrb[0].mxu0 %v4438
  %v4715 = vpop.f32.mrb[0].mxu0
  %v4716 = vadd.f32 %v4603, %v4715
  %v4717 = vpop.f32.mrb[0].mxu0
  %v4718 = vpop.f32.mrb[0].mxu0
  %v4719 = vadd.f32 %v4606, %v4718
  %v4720 = vpop.f32.mrb[0].mxu0
  %4721 = vmatprep.mubr.bf16.mxu0 %v4445
  %4722 = vmatmul.mubr.bf16.gmra.mrb[0].mxu0 %v4444
  %v4723 = vpop.f32.mrb[0].mxu0
  %v4724 = vadd.f32 %v4611, %v4723
  %v4725 = vpop.f32.mrb[0].mxu0
  %v4726 = vpop.f32.mrb[0].mxu0
  %v4727 = vadd.f32 %v4614, %v4726
  %v4728 = vpop.f32.mrb[0].mxu0
  %4729 = vmatprep.mubr.bf16.mxu0 %v4451
  %4730 = vmatmul.mubr.bf16.gmra.mrb[0].mxu0 %v4450
  %v4731 = vpop.f32.mrb[0].mxu0
  %v4732 = vadd.f32 %v4619, %v4731
  %v4733 = vpop.f32.mrb[0].mxu0
  %v4734 = vpop.f32.mrb[0].mxu0
  %v4735 = vadd.f32 %v4622, %v4734
  %v4736 = vpop.f32.mrb[0].mxu0
  %4737 = vmatprep.mubr.bf16.mxu0 %v4457
  %4738 = vmatmul.mubr.bf16.gmra.mrb[0].mxu0 %v4456
  %v4739 = vpop.f32.mrb[0].mxu0
  %v4740 = vadd.f32 %v4627, %v4739
  %v4741 = vpop.f32.mrb[0].mxu0
  %v4742 = vpop.f32.mrb[0].mxu0
  %v4743 = vadd.f32 %v4630, %v4742
  %v4744 = vpop.f32.mrb[0].mxu0
  %4745 = vdwg.mxu0
  %4746 = vmatprep.subr.bf16.mxu0 0
  %4747 = vmatpush1.bf16.msra.mxu0 %v817
  %4748 = vmatprep.subr.bf16.mxu0 0
  %4749 = vmatpush1.bf16.msra.mxu0 %v818
  %4750 = vmatprep.subr.bf16.mxu0 0
  %4751 = vmatpush1.bf16.msra.mxu0 %v819
  %4752 = vmatprep.subr.bf16.mxu0 0
  %4753 = vmatpush1.bf16.msra.mxu0 %v820
  %4754 = vmatprep.subr.bf16.mxu0 0
  %4755 = vmatpush1.bf16.msra.mxu0 %v821
  %4756 = vmatprep.subr.bf16.mxu0 0
  %4757 = vmatpush1.bf16.msra.mxu0 %v822
  %4758 = vmatprep.subr.bf16.mxu0 0
  %4759 = vmatpush1.bf16.msra.mxu0 %v823
  %4760 = vmatprep.subr.bf16.mxu0 0
  %4761 = vmatpush1.bf16.msra.mxu0 %v824
  %4762 = vmatprep.subr.bf16.mxu0 0
  %4763 = vmatpush1.bf16.msra.mxu0 %v825
  %4764 = vmatprep.subr.bf16.mxu0 0
  %4765 = vmatpush1.bf16.msra.mxu0 %v826
  %4766 = vmatprep.subr.bf16.mxu0 0
  %4767 = vmatpush1.bf16.msra.mxu0 %v827
  %4768 = vmatprep.subr.bf16.mxu0 0
  %4769 = vmatpush1.bf16.msra.mxu0 %v828
  %4770 = vmatprep.subr.bf16.mxu0 0
  %4771 = vmatpush1.bf16.msra.mxu0 %v829
  %4772 = vmatprep.subr.bf16.mxu0 0
  %4773 = vmatpush1.bf16.msra.mxu0 %v830
  %4774 = vmatprep.subr.bf16.mxu0 0
  %4775 = vmatpush1.bf16.msra.mxu0 %v831
  %4776 = vmatprep.subr.bf16.mxu0 0
  %4777 = vmatpush1.bf16.msra.mxu0 %v832
  %4778 = vmatprep.mubr.bf16.mxu0 %v4405
  %4779 = vmatmul.mubr.bf16.gmra.mrb[0].mxu0 %v4404
  %v4780 = vpop.f32.mrb[0].mxu0
  %v4781 = vadd.f32 %v4668, %v4780
  %v4782 = vpop.f32.mrb[0].mxu0
  %v4783 = vpop.f32.mrb[0].mxu0
  %v4784 = vadd.f32 %v4671, %v4783
  %v4785 = vpop.f32.mrb[0].mxu0
  %4786 = vmatprep.mubr.bf16.mxu0 %v4411
  %4787 = vmatmul.mubr.bf16.gmra.mrb[0].mxu0 %v4410
  %v4788 = vpop.f32.mrb[0].mxu0
  %v4789 = vadd.f32 %v4676, %v4788
  %v4790 = vpop.f32.mrb[0].mxu0
  %v4791 = vpop.f32.mrb[0].mxu0
  %v4792 = vadd.f32 %v4679, %v4791
  %v4793 = vpop.f32.mrb[0].mxu0
  %4794 = vmatprep.mubr.bf16.mxu0 %v4417
  %4795 = vmatmul.mubr.bf16.gmra.mrb[0].mxu0 %v4416
  %v4796 = vpop.f32.mrb[0].mxu0
  %v4797 = vadd.f32 %v4684, %v4796
  %v4798 = vpop.f32.mrb[0].mxu0
  %v4799 = vpop.f32.mrb[0].mxu0
  %v4800 = vadd.f32 %v4687, %v4799
  %v4801 = vpop.f32.mrb[0].mxu0
  %4802 = vmatprep.mubr.bf16.mxu0 %v4423
  %4803 = vmatmul.mubr.bf16.gmra.mrb[0].mxu0 %v4422
  %v4804 = vpop.f32.mrb[0].mxu0
  %v4805 = vadd.f32 %v4692, %v4804
  %v4806 = vpop.f32.mrb[0].mxu0
  %v4807 = vpop.f32.mrb[0].mxu0
  %v4808 = vadd.f32 %v4695, %v4807
  %v4809 = vpop.f32.mrb[0].mxu0
  %4810 = vmatprep.mubr.bf16.mxu0 %v4429
  %4811 = vmatmul.mubr.bf16.gmra.mrb[0].mxu0 %v4428
  %v4812 = vpop.f32.mrb[0].mxu0
  %v4813 = vadd.f32 %v4700, %v4812
  %v4814 = vpop.f32.mrb[0].mxu0
  %v4815 = vpop.f32.mrb[0].mxu0
  %v4816 = vadd.f32 %v4703, %v4815
  %v4817 = vpop.f32.mrb[0].mxu0
  %4818 = vmatprep.mubr.bf16.mxu0 %v4435
  %4819 = vmatmul.mubr.bf16.gmra.mrb[0].mxu0 %v4434
  %v4820 = vpop.f32.mrb[0].mxu0
  %v4821 = vadd.f32 %v4708, %v4820
  %v4822 = vpop.f32.mrb[0].mxu0
  %v4823 = vpop.f32.mrb[0].mxu0
  %v4824 = vadd.f32 %v4711, %v4823
  %v4825 = vpop.f32.mrb[0].mxu0
  %4826 = vmatprep.mubr.bf16.mxu0 %v4441
  %4827 = vmatmul.mubr.bf16.gmra.mrb[0].mxu0 %v4440
  %v4828 = vpop.f32.mrb[0].mxu0
  %v4829 = vadd.f32 %v4716, %v4828
  %v4830 = vpop.f32.mrb[0].mxu0
  %v4831 = vpop.f32.mrb[0].mxu0
  %v4832 = vadd.f32 %v4719, %v4831
  %v4833 = vpop.f32.mrb[0].mxu0
  %4834 = vmatprep.mubr.bf16.mxu0 %v4447
  %4835 = vmatmul.mubr.bf16.gmra.mrb[0].mxu0 %v4446
  %v4836 = vpop.f32.mrb[0].mxu0
  %v4837 = vadd.f32 %v4724, %v4836
  %v4838 = vpop.f32.mrb[0].mxu0
  %v4839 = vpop.f32.mrb[0].mxu0
  %v4840 = vadd.f32 %v4727, %v4839
  %v4841 = vpop.f32.mrb[0].mxu0
  %4842 = vmatprep.mubr.bf16.mxu0 %v4453
  %4843 = vmatmul.mubr.bf16.gmra.mrb[0].mxu0 %v4452
  %v4844 = vpop.f32.mrb[0].mxu0
  %v4845 = vadd.f32 %v4732, %v4844
  %v4846 = vpop.f32.mrb[0].mxu0
  %v4847 = vpop.f32.mrb[0].mxu0
  %v4848 = vadd.f32 %v4735, %v4847
  %v4849 = vpop.f32.mrb[0].mxu0
  %4850 = vmatprep.mubr.bf16.mxu0 %v4459
  %4851 = vmatmul.mubr.bf16.gmra.mrb[0].mxu0 %v4458
  %v4852 = vpop.f32.mrb[0].mxu0
  %v4853 = vadd.f32 %v4740, %v4852
  %v4854 = vpop.f32.mrb[0].mxu0
  %v4855 = vpop.f32.mrb[0].mxu0
  %v4856 = vadd.f32 %v4743, %v4855
  %v4857 = vpop.f32.mrb[0].mxu0
  %4858 = vdwg.mxu0
  %v4865 = vunpack.c.l.b16 %v4154
  %v4866 = vunpack.c.h.b16 %v4154
  %v4867 = vunpack.c.l.b16 %v4155
  %v4868 = vunpack.c.h.b16 %v4155
  %v4869 = vunpack.c.l.b16 %v4156
  %v4870 = vunpack.c.h.b16 %v4156
  %v4871 = vunpack.c.l.b16 %v4157
  %v4872 = vunpack.c.h.b16 %v4157
  %v4873 = vunpack.c.l.b16 %v4158
  %v4874 = vunpack.c.h.b16 %v4158
  %v4875 = vunpack.c.l.b16 %v4159
  %v4876 = vunpack.c.h.b16 %v4159
  %v4877 = vpack.c.b16 %v4871, %v4865
  %v4878 = vpack.c.b16 %v4872, %v4866
  %v4879 = vpack.c.b16 %v4873, %v4867
  %v4880 = vpack.c.b16 %v4874, %v4868
  %v4881 = vpack.c.b16 %v4875, %v4869
  %v4882 = vpack.c.b16 %v4876, %v4870
  %4889 = vmatprep.subr.bf16.mxu0 0
  %4890 = vmatpush1.bf16.msra.mxu0 %v1442
  %4891 = vmatprep.subr.bf16.mxu0 0
  %4892 = vmatpush1.bf16.msra.mxu0 %v1443
  %4893 = vmatprep.subr.bf16.mxu0 0
  %4894 = vmatpush1.bf16.msra.mxu0 %v1444
  %4895 = vmatprep.subr.bf16.mxu0 0
  %4896 = vmatpush1.bf16.msra.mxu0 %v1445
  %4897 = vmatprep.subr.bf16.mxu0 0
  %4898 = vmatpush1.bf16.msra.mxu0 %v1446
  %4899 = vmatprep.subr.bf16.mxu0 0
  %4900 = vmatpush1.bf16.msra.mxu0 %v1447
  %4901 = vmatprep.subr.bf16.mxu0 0
  %4902 = vmatpush1.bf16.msra.mxu0 %v1448
  %4903 = vmatprep.subr.bf16.mxu0 0
  %4904 = vmatpush1.bf16.msra.mxu0 %v1449
  %4905 = vmatprep.subr.bf16.mxu0 0
  %4906 = vmatpush1.bf16.msra.mxu0 %v1450
  %4907 = vmatprep.subr.bf16.mxu0 0
  %4908 = vmatpush1.bf16.msra.mxu0 %v1451
  %4909 = vmatprep.subr.bf16.mxu0 0
  %4910 = vmatpush1.bf16.msra.mxu0 %v1452
  %4911 = vmatprep.subr.bf16.mxu0 0
  %4912 = vmatpush1.bf16.msra.mxu0 %v1453
  %4913 = vmatprep.subr.bf16.mxu0 0
  %4914 = vmatpush1.bf16.msra.mxu0 %v1454
  %4915 = vmatprep.subr.bf16.mxu0 0
  %4916 = vmatpush1.bf16.msra.mxu0 %v1455
  %4917 = vmatprep.subr.bf16.mxu0 0
  %4918 = vmatpush1.bf16.msra.mxu0 %v1456
  %4919 = vmatprep.subr.bf16.mxu0 0
  %4920 = vmatpush1.bf16.msra.mxu0 %v1457
  %4921 = vmatprep.mubr.bf16.mxu0 %v4878
  %4922 = vmatmul.mubr.bf16.gmra.mrb[0].mxu0 %v4877
  %v4923 = vpop.f32.mrb[0].mxu0
  %v4924 = vadd.f32 %v4781, %v4923
  %v4925 = vpop.f32.mrb[0].mxu0
  %v4926 = vpop.f32.mrb[0].mxu0
  %v4927 = vadd.f32 %v4784, %v4926
  %v4928 = vpop.f32.mrb[0].mxu0
  %4929 = vmatprep.mubr.bf16.mxu0 %v4401
  %4930 = vmatmul.mubr.bf16.gmra.mrb[0].mxu0 %v4400
  %v4931 = vpop.f32.mrb[0].mxu0
  %v4932 = vadd.f32 %v4789, %v4931
  %v4933 = vpop.f32.mrb[0].mxu0
  %v4934 = vpop.f32.mrb[0].mxu0
  %v4935 = vadd.f32 %v4792, %v4934
  %v4936 = vpop.f32.mrb[0].mxu0
  %4937 = vmatprep.mubr.bf16.mxu0 %v4407
  %4938 = vmatmul.mubr.bf16.gmra.mrb[0].mxu0 %v4406
  %v4939 = vpop.f32.mrb[0].mxu0
  %v4940 = vadd.f32 %v4797, %v4939
  %v4941 = vpop.f32.mrb[0].mxu0
  %v4942 = vpop.f32.mrb[0].mxu0
  %v4943 = vadd.f32 %v4800, %v4942
  %v4944 = vpop.f32.mrb[0].mxu0
  %4945 = vmatprep.mubr.bf16.mxu0 %v4413
  %4946 = vmatmul.mubr.bf16.gmra.mrb[0].mxu0 %v4412
  %v4947 = vpop.f32.mrb[0].mxu0
  %v4948 = vadd.f32 %v4805, %v4947
  %v4949 = vpop.f32.mrb[0].mxu0
  %v4950 = vpop.f32.mrb[0].mxu0
  %v4951 = vadd.f32 %v4808, %v4950
  %v4952 = vpop.f32.mrb[0].mxu0
  %4953 = vmatprep.mubr.bf16.mxu0 %v4419
  %4954 = vmatmul.mubr.bf16.gmra.mrb[0].mxu0 %v4418
  %v4955 = vpop.f32.mrb[0].mxu0
  %v4956 = vadd.f32 %v4813, %v4955
  %v4957 = vpop.f32.mrb[0].mxu0
  %v4958 = vpop.f32.mrb[0].mxu0
  %v4959 = vadd.f32 %v4816, %v4958
  %v4960 = vpop.f32.mrb[0].mxu0
  %4961 = vmatprep.mubr.bf16.mxu0 %v4425
  %4962 = vmatmul.mubr.bf16.gmra.mrb[0].mxu0 %v4424
  %v4963 = vpop.f32.mrb[0].mxu0
  %v4964 = vadd.f32 %v4821, %v4963
  %v4965 = vpop.f32.mrb[0].mxu0
  %v4966 = vpop.f32.mrb[0].mxu0
  %v4967 = vadd.f32 %v4824, %v4966
  %v4968 = vpop.f32.mrb[0].mxu0
  %4969 = vmatprep.mubr.bf16.mxu0 %v4431
  %4970 = vmatmul.mubr.bf16.gmra.mrb[0].mxu0 %v4430
  %v4971 = vpop.f32.mrb[0].mxu0
  %v4972 = vadd.f32 %v4829, %v4971
  %v4973 = vpop.f32.mrb[0].mxu0
  %v4974 = vpop.f32.mrb[0].mxu0
  %v4975 = vadd.f32 %v4832, %v4974
  %v4976 = vpop.f32.mrb[0].mxu0
  %4977 = vmatprep.mubr.bf16.mxu0 %v4437
  %4978 = vmatmul.mubr.bf16.gmra.mrb[0].mxu0 %v4436
  %v4979 = vpop.f32.mrb[0].mxu0
  %v4980 = vadd.f32 %v4837, %v4979
  %v4981 = vpop.f32.mrb[0].mxu0
  %v4982 = vpop.f32.mrb[0].mxu0
  %v4983 = vadd.f32 %v4840, %v4982
  %v4984 = vpop.f32.mrb[0].mxu0
  %4985 = vmatprep.mubr.bf16.mxu0 %v4443
  %4986 = vmatmul.mubr.bf16.gmra.mrb[0].mxu0 %v4442
  %v4987 = vpop.f32.mrb[0].mxu0
  %v4988 = vadd.f32 %v4845, %v4987
  %v4989 = vpop.f32.mrb[0].mxu0
  %v4990 = vpop.f32.mrb[0].mxu0
  %v4991 = vadd.f32 %v4848, %v4990
  %v4992 = vpop.f32.mrb[0].mxu0
  %4993 = vmatprep.mubr.bf16.mxu0 %v4449
  %4994 = vmatmul.mubr.bf16.gmra.mrb[0].mxu0 %v4448
  %v4995 = vpop.f32.mrb[0].mxu0
  %v4996 = vadd.f32 %v4853, %v4995
  %v4997 = vpop.f32.mrb[0].mxu0
  %v4998 = vpop.f32.mrb[0].mxu0
  %v4999 = vadd.f32 %v4856, %v4998
  %v5000 = vpop.f32.mrb[0].mxu0
  %5001 = vdwg.mxu0
  %5002 = vmatprep.subr.bf16.mxu0 0
  %5003 = vmatpush1.bf16.msra.mxu0 %v1458
  %5004 = vmatprep.subr.bf16.mxu0 0
  %5005 = vmatpush1.bf16.msra.mxu0 %v1459
  %5006 = vmatprep.subr.bf16.mxu0 0
  %5007 = vmatpush1.bf16.msra.mxu0 %v1460
  %5008 = vmatprep.subr.bf16.mxu0 0
  %5009 = vmatpush1.bf16.msra.mxu0 %v1461
  %5010 = vmatprep.subr.bf16.mxu0 0
  %5011 = vmatpush1.bf16.msra.mxu0 %v1462
  %5012 = vmatprep.subr.bf16.mxu0 0
  %5013 = vmatpush1.bf16.msra.mxu0 %v1463
  %5014 = vmatprep.subr.bf16.mxu0 0
  %5015 = vmatpush1.bf16.msra.mxu0 %v1464
  %5016 = vmatprep.subr.bf16.mxu0 0
  %5017 = vmatpush1.bf16.msra.mxu0 %v1465
  %5018 = vmatprep.subr.bf16.mxu0 0
  %5019 = vmatpush1.bf16.msra.mxu0 %v1466
  %5020 = vmatprep.subr.bf16.mxu0 0
  %5021 = vmatpush1.bf16.msra.mxu0 %v1467
  %5022 = vmatprep.subr.bf16.mxu0 0
  %5023 = vmatpush1.bf16.msra.mxu0 %v1468
  %5024 = vmatprep.subr.bf16.mxu0 0
  %5025 = vmatpush1.bf16.msra.mxu0 %v1469
  %5026 = vmatprep.subr.bf16.mxu0 0
  %5027 = vmatpush1.bf16.msra.mxu0 %v1470
  %5028 = vmatprep.subr.bf16.mxu0 0
  %5029 = vmatpush1.bf16.msra.mxu0 %v1471
  %5030 = vmatprep.subr.bf16.mxu0 0
  %5031 = vmatpush1.bf16.msra.mxu0 %v1472
  %5032 = vmatprep.subr.bf16.mxu0 0
  %5033 = vmatpush1.bf16.msra.mxu0 %v1473
  %5034 = vmatprep.mubr.bf16.mxu0 %v4880
  %5035 = vmatmul.mubr.bf16.gmra.mrb[0].mxu0 %v4879
  %v5036 = vpop.f32.mrb[0].mxu0
  %v5037 = vadd.f32 %v4924, %v5036
  %v5038 = vpop.f32.mrb[0].mxu0
  %v5039 = vpop.f32.mrb[0].mxu0
  %v5040 = vadd.f32 %v4927, %v5039
  %v5041 = vpop.f32.mrb[0].mxu0
  %5042 = vmatprep.mubr.bf16.mxu0 %v4403
  %5043 = vmatmul.mubr.bf16.gmra.mrb[0].mxu0 %v4402
  %v5044 = vpop.f32.mrb[0].mxu0
  %v5045 = vadd.f32 %v4932, %v5044
  %v5046 = vpop.f32.mrb[0].mxu0
  %v5047 = vpop.f32.mrb[0].mxu0
  %v5048 = vadd.f32 %v4935, %v5047
  %v5049 = vpop.f32.mrb[0].mxu0
  %5050 = vmatprep.mubr.bf16.mxu0 %v4409
  %5051 = vmatmul.mubr.bf16.gmra.mrb[0].mxu0 %v4408
  %v5052 = vpop.f32.mrb[0].mxu0
  %v5053 = vadd.f32 %v4940, %v5052
  %v5054 = vpop.f32.mrb[0].mxu0
  %v5055 = vpop.f32.mrb[0].mxu0
  %v5056 = vadd.f32 %v4943, %v5055
  %v5057 = vpop.f32.mrb[0].mxu0
  %5058 = vmatprep.mubr.bf16.mxu0 %v4415
  %5059 = vmatmul.mubr.bf16.gmra.mrb[0].mxu0 %v4414
  %v5060 = vpop.f32.mrb[0].mxu0
  %v5061 = vadd.f32 %v4948, %v5060
  %v5062 = vpop.f32.mrb[0].mxu0
  %v5063 = vpop.f32.mrb[0].mxu0
  %v5064 = vadd.f32 %v4951, %v5063
  %v5065 = vpop.f32.mrb[0].mxu0
  %5066 = vmatprep.mubr.bf16.mxu0 %v4421
  %5067 = vmatmul.mubr.bf16.gmra.mrb[0].mxu0 %v4420
  %v5068 = vpop.f32.mrb[0].mxu0
  %v5069 = vadd.f32 %v4956, %v5068
  %v5070 = vpop.f32.mrb[0].mxu0
  %v5071 = vpop.f32.mrb[0].mxu0
  %v5072 = vadd.f32 %v4959, %v5071
  %v5073 = vpop.f32.mrb[0].mxu0
  %5074 = vmatprep.mubr.bf16.mxu0 %v4427
  %5075 = vmatmul.mubr.bf16.gmra.mrb[0].mxu0 %v4426
  %v5076 = vpop.f32.mrb[0].mxu0
  %v5077 = vadd.f32 %v4964, %v5076
  %v5078 = vpop.f32.mrb[0].mxu0
  %v5079 = vpop.f32.mrb[0].mxu0
  %v5080 = vadd.f32 %v4967, %v5079
  %v5081 = vpop.f32.mrb[0].mxu0
  %5082 = vmatprep.mubr.bf16.mxu0 %v4433
  %5083 = vmatmul.mubr.bf16.gmra.mrb[0].mxu0 %v4432
  %v5084 = vpop.f32.mrb[0].mxu0
  %v5085 = vadd.f32 %v4972, %v5084
  %v5086 = vpop.f32.mrb[0].mxu0
  %v5087 = vpop.f32.mrb[0].mxu0
  %v5088 = vadd.f32 %v4975, %v5087
  %v5089 = vpop.f32.mrb[0].mxu0
  %5090 = vmatprep.mubr.bf16.mxu0 %v4439
  %5091 = vmatmul.mubr.bf16.gmra.mrb[0].mxu0 %v4438
  %v5092 = vpop.f32.mrb[0].mxu0
  %v5093 = vadd.f32 %v4980, %v5092
  %v5094 = vpop.f32.mrb[0].mxu0
  %v5095 = vpop.f32.mrb[0].mxu0
  %v5096 = vadd.f32 %v4983, %v5095
  %v5097 = vpop.f32.mrb[0].mxu0
  %5098 = vmatprep.mubr.bf16.mxu0 %v4445
  %5099 = vmatmul.mubr.bf16.gmra.mrb[0].mxu0 %v4444
  %v5100 = vpop.f32.mrb[0].mxu0
  %v5101 = vadd.f32 %v4988, %v5100
  %v5102 = vpop.f32.mrb[0].mxu0
  %v5103 = vpop.f32.mrb[0].mxu0
  %v5104 = vadd.f32 %v4991, %v5103
  %v5105 = vpop.f32.mrb[0].mxu0
  %5106 = vmatprep.mubr.bf16.mxu0 %v4451
  %5107 = vmatmul.mubr.bf16.gmra.mrb[0].mxu0 %v4450
  %v5108 = vpop.f32.mrb[0].mxu0
  %v5109 = vadd.f32 %v4996, %v5108
  %v5110 = vpop.f32.mrb[0].mxu0
  %v5111 = vpop.f32.mrb[0].mxu0
  %v5112 = vadd.f32 %v4999, %v5111
  %v5113 = vpop.f32.mrb[0].mxu0
  %5114 = vdwg.mxu0
  %5115 = vmatprep.subr.bf16.mxu0 0
  %5116 = vmatpush1.bf16.msra.mxu0 %v1474
  %5117 = vmatprep.subr.bf16.mxu0 0
  %5118 = vmatpush1.bf16.msra.mxu0 %v1475
  %5119 = vmatprep.subr.bf16.mxu0 0
  %5120 = vmatpush1.bf16.msra.mxu0 %v1476
  %5121 = vmatprep.subr.bf16.mxu0 0
  %5122 = vmatpush1.bf16.msra.mxu0 %v1477
  %5123 = vmatprep.subr.bf16.mxu0 0
  %5124 = vmatpush1.bf16.msra.mxu0 %v1478
  %5125 = vmatprep.subr.bf16.mxu0 0
  %5126 = vmatpush1.bf16.msra.mxu0 %v1479
  %5127 = vmatprep.subr.bf16.mxu0 0
  %5128 = vmatpush1.bf16.msra.mxu0 %v1480
  %5129 = vmatprep.subr.bf16.mxu0 0
  %5130 = vmatpush1.bf16.msra.mxu0 %v1481
  %5131 = vmatprep.subr.bf16.mxu0 0
  %5132 = vmatpush1.bf16.msra.mxu0 %v1482
  %5133 = vmatprep.subr.bf16.mxu0 0
  %5134 = vmatpush1.bf16.msra.mxu0 %v1483
  %5135 = vmatprep.subr.bf16.mxu0 0
  %5136 = vmatpush1.bf16.msra.mxu0 %v1484
  %5137 = vmatprep.subr.bf16.mxu0 0
  %5138 = vmatpush1.bf16.msra.mxu0 %v1485
  %5139 = vmatprep.subr.bf16.mxu0 0
  %5140 = vmatpush1.bf16.msra.mxu0 %v1486
  %5141 = vmatprep.subr.bf16.mxu0 0
  %5142 = vmatpush1.bf16.msra.mxu0 %v1487
  %5143 = vmatprep.subr.bf16.mxu0 0
  %5144 = vmatpush1.bf16.msra.mxu0 %v1488
  %5145 = vmatprep.subr.bf16.mxu0 0
  %5146 = vmatpush1.bf16.msra.mxu0 %v1489
  %5147 = vmatprep.mubr.bf16.mxu0 %v4882
  %5148 = vmatmul.mubr.bf16.gmra.mrb[0].mxu0 %v4881
  %v5149 = vpop.f32.mrb[0].mxu0
  %v5150 = vadd.f32 %v5037, %v5149
  %v5151 = vpop.f32.mrb[0].mxu0
  %v5152 = vpop.f32.mrb[0].mxu0
  %v5153 = vadd.f32 %v5040, %v5152
  %v5154 = vpop.f32.mrb[0].mxu0
  %5155 = vmatprep.mubr.bf16.mxu0 %v4405
  %5156 = vmatmul.mubr.bf16.gmra.mrb[0].mxu0 %v4404
  %v5157 = vpop.f32.mrb[0].mxu0
  %v5158 = vadd.f32 %v5045, %v5157
  %v5159 = vpop.f32.mrb[0].mxu0
  %v5160 = vpop.f32.mrb[0].mxu0
  %v5161 = vadd.f32 %v5048, %v5160
  %v5162 = vpop.f32.mrb[0].mxu0
  %5163 = vmatprep.mubr.bf16.mxu0 %v4411
  %5164 = vmatmul.mubr.bf16.gmra.mrb[0].mxu0 %v4410
  %v5165 = vpop.f32.mrb[0].mxu0
  %v5166 = vadd.f32 %v5053, %v5165
  %v5167 = vpop.f32.mrb[0].mxu0
  %v5168 = vpop.f32.mrb[0].mxu0
  %v5169 = vadd.f32 %v5056, %v5168
  %v5170 = vpop.f32.mrb[0].mxu0
  %5171 = vmatprep.mubr.bf16.mxu0 %v4417
  %5172 = vmatmul.mubr.bf16.gmra.mrb[0].mxu0 %v4416
  %v5173 = vpop.f32.mrb[0].mxu0
  %v5174 = vadd.f32 %v5061, %v5173
  %v5175 = vpop.f32.mrb[0].mxu0
  %v5176 = vpop.f32.mrb[0].mxu0
  %v5177 = vadd.f32 %v5064, %v5176
  %v5178 = vpop.f32.mrb[0].mxu0
  %5179 = vmatprep.mubr.bf16.mxu0 %v4423
  %5180 = vmatmul.mubr.bf16.gmra.mrb[0].mxu0 %v4422
  %v5181 = vpop.f32.mrb[0].mxu0
  %v5182 = vadd.f32 %v5069, %v5181
  %v5183 = vpop.f32.mrb[0].mxu0
  %v5184 = vpop.f32.mrb[0].mxu0
  %v5185 = vadd.f32 %v5072, %v5184
  %v5186 = vpop.f32.mrb[0].mxu0
  %5187 = vmatprep.mubr.bf16.mxu0 %v4429
  %5188 = vmatmul.mubr.bf16.gmra.mrb[0].mxu0 %v4428
  %v5189 = vpop.f32.mrb[0].mxu0
  %v5190 = vadd.f32 %v5077, %v5189
  %v5191 = vpop.f32.mrb[0].mxu0
  %v5192 = vpop.f32.mrb[0].mxu0
  %v5193 = vadd.f32 %v5080, %v5192
  %v5194 = vpop.f32.mrb[0].mxu0
  %5195 = vmatprep.mubr.bf16.mxu0 %v4435
  %5196 = vmatmul.mubr.bf16.gmra.mrb[0].mxu0 %v4434
  %v5197 = vpop.f32.mrb[0].mxu0
  %v5198 = vadd.f32 %v5085, %v5197
  %v5199 = vpop.f32.mrb[0].mxu0
  %v5200 = vpop.f32.mrb[0].mxu0
  %v5201 = vadd.f32 %v5088, %v5200
  %v5202 = vpop.f32.mrb[0].mxu0
  %5203 = vmatprep.mubr.bf16.mxu0 %v4441
  %5204 = vmatmul.mubr.bf16.gmra.mrb[0].mxu0 %v4440
  %v5205 = vpop.f32.mrb[0].mxu0
  %v5206 = vadd.f32 %v5093, %v5205
  %v5207 = vpop.f32.mrb[0].mxu0
  %v5208 = vpop.f32.mrb[0].mxu0
  %v5209 = vadd.f32 %v5096, %v5208
  %v5210 = vpop.f32.mrb[0].mxu0
  %5211 = vmatprep.mubr.bf16.mxu0 %v4447
  %5212 = vmatmul.mubr.bf16.gmra.mrb[0].mxu0 %v4446
  %v5213 = vpop.f32.mrb[0].mxu0
  %v5214 = vadd.f32 %v5101, %v5213
  %v5215 = vpop.f32.mrb[0].mxu0
  %v5216 = vpop.f32.mrb[0].mxu0
  %v5217 = vadd.f32 %v5104, %v5216
  %v5218 = vpop.f32.mrb[0].mxu0
  %5219 = vmatprep.mubr.bf16.mxu0 %v4453
  %5220 = vmatmul.mubr.bf16.gmra.mrb[0].mxu0 %v4452
  %v5221 = vpop.f32.mrb[0].mxu0
  %v5222 = vadd.f32 %v5109, %v5221
  %v5223 = vpop.f32.mrb[0].mxu0
  %v5224 = vpop.f32.mrb[0].mxu0
  %v5225 = vadd.f32 %v5112, %v5224
  %v5226 = vpop.f32.mrb[0].mxu0
  %5227 = vdwg.mxu0
  %v5228 = vadd.f32 %v5150, %v1881
  %v5229 = vadd.f32 %v5153, %v1881
  %v5230 = vadd.f32 %v5158, %v1881
  %v5231 = vadd.f32 %v5161, %v1881
  %v5232 = vadd.f32 %v5166, %v1881
  %v5233 = vadd.f32 %v5169, %v1881
  %v5234 = vadd.f32 %v5174, %v1881
  %v5235 = vadd.f32 %v5177, %v1881
  %v5236 = vadd.f32 %v5182, %v1881
  %v5237 = vadd.f32 %v5185, %v1881
  %v5238 = vadd.f32 %v5190, %v1881
  %v5239 = vadd.f32 %v5193, %v1881
  %v5240 = vadd.f32 %v5198, %v1881
  %v5241 = vadd.f32 %v5201, %v1881
  %v5242 = vadd.f32 %v5206, %v1881
  %v5243 = vadd.f32 %v5209, %v1881
  %v5244 = vadd.f32 %v5214, %v1881
  %v5245 = vadd.f32 %v5217, %v1881
  %v5246 = vadd.f32 %v5222, %v1881
  %v5247 = vadd.f32 %v5225, %v1881
  %v5248 = vmax.f32 %v5228, 0.0
  %v5249 = vmax.f32 %v5229, 0.0
  %v5250 = vmax.f32 %v5230, 0.0
  %v5251 = vmax.f32 %v5231, 0.0
  %v5252 = vmax.f32 %v5232, 0.0
  %v5253 = vmax.f32 %v5233, 0.0
  %v5254 = vmax.f32 %v5234, 0.0
  %v5255 = vmax.f32 %v5235, 0.0
  %v5256 = vmax.f32 %v5236, 0.0
  %v5257 = vmax.f32 %v5237, 0.0
  %v5258 = vmax.f32 %v5238, 0.0
  %v5259 = vmax.f32 %v5239, 0.0
  %v5260 = vmax.f32 %v5240, 0.0
  %v5261 = vmax.f32 %v5241, 0.0
  %v5262 = vmax.f32 %v5242, 0.0
  %v5263 = vmax.f32 %v5243, 0.0
  %v5264 = vmax.f32 %v5244, 0.0
  %v5265 = vmax.f32 %v5245, 0.0
  %v5266 = vmax.f32 %v5246, 0.0
  %v5267 = vmax.f32 %v5247, 0.0
  %v5268 = vpack.c.bf16 %v5249, %v5248
  %v5269 = vpack.c.bf16 %v5251, %v5250
  %v5270 = vpack.c.bf16 %v5253, %v5252
  %v5271 = vpack.c.bf16 %v5255, %v5254
  %v5272 = vpack.c.bf16 %v5257, %v5256
  %v5273 = vpack.c.bf16 %v5259, %v5258
  %v5274 = vpack.c.bf16 %v5261, %v5260
  %v5275 = vpack.c.bf16 %v5263, %v5262
  %v5276 = vpack.c.bf16 %v5265, %v5264
  %v5277 = vpack.c.bf16 %v5267, %v5266
  %s5278 = scalar_lea.vmem %s3, 768
  %v5279 = vld [vmem:[%s5278] sm:$0xff]
  %v5280 = vld [vmem:[%s5278 + $0x8] sm:$0xf]
  %v5281 = vld [vmem:[%s5278 + $0xc] sm:$0xff]
  %v5282 = vld [vmem:[%s5278 + $0x14] sm:$0xf]
  %v5283 = vld [vmem:[%s5278 + $0x18] sm:$0xff]
  %v5284 = vld [vmem:[%s5278 + $0x20] sm:$0xf]
  %v5285 = vld [vmem:[%s5278 + $0x24] sm:$0xff]
  %v5286 = vld [vmem:[%s5278 + $0x2c] sm:$0xf]
  %v5287 = vld [vmem:[%s5278 + $0x30] sm:$0xff]
  %v5288 = vld [vmem:[%s5278 + $0x38] sm:$0xf]
  %v5289 = vld [vmem:[%s5278 + $0x3c] sm:$0xff]
  %v5290 = vld [vmem:[%s5278 + $0x44] sm:$0xf]
  %v5291 = vld [vmem:[%s5278 + $0x48] sm:$0xff]
  %v5292 = vld [vmem:[%s5278 + $0x50] sm:$0xf]
  %v5293 = vld [vmem:[%s5278 + $0x54] sm:$0xff]
  %v5294 = vld [vmem:[%s5278 + $0x5c] sm:$0xf]
  %v5295 = vld [vmem:[%s5278 + $0x60] sm:$0xff]
  %v5296 = vld [vmem:[%s5278 + $0x68] sm:$0xf]
  %v5297 = vld [vmem:[%s5278 + $0x6c] sm:$0xff]
  %v5298 = vld [vmem:[%s5278 + $0x74] sm:$0xf]
  %v5299 = vld [vmem:[%s5278 + $0x78] sm:$0xff]
  %v5300 = vld [vmem:[%s5278 + $0x80] sm:$0xf]
  %v5301 = vld [vmem:[%s5278 + $0x84] sm:$0xff]
  %v5302 = vld [vmem:[%s5278 + $0x8c] sm:$0xf]
  %v5303 = vld [vmem:[%s5278 + $0x90] sm:$0xff]
  %v5304 = vld [vmem:[%s5278 + $0x98] sm:$0xf]
  %v5305 = vld [vmem:[%s5278 + $0x9c] sm:$0xff]
  %v5306 = vld [vmem:[%s5278 + $0xa4] sm:$0xf]
  %v5307 = vld [vmem:[%s5278 + $0xa8] sm:$0xff]
  %v5308 = vld [vmem:[%s5278 + $0xb0] sm:$0xf]
  %v5309 = vld [vmem:[%s5278 + $0xb4] sm:$0xff]
  %v5310 = vld [vmem:[%s5278 + $0xbc] sm:$0xf]
  %v5311 = vld [vmem:[%s5278 + $0xc0] sm:$0xff]
  %v5312 = vld [vmem:[%s5278 + $0xc8] sm:$0xf]
  %v5313 = vld [vmem:[%s5278 + $0xcc] sm:$0xff]
  %v5314 = vld [vmem:[%s5278 + $0xd4] sm:$0xf]
  %v5315 = vld [vmem:[%s5278 + $0xd8] sm:$0xff]
  %v5316 = vld [vmem:[%s5278 + $0xe0] sm:$0xf]
  %v5317 = vld [vmem:[%s5278 + $0xe4] sm:$0xff]
  %v5318 = vld [vmem:[%s5278 + $0xec] sm:$0xf]
  %v5319 = vld [vmem:[%s5278 + $0xf0] sm:$0xff]
  %v5320 = vld [vmem:[%s5278 + $0xf8] sm:$0xf]
  %v5321 = vld [vmem:[%s5278 + $0xfc] sm:$0xff]
  %v5322 = vld [vmem:[%s5278 + $0x104] sm:$0xf]
  %v5323 = vld [vmem:[%s5278 + $0x108] sm:$0xff]
  %v5324 = vld [vmem:[%s5278 + $0x110] sm:$0xf]
  %v5325 = vld [vmem:[%s5278 + $0x114] sm:$0xff]
  %v5326 = vld [vmem:[%s5278 + $0x11c] sm:$0xf]
  %v5327 = vld [vmem:[%s5278 + $0x120] sm:$0xff]
  %v5328 = vld [vmem:[%s5278 + $0x128] sm:$0xf]
  %v5329 = vld [vmem:[%s5278 + $0x12c] sm:$0xff]
  %v5330 = vld [vmem:[%s5278 + $0x134] sm:$0xf]
  %v5331 = vld [vmem:[%s5278 + $0x138] sm:$0xff]
  %v5332 = vld [vmem:[%s5278 + $0x140] sm:$0xf]
  %v5333 = vld [vmem:[%s5278 + $0x144] sm:$0xff]
  %v5334 = vld [vmem:[%s5278 + $0x14c] sm:$0xf]
  %v5335 = vld [vmem:[%s5278 + $0x150] sm:$0xff]
  %v5336 = vld [vmem:[%s5278 + $0x158] sm:$0xf]
  %v5337 = vld [vmem:[%s5278 + $0x15c] sm:$0xff]
  %v5338 = vld [vmem:[%s5278 + $0x164] sm:$0xf]
  %v5339 = vld [vmem:[%s5278 + $0x168] sm:$0xff]
  %v5340 = vld [vmem:[%s5278 + $0x170] sm:$0xf]
  %v5341 = vld [vmem:[%s5278 + $0x174] sm:$0xff]
  %v5342 = vld [vmem:[%s5278 + $0x17c] sm:$0xf]
  %v5407 = vunpack.c.l.b16 %v5279
  %v5408 = vunpack.c.h.b16 %v5279
  %v5409 = vunpack.c.l.b16 %v5280
  %v5410 = vunpack.c.l.b16 %v5281
  %v5411 = vunpack.c.h.b16 %v5281
  %v5412 = vunpack.c.l.b16 %v5282
  %v5413 = vunpack.c.l.b16 %v5283
  %v5414 = vunpack.c.h.b16 %v5283
  %v5415 = vunpack.c.l.b16 %v5284
  %v5416 = vunpack.c.l.b16 %v5285
  %v5417 = vunpack.c.h.b16 %v5285
  %v5418 = vunpack.c.l.b16 %v5286
  %v5419 = vunpack.c.l.b16 %v5287
  %v5420 = vunpack.c.h.b16 %v5287
  %v5421 = vunpack.c.l.b16 %v5288
  %v5422 = vunpack.c.l.b16 %v5289
  %v5423 = vunpack.c.h.b16 %v5289
  %v5424 = vunpack.c.l.b16 %v5290
  %v5425 = vunpack.c.l.b16 %v5291
  %v5426 = vunpack.c.h.b16 %v5291
  %v5427 = vunpack.c.l.b16 %v5292
  %v5428 = vunpack.c.l.b16 %v5293
  %v5429 = vunpack.c.h.b16 %v5293
  %v5430 = vunpack.c.l.b16 %v5294
  %v5431 = vunpack.c.l.b16 %v5295
  %v5432 = vunpack.c.h.b16 %v5295
  %v5433 = vunpack.c.l.b16 %v5296
  %v5434 = vunpack.c.l.b16 %v5297
  %v5435 = vunpack.c.h.b16 %v5297
  %v5436 = vunpack.c.l.b16 %v5298
  %v5437 = vunpack.c.l.b16 %v5299
  %v5438 = vunpack.c.h.b16 %v5299
  %v5439 = vunpack.c.l.b16 %v5300
  %v5440 = vunpack.c.l.b16 %v5301
  %v5441 = vunpack.c.h.b16 %v5301
  %v5442 = vunpack.c.l.b16 %v5302
  %v5443 = vunpack.c.l.b16 %v5303
  %v5444 = vunpack.c.h.b16 %v5303
  %v5445 = vunpack.c.l.b16 %v5304
  %v5446 = vunpack.c.l.b16 %v5305
  %v5447 = vunpack.c.h.b16 %v5305
  %v5448 = vunpack.c.l.b16 %v5306
  %v5449 = vunpack.c.l.b16 %v5307
  %v5450 = vunpack.c.h.b16 %v5307
  %v5451 = vunpack.c.l.b16 %v5308
  %v5452 = vunpack.c.l.b16 %v5309
  %v5453 = vunpack.c.h.b16 %v5309
  %v5454 = vunpack.c.l.b16 %v5310
  %v5455 = vunpack.c.l.b16 %v5311
  %v5456 = vunpack.c.h.b16 %v5311
  %v5457 = vunpack.c.l.b16 %v5312
  %v5458 = vunpack.c.l.b16 %v5313
  %v5459 = vunpack.c.h.b16 %v5313
  %v5460 = vunpack.c.l.b16 %v5314
  %v5461 = vunpack.c.l.b16 %v5315
  %v5462 = vunpack.c.h.b16 %v5315
  %v5463 = vunpack.c.l.b16 %v5316
  %v5464 = vunpack.c.l.b16 %v5317
  %v5465 = vunpack.c.h.b16 %v5317
  %v5466 = vunpack.c.l.b16 %v5318
  %v5467 = vunpack.c.l.b16 %v5319
  %v5468 = vunpack.c.h.b16 %v5319
  %v5469 = vunpack.c.l.b16 %v5320
  %v5470 = vunpack.c.l.b16 %v5321
  %v5471 = vunpack.c.h.b16 %v5321
  %v5472 = vunpack.c.l.b16 %v5322
  %v5473 = vunpack.c.l.b16 %v5323
  %v5474 = vunpack.c.h.b16 %v5323
  %v5475 = vunpack.c.l.b16 %v5324
  %v5476 = vunpack.c.l.b16 %v5325
  %v5477 = vunpack.c.h.b16 %v5325
  %v5478 = vunpack.c.l.b16 %v5326
  %v5479 = vunpack.c.l.b16 %v5327
  %v5480 = vunpack.c.h.b16 %v5327
  %v5481 = vunpack.c.l.b16 %v5328
  %v5482 = vunpack.c.l.b16 %v5329
  %v5483 = vunpack.c.h.b16 %v5329
  %v5484 = vunpack.c.l.b16 %v5330
  %v5485 = vunpack.c.l.b16 %v5331
  %v5486 = vunpack.c.h.b16 %v5331
  %v5487 = vunpack.c.l.b16 %v5332
  %v5488 = vunpack.c.l.b16 %v5333
  %v5489 = vunpack.c.h.b16 %v5333
  %v5490 = vunpack.c.l.b16 %v5334
  %v5491 = vunpack.c.l.b16 %v5335
  %v5492 = vunpack.c.h.b16 %v5335
  %v5493 = vunpack.c.l.b16 %v5336
  %v5494 = vunpack.c.l.b16 %v5337
  %v5495 = vunpack.c.h.b16 %v5337
  %v5496 = vunpack.c.l.b16 %v5338
  %v5497 = vunpack.c.l.b16 %v5339
  %v5498 = vunpack.c.h.b16 %v5339
  %v5499 = vunpack.c.l.b16 %v5340
  %v5500 = vunpack.c.l.b16 %v5341
  %v5501 = vunpack.c.h.b16 %v5341
  %v5502 = vunpack.c.l.b16 %v5342
  %v5503 = vpack.c.b16 %v5410, %v5407
  %v5504 = vpack.c.b16 %v5411, %v5408
  %v5505 = vpack.c.b16 %v5412, %v5409
  %v5506 = vpack.c.b16 %v5416, %v5413
  %v5507 = vpack.c.b16 %v5417, %v5414
  %v5508 = vpack.c.b16 %v5418, %v5415
  %v5509 = vpack.c.b16 %v5422, %v5419
  %v5510 = vpack.c.b16 %v5423, %v5420
  %v5511 = vpack.c.b16 %v5424, %v5421
  %v5512 = vpack.c.b16 %v5428, %v5425
  %v5513 = vpack.c.b16 %v5429, %v5426
  %v5514 = vpack.c.b16 %v5430, %v5427
  %v5515 = vpack.c.b16 %v5434, %v5431
  %v5516 = vpack.c.b16 %v5435, %v5432
  %v5517 = vpack.c.b16 %v5436, %v5433
  %v5518 = vpack.c.b16 %v5440, %v5437
  %v5519 = vpack.c.b16 %v5441, %v5438
  %v5520 = vpack.c.b16 %v5442, %v5439
  %v5521 = vpack.c.b16 %v5446, %v5443
  %v5522 = vpack.c.b16 %v5447, %v5444
  %v5523 = vpack.c.b16 %v5448, %v5445
  %v5524 = vpack.c.b16 %v5452, %v5449
  %v5525 = vpack.c.b16 %v5453, %v5450
  %v5526 = vpack.c.b16 %v5454, %v5451
  %v5527 = vpack.c.b16 %v5458, %v5455
  %v5528 = vpack.c.b16 %v5459, %v5456
  %v5529 = vpack.c.b16 %v5460, %v5457
  %v5530 = vpack.c.b16 %v5464, %v5461
  %v5531 = vpack.c.b16 %v5465, %v5462
  %v5532 = vpack.c.b16 %v5466, %v5463
  %v5533 = vpack.c.b16 %v5470, %v5467
  %v5534 = vpack.c.b16 %v5471, %v5468
  %v5535 = vpack.c.b16 %v5472, %v5469
  %v5536 = vpack.c.b16 %v5476, %v5473
  %v5537 = vpack.c.b16 %v5477, %v5474
  %v5538 = vpack.c.b16 %v5478, %v5475
  %v5539 = vpack.c.b16 %v5482, %v5479
  %v5540 = vpack.c.b16 %v5483, %v5480
  %v5541 = vpack.c.b16 %v5484, %v5481
  %v5542 = vpack.c.b16 %v5488, %v5485
  %v5543 = vpack.c.b16 %v5489, %v5486
  %v5544 = vpack.c.b16 %v5490, %v5487
  %v5545 = vpack.c.b16 %v5494, %v5491
  %v5546 = vpack.c.b16 %v5495, %v5492
  %v5547 = vpack.c.b16 %v5496, %v5493
  %v5548 = vpack.c.b16 %v5500, %v5497
  %v5549 = vpack.c.b16 %v5501, %v5498
  %v5550 = vpack.c.b16 %v5502, %v5499
  %5599 = vmatprep.subr.bf16.mxu0 %v5504
  %5600 = vmatpush1.bf16.msra.mxu0 %v5503
  %5601 = vmatprep.subr.bf16.mxu0 %v5507
  %5602 = vmatpush1.bf16.msra.mxu0 %v5506
  %5603 = vmatprep.subr.bf16.mxu0 %v5510
  %5604 = vmatpush1.bf16.msra.mxu0 %v5509
  %5605 = vmatprep.subr.bf16.mxu0 %v5513
  %5606 = vmatpush1.bf16.msra.mxu0 %v5512
  %5607 = vmatprep.subr.bf16.mxu0 %v5516
  %5608 = vmatpush1.bf16.msra.mxu0 %v5515
  %5609 = vmatprep.subr.bf16.mxu0 %v5519
  %5610 = vmatpush1.bf16.msra.mxu0 %v5518
  %5611 = vmatprep.subr.bf16.mxu0 %v5522
  %5612 = vmatpush1.bf16.msra.mxu0 %v5521
  %5613 = vmatprep.subr.bf16.mxu0 %v5525
  %5614 = vmatpush1.bf16.msra.mxu0 %v5524
  %5615 = vmatprep.subr.bf16.mxu0 %v5528
  %5616 = vmatpush1.bf16.msra.mxu0 %v5527
  %5617 = vmatprep.subr.bf16.mxu0 %v5531
  %5618 = vmatpush1.bf16.msra.mxu0 %v5530
  %5619 = vmatprep.subr.bf16.mxu0 %v5534
  %5620 = vmatpush1.bf16.msra.mxu0 %v5533
  %5621 = vmatprep.subr.bf16.mxu0 %v5537
  %5622 = vmatpush1.bf16.msra.mxu0 %v5536
  %5623 = vmatprep.subr.bf16.mxu0 %v5540
  %5624 = vmatpush1.bf16.msra.mxu0 %v5539
  %5625 = vmatprep.subr.bf16.mxu0 %v5543
  %5626 = vmatpush1.bf16.msra.mxu0 %v5542
  %5627 = vmatprep.subr.bf16.mxu0 %v5546
  %5628 = vmatpush1.bf16.msra.mxu0 %v5545
  %5629 = vmatprep.subr.bf16.mxu0 %v5549
  %5630 = vmatpush1.bf16.msra.mxu0 %v5548
  %5631 = vmatprep.mubr.bf16.mxu0 %v5269
  %5632 = vmatmul.mubr.bf16.gmra.mrb[0].mxu0 %v5268
  %v5633 = vpop.f32.mrb[0].mxu0
  %v5634 = vadd.f32 0.0, %v5633
  %v5635 = vpop.f32.mrb[0].mxu0
  %v5636 = vadd.f32 0.0, %v5635
  %v5637 = vpop.f32.mrb[0].mxu0
  %v5638 = vadd.f32 0.0, %v5637
  %v5639 = vpop.f32.mrb[0].mxu0
  %v5640 = vadd.f32 0.0, %v5639
  %5641 = vmatprep.mubr.bf16.mxu0 %v5270
  %5642 = vmatmul.mubr.bf16.gmra.mrb[0].mxu0 %v5269
  %v5643 = vpop.f32.mrb[0].mxu0
  %v5644 = vadd.f32 0.0, %v5643
  %v5645 = vpop.f32.mrb[0].mxu0
  %v5646 = vadd.f32 0.0, %v5645
  %v5647 = vpop.f32.mrb[0].mxu0
  %v5648 = vadd.f32 0.0, %v5647
  %v5649 = vpop.f32.mrb[0].mxu0
  %v5650 = vadd.f32 0.0, %v5649
  %5651 = vmatprep.mubr.bf16.mxu0 %v5271
  %5652 = vmatmul.mubr.bf16.gmra.mrb[0].mxu0 %v5270
  %v5653 = vpop.f32.mrb[0].mxu0
  %v5654 = vadd.f32 0.0, %v5653
  %v5655 = vpop.f32.mrb[0].mxu0
  %v5656 = vadd.f32 0.0, %v5655
  %v5657 = vpop.f32.mrb[0].mxu0
  %v5658 = vadd.f32 0.0, %v5657
  %v5659 = vpop.f32.mrb[0].mxu0
  %v5660 = vadd.f32 0.0, %v5659
  %5661 = vmatprep.mubr.bf16.mxu0 %v5272
  %5662 = vmatmul.mubr.bf16.gmra.mrb[0].mxu0 %v5271
  %v5663 = vpop.f32.mrb[0].mxu0
  %v5664 = vadd.f32 0.0, %v5663
  %v5665 = vpop.f32.mrb[0].mxu0
  %v5666 = vadd.f32 0.0, %v5665
  %v5667 = vpop.f32.mrb[0].mxu0
  %v5668 = vadd.f32 0.0, %v5667
  %v5669 = vpop.f32.mrb[0].mxu0
  %v5670 = vadd.f32 0.0, %v5669
  %5671 = vmatprep.mubr.bf16.mxu0 %v5273
  %5672 = vmatmul.mubr.bf16.gmra.mrb[0].mxu0 %v5272
  %v5673 = vpop.f32.mrb[0].mxu0
  %v5674 = vadd.f32 0.0, %v5673
  %v5675 = vpop.f32.mrb[0].mxu0
  %v5676 = vadd.f32 0.0, %v5675
  %v5677 = vpop.f32.mrb[0].mxu0
  %v5678 = vadd.f32 0.0, %v5677
  %v5679 = vpop.f32.mrb[0].mxu0
  %v5680 = vadd.f32 0.0, %v5679
  %5681 = vmatprep.mubr.bf16.mxu0 %v5274
  %5682 = vmatmul.mubr.bf16.gmra.mrb[0].mxu0 %v5273
  %v5683 = vpop.f32.mrb[0].mxu0
  %v5684 = vadd.f32 0.0, %v5683
  %v5685 = vpop.f32.mrb[0].mxu0
  %v5686 = vadd.f32 0.0, %v5685
  %v5687 = vpop.f32.mrb[0].mxu0
  %v5688 = vadd.f32 0.0, %v5687
  %v5689 = vpop.f32.mrb[0].mxu0
  %v5690 = vadd.f32 0.0, %v5689
  %5691 = vmatprep.mubr.bf16.mxu0 %v5275
  %5692 = vmatmul.mubr.bf16.gmra.mrb[0].mxu0 %v5274
  %v5693 = vpop.f32.mrb[0].mxu0
  %v5694 = vadd.f32 0.0, %v5693
  %v5695 = vpop.f32.mrb[0].mxu0
  %v5696 = vadd.f32 0.0, %v5695
  %v5697 = vpop.f32.mrb[0].mxu0
  %v5698 = vadd.f32 0.0, %v5697
  %v5699 = vpop.f32.mrb[0].mxu0
  %v5700 = vadd.f32 0.0, %v5699
  %5701 = vmatprep.mubr.bf16.mxu0 %v5276
  %5702 = vmatmul.mubr.bf16.gmra.mrb[0].mxu0 %v5275
  %v5703 = vpop.f32.mrb[0].mxu0
  %v5704 = vadd.f32 0.0, %v5703
  %v5705 = vpop.f32.mrb[0].mxu0
  %v5706 = vadd.f32 0.0, %v5705
  %v5707 = vpop.f32.mrb[0].mxu0
  %v5708 = vadd.f32 0.0, %v5707
  %v5709 = vpop.f32.mrb[0].mxu0
  %v5710 = vadd.f32 0.0, %v5709
  %5711 = vmatprep.mubr.bf16.mxu0 %v5277
  %5712 = vmatmul.mubr.bf16.gmra.mrb[0].mxu0 %v5276
  %v5713 = vpop.f32.mrb[0].mxu0
  %v5714 = vadd.f32 0.0, %v5713
  %v5715 = vpop.f32.mrb[0].mxu0
  %v5716 = vadd.f32 0.0, %v5715
  %v5717 = vpop.f32.mrb[0].mxu0
  %v5718 = vadd.f32 0.0, %v5717
  %v5719 = vpop.f32.mrb[0].mxu0
  %v5720 = vadd.f32 0.0, %v5719
  %5721 = vdwg.mxu0
  %5722 = vmatprep.subr.bf16.mxu0 0
  %5723 = vmatpush1.bf16.msra.mxu0 %v5505
  %5724 = vmatprep.subr.bf16.mxu0 0
  %5725 = vmatpush1.bf16.msra.mxu0 %v5508
  %5726 = vmatprep.subr.bf16.mxu0 0
  %5727 = vmatpush1.bf16.msra.mxu0 %v5511
  %5728 = vmatprep.subr.bf16.mxu0 0
  %5729 = vmatpush1.bf16.msra.mxu0 %v5514
  %5730 = vmatprep.subr.bf16.mxu0 0
  %5731 = vmatpush1.bf16.msra.mxu0 %v5517
  %5732 = vmatprep.subr.bf16.mxu0 0
  %5733 = vmatpush1.bf16.msra.mxu0 %v5520
  %5734 = vmatprep.subr.bf16.mxu0 0
  %5735 = vmatpush1.bf16.msra.mxu0 %v5523
  %5736 = vmatprep.subr.bf16.mxu0 0
  %5737 = vmatpush1.bf16.msra.mxu0 %v5526
  %5738 = vmatprep.subr.bf16.mxu0 0
  %5739 = vmatpush1.bf16.msra.mxu0 %v5529
  %5740 = vmatprep.subr.bf16.mxu0 0
  %5741 = vmatpush1.bf16.msra.mxu0 %v5532
  %5742 = vmatprep.subr.bf16.mxu0 0
  %5743 = vmatpush1.bf16.msra.mxu0 %v5535
  %5744 = vmatprep.subr.bf16.mxu0 0
  %5745 = vmatpush1.bf16.msra.mxu0 %v5538
  %5746 = vmatprep.subr.bf16.mxu0 0
  %5747 = vmatpush1.bf16.msra.mxu0 %v5541
  %5748 = vmatprep.subr.bf16.mxu0 0
  %5749 = vmatpush1.bf16.msra.mxu0 %v5544
  %5750 = vmatprep.subr.bf16.mxu0 0
  %5751 = vmatpush1.bf16.msra.mxu0 %v5547
  %5752 = vmatprep.subr.bf16.mxu0 0
  %5753 = vmatpush1.bf16.msra.mxu0 %v5550
  %5754 = vmatprep.mubr.bf16.mxu0 %v5269
  %5755 = vmatmul.mubr.bf16.gmra.mrb[0].mxu0 %v5268
  %v5756 = vpop.f32.mrb[0].mxu0
  %v5757 = vadd.f32 0.0, %v5756
  %v5758 = vpop.f32.mrb[0].mxu0
  %v5759 = vpop.f32.mrb[0].mxu0
  %v5760 = vadd.f32 0.0, %v5759
  %v5761 = vpop.f32.mrb[0].mxu0
  %5762 = vmatprep.mubr.bf16.mxu0 %v5270
  %5763 = vmatmul.mubr.bf16.gmra.mrb[0].mxu0 %v5269
  %v5764 = vpop.f32.mrb[0].mxu0
  %v5765 = vadd.f32 0.0, %v5764
  %v5766 = vpop.f32.mrb[0].mxu0
  %v5767 = vpop.f32.mrb[0].mxu0
  %v5768 = vadd.f32 0.0, %v5767
  %v5769 = vpop.f32.mrb[0].mxu0
  %5770 = vmatprep.mubr.bf16.mxu0 %v5271
  %5771 = vmatmul.mubr.bf16.gmra.mrb[0].mxu0 %v5270
  %v5772 = vpop.f32.mrb[0].mxu0
  %v5773 = vadd.f32 0.0, %v5772
  %v5774 = vpop.f32.mrb[0].mxu0
  %v5775 = vpop.f32.mrb[0].mxu0
  %v5776 = vadd.f32 0.0, %v5775
  %v5777 = vpop.f32.mrb[0].mxu0
  %5778 = vmatprep.mubr.bf16.mxu0 %v5272
  %5779 = vmatmul.mubr.bf16.gmra.mrb[0].mxu0 %v5271
  %v5780 = vpop.f32.mrb[0].mxu0
  %v5781 = vadd.f32 0.0, %v5780
  %v5782 = vpop.f32.mrb[0].mxu0
  %v5783 = vpop.f32.mrb[0].mxu0
  %v5784 = vadd.f32 0.0, %v5783
  %v5785 = vpop.f32.mrb[0].mxu0
  %5786 = vmatprep.mubr.bf16.mxu0 %v5273
  %5787 = vmatmul.mubr.bf16.gmra.mrb[0].mxu0 %v5272
  %v5788 = vpop.f32.mrb[0].mxu0
  %v5789 = vadd.f32 0.0, %v5788
  %v5790 = vpop.f32.mrb[0].mxu0
  %v5791 = vpop.f32.mrb[0].mxu0
  %v5792 = vadd.f32 0.0, %v5791
  %v5793 = vpop.f32.mrb[0].mxu0
  %5794 = vmatprep.mubr.bf16.mxu0 %v5274
  %5795 = vmatmul.mubr.bf16.gmra.mrb[0].mxu0 %v5273
  %v5796 = vpop.f32.mrb[0].mxu0
  %v5797 = vadd.f32 0.0, %v5796
  %v5798 = vpop.f32.mrb[0].mxu0
  %v5799 = vpop.f32.mrb[0].mxu0
  %v5800 = vadd.f32 0.0, %v5799
  %v5801 = vpop.f32.mrb[0].mxu0
  %5802 = vmatprep.mubr.bf16.mxu0 %v5275
  %5803 = vmatmul.mubr.bf16.gmra.mrb[0].mxu0 %v5274
  %v5804 = vpop.f32.mrb[0].mxu0
  %v5805 = vadd.f32 0.0, %v5804
  %v5806 = vpop.f32.mrb[0].mxu0
  %v5807 = vpop.f32.mrb[0].mxu0
  %v5808 = vadd.f32 0.0, %v5807
  %v5809 = vpop.f32.mrb[0].mxu0
  %5810 = vmatprep.mubr.bf16.mxu0 %v5276
  %5811 = vmatmul.mubr.bf16.gmra.mrb[0].mxu0 %v5275
  %v5812 = vpop.f32.mrb[0].mxu0
  %v5813 = vadd.f32 0.0, %v5812
  %v5814 = vpop.f32.mrb[0].mxu0
  %v5815 = vpop.f32.mrb[0].mxu0
  %v5816 = vadd.f32 0.0, %v5815
  %v5817 = vpop.f32.mrb[0].mxu0
  %5818 = vmatprep.mubr.bf16.mxu0 %v5277
  %5819 = vmatmul.mubr.bf16.gmra.mrb[0].mxu0 %v5276
  %v5820 = vpop.f32.mrb[0].mxu0
  %v5821 = vadd.f32 0.0, %v5820
  %v5822 = vpop.f32.mrb[0].mxu0
  %v5823 = vpop.f32.mrb[0].mxu0
  %v5824 = vadd.f32 0.0, %v5823
  %v5825 = vpop.f32.mrb[0].mxu0
  %5826 = vdwg.mxu0
  %v5827 = vadd.f32 %v3961, %v5634
  %v5828 = vadd.f32 %v3963, %v5636
  %v5829 = vadd.f32 %v4084, %v5757
  %v5830 = vadd.f32 %v3965, %v5638
  %v5831 = vadd.f32 %v3967, %v5640
  %v5832 = vadd.f32 %v4087, %v5760
  %v5833 = vadd.f32 %v3971, %v5644
  %v5834 = vadd.f32 %v3973, %v5646
  %v5835 = vadd.f32 %v4092, %v5765
  %v5836 = vadd.f32 %v3975, %v5648
  %v5837 = vadd.f32 %v3977, %v5650
  %v5838 = vadd.f32 %v4095, %v5768
  %v5839 = vadd.f32 %v3981, %v5654
  %v5840 = vadd.f32 %v3983, %v5656
  %v5841 = vadd.f32 %v4100, %v5773
  %v5842 = vadd.f32 %v3985, %v5658
  %v5843 = vadd.f32 %v3987, %v5660
  %v5844 = vadd.f32 %v4103, %v5776
  %v5845 = vadd.f32 %v3991, %v5664
  %v5846 = vadd.f32 %v3993, %v5666
  %v5847 = vadd.f32 %v4108, %v5781
  %v5848 = vadd.f32 %v3995, %v5668
  %v5849 = vadd.f32 %v3997, %v5670
  %v5850 = vadd.f32 %v4111, %v5784
  %v5851 = vadd.f32 %v4001, %v5674
  %v5852 = vadd.f32 %v4003, %v5676
  %v5853 = vadd.f32 %v4116, %v5789
  %v5854 = vadd.f32 %v4005, %v5678
  %v5855 = vadd.f32 %v4007, %v5680
  %v5856 = vadd.f32 %v4119, %v5792
  %v5857 = vadd.f32 %v4011, %v5684
  %v5858 = vadd.f32 %v4013, %v5686
  %v5859 = vadd.f32 %v4124, %v5797
  %v5860 = vadd.f32 %v4015, %v5688
  %v5861 = vadd.f32 %v4017, %v5690
  %v5862 = vadd.f32 %v4127, %v5800
  %v5863 = vadd.f32 %v4021, %v5694
  %v5864 = vadd.f32 %v4023, %v5696
  %v5865 = vadd.f32 %v4132, %v5805
  %v5866 = vadd.f32 %v4025, %v5698
  %v5867 = vadd.f32 %v4027, %v5700
  %v5868 = vadd.f32 %v4135, %v5808
  %v5869 = vadd.f32 %v4031, %v5704
  %v5870 = vadd.f32 %v4033, %v5706
  %v5871 = vadd.f32 %v4140, %v5813
  %v5872 = vadd.f32 %v4035, %v5708
  %v5873 = vadd.f32 %v4037, %v5710
  %v5874 = vadd.f32 %v4143, %v5816
  %v5875 = vadd.f32 %v4041, %v5714
  %v5876 = vadd.f32 %v4043, %v5716
  %v5877 = vadd.f32 %v4148, %v5821
  %v5878 = vadd.f32 %v4045, %v5718
  %v5879 = vadd.f32 %v4047, %v5720
  %v5880 = vadd.f32 %v4151, %v5824
  %v5881 = vld [vmem:[%s0 + $0x30] sm:$0xff]
  %v5882 = vld [vmem:[%s0 + $0x38] sm:$0xff]
  %v5883 = vld [vmem:[%s0 + $0x40] sm:$0xff]
  %v5884 = vld [vmem:[%s0 + $0x88] sm:$0xff]
  %v5885 = vld [vmem:[%s0 + $0x90] sm:$0xff]
  %v5886 = vld [vmem:[%s0 + $0x98] sm:$0xff]
  %v5887 = vld [vmem:[%s0 + $0xe0] sm:$0xff]
  %v5888 = vld [vmem:[%s0 + $0xe8] sm:$0xff]
  %v5889 = vld [vmem:[%s0 + $0xf0] sm:$0xff]
  %v5890 = vld [vmem:[%s0 + $0x138] sm:$0xff]
  %v5891 = vld [vmem:[%s0 + $0x140] sm:$0xff]
  %v5892 = vld [vmem:[%s0 + $0x148] sm:$0xff]
  %v5893 = vld [vmem:[%s0 + $0x190] sm:$0xff]
  %v5894 = vld [vmem:[%s0 + $0x198] sm:$0xff]
  %v5895 = vld [vmem:[%s0 + $0x1a0] sm:$0xff]
  %v5896 = vld [vmem:[%s0 + $0x1e8] sm:$0xff]
  %v5897 = vld [vmem:[%s0 + $0x1f0] sm:$0xff]
  %v5898 = vld [vmem:[%s0 + $0x1f8] sm:$0xff]
  %v5899 = vld [vmem:[%s0 + $0x240] sm:$0xff]
  %v5900 = vld [vmem:[%s0 + $0x248] sm:$0xff]
  %v5901 = vld [vmem:[%s0 + $0x250] sm:$0xff]
  %v5902 = vld [vmem:[%s0 + $0x298] sm:$0xff]
  %v5903 = vld [vmem:[%s0 + $0x2a0] sm:$0xff]
  %v5904 = vld [vmem:[%s0 + $0x2a8] sm:$0xff]
  %v5905 = vld [vmem:[%s0 + $0x2f0] sm:$0xff]
  %v5906 = vld [vmem:[%s0 + $0x2f8] sm:$0xff]
  %v5907 = vld [vmem:[%s0 + $0x300] sm:$0xff]
  %v5908 = vld [vmem:[%s0 + $0x348] sm:$0xff]
  %v5909 = vld [vmem:[%s0 + $0x350] sm:$0xff]
  %v5910 = vld [vmem:[%s0 + $0x358] sm:$0xff]
  %v5911 = vld [vmem:[%s0 + $0x3a0] sm:$0xff]
  %v5912 = vld [vmem:[%s0 + $0x3a8] sm:$0xff]
  %v5913 = vld [vmem:[%s0 + $0x3b0] sm:$0xff]
  %v5914 = vld [vmem:[%s0 + $0x3f8] sm:$0xff]
  %v5915 = vld [vmem:[%s0 + $0x400] sm:$0xff]
  %v5916 = vld [vmem:[%s0 + $0x408] sm:$0xff]
  %v5917 = vld [vmem:[%s0 + $0x450] sm:$0xff]
  %v5918 = vld [vmem:[%s0 + $0x458] sm:$0xff]
  %v5919 = vld [vmem:[%s0 + $0x460] sm:$0xff]
  %v5920 = vld [vmem:[%s0 + $0x4a8] sm:$0xff]
  %v5921 = vld [vmem:[%s0 + $0x4b0] sm:$0xff]
  %v5922 = vld [vmem:[%s0 + $0x4b8] sm:$0xff]
  %v5923 = vld [vmem:[%s0 + $0x500] sm:$0xff]
  %v5924 = vld [vmem:[%s0 + $0x508] sm:$0xff]
  %v5925 = vld [vmem:[%s0 + $0x510] sm:$0xff]
  %v5926 = vld [vmem:[%s0 + $0x558] sm:$0xff]
  %v5927 = vld [vmem:[%s0 + $0x560] sm:$0xff]
  %v5928 = vld [vmem:[%s0 + $0x568] sm:$0xff]
  %v5929 = vld [vmem:[%s0 + $0x5b0] sm:$0xff]
  %v5930 = vld [vmem:[%s0 + $0x5b8] sm:$0xff]
  %v5931 = vld [vmem:[%s0 + $0x5c0] sm:$0xff]
  %v5932 = vld [vmem:[%s0 + $0x608] sm:$0xff]
  %v5933 = vld [vmem:[%s0 + $0x610] sm:$0xff]
  %v5934 = vld [vmem:[%s0 + $0x618] sm:$0xff]
  %v5935 = vld [vmem:[%s0 + $0x660] sm:$0xff]
  %v5936 = vld [vmem:[%s0 + $0x668] sm:$0xff]
  %v5937 = vld [vmem:[%s0 + $0x670] sm:$0xff]
  %v5938 = vld [vmem:[%s0 + $0x6b8] sm:$0xff]
  %v5939 = vld [vmem:[%s0 + $0x6c0] sm:$0xff]
  %v5940 = vld [vmem:[%s0 + $0x6c8] sm:$0xff]
  %v5941 = vld [vmem:[%s0 + $0x710] sm:$0xff]
  %v5942 = vld [vmem:[%s0 + $0x718] sm:$0xff]
  %v5943 = vld [vmem:[%s0 + $0x720] sm:$0xff]
  %v5944 = vld [vmem:[%s0 + $0x768] sm:$0xff]
  %v5945 = vld [vmem:[%s0 + $0x770] sm:$0xff]
  %v5946 = vld [vmem:[%s0 + $0x778] sm:$0xff]
  %v6007 = vunpack.c.l.b16 %v5887
  %v6008 = vunpack.c.h.b16 %v5887
  %v6009 = vunpack.c.l.b16 %v5888
  %v6010 = vunpack.c.h.b16 %v5888
  %v6011 = vunpack.c.l.b16 %v5889
  %v6012 = vunpack.c.h.b16 %v5889
  %v6013 = vunpack.c.l.b16 %v5890
  %v6014 = vunpack.c.h.b16 %v5890
  %v6015 = vunpack.c.l.b16 %v5891
  %v6016 = vunpack.c.h.b16 %v5891
  %v6017 = vunpack.c.l.b16 %v5892
  %v6018 = vunpack.c.h.b16 %v5892
  %v6019 = vunpack.c.l.b16 %v5893
  %v6020 = vunpack.c.h.b16 %v5893
  %v6021 = vunpack.c.l.b16 %v5894
  %v6022 = vunpack.c.h.b16 %v5894
  %v6023 = vunpack.c.l.b16 %v5895
  %v6024 = vunpack.c.h.b16 %v5895
  %v6025 = vunpack.c.l.b16 %v5896
  %v6026 = vunpack.c.h.b16 %v5896
  %v6027 = vunpack.c.l.b16 %v5897
  %v6028 = vunpack.c.h.b16 %v5897
  %v6029 = vunpack.c.l.b16 %v5898
  %v6030 = vunpack.c.h.b16 %v5898
  %v6031 = vunpack.c.l.b16 %v5899
  %v6032 = vunpack.c.h.b16 %v5899
  %v6033 = vunpack.c.l.b16 %v5900
  %v6034 = vunpack.c.h.b16 %v5900
  %v6035 = vunpack.c.l.b16 %v5901
  %v6036 = vunpack.c.h.b16 %v5901
  %v6037 = vunpack.c.l.b16 %v5902
  %v6038 = vunpack.c.h.b16 %v5902
  %v6039 = vunpack.c.l.b16 %v5903
  %v6040 = vunpack.c.h.b16 %v5903
  %v6041 = vunpack.c.l.b16 %v5904
  %v6042 = vunpack.c.h.b16 %v5904
  %v6043 = vunpack.c.l.b16 %v5905
  %v6044 = vunpack.c.h.b16 %v5905
  %v6045 = vunpack.c.l.b16 %v5906
  %v6046 = vunpack.c.h.b16 %v5906
  %v6047 = vunpack.c.l.b16 %v5907
  %v6048 = vunpack.c.h.b16 %v5907
  %v6049 = vunpack.c.l.b16 %v5908
  %v6050 = vunpack.c.h.b16 %v5908
  %v6051 = vunpack.c.l.b16 %v5909
  %v6052 = vunpack.c.h.b16 %v5909
  %v6053 = vunpack.c.l.b16 %v5910
  %v6054 = vunpack.c.h.b16 %v5910
  %v6055 = vunpack.c.l.b16 %v5911
  %v6056 = vunpack.c.h.b16 %v5911
  %v6057 = vunpack.c.l.b16 %v5912
  %v6058 = vunpack.c.h.b16 %v5912
  %v6059 = vunpack.c.l.b16 %v5913
  %v6060 = vunpack.c.h.b16 %v5913
  %v6061 = vunpack.c.l.b16 %v5914
  %v6062 = vunpack.c.h.b16 %v5914
  %v6063 = vunpack.c.l.b16 %v5915
  %v6064 = vunpack.c.h.b16 %v5915
  %v6065 = vunpack.c.l.b16 %v5916
  %v6066 = vunpack.c.h.b16 %v5916
  %v6067 = vunpack.c.l.b16 %v5917
  %v6068 = vunpack.c.h.b16 %v5917
  %v6069 = vunpack.c.l.b16 %v5918
  %v6070 = vunpack.c.h.b16 %v5918
  %v6071 = vunpack.c.l.b16 %v5919
  %v6072 = vunpack.c.h.b16 %v5919
  %v6073 = vunpack.c.l.b16 %v5920
  %v6074 = vunpack.c.h.b16 %v5920
  %v6075 = vunpack.c.l.b16 %v5921
  %v6076 = vunpack.c.h.b16 %v5921
  %v6077 = vunpack.c.l.b16 %v5922
  %v6078 = vunpack.c.h.b16 %v5922
  %v6079 = vunpack.c.l.b16 %v5923
  %v6080 = vunpack.c.h.b16 %v5923
  %v6081 = vunpack.c.l.b16 %v5924
  %v6082 = vunpack.c.h.b16 %v5924
  %v6083 = vunpack.c.l.b16 %v5925
  %v6084 = vunpack.c.h.b16 %v5925
  %v6085 = vunpack.c.l.b16 %v5926
  %v6086 = vunpack.c.h.b16 %v5926
  %v6087 = vunpack.c.l.b16 %v5927
  %v6088 = vunpack.c.h.b16 %v5927
  %v6089 = vunpack.c.l.b16 %v5928
  %v6090 = vunpack.c.h.b16 %v5928
  %v6091 = vunpack.c.l.b16 %v5929
  %v6092 = vunpack.c.h.b16 %v5929
  %v6093 = vunpack.c.l.b16 %v5930
  %v6094 = vunpack.c.h.b16 %v5930
  %v6095 = vunpack.c.l.b16 %v5931
  %v6096 = vunpack.c.h.b16 %v5931
  %v6097 = vunpack.c.l.b16 %v5932
  %v6098 = vunpack.c.h.b16 %v5932
  %v6099 = vunpack.c.l.b16 %v5933
  %v6100 = vunpack.c.h.b16 %v5933
  %v6101 = vunpack.c.l.b16 %v5934
  %v6102 = vunpack.c.h.b16 %v5934
  %v6103 = vunpack.c.l.b16 %v5935
  %v6104 = vunpack.c.h.b16 %v5935
  %v6105 = vunpack.c.l.b16 %v5936
  %v6106 = vunpack.c.h.b16 %v5936
  %v6107 = vunpack.c.l.b16 %v5937
  %v6108 = vunpack.c.h.b16 %v5937
  %v6109 = vunpack.c.l.b16 %v5938
  %v6110 = vunpack.c.h.b16 %v5938
  %v6111 = vunpack.c.l.b16 %v5939
  %v6112 = vunpack.c.h.b16 %v5939
  %v6113 = vunpack.c.l.b16 %v5940
  %v6114 = vunpack.c.h.b16 %v5940
  %v6115 = vunpack.c.l.b16 %v5941
  %v6116 = vunpack.c.h.b16 %v5941
  %v6117 = vunpack.c.l.b16 %v5942
  %v6118 = vunpack.c.h.b16 %v5942
  %v6119 = vunpack.c.l.b16 %v5943
  %v6120 = vunpack.c.h.b16 %v5943
  %v6121 = vunpack.c.l.b16 %v5944
  %v6122 = vunpack.c.h.b16 %v5944
  %v6123 = vunpack.c.l.b16 %v5945
  %v6124 = vunpack.c.h.b16 %v5945
  %v6125 = vunpack.c.l.b16 %v5946
  %v6126 = vunpack.c.h.b16 %v5946
  %v6127 = vpack.c.b16 %v6013, %v6007
  %v6128 = vpack.c.b16 %v6014, %v6008
  %v6129 = vpack.c.b16 %v6015, %v6009
  %v6130 = vpack.c.b16 %v6016, %v6010
  %v6131 = vpack.c.b16 %v6017, %v6011
  %v6132 = vpack.c.b16 %v6018, %v6012
  %v6133 = vpack.c.b16 %v6025, %v6019
  %v6134 = vpack.c.b16 %v6026, %v6020
  %v6135 = vpack.c.b16 %v6027, %v6021
  %v6136 = vpack.c.b16 %v6028, %v6022
  %v6137 = vpack.c.b16 %v6029, %v6023
  %v6138 = vpack.c.b16 %v6030, %v6024
  %v6139 = vpack.c.b16 %v6037, %v6031
  %v6140 = vpack.c.b16 %v6038, %v6032
  %v6141 = vpack.c.b16 %v6039, %v6033
  %v6142 = vpack.c.b16 %v6040, %v6034
  %v6143 = vpack.c.b16 %v6041, %v6035
  %v6144 = vpack.c.b16 %v6042, %v6036
  %v6145 = vpack.c.b16 %v6049, %v6043
  %v6146 = vpack.c.b16 %v6050, %v6044
  %v6147 = vpack.c.b16 %v6051, %v6045
  %v6148 = vpack.c.b16 %v6052, %v6046
  %v6149 = vpack.c.b16 %v6053, %v6047
  %v6150 = vpack.c.b16 %v6054, %v6048
  %v6151 = vpack.c.b16 %v6061, %v6055
  %v6152 = vpack.c.b16 %v6062, %v6056
  %v6153 = vpack.c.b16 %v6063, %v6057
  %v6154 = vpack.c.b16 %v6064, %v6058
  %v6155 = vpack.c.b16 %v6065, %v6059
  %v6156 = vpack.c.b16 %v6066, %v6060
  %v6157 = vpack.c.b16 %v6073, %v6067
  %v6158 = vpack.c.b16 %v6074, %v6068
  %v6159 = vpack.c.b16 %v6075, %v6069
  %v6160 = vpack.c.b16 %v6076, %v6070
  %v6161 = vpack.c.b16 %v6077, %v6071
  %v6162 = vpack.c.b16 %v6078, %v6072
  %v6163 = vpack.c.b16 %v6085, %v6079
  %v6164 = vpack.c.b16 %v6086, %v6080
  %v6165 = vpack.c.b16 %v6087, %v6081
  %v6166 = vpack.c.b16 %v6088, %v6082
  %v6167 = vpack.c.b16 %v6089, %v6083
  %v6168 = vpack.c.b16 %v6090, %v6084
  %v6169 = vpack.c.b16 %v6097, %v6091
  %v6170 = vpack.c.b16 %v6098, %v6092
  %v6171 = vpack.c.b16 %v6099, %v6093
  %v6172 = vpack.c.b16 %v6100, %v6094
  %v6173 = vpack.c.b16 %v6101, %v6095
  %v6174 = vpack.c.b16 %v6102, %v6096
  %v6175 = vpack.c.b16 %v6109, %v6103
  %v6176 = vpack.c.b16 %v6110, %v6104
  %v6177 = vpack.c.b16 %v6111, %v6105
  %v6178 = vpack.c.b16 %v6112, %v6106
  %v6179 = vpack.c.b16 %v6113, %v6107
  %v6180 = vpack.c.b16 %v6114, %v6108
  %v6181 = vpack.c.b16 %v6121, %v6115
  %v6182 = vpack.c.b16 %v6122, %v6116
  %v6183 = vpack.c.b16 %v6123, %v6117
  %v6184 = vpack.c.b16 %v6124, %v6118
  %v6185 = vpack.c.b16 %v6125, %v6119
  %v6186 = vpack.c.b16 %v6126, %v6120
  %6247 = vmatprep.subr.bf16.mxu0 0
  %6248 = vmatpush1.bf16.msra.mxu0 %v785
  %6249 = vmatprep.subr.bf16.mxu0 0
  %6250 = vmatpush1.bf16.msra.mxu0 %v786
  %6251 = vmatprep.subr.bf16.mxu0 0
  %6252 = vmatpush1.bf16.msra.mxu0 %v787
  %6253 = vmatprep.subr.bf16.mxu0 0
  %6254 = vmatpush1.bf16.msra.mxu0 %v788
  %6255 = vmatprep.subr.bf16.mxu0 0
  %6256 = vmatpush1.bf16.msra.mxu0 %v789
  %6257 = vmatprep.subr.bf16.mxu0 0
  %6258 = vmatpush1.bf16.msra.mxu0 %v790
  %6259 = vmatprep.subr.bf16.mxu0 0
  %6260 = vmatpush1.bf16.msra.mxu0 %v791
  %6261 = vmatprep.subr.bf16.mxu0 0
  %6262 = vmatpush1.bf16.msra.mxu0 %v792
  %6263 = vmatprep.subr.bf16.mxu0 0
  %6264 = vmatpush1.bf16.msra.mxu0 %v793
  %6265 = vmatprep.subr.bf16.mxu0 0
  %6266 = vmatpush1.bf16.msra.mxu0 %v794
  %6267 = vmatprep.subr.bf16.mxu0 0
  %6268 = vmatpush1.bf16.msra.mxu0 %v795
  %6269 = vmatprep.subr.bf16.mxu0 0
  %6270 = vmatpush1.bf16.msra.mxu0 %v796
  %6271 = vmatprep.subr.bf16.mxu0 0
  %6272 = vmatpush1.bf16.msra.mxu0 %v797
  %6273 = vmatprep.subr.bf16.mxu0 0
  %6274 = vmatpush1.bf16.msra.mxu0 %v798
  %6275 = vmatprep.subr.bf16.mxu0 0
  %6276 = vmatpush1.bf16.msra.mxu0 %v799
  %6277 = vmatprep.subr.bf16.mxu0 0
  %6278 = vmatpush1.bf16.msra.mxu0 %v800
  %6279 = vmatprep.mubr.bf16.mxu0 %v6128
  %6280 = vmatmul.mubr.bf16.gmra.mrb[0].mxu0 %v6127
  %v6281 = vpop.f32.mrb[0].mxu0
  %v6282 = vadd.f32 0.0, %v6281
  %v6283 = vpop.f32.mrb[0].mxu0
  %v6284 = vpop.f32.mrb[0].mxu0
  %v6285 = vadd.f32 0.0, %v6284
  %v6286 = vpop.f32.mrb[0].mxu0
  %6287 = vmatprep.mubr.bf16.mxu0 %v6134
  %6288 = vmatmul.mubr.bf16.gmra.mrb[0].mxu0 %v6133
  %v6289 = vpop.f32.mrb[0].mxu0
  %v6290 = vadd.f32 0.0, %v6289
  %v6291 = vpop.f32.mrb[0].mxu0
  %v6292 = vpop.f32.mrb[0].mxu0
  %v6293 = vadd.f32 0.0, %v6292
  %v6294 = vpop.f32.mrb[0].mxu0
  %6295 = vmatprep.mubr.bf16.mxu0 %v6140
  %6296 = vmatmul.mubr.bf16.gmra.mrb[0].mxu0 %v6139
  %v6297 = vpop.f32.mrb[0].mxu0
  %v6298 = vadd.f32 0.0, %v6297
  %v6299 = vpop.f32.mrb[0].mxu0
  %v6300 = vpop.f32.mrb[0].mxu0
  %v6301 = vadd.f32 0.0, %v6300
  %v6302 = vpop.f32.mrb[0].mxu0
  %6303 = vmatprep.mubr.bf16.mxu0 %v6146
  %6304 = vmatmul.mubr.bf16.gmra.mrb[0].mxu0 %v6145
  %v6305 = vpop.f32.mrb[0].mxu0
  %v6306 = vadd.f32 0.0, %v6305
  %v6307 = vpop.f32.mrb[0].mxu0
  %v6308 = vpop.f32.mrb[0].mxu0
  %v6309 = vadd.f32 0.0, %v6308
  %v6310 = vpop.f32.mrb[0].mxu0
  %6311 = vmatprep.mubr.bf16.mxu0 %v6152
  %6312 = vmatmul.mubr.bf16.gmra.mrb[0].mxu0 %v6151
  %v6313 = vpop.f32.mrb[0].mxu0
  %v6314 = vadd.f32 0.0, %v6313
  %v6315 = vpop.f32.mrb[0].mxu0
  %v6316 = vpop.f32.mrb[0].mxu0
  %v6317 = vadd.f32 0.0, %v6316
  %v6318 = vpop.f32.mrb[0].mxu0
  %6319 = vmatprep.mubr.bf16.mxu0 %v6158
  %6320 = vmatmul.mubr.bf16.gmra.mrb[0].mxu0 %v6157
  %v6321 = vpop.f32.mrb[0].mxu0
  %v6322 = vadd.f32 0.0, %v6321
  %v6323 = vpop.f32.mrb[0].mxu0
  %v6324 = vpop.f32.mrb[0].mxu0
  %v6325 = vadd.f32 0.0, %v6324
  %v6326 = vpop.f32.mrb[0].mxu0
  %6327 = vmatprep.mubr.bf16.mxu0 %v6164
  %6328 = vmatmul.mubr.bf16.gmra.mrb[0].mxu0 %v6163
  %v6329 = vpop.f32.mrb[0].mxu0
  %v6330 = vadd.f32 0.0, %v6329
  %v6331 = vpop.f32.mrb[0].mxu0
  %v6332 = vpop.f32.mrb[0].mxu0
  %v6333 = vadd.f32 0.0, %v6332
  %v6334 = vpop.f32.mrb[0].mxu0
  %6335 = vmatprep.mubr.bf16.mxu0 %v6170
  %6336 = vmatmul.mubr.bf16.gmra.mrb[0].mxu0 %v6169
  %v6337 = vpop.f32.mrb[0].mxu0
  %v6338 = vadd.f32 0.0, %v6337
  %v6339 = vpop.f32.mrb[0].mxu0
  %v6340 = vpop.f32.mrb[0].mxu0
  %v6341 = vadd.f32 0.0, %v6340
  %v6342 = vpop.f32.mrb[0].mxu0
  %6343 = vmatprep.mubr.bf16.mxu0 %v6176
  %6344 = vmatmul.mubr.bf16.gmra.mrb[0].mxu0 %v6175
  %v6345 = vpop.f32.mrb[0].mxu0
  %v6346 = vadd.f32 0.0, %v6345
  %v6347 = vpop.f32.mrb[0].mxu0
  %v6348 = vpop.f32.mrb[0].mxu0
  %v6349 = vadd.f32 0.0, %v6348
  %v6350 = vpop.f32.mrb[0].mxu0
  %6351 = vmatprep.mubr.bf16.mxu0 %v6182
  %6352 = vmatmul.mubr.bf16.gmra.mrb[0].mxu0 %v6181
  %v6353 = vpop.f32.mrb[0].mxu0
  %v6354 = vadd.f32 0.0, %v6353
  %v6355 = vpop.f32.mrb[0].mxu0
  %v6356 = vpop.f32.mrb[0].mxu0
  %v6357 = vadd.f32 0.0, %v6356
  %v6358 = vpop.f32.mrb[0].mxu0
  %6359 = vdwg.mxu0
  %6360 = vmatprep.subr.bf16.mxu0 0
  %6361 = vmatpush1.bf16.msra.mxu0 %v801
  %6362 = vmatprep.subr.bf16.mxu0 0
  %6363 = vmatpush1.bf16.msra.mxu0 %v802
  %6364 = vmatprep.subr.bf16.mxu0 0
  %6365 = vmatpush1.bf16.msra.mxu0 %v803
  %6366 = vmatprep.subr.bf16.mxu0 0
  %6367 = vmatpush1.bf16.msra.mxu0 %v804
  %6368 = vmatprep.subr.bf16.mxu0 0
  %6369 = vmatpush1.bf16.msra.mxu0 %v805
  %6370 = vmatprep.subr.bf16.mxu0 0
  %6371 = vmatpush1.bf16.msra.mxu0 %v806
  %6372 = vmatprep.subr.bf16.mxu0 0
  %6373 = vmatpush1.bf16.msra.mxu0 %v807
  %6374 = vmatprep.subr.bf16.mxu0 0
  %6375 = vmatpush1.bf16.msra.mxu0 %v808
  %6376 = vmatprep.subr.bf16.mxu0 0
  %6377 = vmatpush1.bf16.msra.mxu0 %v809
  %6378 = vmatprep.subr.bf16.mxu0 0
  %6379 = vmatpush1.bf16.msra.mxu0 %v810
  %6380 = vmatprep.subr.bf16.mxu0 0
  %6381 = vmatpush1.bf16.msra.mxu0 %v811
  %6382 = vmatprep.subr.bf16.mxu0 0
  %6383 = vmatpush1.bf16.msra.mxu0 %v812
  %6384 = vmatprep.subr.bf16.mxu0 0
  %6385 = vmatpush1.bf16.msra.mxu0 %v813
  %6386 = vmatprep.subr.bf16.mxu0 0
  %6387 = vmatpush1.bf16.msra.mxu0 %v814
  %6388 = vmatprep.subr.bf16.mxu0 0
  %6389 = vmatpush1.bf16.msra.mxu0 %v815
  %6390 = vmatprep.subr.bf16.mxu0 0
  %6391 = vmatpush1.bf16.msra.mxu0 %v816
  %6392 = vmatprep.mubr.bf16.mxu0 %v6130
  %6393 = vmatmul.mubr.bf16.gmra.mrb[0].mxu0 %v6129
  %v6394 = vpop.f32.mrb[0].mxu0
  %v6395 = vadd.f32 %v6282, %v6394
  %v6396 = vpop.f32.mrb[0].mxu0
  %v6397 = vpop.f32.mrb[0].mxu0
  %v6398 = vadd.f32 %v6285, %v6397
  %v6399 = vpop.f32.mrb[0].mxu0
  %6400 = vmatprep.mubr.bf16.mxu0 %v6136
  %6401 = vmatmul.mubr.bf16.gmra.mrb[0].mxu0 %v6135
  %v6402 = vpop.f32.mrb[0].mxu0
  %v6403 = vadd.f32 %v6290, %v6402
  %v6404 = vpop.f32.mrb[0].mxu0
  %v6405 = vpop.f32.mrb[0].mxu0
  %v6406 = vadd.f32 %v6293, %v6405
  %v6407 = vpop.f32.mrb[0].mxu0
  %6408 = vmatprep.mubr.bf16.mxu0 %v6142
  %6409 = vmatmul.mubr.bf16.gmra.mrb[0].mxu0 %v6141
  %v6410 = vpop.f32.mrb[0].mxu0
  %v6411 = vadd.f32 %v6298, %v6410
  %v6412 = vpop.f32.mrb[0].mxu0
  %v6413 = vpop.f32.mrb[0].mxu0
  %v6414 = vadd.f32 %v6301, %v6413
  %v6415 = vpop.f32.mrb[0].mxu0
  %6416 = vmatprep.mubr.bf16.mxu0 %v6148
  %6417 = vmatmul.mubr.bf16.gmra.mrb[0].mxu0 %v6147
  %v6418 = vpop.f32.mrb[0].mxu0
  %v6419 = vadd.f32 %v6306, %v6418
  %v6420 = vpop.f32.mrb[0].mxu0
  %v6421 = vpop.f32.mrb[0].mxu0
  %v6422 = vadd.f32 %v6309, %v6421
  %v6423 = vpop.f32.mrb[0].mxu0
  %6424 = vmatprep.mubr.bf16.mxu0 %v6154
  %6425 = vmatmul.mubr.bf16.gmra.mrb[0].mxu0 %v6153
  %v6426 = vpop.f32.mrb[0].mxu0
  %v6427 = vadd.f32 %v6314, %v6426
  %v6428 = vpop.f32.mrb[0].mxu0
  %v6429 = vpop.f32.mrb[0].mxu0
  %v6430 = vadd.f32 %v6317, %v6429
  %v6431 = vpop.f32.mrb[0].mxu0
  %6432 = vmatprep.mubr.bf16.mxu0 %v6160
  %6433 = vmatmul.mubr.bf16.gmra.mrb[0].mxu0 %v6159
  %v6434 = vpop.f32.mrb[0].mxu0
  %v6435 = vadd.f32 %v6322, %v6434
  %v6436 = vpop.f32.mrb[0].mxu0
  %v6437 = vpop.f32.mrb[0].mxu0
  %v6438 = vadd.f32 %v6325, %v6437
  %v6439 = vpop.f32.mrb[0].mxu0
  %6440 = vmatprep.mubr.bf16.mxu0 %v6166
  %6441 = vmatmul.mubr.bf16.gmra.mrb[0].mxu0 %v6165
  %v6442 = vpop.f32.mrb[0].mxu0
  %v6443 = vadd.f32 %v6330, %v6442
  %v6444 = vpop.f32.mrb[0].mxu0
  %v6445 = vpop.f32.mrb[0].mxu0
  %v6446 = vadd.f32 %v6333, %v6445
  %v6447 = vpop.f32.mrb[0].mxu0
  %6448 = vmatprep.mubr.bf16.mxu0 %v6172
  %6449 = vmatmul.mubr.bf16.gmra.mrb[0].mxu0 %v6171
  %v6450 = vpop.f32.mrb[0].mxu0
  %v6451 = vadd.f32 %v6338, %v6450
  %v6452 = vpop.f32.mrb[0].mxu0
  %v6453 = vpop.f32.mrb[0].mxu0
  %v6454 = vadd.f32 %v6341, %v6453
  %v6455 = vpop.f32.mrb[0].mxu0
  %6456 = vmatprep.mubr.bf16.mxu0 %v6178
  %6457 = vmatmul.mubr.bf16.gmra.mrb[0].mxu0 %v6177
  %v6458 = vpop.f32.mrb[0].mxu0
  %v6459 = vadd.f32 %v6346, %v6458
  %v6460 = vpop.f32.mrb[0].mxu0
  %v6461 = vpop.f32.mrb[0].mxu0
  %v6462 = vadd.f32 %v6349, %v6461
  %v6463 = vpop.f32.mrb[0].mxu0
  %6464 = vmatprep.mubr.bf16.mxu0 %v6184
  %6465 = vmatmul.mubr.bf16.gmra.mrb[0].mxu0 %v6183
  %v6466 = vpop.f32.mrb[0].mxu0
  %v6467 = vadd.f32 %v6354, %v6466
  %v6468 = vpop.f32.mrb[0].mxu0
  %v6469 = vpop.f32.mrb[0].mxu0
  %v6470 = vadd.f32 %v6357, %v6469
  %v6471 = vpop.f32.mrb[0].mxu0
  %6472 = vdwg.mxu0
  %6473 = vmatprep.subr.bf16.mxu0 0
  %6474 = vmatpush1.bf16.msra.mxu0 %v817
  %6475 = vmatprep.subr.bf16.mxu0 0
  %6476 = vmatpush1.bf16.msra.mxu0 %v818
  %6477 = vmatprep.subr.bf16.mxu0 0
  %6478 = vmatpush1.bf16.msra.mxu0 %v819
  %6479 = vmatprep.subr.bf16.mxu0 0
  %6480 = vmatpush1.bf16.msra.mxu0 %v820
  %6481 = vmatprep.subr.bf16.mxu0 0
  %6482 = vmatpush1.bf16.msra.mxu0 %v821
  %6483 = vmatprep.subr.bf16.mxu0 0
  %6484 = vmatpush1.bf16.msra.mxu0 %v822
  %6485 = vmatprep.subr.bf16.mxu0 0
  %6486 = vmatpush1.bf16.msra.mxu0 %v823
  %6487 = vmatprep.subr.bf16.mxu0 0
  %6488 = vmatpush1.bf16.msra.mxu0 %v824
  %6489 = vmatprep.subr.bf16.mxu0 0
  %6490 = vmatpush1.bf16.msra.mxu0 %v825
  %6491 = vmatprep.subr.bf16.mxu0 0
  %6492 = vmatpush1.bf16.msra.mxu0 %v826
  %6493 = vmatprep.subr.bf16.mxu0 0
  %6494 = vmatpush1.bf16.msra.mxu0 %v827
  %6495 = vmatprep.subr.bf16.mxu0 0
  %6496 = vmatpush1.bf16.msra.mxu0 %v828
  %6497 = vmatprep.subr.bf16.mxu0 0
  %6498 = vmatpush1.bf16.msra.mxu0 %v829
  %6499 = vmatprep.subr.bf16.mxu0 0
  %6500 = vmatpush1.bf16.msra.mxu0 %v830
  %6501 = vmatprep.subr.bf16.mxu0 0
  %6502 = vmatpush1.bf16.msra.mxu0 %v831
  %6503 = vmatprep.subr.bf16.mxu0 0
  %6504 = vmatpush1.bf16.msra.mxu0 %v832
  %6505 = vmatprep.mubr.bf16.mxu0 %v6132
  %6506 = vmatmul.mubr.bf16.gmra.mrb[0].mxu0 %v6131
  %v6507 = vpop.f32.mrb[0].mxu0
  %v6508 = vadd.f32 %v6395, %v6507
  %v6509 = vpop.f32.mrb[0].mxu0
  %v6510 = vpop.f32.mrb[0].mxu0
  %v6511 = vadd.f32 %v6398, %v6510
  %v6512 = vpop.f32.mrb[0].mxu0
  %6513 = vmatprep.mubr.bf16.mxu0 %v6138
  %6514 = vmatmul.mubr.bf16.gmra.mrb[0].mxu0 %v6137
  %v6515 = vpop.f32.mrb[0].mxu0
  %v6516 = vadd.f32 %v6403, %v6515
  %v6517 = vpop.f32.mrb[0].mxu0
  %v6518 = vpop.f32.mrb[0].mxu0
  %v6519 = vadd.f32 %v6406, %v6518
  %v6520 = vpop.f32.mrb[0].mxu0
  %6521 = vmatprep.mubr.bf16.mxu0 %v6144
  %6522 = vmatmul.mubr.bf16.gmra.mrb[0].mxu0 %v6143
  %v6523 = vpop.f32.mrb[0].mxu0
  %v6524 = vadd.f32 %v6411, %v6523
  %v6525 = vpop.f32.mrb[0].mxu0
  %v6526 = vpop.f32.mrb[0].mxu0
  %v6527 = vadd.f32 %v6414, %v6526
  %v6528 = vpop.f32.mrb[0].mxu0
  %6529 = vmatprep.mubr.bf16.mxu0 %v6150
  %6530 = vmatmul.mubr.bf16.gmra.mrb[0].mxu0 %v6149
  %v6531 = vpop.f32.mrb[0].mxu0
  %v6532 = vadd.f32 %v6419, %v6531
  %v6533 = vpop.f32.mrb[0].mxu0
  %v6534 = vpop.f32.mrb[0].mxu0
  %v6535 = vadd.f32 %v6422, %v6534
  %v6536 = vpop.f32.mrb[0].mxu0
  %6537 = vmatprep.mubr.bf16.mxu0 %v6156
  %6538 = vmatmul.mubr.bf16.gmra.mrb[0].mxu0 %v6155
  %v6539 = vpop.f32.mrb[0].mxu0
  %v6540 = vadd.f32 %v6427, %v6539
  %v6541 = vpop.f32.mrb[0].mxu0
  %v6542 = vpop.f32.mrb[0].mxu0
  %v6543 = vadd.f32 %v6430, %v6542
  %v6544 = vpop.f32.mrb[0].mxu0
  %6545 = vmatprep.mubr.bf16.mxu0 %v6162
  %6546 = vmatmul.mubr.bf16.gmra.mrb[0].mxu0 %v6161
  %v6547 = vpop.f32.mrb[0].mxu0
  %v6548 = vadd.f32 %v6435, %v6547
  %v6549 = vpop.f32.mrb[0].mxu0
  %v6550 = vpop.f32.mrb[0].mxu0
  %v6551 = vadd.f32 %v6438, %v6550
  %v6552 = vpop.f32.mrb[0].mxu0
  %6553 = vmatprep.mubr.bf16.mxu0 %v6168
  %6554 = vmatmul.mubr.bf16.gmra.mrb[0].mxu0 %v6167
  %v6555 = vpop.f32.mrb[0].mxu0
  %v6556 = vadd.f32 %v6443, %v6555
  %v6557 = vpop.f32.mrb[0].mxu0
  %v6558 = vpop.f32.mrb[0].mxu0
  %v6559 = vadd.f32 %v6446, %v6558
  %v6560 = vpop.f32.mrb[0].mxu0
  %6561 = vmatprep.mubr.bf16.mxu0 %v6174
  %6562 = vmatmul.mubr.bf16.gmra.mrb[0].mxu0 %v6173
  %v6563 = vpop.f32.mrb[0].mxu0
  %v6564 = vadd.f32 %v6451, %v6563
  %v6565 = vpop.f32.mrb[0].mxu0
  %v6566 = vpop.f32.mrb[0].mxu0
  %v6567 = vadd.f32 %v6454, %v6566
  %v6568 = vpop.f32.mrb[0].mxu0
  %6569 = vmatprep.mubr.bf16.mxu0 %v6180
  %6570 = vmatmul.mubr.bf16.gmra.mrb[0].mxu0 %v6179
  %v6571 = vpop.f32.mrb[0].mxu0
  %v6572 = vadd.f32 %v6459, %v6571
  %v6573 = vpop.f32.mrb[0].mxu0
  %v6574 = vpop.f32.mrb[0].mxu0
  %v6575 = vadd.f32 %v6462, %v6574
  %v6576 = vpop.f32.mrb[0].mxu0
  %6577 = vmatprep.mubr.bf16.mxu0 %v6186
  %6578 = vmatmul.mubr.bf16.gmra.mrb[0].mxu0 %v6185
  %v6579 = vpop.f32.mrb[0].mxu0
  %v6580 = vadd.f32 %v6467, %v6579
  %v6581 = vpop.f32.mrb[0].mxu0
  %v6582 = vpop.f32.mrb[0].mxu0
  %v6583 = vadd.f32 %v6470, %v6582
  %v6584 = vpop.f32.mrb[0].mxu0
  %6585 = vdwg.mxu0
  %v6592 = vunpack.c.l.b16 %v5881
  %v6593 = vunpack.c.h.b16 %v5881
  %v6594 = vunpack.c.l.b16 %v5882
  %v6595 = vunpack.c.h.b16 %v5882
  %v6596 = vunpack.c.l.b16 %v5883
  %v6597 = vunpack.c.h.b16 %v5883
  %v6598 = vunpack.c.l.b16 %v5884
  %v6599 = vunpack.c.h.b16 %v5884
  %v6600 = vunpack.c.l.b16 %v5885
  %v6601 = vunpack.c.h.b16 %v5885
  %v6602 = vunpack.c.l.b16 %v5886
  %v6603 = vunpack.c.h.b16 %v5886
  %v6604 = vpack.c.b16 %v6598, %v6592
  %v6605 = vpack.c.b16 %v6599, %v6593
  %v6606 = vpack.c.b16 %v6600, %v6594
  %v6607 = vpack.c.b16 %v6601, %v6595
  %v6608 = vpack.c.b16 %v6602, %v6596
  %v6609 = vpack.c.b16 %v6603, %v6597
  %6616 = vmatprep.subr.bf16.mxu0 0
  %6617 = vmatpush1.bf16.msra.mxu0 %v1442
  %6618 = vmatprep.subr.bf16.mxu0 0
  %6619 = vmatpush1.bf16.msra.mxu0 %v1443
  %6620 = vmatprep.subr.bf16.mxu0 0
  %6621 = vmatpush1.bf16.msra.mxu0 %v1444
  %6622 = vmatprep.subr.bf16.mxu0 0
  %6623 = vmatpush1.bf16.msra.mxu0 %v1445
  %6624 = vmatprep.subr.bf16.mxu0 0
  %6625 = vmatpush1.bf16.msra.mxu0 %v1446
  %6626 = vmatprep.subr.bf16.mxu0 0
  %6627 = vmatpush1.bf16.msra.mxu0 %v1447
  %6628 = vmatprep.subr.bf16.mxu0 0
  %6629 = vmatpush1.bf16.msra.mxu0 %v1448
  %6630 = vmatprep.subr.bf16.mxu0 0
  %6631 = vmatpush1.bf16.msra.mxu0 %v1449
  %6632 = vmatprep.subr.bf16.mxu0 0
  %6633 = vmatpush1.bf16.msra.mxu0 %v1450
  %6634 = vmatprep.subr.bf16.mxu0 0
  %6635 = vmatpush1.bf16.msra.mxu0 %v1451
  %6636 = vmatprep.subr.bf16.mxu0 0
  %6637 = vmatpush1.bf16.msra.mxu0 %v1452
  %6638 = vmatprep.subr.bf16.mxu0 0
  %6639 = vmatpush1.bf16.msra.mxu0 %v1453
  %6640 = vmatprep.subr.bf16.mxu0 0
  %6641 = vmatpush1.bf16.msra.mxu0 %v1454
  %6642 = vmatprep.subr.bf16.mxu0 0
  %6643 = vmatpush1.bf16.msra.mxu0 %v1455
  %6644 = vmatprep.subr.bf16.mxu0 0
  %6645 = vmatpush1.bf16.msra.mxu0 %v1456
  %6646 = vmatprep.subr.bf16.mxu0 0
  %6647 = vmatpush1.bf16.msra.mxu0 %v1457
  %6648 = vmatprep.mubr.bf16.mxu0 %v6605
  %6649 = vmatmul.mubr.bf16.gmra.mrb[0].mxu0 %v6604
  %v6650 = vpop.f32.mrb[0].mxu0
  %v6651 = vadd.f32 %v6508, %v6650
  %v6652 = vpop.f32.mrb[0].mxu0
  %v6653 = vpop.f32.mrb[0].mxu0
  %v6654 = vadd.f32 %v6511, %v6653
  %v6655 = vpop.f32.mrb[0].mxu0
  %6656 = vmatprep.mubr.bf16.mxu0 %v6128
  %6657 = vmatmul.mubr.bf16.gmra.mrb[0].mxu0 %v6127
  %v6658 = vpop.f32.mrb[0].mxu0
  %v6659 = vadd.f32 %v6516, %v6658
  %v6660 = vpop.f32.mrb[0].mxu0
  %v6661 = vpop.f32.mrb[0].mxu0
  %v6662 = vadd.f32 %v6519, %v6661
  %v6663 = vpop.f32.mrb[0].mxu0
  %6664 = vmatprep.mubr.bf16.mxu0 %v6134
  %6665 = vmatmul.mubr.bf16.gmra.mrb[0].mxu0 %v6133
  %v6666 = vpop.f32.mrb[0].mxu0
  %v6667 = vadd.f32 %v6524, %v6666
  %v6668 = vpop.f32.mrb[0].mxu0
  %v6669 = vpop.f32.mrb[0].mxu0
  %v6670 = vadd.f32 %v6527, %v6669
  %v6671 = vpop.f32.mrb[0].mxu0
  %6672 = vmatprep.mubr.bf16.mxu0 %v6140
  %6673 = vmatmul.mubr.bf16.gmra.mrb[0].mxu0 %v6139
  %v6674 = vpop.f32.mrb[0].mxu0
  %v6675 = vadd.f32 %v6532, %v6674
  %v6676 = vpop.f32.mrb[0].mxu0
  %v6677 = vpop.f32.mrb[0].mxu0
  %v6678 = vadd.f32 %v6535, %v6677
  %v6679 = vpop.f32.mrb[0].mxu0
  %6680 = vmatprep.mubr.bf16.mxu0 %v6146
  %6681 = vmatmul.mubr.bf16.gmra.mrb[0].mxu0 %v6145
  %v6682 = vpop.f32.mrb[0].mxu0
  %v6683 = vadd.f32 %v6540, %v6682
  %v6684 = vpop.f32.mrb[0].mxu0
  %v6685 = vpop.f32.mrb[0].mxu0
  %v6686 = vadd.f32 %v6543, %v6685
  %v6687 = vpop.f32.mrb[0].mxu0
  %6688 = vmatprep.mubr.bf16.mxu0 %v6152
  %6689 = vmatmul.mubr.bf16.gmra.mrb[0].mxu0 %v6151
  %v6690 = vpop.f32.mrb[0].mxu0
  %v6691 = vadd.f32 %v6548, %v6690
  %v6692 = vpop.f32.mrb[0].mxu0
  %v6693 = vpop.f32.mrb[0].mxu0
  %v6694 = vadd.f32 %v6551, %v6693
  %v6695 = vpop.f32.mrb[0].mxu0
  %6696 = vmatprep.mubr.bf16.mxu0 %v6158
  %6697 = vmatmul.mubr.bf16.gmra.mrb[0].mxu0 %v6157
  %v6698 = vpop.f32.mrb[0].mxu0
  %v6699 = vadd.f32 %v6556, %v6698
  %v6700 = vpop.f32.mrb[0].mxu0
  %v6701 = vpop.f32.mrb[0].mxu0
  %v6702 = vadd.f32 %v6559, %v6701
  %v6703 = vpop.f32.mrb[0].mxu0
  %6704 = vmatprep.mubr.bf16.mxu0 %v6164
  %6705 = vmatmul.mubr.bf16.gmra.mrb[0].mxu0 %v6163
  %v6706 = vpop.f32.mrb[0].mxu0
  %v6707 = vadd.f32 %v6564, %v6706
  %v6708 = vpop.f32.mrb[0].mxu0
  %v6709 = vpop.f32.mrb[0].mxu0
  %v6710 = vadd.f32 %v6567, %v6709
  %v6711 = vpop.f32.mrb[0].mxu0
  %6712 = vmatprep.mubr.bf16.mxu0 %v6170
  %6713 = vmatmul.mubr.bf16.gmra.mrb[0].mxu0 %v6169
  %v6714 = vpop.f32.mrb[0].mxu0
  %v6715 = vadd.f32 %v6572, %v6714
  %v6716 = vpop.f32.mrb[0].mxu0
  %v6717 = vpop.f32.mrb[0].mxu0
  %v6718 = vadd.f32 %v6575, %v6717
  %v6719 = vpop.f32.mrb[0].mxu0
  %6720 = vmatprep.mubr.bf16.mxu0 %v6176
  %6721 = vmatmul.mubr.bf16.gmra.mrb[0].mxu0 %v6175
  %v6722 = vpop.f32.mrb[0].mxu0
  %v6723 = vadd.f32 %v6580, %v6722
  %v6724 = vpop.f32.mrb[0].mxu0
  %v6725 = vpop.f32.mrb[0].mxu0
  %v6726 = vadd.f32 %v6583, %v6725
  %v6727 = vpop.f32.mrb[0].mxu0
  %6728 = vdwg.mxu0
  %6729 = vmatprep.subr.bf16.mxu0 0
  %6730 = vmatpush1.bf16.msra.mxu0 %v1458
  %6731 = vmatprep.subr.bf16.mxu0 0
  %6732 = vmatpush1.bf16.msra.mxu0 %v1459
  %6733 = vmatprep.subr.bf16.mxu0 0
  %6734 = vmatpush1.bf16.msra.mxu0 %v1460
  %6735 = vmatprep.subr.bf16.mxu0 0
  %6736 = vmatpush1.bf16.msra.mxu0 %v1461
  %6737 = vmatprep.subr.bf16.mxu0 0
  %6738 = vmatpush1.bf16.msra.mxu0 %v1462
  %6739 = vmatprep.subr.bf16.mxu0 0
  %6740 = vmatpush1.bf16.msra.mxu0 %v1463
  %6741 = vmatprep.subr.bf16.mxu0 0
  %6742 = vmatpush1.bf16.msra.mxu0 %v1464
  %6743 = vmatprep.subr.bf16.mxu0 0
  %6744 = vmatpush1.bf16.msra.mxu0 %v1465
  %6745 = vmatprep.subr.bf16.mxu0 0
  %6746 = vmatpush1.bf16.msra.mxu0 %v1466
  %6747 = vmatprep.subr.bf16.mxu0 0
  %6748 = vmatpush1.bf16.msra.mxu0 %v1467
  %6749 = vmatprep.subr.bf16.mxu0 0
  %6750 = vmatpush1.bf16.msra.mxu0 %v1468
  %6751 = vmatprep.subr.bf16.mxu0 0
  %6752 = vmatpush1.bf16.msra.mxu0 %v1469
  %6753 = vmatprep.subr.bf16.mxu0 0
  %6754 = vmatpush1.bf16.msra.mxu0 %v1470
  %6755 = vmatprep.subr.bf16.mxu0 0
  %6756 = vmatpush1.bf16.msra.mxu0 %v1471
  %6757 = vmatprep.subr.bf16.mxu0 0
  %6758 = vmatpush1.bf16.msra.mxu0 %v1472
  %6759 = vmatprep.subr.bf16.mxu0 0
  %6760 = vmatpush1.bf16.msra.mxu0 %v1473
  %6761 = vmatprep.mubr.bf16.mxu0 %v6607
  %6762 = vmatmul.mubr.bf16.gmra.mrb[0].mxu0 %v6606
  %v6763 = vpop.f32.mrb[0].mxu0
  %v6764 = vadd.f32 %v6651, %v6763
  %v6765 = vpop.f32.mrb[0].mxu0
  %v6766 = vpop.f32.mrb[0].mxu0
  %v6767 = vadd.f32 %v6654, %v6766
  %v6768 = vpop.f32.mrb[0].mxu0
  %6769 = vmatprep.mubr.bf16.mxu0 %v6130
  %6770 = vmatmul.mubr.bf16.gmra.mrb[0].mxu0 %v6129
  %v6771 = vpop.f32.mrb[0].mxu0
  %v6772 = vadd.f32 %v6659, %v6771
  %v6773 = vpop.f32.mrb[0].mxu0
  %v6774 = vpop.f32.mrb[0].mxu0
  %v6775 = vadd.f32 %v6662, %v6774
  %v6776 = vpop.f32.mrb[0].mxu0
  %6777 = vmatprep.mubr.bf16.mxu0 %v6136
  %6778 = vmatmul.mubr.bf16.gmra.mrb[0].mxu0 %v6135
  %v6779 = vpop.f32.mrb[0].mxu0
  %v6780 = vadd.f32 %v6667, %v6779
  %v6781 = vpop.f32.mrb[0].mxu0
  %v6782 = vpop.f32.mrb[0].mxu0
  %v6783 = vadd.f32 %v6670, %v6782
  %v6784 = vpop.f32.mrb[0].mxu0
  %6785 = vmatprep.mubr.bf16.mxu0 %v6142
  %6786 = vmatmul.mubr.bf16.gmra.mrb[0].mxu0 %v6141
  %v6787 = vpop.f32.mrb[0].mxu0
  %v6788 = vadd.f32 %v6675, %v6787
  %v6789 = vpop.f32.mrb[0].mxu0
  %v6790 = vpop.f32.mrb[0].mxu0
  %v6791 = vadd.f32 %v6678, %v6790
  %v6792 = vpop.f32.mrb[0].mxu0
  %6793 = vmatprep.mubr.bf16.mxu0 %v6148
  %6794 = vmatmul.mubr.bf16.gmra.mrb[0].mxu0 %v6147
  %v6795 = vpop.f32.mrb[0].mxu0
  %v6796 = vadd.f32 %v6683, %v6795
  %v6797 = vpop.f32.mrb[0].mxu0
  %v6798 = vpop.f32.mrb[0].mxu0
  %v6799 = vadd.f32 %v6686, %v6798
  %v6800 = vpop.f32.mrb[0].mxu0
  %6801 = vmatprep.mubr.bf16.mxu0 %v6154
  %6802 = vmatmul.mubr.bf16.gmra.mrb[0].mxu0 %v6153
  %v6803 = vpop.f32.mrb[0].mxu0
  %v6804 = vadd.f32 %v6691, %v6803
  %v6805 = vpop.f32.mrb[0].mxu0
  %v6806 = vpop.f32.mrb[0].mxu0
  %v6807 = vadd.f32 %v6694, %v6806
  %v6808 = vpop.f32.mrb[0].mxu0
  %6809 = vmatprep.mubr.bf16.mxu0 %v6160
  %6810 = vmatmul.mubr.bf16.gmra.mrb[0].mxu0 %v6159
  %v6811 = vpop.f32.mrb[0].mxu0
  %v6812 = vadd.f32 %v6699, %v6811
  %v6813 = vpop.f32.mrb[0].mxu0
  %v6814 = vpop.f32.mrb[0].mxu0
  %v6815 = vadd.f32 %v6702, %v6814
  %v6816 = vpop.f32.mrb[0].mxu0
  %6817 = vmatprep.mubr.bf16.mxu0 %v6166
  %6818 = vmatmul.mubr.bf16.gmra.mrb[0].mxu0 %v6165
  %v6819 = vpop.f32.mrb[0].mxu0
  %v6820 = vadd.f32 %v6707, %v6819
  %v6821 = vpop.f32.mrb[0].mxu0
  %v6822 = vpop.f32.mrb[0].mxu0
  %v6823 = vadd.f32 %v6710, %v6822
  %v6824 = vpop.f32.mrb[0].mxu0
  %6825 = vmatprep.mubr.bf16.mxu0 %v6172
  %6826 = vmatmul.mubr.bf16.gmra.mrb[0].mxu0 %v6171
  %v6827 = vpop.f32.mrb[0].mxu0
  %v6828 = vadd.f32 %v6715, %v6827
  %v6829 = vpop.f32.mrb[0].mxu0
  %v6830 = vpop.f32.mrb[0].mxu0
  %v6831 = vadd.f32 %v6718, %v6830
  %v6832 = vpop.f32.mrb[0].mxu0
  %6833 = vmatprep.mubr.bf16.mxu0 %v6178
  %6834 = vmatmul.mubr.bf16.gmra.mrb[0].mxu0 %v6177
  %v6835 = vpop.f32.mrb[0].mxu0
  %v6836 = vadd.f32 %v6723, %v6835
  %v6837 = vpop.f32.mrb[0].mxu0
  %v6838 = vpop.f32.mrb[0].mxu0
  %v6839 = vadd.f32 %v6726, %v6838
  %v6840 = vpop.f32.mrb[0].mxu0
  %6841 = vdwg.mxu0
  %6842 = vmatprep.subr.bf16.mxu0 0
  %6843 = vmatpush1.bf16.msra.mxu0 %v1474
  %6844 = vmatprep.subr.bf16.mxu0 0
  %6845 = vmatpush1.bf16.msra.mxu0 %v1475
  %6846 = vmatprep.subr.bf16.mxu0 0
  %6847 = vmatpush1.bf16.msra.mxu0 %v1476
  %6848 = vmatprep.subr.bf16.mxu0 0
  %6849 = vmatpush1.bf16.msra.mxu0 %v1477
  %6850 = vmatprep.subr.bf16.mxu0 0
  %6851 = vmatpush1.bf16.msra.mxu0 %v1478
  %6852 = vmatprep.subr.bf16.mxu0 0
  %6853 = vmatpush1.bf16.msra.mxu0 %v1479
  %6854 = vmatprep.subr.bf16.mxu0 0
  %6855 = vmatpush1.bf16.msra.mxu0 %v1480
  %6856 = vmatprep.subr.bf16.mxu0 0
  %6857 = vmatpush1.bf16.msra.mxu0 %v1481
  %6858 = vmatprep.subr.bf16.mxu0 0
  %6859 = vmatpush1.bf16.msra.mxu0 %v1482
  %6860 = vmatprep.subr.bf16.mxu0 0
  %6861 = vmatpush1.bf16.msra.mxu0 %v1483
  %6862 = vmatprep.subr.bf16.mxu0 0
  %6863 = vmatpush1.bf16.msra.mxu0 %v1484
  %6864 = vmatprep.subr.bf16.mxu0 0
  %6865 = vmatpush1.bf16.msra.mxu0 %v1485
  %6866 = vmatprep.subr.bf16.mxu0 0
  %6867 = vmatpush1.bf16.msra.mxu0 %v1486
  %6868 = vmatprep.subr.bf16.mxu0 0
  %6869 = vmatpush1.bf16.msra.mxu0 %v1487
  %6870 = vmatprep.subr.bf16.mxu0 0
  %6871 = vmatpush1.bf16.msra.mxu0 %v1488
  %6872 = vmatprep.subr.bf16.mxu0 0
  %6873 = vmatpush1.bf16.msra.mxu0 %v1489
  %6874 = vmatprep.mubr.bf16.mxu0 %v6609
  %6875 = vmatmul.mubr.bf16.gmra.mrb[0].mxu0 %v6608
  %v6876 = vpop.f32.mrb[0].mxu0
  %v6877 = vadd.f32 %v6764, %v6876
  %v6878 = vpop.f32.mrb[0].mxu0
  %v6879 = vpop.f32.mrb[0].mxu0
  %v6880 = vadd.f32 %v6767, %v6879
  %v6881 = vpop.f32.mrb[0].mxu0
  %6882 = vmatprep.mubr.bf16.mxu0 %v6132
  %6883 = vmatmul.mubr.bf16.gmra.mrb[0].mxu0 %v6131
  %v6884 = vpop.f32.mrb[0].mxu0
  %v6885 = vadd.f32 %v6772, %v6884
  %v6886 = vpop.f32.mrb[0].mxu0
  %v6887 = vpop.f32.mrb[0].mxu0
  %v6888 = vadd.f32 %v6775, %v6887
  %v6889 = vpop.f32.mrb[0].mxu0
  %6890 = vmatprep.mubr.bf16.mxu0 %v6138
  %6891 = vmatmul.mubr.bf16.gmra.mrb[0].mxu0 %v6137
  %v6892 = vpop.f32.mrb[0].mxu0
  %v6893 = vadd.f32 %v6780, %v6892
  %v6894 = vpop.f32.mrb[0].mxu0
  %v6895 = vpop.f32.mrb[0].mxu0
  %v6896 = vadd.f32 %v6783, %v6895
  %v6897 = vpop.f32.mrb[0].mxu0
  %6898 = vmatprep.mubr.bf16.mxu0 %v6144
  %6899 = vmatmul.mubr.bf16.gmra.mrb[0].mxu0 %v6143
  %v6900 = vpop.f32.mrb[0].mxu0
  %v6901 = vadd.f32 %v6788, %v6900
  %v6902 = vpop.f32.mrb[0].mxu0
  %v6903 = vpop.f32.mrb[0].mxu0
  %v6904 = vadd.f32 %v6791, %v6903
  %v6905 = vpop.f32.mrb[0].mxu0
  %6906 = vmatprep.mubr.bf16.mxu0 %v6150
  %6907 = vmatmul.mubr.bf16.gmra.mrb[0].mxu0 %v6149
  %v6908 = vpop.f32.mrb[0].mxu0
  %v6909 = vadd.f32 %v6796, %v6908
  %v6910 = vpop.f32.mrb[0].mxu0
  %v6911 = vpop.f32.mrb[0].mxu0
  %v6912 = vadd.f32 %v6799, %v6911
  %v6913 = vpop.f32.mrb[0].mxu0
  %6914 = vmatprep.mubr.bf16.mxu0 %v6156
  %6915 = vmatmul.mubr.bf16.gmra.mrb[0].mxu0 %v6155
  %v6916 = vpop.f32.mrb[0].mxu0
  %v6917 = vadd.f32 %v6804, %v6916
  %v6918 = vpop.f32.mrb[0].mxu0
  %v6919 = vpop.f32.mrb[0].mxu0
  %v6920 = vadd.f32 %v6807, %v6919
  %v6921 = vpop.f32.mrb[0].mxu0
  %6922 = vmatprep.mubr.bf16.mxu0 %v6162
  %6923 = vmatmul.mubr.bf16.gmra.mrb[0].mxu0 %v6161
  %v6924 = vpop.f32.mrb[0].mxu0
  %v6925 = vadd.f32 %v6812, %v6924
  %v6926 = vpop.f32.mrb[0].mxu0
  %v6927 = vpop.f32.mrb[0].mxu0
  %v6928 = vadd.f32 %v6815, %v6927
  %v6929 = vpop.f32.mrb[0].mxu0
  %6930 = vmatprep.mubr.bf16.mxu0 %v6168
  %6931 = vmatmul.mubr.bf16.gmra.mrb[0].mxu0 %v6167
  %v6932 = vpop.f32.mrb[0].mxu0
  %v6933 = vadd.f32 %v6820, %v6932
  %v6934 = vpop.f32.mrb[0].mxu0
  %v6935 = vpop.f32.mrb[0].mxu0
  %v6936 = vadd.f32 %v6823, %v6935
  %v6937 = vpop.f32.mrb[0].mxu0
  %6938 = vmatprep.mubr.bf16.mxu0 %v6174
  %6939 = vmatmul.mubr.bf16.gmra.mrb[0].mxu0 %v6173
  %v6940 = vpop.f32.mrb[0].mxu0
  %v6941 = vadd.f32 %v6828, %v6940
  %v6942 = vpop.f32.mrb[0].mxu0
  %v6943 = vpop.f32.mrb[0].mxu0
  %v6944 = vadd.f32 %v6831, %v6943
  %v6945 = vpop.f32.mrb[0].mxu0
  %6946 = vmatprep.mubr.bf16.mxu0 %v6180
  %6947 = vmatmul.mubr.bf16.gmra.mrb[0].mxu0 %v6179
  %v6948 = vpop.f32.mrb[0].mxu0
  %v6949 = vadd.f32 %v6836, %v6948
  %v6950 = vpop.f32.mrb[0].mxu0
  %v6951 = vpop.f32.mrb[0].mxu0
  %v6952 = vadd.f32 %v6839, %v6951
  %v6953 = vpop.f32.mrb[0].mxu0
  %6954 = vdwg.mxu0
  %v6955 = vadd.f32 %v6877, %v1881
  %v6956 = vadd.f32 %v6880, %v1881
  %v6957 = vadd.f32 %v6885, %v1881
  %v6958 = vadd.f32 %v6888, %v1881
  %v6959 = vadd.f32 %v6893, %v1881
  %v6960 = vadd.f32 %v6896, %v1881
  %v6961 = vadd.f32 %v6901, %v1881
  %v6962 = vadd.f32 %v6904, %v1881
  %v6963 = vadd.f32 %v6909, %v1881
  %v6964 = vadd.f32 %v6912, %v1881
  %v6965 = vadd.f32 %v6917, %v1881
  %v6966 = vadd.f32 %v6920, %v1881
  %v6967 = vadd.f32 %v6925, %v1881
  %v6968 = vadd.f32 %v6928, %v1881
  %v6969 = vadd.f32 %v6933, %v1881
  %v6970 = vadd.f32 %v6936, %v1881
  %v6971 = vadd.f32 %v6941, %v1881
  %v6972 = vadd.f32 %v6944, %v1881
  %v6973 = vadd.f32 %v6949, %v1881
  %v6974 = vadd.f32 %v6952, %v1881
  %v6975 = vmax.f32 %v6955, 0.0
  %v6976 = vmax.f32 %v6956, 0.0
  %v6977 = vmax.f32 %v6957, 0.0
  %v6978 = vmax.f32 %v6958, 0.0
  %v6979 = vmax.f32 %v6959, 0.0
  %v6980 = vmax.f32 %v6960, 0.0
  %v6981 = vmax.f32 %v6961, 0.0
  %v6982 = vmax.f32 %v6962, 0.0
  %v6983 = vmax.f32 %v6963, 0.0
  %v6984 = vmax.f32 %v6964, 0.0
  %v6985 = vmax.f32 %v6965, 0.0
  %v6986 = vmax.f32 %v6966, 0.0
  %v6987 = vmax.f32 %v6967, 0.0
  %v6988 = vmax.f32 %v6968, 0.0
  %v6989 = vmax.f32 %v6969, 0.0
  %v6990 = vmax.f32 %v6970, 0.0
  %v6991 = vmax.f32 %v6971, 0.0
  %v6992 = vmax.f32 %v6972, 0.0
  %v6993 = vmax.f32 %v6973, 0.0
  %v6994 = vmax.f32 %v6974, 0.0
  %v6995 = vpack.c.bf16 %v6976, %v6975
  %v6996 = vpack.c.bf16 %v6978, %v6977
  %v6997 = vpack.c.bf16 %v6980, %v6979
  %v6998 = vpack.c.bf16 %v6982, %v6981
  %v6999 = vpack.c.bf16 %v6984, %v6983
  %v7000 = vpack.c.bf16 %v6986, %v6985
  %v7001 = vpack.c.bf16 %v6988, %v6987
  %v7002 = vpack.c.bf16 %v6990, %v6989
  %v7003 = vpack.c.bf16 %v6992, %v6991
  %v7004 = vpack.c.bf16 %v6994, %v6993
  %s7005 = scalar_lea.vmem %s3, 1152
  %v7006 = vld [vmem:[%s7005] sm:$0xff]
  %v7007 = vld [vmem:[%s7005 + $0x8] sm:$0xf]
  %v7008 = vld [vmem:[%s7005 + $0xc] sm:$0xff]
  %v7009 = vld [vmem:[%s7005 + $0x14] sm:$0xf]
  %v7010 = vld [vmem:[%s7005 + $0x18] sm:$0xff]
  %v7011 = vld [vmem:[%s7005 + $0x20] sm:$0xf]
  %v7012 = vld [vmem:[%s7005 + $0x24] sm:$0xff]
  %v7013 = vld [vmem:[%s7005 + $0x2c] sm:$0xf]
  %v7014 = vld [vmem:[%s7005 + $0x30] sm:$0xff]
  %v7015 = vld [vmem:[%s7005 + $0x38] sm:$0xf]
  %v7016 = vld [vmem:[%s7005 + $0x3c] sm:$0xff]
  %v7017 = vld [vmem:[%s7005 + $0x44] sm:$0xf]
  %v7018 = vld [vmem:[%s7005 + $0x48] sm:$0xff]
  %v7019 = vld [vmem:[%s7005 + $0x50] sm:$0xf]
  %v7020 = vld [vmem:[%s7005 + $0x54] sm:$0xff]
  %v7021 = vld [vmem:[%s7005 + $0x5c] sm:$0xf]
  %v7022 = vld [vmem:[%s7005 + $0x60] sm:$0xff]
  %v7023 = vld [vmem:[%s7005 + $0x68] sm:$0xf]
  %v7024 = vld [vmem:[%s7005 + $0x6c] sm:$0xff]
  %v7025 = vld [vmem:[%s7005 + $0x74] sm:$0xf]
  %v7026 = vld [vmem:[%s7005 + $0x78] sm:$0xff]
  %v7027 = vld [vmem:[%s7005 + $0x80] sm:$0xf]
  %v7028 = vld [vmem:[%s7005 + $0x84] sm:$0xff]
  %v7029 = vld [vmem:[%s7005 + $0x8c] sm:$0xf]
  %v7030 = vld [vmem:[%s7005 + $0x90] sm:$0xff]
  %v7031 = vld [vmem:[%s7005 + $0x98] sm:$0xf]
  %v7032 = vld [vmem:[%s7005 + $0x9c] sm:$0xff]
  %v7033 = vld [vmem:[%s7005 + $0xa4] sm:$0xf]
  %v7034 = vld [vmem:[%s7005 + $0xa8] sm:$0xff]
  %v7035 = vld [vmem:[%s7005 + $0xb0] sm:$0xf]
  %v7036 = vld [vmem:[%s7005 + $0xb4] sm:$0xff]
  %v7037 = vld [vmem:[%s7005 + $0xbc] sm:$0xf]
  %v7038 = vld [vmem:[%s7005 + $0xc0] sm:$0xff]
  %v7039 = vld [vmem:[%s7005 + $0xc8] sm:$0xf]
  %v7040 = vld [vmem:[%s7005 + $0xcc] sm:$0xff]
  %v7041 = vld [vmem:[%s7005 + $0xd4] sm:$0xf]
  %v7042 = vld [vmem:[%s7005 + $0xd8] sm:$0xff]
  %v7043 = vld [vmem:[%s7005 + $0xe0] sm:$0xf]
  %v7044 = vld [vmem:[%s7005 + $0xe4] sm:$0xff]
  %v7045 = vld [vmem:[%s7005 + $0xec] sm:$0xf]
  %v7046 = vld [vmem:[%s7005 + $0xf0] sm:$0xff]
  %v7047 = vld [vmem:[%s7005 + $0xf8] sm:$0xf]
  %v7048 = vld [vmem:[%s7005 + $0xfc] sm:$0xff]
  %v7049 = vld [vmem:[%s7005 + $0x104] sm:$0xf]
  %v7050 = vld [vmem:[%s7005 + $0x108] sm:$0xff]
  %v7051 = vld [vmem:[%s7005 + $0x110] sm:$0xf]
  %v7052 = vld [vmem:[%s7005 + $0x114] sm:$0xff]
  %v7053 = vld [vmem:[%s7005 + $0x11c] sm:$0xf]
  %v7054 = vld [vmem:[%s7005 + $0x120] sm:$0xff]
  %v7055 = vld [vmem:[%s7005 + $0x128] sm:$0xf]
  %v7056 = vld [vmem:[%s7005 + $0x12c] sm:$0xff]
  %v7057 = vld [vmem:[%s7005 + $0x134] sm:$0xf]
  %v7058 = vld [vmem:[%s7005 + $0x138] sm:$0xff]
  %v7059 = vld [vmem:[%s7005 + $0x140] sm:$0xf]
  %v7060 = vld [vmem:[%s7005 + $0x144] sm:$0xff]
  %v7061 = vld [vmem:[%s7005 + $0x14c] sm:$0xf]
  %v7062 = vld [vmem:[%s7005 + $0x150] sm:$0xff]
  %v7063 = vld [vmem:[%s7005 + $0x158] sm:$0xf]
  %v7064 = vld [vmem:[%s7005 + $0x15c] sm:$0xff]
  %v7065 = vld [vmem:[%s7005 + $0x164] sm:$0xf]
  %v7066 = vld [vmem:[%s7005 + $0x168] sm:$0xff]
  %v7067 = vld [vmem:[%s7005 + $0x170] sm:$0xf]
  %v7068 = vld [vmem:[%s7005 + $0x174] sm:$0xff]
  %v7069 = vld [vmem:[%s7005 + $0x17c] sm:$0xf]
  %v7134 = vunpack.c.l.b16 %v7006
  %v7135 = vunpack.c.h.b16 %v7006
  %v7136 = vunpack.c.l.b16 %v7007
  %v7137 = vunpack.c.l.b16 %v7008
  %v7138 = vunpack.c.h.b16 %v7008
  %v7139 = vunpack.c.l.b16 %v7009
  %v7140 = vunpack.c.l.b16 %v7010
  %v7141 = vunpack.c.h.b16 %v7010
  %v7142 = vunpack.c.l.b16 %v7011
  %v7143 = vunpack.c.l.b16 %v7012
  %v7144 = vunpack.c.h.b16 %v7012
  %v7145 = vunpack.c.l.b16 %v7013
  %v7146 = vunpack.c.l.b16 %v7014
  %v7147 = vunpack.c.h.b16 %v7014
  %v7148 = vunpack.c.l.b16 %v7015
  %v7149 = vunpack.c.l.b16 %v7016
  %v7150 = vunpack.c.h.b16 %v7016
  %v7151 = vunpack.c.l.b16 %v7017
  %v7152 = vunpack.c.l.b16 %v7018
  %v7153 = vunpack.c.h.b16 %v7018
  %v7154 = vunpack.c.l.b16 %v7019
  %v7155 = vunpack.c.l.b16 %v7020
  %v7156 = vunpack.c.h.b16 %v7020
  %v7157 = vunpack.c.l.b16 %v7021
  %v7158 = vunpack.c.l.b16 %v7022
  %v7159 = vunpack.c.h.b16 %v7022
  %v7160 = vunpack.c.l.b16 %v7023
  %v7161 = vunpack.c.l.b16 %v7024
  %v7162 = vunpack.c.h.b16 %v7024
  %v7163 = vunpack.c.l.b16 %v7025
  %v7164 = vunpack.c.l.b16 %v7026
  %v7165 = vunpack.c.h.b16 %v7026
  %v7166 = vunpack.c.l.b16 %v7027
  %v7167 = vunpack.c.l.b16 %v7028
  %v7168 = vunpack.c.h.b16 %v7028
  %v7169 = vunpack.c.l.b16 %v7029
  %v7170 = vunpack.c.l.b16 %v7030
  %v7171 = vunpack.c.h.b16 %v7030
  %v7172 = vunpack.c.l.b16 %v7031
  %v7173 = vunpack.c.l.b16 %v7032
  %v7174 = vunpack.c.h.b16 %v7032
  %v7175 = vunpack.c.l.b16 %v7033
  %v7176 = vunpack.c.l.b16 %v7034
  %v7177 = vunpack.c.h.b16 %v7034
  %v7178 = vunpack.c.l.b16 %v7035
  %v7179 = vunpack.c.l.b16 %v7036
  %v7180 = vunpack.c.h.b16 %v7036
  %v7181 = vunpack.c.l.b16 %v7037
  %v7182 = vunpack.c.l.b16 %v7038
  %v7183 = vunpack.c.h.b16 %v7038
  %v7184 = vunpack.c.l.b16 %v7039
  %v7185 = vunpack.c.l.b16 %v7040
  %v7186 = vunpack.c.h.b16 %v7040
  %v7187 = vunpack.c.l.b16 %v7041
  %v7188 = vunpack.c.l.b16 %v7042
  %v7189 = vunpack.c.h.b16 %v7042
  %v7190 = vunpack.c.l.b16 %v7043
  %v7191 = vunpack.c.l.b16 %v7044
  %v7192 = vunpack.c.h.b16 %v7044
  %v7193 = vunpack.c.l.b16 %v7045
  %v7194 = vunpack.c.l.b16 %v7046
  %v7195 = vunpack.c.h.b16 %v7046
  %v7196 = vunpack.c.l.b16 %v7047
  %v7197 = vunpack.c.l.b16 %v7048
  %v7198 = vunpack.c.h.b16 %v7048
  %v7199 = vunpack.c.l.b16 %v7049
  %v7200 = vunpack.c.l.b16 %v7050
  %v7201 = vunpack.c.h.b16 %v7050
  %v7202 = vunpack.c.l.b16 %v7051
  %v7203 = vunpack.c.l.b16 %v7052
  %v7204 = vunpack.c.h.b16 %v7052
  %v7205 = vunpack.c.l.b16 %v7053
  %v7206 = vunpack.c.l.b16 %v7054
  %v7207 = vunpack.c.h.b16 %v7054
  %v7208 = vunpack.c.l.b16 %v7055
  %v7209 = vunpack.c.l.b16 %v7056
  %v7210 = vunpack.c.h.b16 %v7056
  %v7211 = vunpack.c.l.b16 %v7057
  %v7212 = vunpack.c.l.b16 %v7058
  %v7213 = vunpack.c.h.b16 %v7058
  %v7214 = vunpack.c.l.b16 %v7059
  %v7215 = vunpack.c.l.b16 %v7060
  %v7216 = vunpack.c.h.b16 %v7060
  %v7217 = vunpack.c.l.b16 %v7061
  %v7218 = vunpack.c.l.b16 %v7062
  %v7219 = vunpack.c.h.b16 %v7062
  %v7220 = vunpack.c.l.b16 %v7063
  %v7221 = vunpack.c.l.b16 %v7064
  %v7222 = vunpack.c.h.b16 %v7064
  %v7223 = vunpack.c.l.b16 %v7065
  %v7224 = vunpack.c.l.b16 %v7066
  %v7225 = vunpack.c.h.b16 %v7066
  %v7226 = vunpack.c.l.b16 %v7067
  %v7227 = vunpack.c.l.b16 %v7068
  %v7228 = vunpack.c.h.b16 %v7068
  %v7229 = vunpack.c.l.b16 %v7069
  %v7230 = vpack.c.b16 %v7137, %v7134
  %v7231 = vpack.c.b16 %v7138, %v7135
  %v7232 = vpack.c.b16 %v7139, %v7136
  %v7233 = vpack.c.b16 %v7143, %v7140
  %v7234 = vpack.c.b16 %v7144, %v7141
  %v7235 = vpack.c.b16 %v7145, %v7142
  %v7236 = vpack.c.b16 %v7149, %v7146
  %v7237 = vpack.c.b16 %v7150, %v7147
  %v7238 = vpack.c.b16 %v7151, %v7148
  %v7239 = vpack.c.b16 %v7155, %v7152
  %v7240 = vpack.c.b16 %v7156, %v7153
  %v7241 = vpack.c.b16 %v7157, %v7154
  %v7242 = vpack.c.b16 %v7161, %v7158
  %v7243 = vpack.c.b16 %v7162, %v7159
  %v7244 = vpack.c.b16 %v7163, %v7160
  %v7245 = vpack.c.b16 %v7167, %v7164
  %v7246 = vpack.c.b16 %v7168, %v7165
  %v7247 = vpack.c.b16 %v7169, %v7166
  %v7248 = vpack.c.b16 %v7173, %v7170
  %v7249 = vpack.c.b16 %v7174, %v7171
  %v7250 = vpack.c.b16 %v7175, %v7172
  %v7251 = vpack.c.b16 %v7179, %v7176
  %v7252 = vpack.c.b16 %v7180, %v7177
  %v7253 = vpack.c.b16 %v7181, %v7178
  %v7254 = vpack.c.b16 %v7185, %v7182
  %v7255 = vpack.c.b16 %v7186, %v7183
  %v7256 = vpack.c.b16 %v7187, %v7184
  %v7257 = vpack.c.b16 %v7191, %v7188
  %v7258 = vpack.c.b16 %v7192, %v7189
  %v7259 = vpack.c.b16 %v7193, %v7190
  %v7260 = vpack.c.b16 %v7197, %v7194
  %v7261 = vpack.c.b16 %v7198, %v7195
  %v7262 = vpack.c.b16 %v7199, %v7196
  %v7263 = vpack.c.b16 %v7203, %v7200
  %v7264 = vpack.c.b16 %v7204, %v7201
  %v7265 = vpack.c.b16 %v7205, %v7202
  %v7266 = vpack.c.b16 %v7209, %v7206
  %v7267 = vpack.c.b16 %v7210, %v7207
  %v7268 = vpack.c.b16 %v7211, %v7208
  %v7269 = vpack.c.b16 %v7215, %v7212
  %v7270 = vpack.c.b16 %v7216, %v7213
  %v7271 = vpack.c.b16 %v7217, %v7214
  %v7272 = vpack.c.b16 %v7221, %v7218
  %v7273 = vpack.c.b16 %v7222, %v7219
  %v7274 = vpack.c.b16 %v7223, %v7220
  %v7275 = vpack.c.b16 %v7227, %v7224
  %v7276 = vpack.c.b16 %v7228, %v7225
  %v7277 = vpack.c.b16 %v7229, %v7226
  %7326 = vmatprep.subr.bf16.mxu0 %v7231
  %7327 = vmatpush1.bf16.msra.mxu0 %v7230
  %7328 = vmatprep.subr.bf16.mxu0 %v7234
  %7329 = vmatpush1.bf16.msra.mxu0 %v7233
  %7330 = vmatprep.subr.bf16.mxu0 %v7237
  %7331 = vmatpush1.bf16.msra.mxu0 %v7236
  %7332 = vmatprep.subr.bf16.mxu0 %v7240
  %7333 = vmatpush1.bf16.msra.mxu0 %v7239
  %7334 = vmatprep.subr.bf16.mxu0 %v7243
  %7335 = vmatpush1.bf16.msra.mxu0 %v7242
  %7336 = vmatprep.subr.bf16.mxu0 %v7246
  %7337 = vmatpush1.bf16.msra.mxu0 %v7245
  %7338 = vmatprep.subr.bf16.mxu0 %v7249
  %7339 = vmatpush1.bf16.msra.mxu0 %v7248
  %7340 = vmatprep.subr.bf16.mxu0 %v7252
  %7341 = vmatpush1.bf16.msra.mxu0 %v7251
  %7342 = vmatprep.subr.bf16.mxu0 %v7255
  %7343 = vmatpush1.bf16.msra.mxu0 %v7254
  %7344 = vmatprep.subr.bf16.mxu0 %v7258
  %7345 = vmatpush1.bf16.msra.mxu0 %v7257
  %7346 = vmatprep.subr.bf16.mxu0 %v7261
  %7347 = vmatpush1.bf16.msra.mxu0 %v7260
  %7348 = vmatprep.subr.bf16.mxu0 %v7264
  %7349 = vmatpush1.bf16.msra.mxu0 %v7263
  %7350 = vmatprep.subr.bf16.mxu0 %v7267
  %7351 = vmatpush1.bf16.msra.mxu0 %v7266
  %7352 = vmatprep.subr.bf16.mxu0 %v7270
  %7353 = vmatpush1.bf16.msra.mxu0 %v7269
  %7354 = vmatprep.subr.bf16.mxu0 %v7273
  %7355 = vmatpush1.bf16.msra.mxu0 %v7272
  %7356 = vmatprep.subr.bf16.mxu0 %v7276
  %7357 = vmatpush1.bf16.msra.mxu0 %v7275
  %7358 = vmatprep.mubr.bf16.mxu0 %v6996
  %7359 = vmatmul.mubr.bf16.gmra.mrb[0].mxu0 %v6995
  %v7360 = vpop.f32.mrb[0].mxu0
  %v7361 = vadd.f32 0.0, %v7360
  %v7362 = vpop.f32.mrb[0].mxu0
  %v7363 = vadd.f32 0.0, %v7362
  %v7364 = vpop.f32.mrb[0].mxu0
  %v7365 = vadd.f32 0.0, %v7364
  %v7366 = vpop.f32.mrb[0].mxu0
  %v7367 = vadd.f32 0.0, %v7366
  %7368 = vmatprep.mubr.bf16.mxu0 %v6997
  %7369 = vmatmul.mubr.bf16.gmra.mrb[0].mxu0 %v6996
  %v7370 = vpop.f32.mrb[0].mxu0
  %v7371 = vadd.f32 0.0, %v7370
  %v7372 = vpop.f32.mrb[0].mxu0
  %v7373 = vadd.f32 0.0, %v7372
  %v7374 = vpop.f32.mrb[0].mxu0
  %v7375 = vadd.f32 0.0, %v7374
  %v7376 = vpop.f32.mrb[0].mxu0
  %v7377 = vadd.f32 0.0, %v7376
  %7378 = vmatprep.mubr.bf16.mxu0 %v6998
  %7379 = vmatmul.mubr.bf16.gmra.mrb[0].mxu0 %v6997
  %v7380 = vpop.f32.mrb[0].mxu0
  %v7381 = vadd.f32 0.0, %v7380
  %v7382 = vpop.f32.mrb[0].mxu0
  %v7383 = vadd.f32 0.0, %v7382
  %v7384 = vpop.f32.mrb[0].mxu0
  %v7385 = vadd.f32 0.0, %v7384
  %v7386 = vpop.f32.mrb[0].mxu0
  %v7387 = vadd.f32 0.0, %v7386
  %7388 = vmatprep.mubr.bf16.mxu0 %v6999
  %7389 = vmatmul.mubr.bf16.gmra.mrb[0].mxu0 %v6998
  %v7390 = vpop.f32.mrb[0].mxu0
  %v7391 = vadd.f32 0.0, %v7390
  %v7392 = vpop.f32.mrb[0].mxu0
  %v7393 = vadd.f32 0.0, %v7392
  %v7394 = vpop.f32.mrb[0].mxu0
  %v7395 = vadd.f32 0.0, %v7394
  %v7396 = vpop.f32.mrb[0].mxu0
  %v7397 = vadd.f32 0.0, %v7396
  %7398 = vmatprep.mubr.bf16.mxu0 %v7000
  %7399 = vmatmul.mubr.bf16.gmra.mrb[0].mxu0 %v6999
  %v7400 = vpop.f32.mrb[0].mxu0
  %v7401 = vadd.f32 0.0, %v7400
  %v7402 = vpop.f32.mrb[0].mxu0
  %v7403 = vadd.f32 0.0, %v7402
  %v7404 = vpop.f32.mrb[0].mxu0
  %v7405 = vadd.f32 0.0, %v7404
  %v7406 = vpop.f32.mrb[0].mxu0
  %v7407 = vadd.f32 0.0, %v7406
  %7408 = vmatprep.mubr.bf16.mxu0 %v7001
  %7409 = vmatmul.mubr.bf16.gmra.mrb[0].mxu0 %v7000
  %v7410 = vpop.f32.mrb[0].mxu0
  %v7411 = vadd.f32 0.0, %v7410
  %v7412 = vpop.f32.mrb[0].mxu0
  %v7413 = vadd.f32 0.0, %v7412
  %v7414 = vpop.f32.mrb[0].mxu0
  %v7415 = vadd.f32 0.0, %v7414
  %v7416 = vpop.f32.mrb[0].mxu0
  %v7417 = vadd.f32 0.0, %v7416
  %7418 = vmatprep.mubr.bf16.mxu0 %v7002
  %7419 = vmatmul.mubr.bf16.gmra.mrb[0].mxu0 %v7001
  %v7420 = vpop.f32.mrb[0].mxu0
  %v7421 = vadd.f32 0.0, %v7420
  %v7422 = vpop.f32.mrb[0].mxu0
  %v7423 = vadd.f32 0.0, %v7422
  %v7424 = vpop.f32.mrb[0].mxu0
  %v7425 = vadd.f32 0.0, %v7424
  %v7426 = vpop.f32.mrb[0].mxu0
  %v7427 = vadd.f32 0.0, %v7426
  %7428 = vmatprep.mubr.bf16.mxu0 %v7003
  %7429 = vmatmul.mubr.bf16.gmra.mrb[0].mxu0 %v7002
  %v7430 = vpop.f32.mrb[0].mxu0
  %v7431 = vadd.f32 0.0, %v7430
  %v7432 = vpop.f32.mrb[0].mxu0
  %v7433 = vadd.f32 0.0, %v7432
  %v7434 = vpop.f32.mrb[0].mxu0
  %v7435 = vadd.f32 0.0, %v7434
  %v7436 = vpop.f32.mrb[0].mxu0
  %v7437 = vadd.f32 0.0, %v7436
  %7438 = vmatprep.mubr.bf16.mxu0 %v7004
  %7439 = vmatmul.mubr.bf16.gmra.mrb[0].mxu0 %v7003
  %v7440 = vpop.f32.mrb[0].mxu0
  %v7441 = vadd.f32 0.0, %v7440
  %v7442 = vpop.f32.mrb[0].mxu0
  %v7443 = vadd.f32 0.0, %v7442
  %v7444 = vpop.f32.mrb[0].mxu0
  %v7445 = vadd.f32 0.0, %v7444
  %v7446 = vpop.f32.mrb[0].mxu0
  %v7447 = vadd.f32 0.0, %v7446
  %7448 = vdwg.mxu0
  %7449 = vmatprep.subr.bf16.mxu0 0
  %7450 = vmatpush1.bf16.msra.mxu0 %v7232
  %7451 = vmatprep.subr.bf16.mxu0 0
  %7452 = vmatpush1.bf16.msra.mxu0 %v7235
  %7453 = vmatprep.subr.bf16.mxu0 0
  %7454 = vmatpush1.bf16.msra.mxu0 %v7238
  %7455 = vmatprep.subr.bf16.mxu0 0
  %7456 = vmatpush1.bf16.msra.mxu0 %v7241
  %7457 = vmatprep.subr.bf16.mxu0 0
  %7458 = vmatpush1.bf16.msra.mxu0 %v7244
  %7459 = vmatprep.subr.bf16.mxu0 0
  %7460 = vmatpush1.bf16.msra.mxu0 %v7247
  %7461 = vmatprep.subr.bf16.mxu0 0
  %7462 = vmatpush1.bf16.msra.mxu0 %v7250
  %7463 = vmatprep.subr.bf16.mxu0 0
  %7464 = vmatpush1.bf16.msra.mxu0 %v7253
  %7465 = vmatprep.subr.bf16.mxu0 0
  %7466 = vmatpush1.bf16.msra.mxu0 %v7256
  %7467 = vmatprep.subr.bf16.mxu0 0
  %7468 = vmatpush1.bf16.msra.mxu0 %v7259
  %7469 = vmatprep.subr.bf16.mxu0 0
  %7470 = vmatpush1.bf16.msra.mxu0 %v7262
  %7471 = vmatprep.subr.bf16.mxu0 0
  %7472 = vmatpush1.bf16.msra.mxu0 %v7265
  %7473 = vmatprep.subr.bf16.mxu0 0
  %7474 = vmatpush1.bf16.msra.mxu0 %v7268
  %7475 = vmatprep.subr.bf16.mxu0 0
  %7476 = vmatpush1.bf16.msra.mxu0 %v7271
  %7477 = vmatprep.subr.bf16.mxu0 0
  %7478 = vmatpush1.bf16.msra.mxu0 %v7274
  %7479 = vmatprep.subr.bf16.mxu0 0
  %7480 = vmatpush1.bf16.msra.mxu0 %v7277
  %7481 = vmatprep.mubr.bf16.mxu0 %v6996
  %7482 = vmatmul.mubr.bf16.gmra.mrb[0].mxu0 %v6995
  %v7483 = vpop.f32.mrb[0].mxu0
  %v7484 = vadd.f32 0.0, %v7483
  %v7485 = vpop.f32.mrb[0].mxu0
  %v7486 = vpop.f32.mrb[0].mxu0
  %v7487 = vadd.f32 0.0, %v7486
  %v7488 = vpop.f32.mrb[0].mxu0
  %7489 = vmatprep.mubr.bf16.mxu0 %v6997
  %7490 = vmatmul.mubr.bf16.gmra.mrb[0].mxu0 %v6996
  %v7491 = vpop.f32.mrb[0].mxu0
  %v7492 = vadd.f32 0.0, %v7491
  %v7493 = vpop.f32.mrb[0].mxu0
  %v7494 = vpop.f32.mrb[0].mxu0
  %v7495 = vadd.f32 0.0, %v7494
  %v7496 = vpop.f32.mrb[0].mxu0
  %7497 = vmatprep.mubr.bf16.mxu0 %v6998
  %7498 = vmatmul.mubr.bf16.gmra.mrb[0].mxu0 %v6997
  %v7499 = vpop.f32.mrb[0].mxu0
  %v7500 = vadd.f32 0.0, %v7499
  %v7501 = vpop.f32.mrb[0].mxu0
  %v7502 = vpop.f32.mrb[0].mxu0
  %v7503 = vadd.f32 0.0, %v7502
  %v7504 = vpop.f32.mrb[0].mxu0
  %7505 = vmatprep.mubr.bf16.mxu0 %v6999
  %7506 = vmatmul.mubr.bf16.gmra.mrb[0].mxu0 %v6998
  %v7507 = vpop.f32.mrb[0].mxu0
  %v7508 = vadd.f32 0.0, %v7507
  %v7509 = vpop.f32.mrb[0].mxu0
  %v7510 = vpop.f32.mrb[0].mxu0
  %v7511 = vadd.f32 0.0, %v7510
  %v7512 = vpop.f32.mrb[0].mxu0
  %7513 = vmatprep.mubr.bf16.mxu0 %v7000
  %7514 = vmatmul.mubr.bf16.gmra.mrb[0].mxu0 %v6999
  %v7515 = vpop.f32.mrb[0].mxu0
  %v7516 = vadd.f32 0.0, %v7515
  %v7517 = vpop.f32.mrb[0].mxu0
  %v7518 = vpop.f32.mrb[0].mxu0
  %v7519 = vadd.f32 0.0, %v7518
  %v7520 = vpop.f32.mrb[0].mxu0
  %7521 = vmatprep.mubr.bf16.mxu0 %v7001
  %7522 = vmatmul.mubr.bf16.gmra.mrb[0].mxu0 %v7000
  %v7523 = vpop.f32.mrb[0].mxu0
  %v7524 = vadd.f32 0.0, %v7523
  %v7525 = vpop.f32.mrb[0].mxu0
  %v7526 = vpop.f32.mrb[0].mxu0
  %v7527 = vadd.f32 0.0, %v7526
  %v7528 = vpop.f32.mrb[0].mxu0
  %7529 = vmatprep.mubr.bf16.mxu0 %v7002
  %7530 = vmatmul.mubr.bf16.gmra.mrb[0].mxu0 %v7001
  %v7531 = vpop.f32.mrb[0].mxu0
  %v7532 = vadd.f32 0.0, %v7531
  %v7533 = vpop.f32.mrb[0].mxu0
  %v7534 = vpop.f32.mrb[0].mxu0
  %v7535 = vadd.f32 0.0, %v7534
  %v7536 = vpop.f32.mrb[0].mxu0
  %7537 = vmatprep.mubr.bf16.mxu0 %v7003
  %7538 = vmatmul.mubr.bf16.gmra.mrb[0].mxu0 %v7002
  %v7539 = vpop.f32.mrb[0].mxu0
  %v7540 = vadd.f32 0.0, %v7539
  %v7541 = vpop.f32.mrb[0].mxu0
  %v7542 = vpop.f32.mrb[0].mxu0
  %v7543 = vadd.f32 0.0, %v7542
  %v7544 = vpop.f32.mrb[0].mxu0
  %7545 = vmatprep.mubr.bf16.mxu0 %v7004
  %7546 = vmatmul.mubr.bf16.gmra.mrb[0].mxu0 %v7003
  %v7547 = vpop.f32.mrb[0].mxu0
  %v7548 = vadd.f32 0.0, %v7547
  %v7549 = vpop.f32.mrb[0].mxu0
  %v7550 = vpop.f32.mrb[0].mxu0
  %v7551 = vadd.f32 0.0, %v7550
  %v7552 = vpop.f32.mrb[0].mxu0
  %7553 = vdwg.mxu0
  %v7554 = vadd.f32 %v5827, %v7361
  %v7555 = vadd.f32 %v5828, %v7363
  %v7556 = vadd.f32 %v5829, %v7484
  %v7557 = vadd.f32 %v5830, %v7365
  %v7558 = vadd.f32 %v5831, %v7367
  %v7559 = vadd.f32 %v5832, %v7487
  %v7560 = vadd.f32 %v5833, %v7371
  %v7561 = vadd.f32 %v5834, %v7373
  %v7562 = vadd.f32 %v5835, %v7492
  %v7563 = vadd.f32 %v5836, %v7375
  %v7564 = vadd.f32 %v5837, %v7377
  %v7565 = vadd.f32 %v5838, %v7495
  %v7566 = vadd.f32 %v5839, %v7381
  %v7567 = vadd.f32 %v5840, %v7383
  %v7568 = vadd.f32 %v5841, %v7500
  %v7569 = vadd.f32 %v5842, %v7385
  %v7570 = vadd.f32 %v5843, %v7387
  %v7571 = vadd.f32 %v5844, %v7503
  %v7572 = vadd.f32 %v5845, %v7391
  %v7573 = vadd.f32 %v5846, %v7393
  %v7574 = vadd.f32 %v5847, %v7508
  %v7575 = vadd.f32 %v5848, %v7395
  %v7576 = vadd.f32 %v5849, %v7397
  %v7577 = vadd.f32 %v5850, %v7511
  %v7578 = vadd.f32 %v5851, %v7401
  %v7579 = vadd.f32 %v5852, %v7403
  %v7580 = vadd.f32 %v5853, %v7516
  %v7581 = vadd.f32 %v5854, %v7405
  %v7582 = vadd.f32 %v5855, %v7407
  %v7583 = vadd.f32 %v5856, %v7519
  %v7584 = vadd.f32 %v5857, %v7411
  %v7585 = vadd.f32 %v5858, %v7413
  %v7586 = vadd.f32 %v5859, %v7524
  %v7587 = vadd.f32 %v5860, %v7415
  %v7588 = vadd.f32 %v5861, %v7417
  %v7589 = vadd.f32 %v5862, %v7527
  %v7590 = vadd.f32 %v5863, %v7421
  %v7591 = vadd.f32 %v5864, %v7423
  %v7592 = vadd.f32 %v5865, %v7532
  %v7593 = vadd.f32 %v5866, %v7425
  %v7594 = vadd.f32 %v5867, %v7427
  %v7595 = vadd.f32 %v5868, %v7535
  %v7596 = vadd.f32 %v5869, %v7431
  %v7597 = vadd.f32 %v5870, %v7433
  %v7598 = vadd.f32 %v5871, %v7540
  %v7599 = vadd.f32 %v5872, %v7435
  %v7600 = vadd.f32 %v5873, %v7437
  %v7601 = vadd.f32 %v5874, %v7543
  %v7602 = vadd.f32 %v5875, %v7441
  %v7603 = vadd.f32 %v5876, %v7443
  %v7604 = vadd.f32 %v5877, %v7548
  %v7605 = vadd.f32 %v5878, %v7445
  %v7606 = vadd.f32 %v5879, %v7447
  %v7607 = vadd.f32 %v5880, %v7551
  %v7608 = vld [vmem:[%s0 + $0x40] sm:$0xff]
  %v7609 = vld [vmem:[%s0 + $0x48] sm:$0xff]
  %v7610 = vld [vmem:[%s0 + $0x50] sm:$0xff]
  %v7611 = vld [vmem:[%s0 + $0x98] sm:$0xff]
  %v7612 = vld [vmem:[%s0 + $0xa0] sm:$0xff]
  %v7613 = vld [vmem:[%s0 + $0xa8] sm:$0xff]
  %v7614 = vld [vmem:[%s0 + $0xf0] sm:$0xff]
  %v7615 = vld [vmem:[%s0 + $0xf8] sm:$0xff]
  %v7616 = vld [vmem:[%s0 + $0x100] sm:$0xff]
  %v7617 = vld [vmem:[%s0 + $0x148] sm:$0xff]
  %v7618 = vld [vmem:[%s0 + $0x150] sm:$0xff]
  %v7619 = vld [vmem:[%s0 + $0x158] sm:$0xff]
  %v7620 = vld [vmem:[%s0 + $0x1a0] sm:$0xff]
  %v7621 = vld [vmem:[%s0 + $0x1a8] sm:$0xff]
  %v7622 = vld [vmem:[%s0 + $0x1b0] sm:$0xff]
  %v7623 = vld [vmem:[%s0 + $0x1f8] sm:$0xff]
  %v7624 = vld [vmem:[%s0 + $0x200] sm:$0xff]
  %v7625 = vld [vmem:[%s0 + $0x208] sm:$0xff]
  %v7626 = vld [vmem:[%s0 + $0x250] sm:$0xff]
  %v7627 = vld [vmem:[%s0 + $0x258] sm:$0xff]
  %v7628 = vld [vmem:[%s0 + $0x260] sm:$0xff]
  %v7629 = vld [vmem:[%s0 + $0x2a8] sm:$0xff]
  %v7630 = vld [vmem:[%s0 + $0x2b0] sm:$0xff]
  %v7631 = vld [vmem:[%s0 + $0x2b8] sm:$0xff]
  %v7632 = vld [vmem:[%s0 + $0x300] sm:$0xff]
  %v7633 = vld [vmem:[%s0 + $0x308] sm:$0xff]
  %v7634 = vld [vmem:[%s0 + $0x310] sm:$0xff]
  %v7635 = vld [vmem:[%s0 + $0x358] sm:$0xff]
  %v7636 = vld [vmem:[%s0 + $0x360] sm:$0xff]
  %v7637 = vld [vmem:[%s0 + $0x368] sm:$0xff]
  %v7638 = vld [vmem:[%s0 + $0x3b0] sm:$0xff]
  %v7639 = vld [vmem:[%s0 + $0x3b8] sm:$0xff]
  %v7640 = vld [vmem:[%s0 + $0x3c0] sm:$0xff]
  %v7641 = vld [vmem:[%s0 + $0x408] sm:$0xff]
  %v7642 = vld [vmem:[%s0 + $0x410] sm:$0xff]
  %v7643 = vld [vmem:[%s0 + $0x418] sm:$0xff]
  %v7644 = vld [vmem:[%s0 + $0x460] sm:$0xff]
  %v7645 = vld [vmem:[%s0 + $0x468] sm:$0xff]
  %v7646 = vld [vmem:[%s0 + $0x470] sm:$0xff]
  %v7647 = vld [vmem:[%s0 + $0x4b8] sm:$0xff]
  %v7648 = vld [vmem:[%s0 + $0x4c0] sm:$0xff]
  %v7649 = vld [vmem:[%s0 + $0x4c8] sm:$0xff]
  %v7650 = vld [vmem:[%s0 + $0x510] sm:$0xff]
  %v7651 = vld [vmem:[%s0 + $0x518] sm:$0xff]
  %v7652 = vld [vmem:[%s0 + $0x520] sm:$0xff]
  %v7653 = vld [vmem:[%s0 + $0x568] sm:$0xff]
  %v7654 = vld [vmem:[%s0 + $0x570] sm:$0xff]
  %v7655 = vld [vmem:[%s0 + $0x578] sm:$0xff]
  %v7656 = vld [vmem:[%s0 + $0x5c0] sm:$0xff]
  %v7657 = vld [vmem:[%s0 + $0x5c8] sm:$0xff]
  %v7658 = vld [vmem:[%s0 + $0x5d0] sm:$0xff]
  %v7659 = vld [vmem:[%s0 + $0x618] sm:$0xff]
  %v7660 = vld [vmem:[%s0 + $0x620] sm:$0xff]
  %v7661 = vld [vmem:[%s0 + $0x628] sm:$0xff]
  %v7662 = vld [vmem:[%s0 + $0x670] sm:$0xff]
  %v7663 = vld [vmem:[%s0 + $0x678] sm:$0xff]
  %v7664 = vld [vmem:[%s0 + $0x680] sm:$0xff]
  %v7665 = vld [vmem:[%s0 + $0x6c8] sm:$0xff]
  %v7666 = vld [vmem:[%s0 + $0x6d0] sm:$0xff]
  %v7667 = vld [vmem:[%s0 + $0x6d8] sm:$0xff]
  %v7668 = vld [vmem:[%s0 + $0xf0] sm:$0xff]
  %v7669 = vld [vmem:[%s0 + $0xf8] sm:$0xff]
  %v7670 = vld [vmem:[%s0 + $0x100] sm:$0xff]
  %v7671 = vld [vmem:[%s0 + $0x148] sm:$0xff]
  %v7672 = vld [vmem:[%s0 + $0x150] sm:$0xff]
  %v7673 = vld [vmem:[%s0 + $0x158] sm:$0xff]
  %v7674 = vld [vmem:[%s0 + $0x1a0] sm:$0xff]
  %v7675 = vld [vmem:[%s0 + $0x1a8] sm:$0xff]
  %v7676 = vld [vmem:[%s0 + $0x1b0] sm:$0xff]
  %v7677 = vld [vmem:[%s0 + $0x1f8] sm:$0xff]
  %v7678 = vld [vmem:[%s0 + $0x200] sm:$0xff]
  %v7679 = vld [vmem:[%s0 + $0x208] sm:$0xff]
  %v7680 = vld [vmem:[%s0 + $0x250] sm:$0xff]
  %v7681 = vld [vmem:[%s0 + $0x258] sm:$0xff]
  %v7682 = vld [vmem:[%s0 + $0x260] sm:$0xff]
  %v7683 = vld [vmem:[%s0 + $0x2a8] sm:$0xff]
  %v7684 = vld [vmem:[%s0 + $0x2b0] sm:$0xff]
  %v7685 = vld [vmem:[%s0 + $0x2b8] sm:$0xff]
  %v7686 = vld [vmem:[%s0 + $0x300] sm:$0xff]
  %v7687 = vld [vmem:[%s0 + $0x308] sm:$0xff]
  %v7688 = vld [vmem:[%s0 + $0x310] sm:$0xff]
  %v7689 = vld [vmem:[%s0 + $0x358] sm:$0xff]
  %v7690 = vld [vmem:[%s0 + $0x360] sm:$0xff]
  %v7691 = vld [vmem:[%s0 + $0x368] sm:$0xff]
  %v7692 = vld [vmem:[%s0 + $0x3b0] sm:$0xff]
  %v7693 = vld [vmem:[%s0 + $0x3b8] sm:$0xff]
  %v7694 = vld [vmem:[%s0 + $0x3c0] sm:$0xff]
  %v7695 = vld [vmem:[%s0 + $0x408] sm:$0xff]
  %v7696 = vld [vmem:[%s0 + $0x410] sm:$0xff]
  %v7697 = vld [vmem:[%s0 + $0x418] sm:$0xff]
  %v7698 = vld [vmem:[%s0 + $0x460] sm:$0xff]
  %v7699 = vld [vmem:[%s0 + $0x468] sm:$0xff]
  %v7700 = vld [vmem:[%s0 + $0x470] sm:$0xff]
  %v7701 = vld [vmem:[%s0 + $0x4b8] sm:$0xff]
  %v7702 = vld [vmem:[%s0 + $0x4c0] sm:$0xff]
  %v7703 = vld [vmem:[%s0 + $0x4c8] sm:$0xff]
  %v7704 = vld [vmem:[%s0 + $0x510] sm:$0xff]
  %v7705 = vld [vmem:[%s0 + $0x518] sm:$0xff]
  %v7706 = vld [vmem:[%s0 + $0x520] sm:$0xff]
  %v7707 = vld [vmem:[%s0 + $0x568] sm:$0xff]
  %v7708 = vld [vmem:[%s0 + $0x570] sm:$0xff]
  %v7709 = vld [vmem:[%s0 + $0x578] sm:$0xff]
  %v7710 = vld [vmem:[%s0 + $0x5c0] sm:$0xff]
  %v7711 = vld [vmem:[%s0 + $0x5c8] sm:$0xff]
  %v7712 = vld [vmem:[%s0 + $0x5d0] sm:$0xff]
  %v7713 = vld [vmem:[%s0 + $0x618] sm:$0xff]
  %v7714 = vld [vmem:[%s0 + $0x620] sm:$0xff]
  %v7715 = vld [vmem:[%s0 + $0x628] sm:$0xff]
  %v7716 = vld [vmem:[%s0 + $0x670] sm:$0xff]
  %v7717 = vld [vmem:[%s0 + $0x678] sm:$0xff]
  %v7718 = vld [vmem:[%s0 + $0x680] sm:$0xff]
  %v7719 = vld [vmem:[%s0 + $0x6c8] sm:$0xff]
  %v7720 = vld [vmem:[%s0 + $0x6d0] sm:$0xff]
  %v7721 = vld [vmem:[%s0 + $0x6d8] sm:$0xff]
  %v7722 = vld [vmem:[%s0 + $0x720] sm:$0xff]
  %v7723 = vld [vmem:[%s0 + $0x728] sm:$0xff]
  %v7724 = vld [vmem:[%s0 + $0x730] sm:$0xff]
  %v7725 = vld [vmem:[%s0 + $0x778] sm:$0xff]
  %v7726 = vld [vmem:[%s0 + $0x780] sm:$0xff]
  %v7727 = vld [vmem:[%s0 + $0x788] sm:$0xff]
  %v7788 = vunpack.c.l.b16 %v7668
  %v7789 = vunpack.c.h.b16 %v7668
  %v7790 = vunpack.c.l.b16 %v7669
  %v7791 = vunpack.c.h.b16 %v7669
  %v7792 = vunpack.c.l.b16 %v7670
  %v7793 = vunpack.c.h.b16 %v7670
  %v7794 = vunpack.c.l.b16 %v7671
  %v7795 = vunpack.c.h.b16 %v7671
  %v7796 = vunpack.c.l.b16 %v7672
  %v7797 = vunpack.c.h.b16 %v7672
  %v7798 = vunpack.c.l.b16 %v7673
  %v7799 = vunpack.c.h.b16 %v7673
  %v7800 = vunpack.c.l.b16 %v7674
  %v7801 = vunpack.c.h.b16 %v7674
  %v7802 = vunpack.c.l.b16 %v7675
  %v7803 = vunpack.c.h.b16 %v7675
  %v7804 = vunpack.c.l.b16 %v7676
  %v7805 = vunpack.c.h.b16 %v7676
  %v7806 = vunpack.c.l.b16 %v7677
  %v7807 = vunpack.c.h.b16 %v7677
  %v7808 = vunpack.c.l.b16 %v7678
  %v7809 = vunpack.c.h.b16 %v7678
  %v7810 = vunpack.c.l.b16 %v7679
  %v7811 = vunpack.c.h.b16 %v7679
  %v7812 = vunpack.c.l.b16 %v7680
  %v7813 = vunpack.c.h.b16 %v7680
  %v7814 = vunpack.c.l.b16 %v7681
  %v7815 = vunpack.c.h.b16 %v7681
  %v7816 = vunpack.c.l.b16 %v7682
  %v7817 = vunpack.c.h.b16 %v7682
  %v7818 = vunpack.c.l.b16 %v7683
  %v7819 = vunpack.c.h.b16 %v7683
  %v7820 = vunpack.c.l.b16 %v7684
  %v7821 = vunpack.c.h.b16 %v7684
  %v7822 = vunpack.c.l.b16 %v7685
  %v7823 = vunpack.c.h.b16 %v7685
  %v7824 = vunpack.c.l.b16 %v7686
  %v7825 = vunpack.c.h.b16 %v7686
  %v7826 = vunpack.c.l.b16 %v7687
  %v7827 = vunpack.c.h.b16 %v7687
  %v7828 = vunpack.c.l.b16 %v7688
  %v7829 = vunpack.c.h.b16 %v7688
  %v7830 = vunpack.c.l.b16 %v7689
  %v7831 = vunpack.c.h.b16 %v7689
  %v7832 = vunpack.c.l.b16 %v7690
  %v7833 = vunpack.c.h.b16 %v7690
  %v7834 = vunpack.c.l.b16 %v7691
  %v7835 = vunpack.c.h.b16 %v7691
  %v7836 = vunpack.c.l.b16 %v7692
  %v7837 = vunpack.c.h.b16 %v7692
  %v7838 = vunpack.c.l.b16 %v7693
  %v7839 = vunpack.c.h.b16 %v7693
  %v7840 = vunpack.c.l.b16 %v7694
  %v7841 = vunpack.c.h.b16 %v7694
  %v7842 = vunpack.c.l.b16 %v7695
  %v7843 = vunpack.c.h.b16 %v7695
  %v7844 = vunpack.c.l.b16 %v7696
  %v7845 = vunpack.c.h.b16 %v7696
  %v7846 = vunpack.c.l.b16 %v7697
  %v7847 = vunpack.c.h.b16 %v7697
  %v7848 = vunpack.c.l.b16 %v7698
  %v7849 = vunpack.c.h.b16 %v7698
  %v7850 = vunpack.c.l.b16 %v7699
  %v7851 = vunpack.c.h.b16 %v7699
  %v7852 = vunpack.c.l.b16 %v7700
  %v7853 = vunpack.c.h.b16 %v7700
  %v7854 = vunpack.c.l.b16 %v7701
  %v7855 = vunpack.c.h.b16 %v7701
  %v7856 = vunpack.c.l.b16 %v7702
  %v7857 = vunpack.c.h.b16 %v7702
  %v7858 = vunpack.c.l.b16 %v7703
  %v7859 = vunpack.c.h.b16 %v7703
  %v7860 = vunpack.c.l.b16 %v7704
  %v7861 = vunpack.c.h.b16 %v7704
  %v7862 = vunpack.c.l.b16 %v7705
  %v7863 = vunpack.c.h.b16 %v7705
  %v7864 = vunpack.c.l.b16 %v7706
  %v7865 = vunpack.c.h.b16 %v7706
  %v7866 = vunpack.c.l.b16 %v7707
  %v7867 = vunpack.c.h.b16 %v7707
  %v7868 = vunpack.c.l.b16 %v7708
  %v7869 = vunpack.c.h.b16 %v7708
  %v7870 = vunpack.c.l.b16 %v7709
  %v7871 = vunpack.c.h.b16 %v7709
  %v7872 = vunpack.c.l.b16 %v7710
  %v7873 = vunpack.c.h.b16 %v7710
  %v7874 = vunpack.c.l.b16 %v7711
  %v7875 = vunpack.c.h.b16 %v7711
  %v7876 = vunpack.c.l.b16 %v7712
  %v7877 = vunpack.c.h.b16 %v7712
  %v7878 = vunpack.c.l.b16 %v7713
  %v7879 = vunpack.c.h.b16 %v7713
  %v7880 = vunpack.c.l.b16 %v7714
  %v7881 = vunpack.c.h.b16 %v7714
  %v7882 = vunpack.c.l.b16 %v7715
  %v7883 = vunpack.c.h.b16 %v7715
  %v7884 = vunpack.c.l.b16 %v7716
  %v7885 = vunpack.c.h.b16 %v7716
  %v7886 = vunpack.c.l.b16 %v7717
  %v7887 = vunpack.c.h.b16 %v7717
  %v7888 = vunpack.c.l.b16 %v7718
  %v7889 = vunpack.c.h.b16 %v7718
  %v7890 = vunpack.c.l.b16 %v7719
  %v7891 = vunpack.c.h.b16 %v7719
  %v7892 = vunpack.c.l.b16 %v7720
  %v7893 = vunpack.c.h.b16 %v7720
  %v7894 = vunpack.c.l.b16 %v7721
  %v7895 = vunpack.c.h.b16 %v7721
  %v7896 = vunpack.c.l.b16 %v7722
  %v7897 = vunpack.c.h.b16 %v7722
  %v7898 = vunpack.c.l.b16 %v7723
  %v7899 = vunpack.c.h.b16 %v7723
  %v7900 = vunpack.c.l.b16 %v7724
  %v7901 = vunpack.c.h.b16 %v7724
  %v7902 = vunpack.c.l.b16 %v7725
  %v7903 = vunpack.c.h.b16 %v7725
  %v7904 = vunpack.c.l.b16 %v7726
  %v7905 = vunpack.c.h.b16 %v7726
  %v7906 = vunpack.c.l.b16 %v7727
  %v7907 = vunpack.c.h.b16 %v7727
  %v7908 = vpack.c.b16 %v7794, %v7788
  %v7909 = vpack.c.b16 %v7795, %v7789
  %v7910 = vpack.c.b16 %v7796, %v7790
  %v7911 = vpack.c.b16 %v7797, %v7791
  %v7912 = vpack.c.b16 %v7798, %v7792
  %v7913 = vpack.c.b16 %v7799, %v7793
  %v7914 = vpack.c.b16 %v7806, %v7800
  %v7915 = vpack.c.b16 %v7807, %v7801
  %v7916 = vpack.c.b16 %v7808, %v7802
  %v7917 = vpack.c.b16 %v7809, %v7803
  %v7918 = vpack.c.b16 %v7810, %v7804
  %v7919 = vpack.c.b16 %v7811, %v7805
  %v7920 = vpack.c.b16 %v7818, %v7812
  %v7921 = vpack.c.b16 %v7819, %v7813
  %v7922 = vpack.c.b16 %v7820, %v7814
  %v7923 = vpack.c.b16 %v7821, %v7815
  %v7924 = vpack.c.b16 %v7822, %v7816
  %v7925 = vpack.c.b16 %v7823, %v7817
  %v7926 = vpack.c.b16 %v7830, %v7824
  %v7927 = vpack.c.b16 %v7831, %v7825
  %v7928 = vpack.c.b16 %v7832, %v7826
  %v7929 = vpack.c.b16 %v7833, %v7827
  %v7930 = vpack.c.b16 %v7834, %v7828
  %v7931 = vpack.c.b16 %v7835, %v7829
  %v7932 = vpack.c.b16 %v7842, %v7836
  %v7933 = vpack.c.b16 %v7843, %v7837
  %v7934 = vpack.c.b16 %v7844, %v7838
  %v7935 = vpack.c.b16 %v7845, %v7839
  %v7936 = vpack.c.b16 %v7846, %v7840
  %v7937 = vpack.c.b16 %v7847, %v7841
  %v7938 = vpack.c.b16 %v7854, %v7848
  %v7939 = vpack.c.b16 %v7855, %v7849
  %v7940 = vpack.c.b16 %v7856, %v7850
  %v7941 = vpack.c.b16 %v7857, %v7851
  %v7942 = vpack.c.b16 %v7858, %v7852
  %v7943 = vpack.c.b16 %v7859, %v7853
  %v7944 = vpack.c.b16 %v7866, %v7860
  %v7945 = vpack.c.b16 %v7867, %v7861
  %v7946 = vpack.c.b16 %v7868, %v7862
  %v7947 = vpack.c.b16 %v7869, %v7863
  %v7948 = vpack.c.b16 %v7870, %v7864
  %v7949 = vpack.c.b16 %v7871, %v7865
  %v7950 = vpack.c.b16 %v7878, %v7872
  %v7951 = vpack.c.b16 %v7879, %v7873
  %v7952 = vpack.c.b16 %v7880, %v7874
  %v7953 = vpack.c.b16 %v7881, %v7875
  %v7954 = vpack.c.b16 %v7882, %v7876
  %v7955 = vpack.c.b16 %v7883, %v7877
  %v7956 = vpack.c.b16 %v7890, %v7884
  %v7957 = vpack.c.b16 %v7891, %v7885
  %v7958 = vpack.c.b16 %v7892, %v7886
  %v7959 = vpack.c.b16 %v7893, %v7887
  %v7960 = vpack.c.b16 %v7894, %v7888
  %v7961 = vpack.c.b16 %v7895, %v7889
  %v7962 = vpack.c.b16 %v7902, %v7896
  %v7963 = vpack.c.b16 %v7903, %v7897
  %v7964 = vpack.c.b16 %v7904, %v7898
  %v7965 = vpack.c.b16 %v7905, %v7899
  %v7966 = vpack.c.b16 %v7906, %v7900
  %v7967 = vpack.c.b16 %v7907, %v7901
  %8028 = vmatprep.subr.bf16.mxu0 0
  %8029 = vmatpush1.bf16.msra.mxu0 %v785
  %8030 = vmatprep.subr.bf16.mxu0 0
  %8031 = vmatpush1.bf16.msra.mxu0 %v786
  %8032 = vmatprep.subr.bf16.mxu0 0
  %8033 = vmatpush1.bf16.msra.mxu0 %v787
  %8034 = vmatprep.subr.bf16.mxu0 0
  %8035 = vmatpush1.bf16.msra.mxu0 %v788
  %8036 = vmatprep.subr.bf16.mxu0 0
  %8037 = vmatpush1.bf16.msra.mxu0 %v789
  %8038 = vmatprep.subr.bf16.mxu0 0
  %8039 = vmatpush1.bf16.msra.mxu0 %v790
  %8040 = vmatprep.subr.bf16.mxu0 0
  %8041 = vmatpush1.bf16.msra.mxu0 %v791
  %8042 = vmatprep.subr.bf16.mxu0 0
  %8043 = vmatpush1.bf16.msra.mxu0 %v792
  %8044 = vmatprep.subr.bf16.mxu0 0
  %8045 = vmatpush1.bf16.msra.mxu0 %v793
  %8046 = vmatprep.subr.bf16.mxu0 0
  %8047 = vmatpush1.bf16.msra.mxu0 %v794
  %8048 = vmatprep.subr.bf16.mxu0 0
  %8049 = vmatpush1.bf16.msra.mxu0 %v795
  %8050 = vmatprep.subr.bf16.mxu0 0
  %8051 = vmatpush1.bf16.msra.mxu0 %v796
  %8052 = vmatprep.subr.bf16.mxu0 0
  %8053 = vmatpush1.bf16.msra.mxu0 %v797
  %8054 = vmatprep.subr.bf16.mxu0 0
  %8055 = vmatpush1.bf16.msra.mxu0 %v798
  %8056 = vmatprep.subr.bf16.mxu0 0
  %8057 = vmatpush1.bf16.msra.mxu0 %v799
  %8058 = vmatprep.subr.bf16.mxu0 0
  %8059 = vmatpush1.bf16.msra.mxu0 %v800
  %8060 = vmatprep.mubr.bf16.mxu0 %v7909
  %8061 = vmatmul.mubr.bf16.gmra.mrb[0].mxu0 %v7908
  %v8062 = vpop.f32.mrb[0].mxu0
  %v8063 = vadd.f32 0.0, %v8062
  %v8064 = vpop.f32.mrb[0].mxu0
  %v8065 = vpop.f32.mrb[0].mxu0
  %v8066 = vadd.f32 0.0, %v8065
  %v8067 = vpop.f32.mrb[0].mxu0
  %8068 = vmatprep.mubr.bf16.mxu0 %v7915
  %8069 = vmatmul.mubr.bf16.gmra.mrb[0].mxu0 %v7914
  %v8070 = vpop.f32.mrb[0].mxu0
  %v8071 = vadd.f32 0.0, %v8070
  %v8072 = vpop.f32.mrb[0].mxu0
  %v8073 = vpop.f32.mrb[0].mxu0
  %v8074 = vadd.f32 0.0, %v8073
  %v8075 = vpop.f32.mrb[0].mxu0
  %8076 = vmatprep.mubr.bf16.mxu0 %v7921
  %8077 = vmatmul.mubr.bf16.gmra.mrb[0].mxu0 %v7920
  %v8078 = vpop.f32.mrb[0].mxu0
  %v8079 = vadd.f32 0.0, %v8078
  %v8080 = vpop.f32.mrb[0].mxu0
  %v8081 = vpop.f32.mrb[0].mxu0
  %v8082 = vadd.f32 0.0, %v8081
  %v8083 = vpop.f32.mrb[0].mxu0
  %8084 = vmatprep.mubr.bf16.mxu0 %v7927
  %8085 = vmatmul.mubr.bf16.gmra.mrb[0].mxu0 %v7926
  %v8086 = vpop.f32.mrb[0].mxu0
  %v8087 = vadd.f32 0.0, %v8086
  %v8088 = vpop.f32.mrb[0].mxu0
  %v8089 = vpop.f32.mrb[0].mxu0
  %v8090 = vadd.f32 0.0, %v8089
  %v8091 = vpop.f32.mrb[0].mxu0
  %8092 = vmatprep.mubr.bf16.mxu0 %v7933
  %8093 = vmatmul.mubr.bf16.gmra.mrb[0].mxu0 %v7932
  %v8094 = vpop.f32.mrb[0].mxu0
  %v8095 = vadd.f32 0.0, %v8094
  %v8096 = vpop.f32.mrb[0].mxu0
  %v8097 = vpop.f32.mrb[0].mxu0
  %v8098 = vadd.f32 0.0, %v8097
  %v8099 = vpop.f32.mrb[0].mxu0
  %8100 = vmatprep.mubr.bf16.mxu0 %v7939
  %8101 = vmatmul.mubr.bf16.gmra.mrb[0].mxu0 %v7938
  %v8102 = vpop.f32.mrb[0].mxu0
  %v8103 = vadd.f32 0.0, %v8102
  %v8104 = vpop.f32.mrb[0].mxu0
  %v8105 = vpop.f32.mrb[0].mxu0
  %v8106 = vadd.f32 0.0, %v8105
  %v8107 = vpop.f32.mrb[0].mxu0
  %8108 = vmatprep.mubr.bf16.mxu0 %v7945
  %8109 = vmatmul.mubr.bf16.gmra.mrb[0].mxu0 %v7944
  %v8110 = vpop.f32.mrb[0].mxu0
  %v8111 = vadd.f32 0.0, %v8110
  %v8112 = vpop.f32.mrb[0].mxu0
  %v8113 = vpop.f32.mrb[0].mxu0
  %v8114 = vadd.f32 0.0, %v8113
  %v8115 = vpop.f32.mrb[0].mxu0
  %8116 = vmatprep.mubr.bf16.mxu0 %v7951
  %8117 = vmatmul.mubr.bf16.gmra.mrb[0].mxu0 %v7950
  %v8118 = vpop.f32.mrb[0].mxu0
  %v8119 = vadd.f32 0.0, %v8118
  %v8120 = vpop.f32.mrb[0].mxu0
  %v8121 = vpop.f32.mrb[0].mxu0
  %v8122 = vadd.f32 0.0, %v8121
  %v8123 = vpop.f32.mrb[0].mxu0
  %8124 = vmatprep.mubr.bf16.mxu0 %v7957
  %8125 = vmatmul.mubr.bf16.gmra.mrb[0].mxu0 %v7956
  %v8126 = vpop.f32.mrb[0].mxu0
  %v8127 = vadd.f32 0.0, %v8126
  %v8128 = vpop.f32.mrb[0].mxu0
  %v8129 = vpop.f32.mrb[0].mxu0
  %v8130 = vadd.f32 0.0, %v8129
  %v8131 = vpop.f32.mrb[0].mxu0
  %8132 = vmatprep.mubr.bf16.mxu0 %v7963
  %8133 = vmatmul.mubr.bf16.gmra.mrb[0].mxu0 %v7962
  %v8134 = vpop.f32.mrb[0].mxu0
  %v8135 = vadd.f32 0.0, %v8134
  %v8136 = vpop.f32.mrb[0].mxu0
  %v8137 = vpop.f32.mrb[0].mxu0
  %v8138 = vadd.f32 0.0, %v8137
  %v8139 = vpop.f32.mrb[0].mxu0
  %8140 = vdwg.mxu0
  %8141 = vmatprep.subr.bf16.mxu0 0
  %8142 = vmatpush1.bf16.msra.mxu0 %v801
  %8143 = vmatprep.subr.bf16.mxu0 0
  %8144 = vmatpush1.bf16.msra.mxu0 %v802
  %8145 = vmatprep.subr.bf16.mxu0 0
  %8146 = vmatpush1.bf16.msra.mxu0 %v803
  %8147 = vmatprep.subr.bf16.mxu0 0
  %8148 = vmatpush1.bf16.msra.mxu0 %v804
  %8149 = vmatprep.subr.bf16.mxu0 0
  %8150 = vmatpush1.bf16.msra.mxu0 %v805
  %8151 = vmatprep.subr.bf16.mxu0 0
  %8152 = vmatpush1.bf16.msra.mxu0 %v806
  %8153 = vmatprep.subr.bf16.mxu0 0
  %8154 = vmatpush1.bf16.msra.mxu0 %v807
  %8155 = vmatprep.subr.bf16.mxu0 0
  %8156 = vmatpush1.bf16.msra.mxu0 %v808
  %8157 = vmatprep.subr.bf16.mxu0 0
  %8158 = vmatpush1.bf16.msra.mxu0 %v809
  %8159 = vmatprep.subr.bf16.mxu0 0
  %8160 = vmatpush1.bf16.msra.mxu0 %v810
  %8161 = vmatprep.subr.bf16.mxu0 0
  %8162 = vmatpush1.bf16.msra.mxu0 %v811
  %8163 = vmatprep.subr.bf16.mxu0 0
  %8164 = vmatpush1.bf16.msra.mxu0 %v812
  %8165 = vmatprep.subr.bf16.mxu0 0
  %8166 = vmatpush1.bf16.msra.mxu0 %v813
  %8167 = vmatprep.subr.bf16.mxu0 0
  %8168 = vmatpush1.bf16.msra.mxu0 %v814
  %8169 = vmatprep.subr.bf16.mxu0 0
  %8170 = vmatpush1.bf16.msra.mxu0 %v815
  %8171 = vmatprep.subr.bf16.mxu0 0
  %8172 = vmatpush1.bf16.msra.mxu0 %v816
  %8173 = vmatprep.mubr.bf16.mxu0 %v7911
  %8174 = vmatmul.mubr.bf16.gmra.mrb[0].mxu0 %v7910
  %v8175 = vpop.f32.mrb[0].mxu0
  %v8176 = vadd.f32 %v8063, %v8175
  %v8177 = vpop.f32.mrb[0].mxu0
  %v8178 = vpop.f32.mrb[0].mxu0
  %v8179 = vadd.f32 %v8066, %v8178
  %v8180 = vpop.f32.mrb[0].mxu0
  %8181 = vmatprep.mubr.bf16.mxu0 %v7917
  %8182 = vmatmul.mubr.bf16.gmra.mrb[0].mxu0 %v7916
  %v8183 = vpop.f32.mrb[0].mxu0
  %v8184 = vadd.f32 %v8071, %v8183
  %v8185 = vpop.f32.mrb[0].mxu0
  %v8186 = vpop.f32.mrb[0].mxu0
  %v8187 = vadd.f32 %v8074, %v8186
  %v8188 = vpop.f32.mrb[0].mxu0
  %8189 = vmatprep.mubr.bf16.mxu0 %v7923
  %8190 = vmatmul.mubr.bf16.gmra.mrb[0].mxu0 %v7922
  %v8191 = vpop.f32.mrb[0].mxu0
  %v8192 = vadd.f32 %v8079, %v8191
  %v8193 = vpop.f32.mrb[0].mxu0
  %v8194 = vpop.f32.mrb[0].mxu0
  %v8195 = vadd.f32 %v8082, %v8194
  %v8196 = vpop.f32.mrb[0].mxu0
  %8197 = vmatprep.mubr.bf16.mxu0 %v7929
  %8198 = vmatmul.mubr.bf16.gmra.mrb[0].mxu0 %v7928
  %v8199 = vpop.f32.mrb[0].mxu0
  %v8200 = vadd.f32 %v8087, %v8199
  %v8201 = vpop.f32.mrb[0].mxu0
  %v8202 = vpop.f32.mrb[0].mxu0
  %v8203 = vadd.f32 %v8090, %v8202
  %v8204 = vpop.f32.mrb[0].mxu0
  %8205 = vmatprep.mubr.bf16.mxu0 %v7935
  %8206 = vmatmul.mubr.bf16.gmra.mrb[0].mxu0 %v7934
  %v8207 = vpop.f32.mrb[0].mxu0
  %v8208 = vadd.f32 %v8095, %v8207
  %v8209 = vpop.f32.mrb[0].mxu0
  %v8210 = vpop.f32.mrb[0].mxu0
  %v8211 = vadd.f32 %v8098, %v8210
  %v8212 = vpop.f32.mrb[0].mxu0
  %8213 = vmatprep.mubr.bf16.mxu0 %v7941
  %8214 = vmatmul.mubr.bf16.gmra.mrb[0].mxu0 %v7940
  %v8215 = vpop.f32.mrb[0].mxu0
  %v8216 = vadd.f32 %v8103, %v8215
  %v8217 = vpop.f32.mrb[0].mxu0
  %v8218 = vpop.f32.mrb[0].mxu0
  %v8219 = vadd.f32 %v8106, %v8218
  %v8220 = vpop.f32.mrb[0].mxu0
  %8221 = vmatprep.mubr.bf16.mxu0 %v7947
  %8222 = vmatmul.mubr.bf16.gmra.mrb[0].mxu0 %v7946
  %v8223 = vpop.f32.mrb[0].mxu0
  %v8224 = vadd.f32 %v8111, %v8223
  %v8225 = vpop.f32.mrb[0].mxu0
  %v8226 = vpop.f32.mrb[0].mxu0
  %v8227 = vadd.f32 %v8114, %v8226
  %v8228 = vpop.f32.mrb[0].mxu0
  %8229 = vmatprep.mubr.bf16.mxu0 %v7953
  %8230 = vmatmul.mubr.bf16.gmra.mrb[0].mxu0 %v7952
  %v8231 = vpop.f32.mrb[0].mxu0
  %v8232 = vadd.f32 %v8119, %v8231
  %v8233 = vpop.f32.mrb[0].mxu0
  %v8234 = vpop.f32.mrb[0].mxu0
  %v8235 = vadd.f32 %v8122, %v8234
  %v8236 = vpop.f32.mrb[0].mxu0
  %8237 = vmatprep.mubr.bf16.mxu0 %v7959
  %8238 = vmatmul.mubr.bf16.gmra.mrb[0].mxu0 %v7958
  %v8239 = vpop.f32.mrb[0].mxu0
  %v8240 = vadd.f32 %v8127, %v8239
  %v8241 = vpop.f32.mrb[0].mxu0
  %v8242 = vpop.f32.mrb[0].mxu0
  %v8243 = vadd.f32 %v8130, %v8242
  %v8244 = vpop.f32.mrb[0].mxu0
  %8245 = vmatprep.mubr.bf16.mxu0 %v7965
  %8246 = vmatmul.mubr.bf16.gmra.mrb[0].mxu0 %v7964
  %v8247 = vpop.f32.mrb[0].mxu0
  %v8248 = vadd.f32 %v8135, %v8247
  %v8249 = vpop.f32.mrb[0].mxu0
  %v8250 = vpop.f32.mrb[0].mxu0
  %v8251 = vadd.f32 %v8138, %v8250
  %v8252 = vpop.f32.mrb[0].mxu0
  %8253 = vdwg.mxu0
  %8254 = vmatprep.subr.bf16.mxu0 0
  %8255 = vmatpush1.bf16.msra.mxu0 %v817
  %8256 = vmatprep.subr.bf16.mxu0 0
  %8257 = vmatpush1.bf16.msra.mxu0 %v818
  %8258 = vmatprep.subr.bf16.mxu0 0
  %8259 = vmatpush1.bf16.msra.mxu0 %v819
  %8260 = vmatprep.subr.bf16.mxu0 0
  %8261 = vmatpush1.bf16.msra.mxu0 %v820
  %8262 = vmatprep.subr.bf16.mxu0 0
  %8263 = vmatpush1.bf16.msra.mxu0 %v821
  %8264 = vmatprep.subr.bf16.mxu0 0
  %8265 = vmatpush1.bf16.msra.mxu0 %v822
  %8266 = vmatprep.subr.bf16.mxu0 0
  %8267 = vmatpush1.bf16.msra.mxu0 %v823
  %8268 = vmatprep.subr.bf16.mxu0 0
  %8269 = vmatpush1.bf16.msra.mxu0 %v824
  %8270 = vmatprep.subr.bf16.mxu0 0
  %8271 = vmatpush1.bf16.msra.mxu0 %v825
  %8272 = vmatprep.subr.bf16.mxu0 0
  %8273 = vmatpush1.bf16.msra.mxu0 %v826
  %8274 = vmatprep.subr.bf16.mxu0 0
  %8275 = vmatpush1.bf16.msra.mxu0 %v827
  %8276 = vmatprep.subr.bf16.mxu0 0
  %8277 = vmatpush1.bf16.msra.mxu0 %v828
  %8278 = vmatprep.subr.bf16.mxu0 0
  %8279 = vmatpush1.bf16.msra.mxu0 %v829
  %8280 = vmatprep.subr.bf16.mxu0 0
  %8281 = vmatpush1.bf16.msra.mxu0 %v830
  %8282 = vmatprep.subr.bf16.mxu0 0
  %8283 = vmatpush1.bf16.msra.mxu0 %v831
  %8284 = vmatprep.subr.bf16.mxu0 0
  %8285 = vmatpush1.bf16.msra.mxu0 %v832
  %8286 = vmatprep.mubr.bf16.mxu0 %v7913
  %8287 = vmatmul.mubr.bf16.gmra.mrb[0].mxu0 %v7912
  %v8288 = vpop.f32.mrb[0].mxu0
  %v8289 = vadd.f32 %v8176, %v8288
  %v8290 = vpop.f32.mrb[0].mxu0
  %v8291 = vpop.f32.mrb[0].mxu0
  %v8292 = vadd.f32 %v8179, %v8291
  %v8293 = vpop.f32.mrb[0].mxu0
  %8294 = vmatprep.mubr.bf16.mxu0 %v7919
  %8295 = vmatmul.mubr.bf16.gmra.mrb[0].mxu0 %v7918
  %v8296 = vpop.f32.mrb[0].mxu0
  %v8297 = vadd.f32 %v8184, %v8296
  %v8298 = vpop.f32.mrb[0].mxu0
  %v8299 = vpop.f32.mrb[0].mxu0
  %v8300 = vadd.f32 %v8187, %v8299
  %v8301 = vpop.f32.mrb[0].mxu0
  %8302 = vmatprep.mubr.bf16.mxu0 %v7925
  %8303 = vmatmul.mubr.bf16.gmra.mrb[0].mxu0 %v7924
  %v8304 = vpop.f32.mrb[0].mxu0
  %v8305 = vadd.f32 %v8192, %v8304
  %v8306 = vpop.f32.mrb[0].mxu0
  %v8307 = vpop.f32.mrb[0].mxu0
  %v8308 = vadd.f32 %v8195, %v8307
  %v8309 = vpop.f32.mrb[0].mxu0
  %8310 = vmatprep.mubr.bf16.mxu0 %v7931
  %8311 = vmatmul.mubr.bf16.gmra.mrb[0].mxu0 %v7930
  %v8312 = vpop.f32.mrb[0].mxu0
  %v8313 = vadd.f32 %v8200, %v8312
  %v8314 = vpop.f32.mrb[0].mxu0
  %v8315 = vpop.f32.mrb[0].mxu0
  %v8316 = vadd.f32 %v8203, %v8315
  %v8317 = vpop.f32.mrb[0].mxu0
  %8318 = vmatprep.mubr.bf16.mxu0 %v7937
  %8319 = vmatmul.mubr.bf16.gmra.mrb[0].mxu0 %v7936
  %v8320 = vpop.f32.mrb[0].mxu0
  %v8321 = vadd.f32 %v8208, %v8320
  %v8322 = vpop.f32.mrb[0].mxu0
  %v8323 = vpop.f32.mrb[0].mxu0
  %v8324 = vadd.f32 %v8211, %v8323
  %v8325 = vpop.f32.mrb[0].mxu0
  %8326 = vmatprep.mubr.bf16.mxu0 %v7943
  %8327 = vmatmul.mubr.bf16.gmra.mrb[0].mxu0 %v7942
  %v8328 = vpop.f32.mrb[0].mxu0
  %v8329 = vadd.f32 %v8216, %v8328
  %v8330 = vpop.f32.mrb[0].mxu0
  %v8331 = vpop.f32.mrb[0].mxu0
  %v8332 = vadd.f32 %v8219, %v8331
  %v8333 = vpop.f32.mrb[0].mxu0
  %8334 = vmatprep.mubr.bf16.mxu0 %v7949
  %8335 = vmatmul.mubr.bf16.gmra.mrb[0].mxu0 %v7948
  %v8336 = vpop.f32.mrb[0].mxu0
  %v8337 = vadd.f32 %v8224, %v8336
  %v8338 = vpop.f32.mrb[0].mxu0
  %v8339 = vpop.f32.mrb[0].mxu0
  %v8340 = vadd.f32 %v8227, %v8339
  %v8341 = vpop.f32.mrb[0].mxu0
  %8342 = vmatprep.mubr.bf16.mxu0 %v7955
  %8343 = vmatmul.mubr.bf16.gmra.mrb[0].mxu0 %v7954
  %v8344 = vpop.f32.mrb[0].mxu0
  %v8345 = vadd.f32 %v8232, %v8344
  %v8346 = vpop.f32.mrb[0].mxu0
  %v8347 = vpop.f32.mrb[0].mxu0
  %v8348 = vadd.f32 %v8235, %v8347
  %v8349 = vpop.f32.mrb[0].mxu0
  %8350 = vmatprep.mubr.bf16.mxu0 %v7961
  %8351 = vmatmul.mubr.bf16.gmra.mrb[0].mxu0 %v7960
  %v8352 = vpop.f32.mrb[0].mxu0
  %v8353 = vadd.f32 %v8240, %v8352
  %v8354 = vpop.f32.mrb[0].mxu0
  %v8355 = vpop.f32.mrb[0].mxu0
  %v8356 = vadd.f32 %v8243, %v8355
  %v8357 = vpop.f32.mrb[0].mxu0
  %8358 = vmatprep.mubr.bf16.mxu0 %v7967
  %8359 = vmatmul.mubr.bf16.gmra.mrb[0].mxu0 %v7966
  %v8360 = vpop.f32.mrb[0].mxu0
  %v8361 = vadd.f32 %v8248, %v8360
  %v8362 = vpop.f32.mrb[0].mxu0
  %v8363 = vpop.f32.mrb[0].mxu0
  %v8364 = vadd.f32 %v8251, %v8363
  %v8365 = vpop.f32.mrb[0].mxu0
  %8366 = vdwg.mxu0
  %v8427 = vunpack.c.l.b16 %v7608
  %v8428 = vunpack.c.h.b16 %v7608
  %v8429 = vunpack.c.l.b16 %v7609
  %v8430 = vunpack.c.h.b16 %v7609
  %v8431 = vunpack.c.l.b16 %v7610
  %v8432 = vunpack.c.h.b16 %v7610
  %v8433 = vunpack.c.l.b16 %v7611
  %v8434 = vunpack.c.h.b16 %v7611
  %v8435 = vunpack.c.l.b16 %v7612
  %v8436 = vunpack.c.h.b16 %v7612
  %v8437 = vunpack.c.l.b16 %v7613
  %v8438 = vunpack.c.h.b16 %v7613
  %v8439 = vunpack.c.l.b16 %v7614
  %v8440 = vunpack.c.h.b16 %v7614
  %v8441 = vunpack.c.l.b16 %v7615
  %v8442 = vunpack.c.h.b16 %v7615
  %v8443 = vunpack.c.l.b16 %v7616
  %v8444 = vunpack.c.h.b16 %v7616
  %v8445 = vunpack.c.l.b16 %v7617
  %v8446 = vunpack.c.h.b16 %v7617
  %v8447 = vunpack.c.l.b16 %v7618
  %v8448 = vunpack.c.h.b16 %v7618
  %v8449 = vunpack.c.l.b16 %v7619
  %v8450 = vunpack.c.h.b16 %v7619
  %v8451 = vunpack.c.l.b16 %v7620
  %v8452 = vunpack.c.h.b16 %v7620
  %v8453 = vunpack.c.l.b16 %v7621
  %v8454 = vunpack.c.h.b16 %v7621
  %v8455 = vunpack.c.l.b16 %v7622
  %v8456 = vunpack.c.h.b16 %v7622
  %v8457 = vunpack.c.l.b16 %v7623
  %v8458 = vunpack.c.h.b16 %v7623
  %v8459 = vunpack.c.l.b16 %v7624
  %v8460 = vunpack.c.h.b16 %v7624
  %v8461 = vunpack.c.l.b16 %v7625
  %v8462 = vunpack.c.h.b16 %v7625
  %v8463 = vunpack.c.l.b16 %v7626
  %v8464 = vunpack.c.h.b16 %v7626
  %v8465 = vunpack.c.l.b16 %v7627
  %v8466 = vunpack.c.h.b16 %v7627
  %v8467 = vunpack.c.l.b16 %v7628
  %v8468 = vunpack.c.h.b16 %v7628
  %v8469 = vunpack.c.l.b16 %v7629
  %v8470 = vunpack.c.h.b16 %v7629
  %v8471 = vunpack.c.l.b16 %v7630
  %v8472 = vunpack.c.h.b16 %v7630
  %v8473 = vunpack.c.l.b16 %v7631
  %v8474 = vunpack.c.h.b16 %v7631
  %v8475 = vunpack.c.l.b16 %v7632
  %v8476 = vunpack.c.h.b16 %v7632
  %v8477 = vunpack.c.l.b16 %v7633
  %v8478 = vunpack.c.h.b16 %v7633
  %v8479 = vunpack.c.l.b16 %v7634
  %v8480 = vunpack.c.h.b16 %v7634
  %v8481 = vunpack.c.l.b16 %v7635
  %v8482 = vunpack.c.h.b16 %v7635
  %v8483 = vunpack.c.l.b16 %v7636
  %v8484 = vunpack.c.h.b16 %v7636
  %v8485 = vunpack.c.l.b16 %v7637
  %v8486 = vunpack.c.h.b16 %v7637
  %v8487 = vunpack.c.l.b16 %v7638
  %v8488 = vunpack.c.h.b16 %v7638
  %v8489 = vunpack.c.l.b16 %v7639
  %v8490 = vunpack.c.h.b16 %v7639
  %v8491 = vunpack.c.l.b16 %v7640
  %v8492 = vunpack.c.h.b16 %v7640
  %v8493 = vunpack.c.l.b16 %v7641
  %v8494 = vunpack.c.h.b16 %v7641
  %v8495 = vunpack.c.l.b16 %v7642
  %v8496 = vunpack.c.h.b16 %v7642
  %v8497 = vunpack.c.l.b16 %v7643
  %v8498 = vunpack.c.h.b16 %v7643
  %v8499 = vunpack.c.l.b16 %v7644
  %v8500 = vunpack.c.h.b16 %v7644
  %v8501 = vunpack.c.l.b16 %v7645
  %v8502 = vunpack.c.h.b16 %v7645
  %v8503 = vunpack.c.l.b16 %v7646
  %v8504 = vunpack.c.h.b16 %v7646
  %v8505 = vunpack.c.l.b16 %v7647
  %v8506 = vunpack.c.h.b16 %v7647
  %v8507 = vunpack.c.l.b16 %v7648
  %v8508 = vunpack.c.h.b16 %v7648
  %v8509 = vunpack.c.l.b16 %v7649
  %v8510 = vunpack.c.h.b16 %v7649
  %v8511 = vunpack.c.l.b16 %v7650
  %v8512 = vunpack.c.h.b16 %v7650
  %v8513 = vunpack.c.l.b16 %v7651
  %v8514 = vunpack.c.h.b16 %v7651
  %v8515 = vunpack.c.l.b16 %v7652
  %v8516 = vunpack.c.h.b16 %v7652
  %v8517 = vunpack.c.l.b16 %v7653
  %v8518 = vunpack.c.h.b16 %v7653
  %v8519 = vunpack.c.l.b16 %v7654
  %v8520 = vunpack.c.h.b16 %v7654
  %v8521 = vunpack.c.l.b16 %v7655
  %v8522 = vunpack.c.h.b16 %v7655
  %v8523 = vunpack.c.l.b16 %v7656
  %v8524 = vunpack.c.h.b16 %v7656
  %v8525 = vunpack.c.l.b16 %v7657
  %v8526 = vunpack.c.h.b16 %v7657
  %v8527 = vunpack.c.l.b16 %v7658
  %v8528 = vunpack.c.h.b16 %v7658
  %v8529 = vunpack.c.l.b16 %v7659
  %v8530 = vunpack.c.h.b16 %v7659
  %v8531 = vunpack.c.l.b16 %v7660
  %v8532 = vunpack.c.h.b16 %v7660
  %v8533 = vunpack.c.l.b16 %v7661
  %v8534 = vunpack.c.h.b16 %v7661
  %v8535 = vunpack.c.l.b16 %v7662
  %v8536 = vunpack.c.h.b16 %v7662
  %v8537 = vunpack.c.l.b16 %v7663
  %v8538 = vunpack.c.h.b16 %v7663
  %v8539 = vunpack.c.l.b16 %v7664
  %v8540 = vunpack.c.h.b16 %v7664
  %v8541 = vunpack.c.l.b16 %v7665
  %v8542 = vunpack.c.h.b16 %v7665
  %v8543 = vunpack.c.l.b16 %v7666
  %v8544 = vunpack.c.h.b16 %v7666
  %v8545 = vunpack.c.l.b16 %v7667
  %v8546 = vunpack.c.h.b16 %v7667
  %v8547 = vpack.c.b16 %v8433, %v8427
  %v8548 = vpack.c.b16 %v8434, %v8428
  %v8549 = vpack.c.b16 %v8435, %v8429
  %v8550 = vpack.c.b16 %v8436, %v8430
  %v8551 = vpack.c.b16 %v8437, %v8431
  %v8552 = vpack.c.b16 %v8438, %v8432
  %v8553 = vpack.c.b16 %v8445, %v8439
  %v8554 = vpack.c.b16 %v8446, %v8440
  %v8555 = vpack.c.b16 %v8447, %v8441
  %v8556 = vpack.c.b16 %v8448, %v8442
  %v8557 = vpack.c.b16 %v8449, %v8443
  %v8558 = vpack.c.b16 %v8450, %v8444
  %v8559 = vpack.c.b16 %v8457, %v8451
  %v8560 = vpack.c.b16 %v8458, %v8452
  %v8561 = vpack.c.b16 %v8459, %v8453
  %v8562 = vpack.c.b16 %v8460, %v8454
  %v8563 = vpack.c.b16 %v8461, %v8455
  %v8564 = vpack.c.b16 %v8462, %v8456
  %v8565 = vpack.c.b16 %v8469, %v8463
  %v8566 = vpack.c.b16 %v8470, %v8464
  %v8567 = vpack.c.b16 %v8471, %v8465
  %v8568 = vpack.c.b16 %v8472, %v8466
  %v8569 = vpack.c.b16 %v8473, %v8467
  %v8570 = vpack.c.b16 %v8474, %v8468
  %v8571 = vpack.c.b16 %v8481, %v8475
  %v8572 = vpack.c.b16 %v8482, %v8476
  %v8573 = vpack.c.b16 %v8483, %v8477
  %v8574 = vpack.c.b16 %v8484, %v8478
  %v8575 = vpack.c.b16 %v8485, %v8479
  %v8576 = vpack.c.b16 %v8486, %v8480
  %v8577 = vpack.c.b16 %v8493, %v8487
  %v8578 = vpack.c.b16 %v8494, %v8488
  %v8579 = vpack.c.b16 %v8495, %v8489
  %v8580 = vpack.c.b16 %v8496, %v8490
  %v8581 = vpack.c.b16 %v8497, %v8491
  %v8582 = vpack.c.b16 %v8498, %v8492
  %v8583 = vpack.c.b16 %v8505, %v8499
  %v8584 = vpack.c.b16 %v8506, %v8500
  %v8585 = vpack.c.b16 %v8507, %v8501
  %v8586 = vpack.c.b16 %v8508, %v8502
  %v8587 = vpack.c.b16 %v8509, %v8503
  %v8588 = vpack.c.b16 %v8510, %v8504
  %v8589 = vpack.c.b16 %v8517, %v8511
  %v8590 = vpack.c.b16 %v8518, %v8512
  %v8591 = vpack.c.b16 %v8519, %v8513
  %v8592 = vpack.c.b16 %v8520, %v8514
  %v8593 = vpack.c.b16 %v8521, %v8515
  %v8594 = vpack.c.b16 %v8522, %v8516
  %v8595 = vpack.c.b16 %v8529, %v8523
  %v8596 = vpack.c.b16 %v8530, %v8524
  %v8597 = vpack.c.b16 %v8531, %v8525
  %v8598 = vpack.c.b16 %v8532, %v8526
  %v8599 = vpack.c.b16 %v8533, %v8527
  %v8600 = vpack.c.b16 %v8534, %v8528
  %v8601 = vpack.c.b16 %v8541, %v8535
  %v8602 = vpack.c.b16 %v8542, %v8536
  %v8603 = vpack.c.b16 %v8543, %v8537
  %v8604 = vpack.c.b16 %v8544, %v8538
  %v8605 = vpack.c.b16 %v8545, %v8539
  %v8606 = vpack.c.b16 %v8546, %v8540
  %8667 = vmatprep.subr.bf16.mxu0 0
  %8668 = vmatpush1.bf16.msra.mxu0 %v1442
  %8669 = vmatprep.subr.bf16.mxu0 0
  %8670 = vmatpush1.bf16.msra.mxu0 %v1443
  %8671 = vmatprep.subr.bf16.mxu0 0
  %8672 = vmatpush1.bf16.msra.mxu0 %v1444
  %8673 = vmatprep.subr.bf16.mxu0 0
  %8674 = vmatpush1.bf16.msra.mxu0 %v1445
  %8675 = vmatprep.subr.bf16.mxu0 0
  %8676 = vmatpush1.bf16.msra.mxu0 %v1446
  %8677 = vmatprep.subr.bf16.mxu0 0
  %8678 = vmatpush1.bf16.msra.mxu0 %v1447
  %8679 = vmatprep.subr.bf16.mxu0 0
  %8680 = vmatpush1.bf16.msra.mxu0 %v1448
  %8681 = vmatprep.subr.bf16.mxu0 0
  %8682 = vmatpush1.bf16.msra.mxu0 %v1449
  %8683 = vmatprep.subr.bf16.mxu0 0
  %8684 = vmatpush1.bf16.msra.mxu0 %v1450
  %8685 = vmatprep.subr.bf16.mxu0 0
  %8686 = vmatpush1.bf16.msra.mxu0 %v1451
  %8687 = vmatprep.subr.bf16.mxu0 0
  %8688 = vmatpush1.bf16.msra.mxu0 %v1452
  %8689 = vmatprep.subr.bf16.mxu0 0
  %8690 = vmatpush1.bf16.msra.mxu0 %v1453
  %8691 = vmatprep.subr.bf16.mxu0 0
  %8692 = vmatpush1.bf16.msra.mxu0 %v1454
  %8693 = vmatprep.subr.bf16.mxu0 0
  %8694 = vmatpush1.bf16.msra.mxu0 %v1455
  %8695 = vmatprep.subr.bf16.mxu0 0
  %8696 = vmatpush1.bf16.msra.mxu0 %v1456
  %8697 = vmatprep.subr.bf16.mxu0 0
  %8698 = vmatpush1.bf16.msra.mxu0 %v1457
  %8699 = vmatprep.mubr.bf16.mxu0 %v8548
  %8700 = vmatmul.mubr.bf16.gmra.mrb[0].mxu0 %v8547
  %v8701 = vpop.f32.mrb[0].mxu0
  %v8702 = vadd.f32 %v8289, %v8701
  %v8703 = vpop.f32.mrb[0].mxu0
  %v8704 = vpop.f32.mrb[0].mxu0
  %v8705 = vadd.f32 %v8292, %v8704
  %v8706 = vpop.f32.mrb[0].mxu0
  %8707 = vmatprep.mubr.bf16.mxu0 %v8554
  %8708 = vmatmul.mubr.bf16.gmra.mrb[0].mxu0 %v8553
  %v8709 = vpop.f32.mrb[0].mxu0
  %v8710 = vadd.f32 %v8297, %v8709
  %v8711 = vpop.f32.mrb[0].mxu0
  %v8712 = vpop.f32.mrb[0].mxu0
  %v8713 = vadd.f32 %v8300, %v8712
  %v8714 = vpop.f32.mrb[0].mxu0
  %8715 = vmatprep.mubr.bf16.mxu0 %v8560
  %8716 = vmatmul.mubr.bf16.gmra.mrb[0].mxu0 %v8559
  %v8717 = vpop.f32.mrb[0].mxu0
  %v8718 = vadd.f32 %v8305, %v8717
  %v8719 = vpop.f32.mrb[0].mxu0
  %v8720 = vpop.f32.mrb[0].mxu0
  %v8721 = vadd.f32 %v8308, %v8720
  %v8722 = vpop.f32.mrb[0].mxu0
  %8723 = vmatprep.mubr.bf16.mxu0 %v8566
  %8724 = vmatmul.mubr.bf16.gmra.mrb[0].mxu0 %v8565
  %v8725 = vpop.f32.mrb[0].mxu0
  %v8726 = vadd.f32 %v8313, %v8725
  %v8727 = vpop.f32.mrb[0].mxu0
  %v8728 = vpop.f32.mrb[0].mxu0
  %v8729 = vadd.f32 %v8316, %v8728
  %v8730 = vpop.f32.mrb[0].mxu0
  %8731 = vmatprep.mubr.bf16.mxu0 %v8572
  %8732 = vmatmul.mubr.bf16.gmra.mrb[0].mxu0 %v8571
  %v8733 = vpop.f32.mrb[0].mxu0
  %v8734 = vadd.f32 %v8321, %v8733
  %v8735 = vpop.f32.mrb[0].mxu0
  %v8736 = vpop.f32.mrb[0].mxu0
  %v8737 = vadd.f32 %v8324, %v8736
  %v8738 = vpop.f32.mrb[0].mxu0
  %8739 = vmatprep.mubr.bf16.mxu0 %v8578
  %8740 = vmatmul.mubr.bf16.gmra.mrb[0].mxu0 %v8577
  %v8741 = vpop.f32.mrb[0].mxu0
  %v8742 = vadd.f32 %v8329, %v8741
  %v8743 = vpop.f32.mrb[0].mxu0
  %v8744 = vpop.f32.mrb[0].mxu0
  %v8745 = vadd.f32 %v8332, %v8744
  %v8746 = vpop.f32.mrb[0].mxu0
  %8747 = vmatprep.mubr.bf16.mxu0 %v8584
  %8748 = vmatmul.mubr.bf16.gmra.mrb[0].mxu0 %v8583
  %v8749 = vpop.f32.mrb[0].mxu0
  %v8750 = vadd.f32 %v8337, %v8749
  %v8751 = vpop.f32.mrb[0].mxu0
  %v8752 = vpop.f32.mrb[0].mxu0
  %v8753 = vadd.f32 %v8340, %v8752
  %v8754 = vpop.f32.mrb[0].mxu0
  %8755 = vmatprep.mubr.bf16.mxu0 %v8590
  %8756 = vmatmul.mubr.bf16.gmra.mrb[0].mxu0 %v8589
  %v8757 = vpop.f32.mrb[0].mxu0
  %v8758 = vadd.f32 %v8345, %v8757
  %v8759 = vpop.f32.mrb[0].mxu0
  %v8760 = vpop.f32.mrb[0].mxu0
  %v8761 = vadd.f32 %v8348, %v8760
  %v8762 = vpop.f32.mrb[0].mxu0
  %8763 = vmatprep.mubr.bf16.mxu0 %v8596
  %8764 = vmatmul.mubr.bf16.gmra.mrb[0].mxu0 %v8595
  %v8765 = vpop.f32.mrb[0].mxu0
  %v8766 = vadd.f32 %v8353, %v8765
  %v8767 = vpop.f32.mrb[0].mxu0
  %v8768 = vpop.f32.mrb[0].mxu0
  %v8769 = vadd.f32 %v8356, %v8768
  %v8770 = vpop.f32.mrb[0].mxu0
  %8771 = vmatprep.mubr.bf16.mxu0 %v8602
  %8772 = vmatmul.mubr.bf16.gmra.mrb[0].mxu0 %v8601
  %v8773 = vpop.f32.mrb[0].mxu0
  %v8774 = vadd.f32 %v8361, %v8773
  %v8775 = vpop.f32.mrb[0].mxu0
  %v8776 = vpop.f32.mrb[0].mxu0
  %v8777 = vadd.f32 %v8364, %v8776
  %v8778 = vpop.f32.mrb[0].mxu0
  %8779 = vdwg.mxu0
  %8780 = vmatprep.subr.bf16.mxu0 0
  %8781 = vmatpush1.bf16.msra.mxu0 %v1458
  %8782 = vmatprep.subr.bf16.mxu0 0
  %8783 = vmatpush1.bf16.msra.mxu0 %v1459
  %8784 = vmatprep.subr.bf16.mxu0 0
  %8785 = vmatpush1.bf16.msra.mxu0 %v1460
  %8786 = vmatprep.subr.bf16.mxu0 0
  %8787 = vmatpush1.bf16.msra.mxu0 %v1461
  %8788 = vmatprep.subr.bf16.mxu0 0
  %8789 = vmatpush1.bf16.msra.mxu0 %v1462
  %8790 = vmatprep.subr.bf16.mxu0 0
  %8791 = vmatpush1.bf16.msra.mxu0 %v1463
  %8792 = vmatprep.subr.bf16.mxu0 0
  %8793 = vmatpush1.bf16.msra.mxu0 %v1464
  %8794 = vmatprep.subr.bf16.mxu0 0
  %8795 = vmatpush1.bf16.msra.mxu0 %v1465
  %8796 = vmatprep.subr.bf16.mxu0 0
  %8797 = vmatpush1.bf16.msra.mxu0 %v1466
  %8798 = vmatprep.subr.bf16.mxu0 0
  %8799 = vmatpush1.bf16.msra.mxu0 %v1467
  %8800 = vmatprep.subr.bf16.mxu0 0
  %8801 = vmatpush1.bf16.msra.mxu0 %v1468
  %8802 = vmatprep.subr.bf16.mxu0 0
  %8803 = vmatpush1.bf16.msra.mxu0 %v1469
  %8804 = vmatprep.subr.bf16.mxu0 0
  %8805 = vmatpush1.bf16.msra.mxu0 %v1470
  %8806 = vmatprep.subr.bf16.mxu0 0
  %8807 = vmatpush1.bf16.msra.mxu0 %v1471
  %8808 = vmatprep.subr.bf16.mxu0 0
  %8809 = vmatpush1.bf16.msra.mxu0 %v1472
  %8810 = vmatprep.subr.bf16.mxu0 0
  %8811 = vmatpush1.bf16.msra.mxu0 %v1473
  %8812 = vmatprep.mubr.bf16.mxu0 %v8550
  %8813 = vmatmul.mubr.bf16.gmra.mrb[0].mxu0 %v8549
  %v8814 = vpop.f32.mrb[0].mxu0
  %v8815 = vadd.f32 %v8702, %v8814
  %v8816 = vpop.f32.mrb[0].mxu0
  %v8817 = vpop.f32.mrb[0].mxu0
  %v8818 = vadd.f32 %v8705, %v8817
  %v8819 = vpop.f32.mrb[0].mxu0
  %8820 = vmatprep.mubr.bf16.mxu0 %v8556
  %8821 = vmatmul.mubr.bf16.gmra.mrb[0].mxu0 %v8555
  %v8822 = vpop.f32.mrb[0].mxu0
  %v8823 = vadd.f32 %v8710, %v8822
  %v8824 = vpop.f32.mrb[0].mxu0
  %v8825 = vpop.f32.mrb[0].mxu0
  %v8826 = vadd.f32 %v8713, %v8825
  %v8827 = vpop.f32.mrb[0].mxu0
  %8828 = vmatprep.mubr.bf16.mxu0 %v8562
  %8829 = vmatmul.mubr.bf16.gmra.mrb[0].mxu0 %v8561
  %v8830 = vpop.f32.mrb[0].mxu0
  %v8831 = vadd.f32 %v8718, %v8830
  %v8832 = vpop.f32.mrb[0].mxu0
  %v8833 = vpop.f32.mrb[0].mxu0
  %v8834 = vadd.f32 %v8721, %v8833
  %v8835 = vpop.f32.mrb[0].mxu0
  %8836 = vmatprep.mubr.bf16.mxu0 %v8568
  %8837 = vmatmul.mubr.bf16.gmra.mrb[0].mxu0 %v8567
  %v8838 = vpop.f32.mrb[0].mxu0
  %v8839 = vadd.f32 %v8726, %v8838
  %v8840 = vpop.f32.mrb[0].mxu0
  %v8841 = vpop.f32.mrb[0].mxu0
  %v8842 = vadd.f32 %v8729, %v8841
  %v8843 = vpop.f32.mrb[0].mxu0
  %8844 = vmatprep.mubr.bf16.mxu0 %v8574
  %8845 = vmatmul.mubr.bf16.gmra.mrb[0].mxu0 %v8573
  %v8846 = vpop.f32.mrb[0].mxu0
  %v8847 = vadd.f32 %v8734, %v8846
  %v8848 = vpop.f32.mrb[0].mxu0
  %v8849 = vpop.f32.mrb[0].mxu0
  %v8850 = vadd.f32 %v8737, %v8849
  %v8851 = vpop.f32.mrb[0].mxu0
  %8852 = vmatprep.mubr.bf16.mxu0 %v8580
  %8853 = vmatmul.mubr.bf16.gmra.mrb[0].mxu0 %v8579
  %v8854 = vpop.f32.mrb[0].mxu0
  %v8855 = vadd.f32 %v8742, %v8854
  %v8856 = vpop.f32.mrb[0].mxu0
  %v8857 = vpop.f32.mrb[0].mxu0
  %v8858 = vadd.f32 %v8745, %v8857
  %v8859 = vpop.f32.mrb[0].mxu0
  %8860 = vmatprep.mubr.bf16.mxu0 %v8586
  %8861 = vmatmul.mubr.bf16.gmra.mrb[0].mxu0 %v8585
  %v8862 = vpop.f32.mrb[0].mxu0
  %v8863 = vadd.f32 %v8750, %v8862
  %v8864 = vpop.f32.mrb[0].mxu0
  %v8865 = vpop.f32.mrb[0].mxu0
  %v8866 = vadd.f32 %v8753, %v8865
  %v8867 = vpop.f32.mrb[0].mxu0
  %8868 = vmatprep.mubr.bf16.mxu0 %v8592
  %8869 = vmatmul.mubr.bf16.gmra.mrb[0].mxu0 %v8591
  %v8870 = vpop.f32.mrb[0].mxu0
  %v8871 = vadd.f32 %v8758, %v8870
  %v8872 = vpop.f32.mrb[0].mxu0
  %v8873 = vpop.f32.mrb[0].mxu0
  %v8874 = vadd.f32 %v8761, %v8873
  %v8875 = vpop.f32.mrb[0].mxu0
  %8876 = vmatprep.mubr.bf16.mxu0 %v8598
  %8877 = vmatmul.mubr.bf16.gmra.mrb[0].mxu0 %v8597
  %v8878 = vpop.f32.mrb[0].mxu0
  %v8879 = vadd.f32 %v8766, %v8878
  %v8880 = vpop.f32.mrb[0].mxu0
  %v8881 = vpop.f32.mrb[0].mxu0
  %v8882 = vadd.f32 %v8769, %v8881
  %v8883 = vpop.f32.mrb[0].mxu0
  %8884 = vmatprep.mubr.bf16.mxu0 %v8604
  %8885 = vmatmul.mubr.bf16.gmra.mrb[0].mxu0 %v8603
  %v8886 = vpop.f32.mrb[0].mxu0
  %v8887 = vadd.f32 %v8774, %v8886
  %v8888 = vpop.f32.mrb[0].mxu0
  %v8889 = vpop.f32.mrb[0].mxu0
  %v8890 = vadd.f32 %v8777, %v8889
  %v8891 = vpop.f32.mrb[0].mxu0
  %8892 = vdwg.mxu0
  %8893 = vmatprep.subr.bf16.mxu0 0
  %8894 = vmatpush1.bf16.msra.mxu0 %v1474
  %8895 = vmatprep.subr.bf16.mxu0 0
  %8896 = vmatpush1.bf16.msra.mxu0 %v1475
  %8897 = vmatprep.subr.bf16.mxu0 0
  %8898 = vmatpush1.bf16.msra.mxu0 %v1476
  %8899 = vmatprep.subr.bf16.mxu0 0
  %8900 = vmatpush1.bf16.msra.mxu0 %v1477
  %8901 = vmatprep.subr.bf16.mxu0 0
  %8902 = vmatpush1.bf16.msra.mxu0 %v1478
  %8903 = vmatprep.subr.bf16.mxu0 0
  %8904 = vmatpush1.bf16.msra.mxu0 %v1479
  %8905 = vmatprep.subr.bf16.mxu0 0
  %8906 = vmatpush1.bf16.msra.mxu0 %v1480
  %8907 = vmatprep.subr.bf16.mxu0 0
  %8908 = vmatpush1.bf16.msra.mxu0 %v1481
  %8909 = vmatprep.subr.bf16.mxu0 0
  %8910 = vmatpush1.bf16.msra.mxu0 %v1482
  %8911 = vmatprep.subr.bf16.mxu0 0
  %8912 = vmatpush1.bf16.msra.mxu0 %v1483
  %8913 = vmatprep.subr.bf16.mxu0 0
  %8914 = vmatpush1.bf16.msra.mxu0 %v1484
  %8915 = vmatprep.subr.bf16.mxu0 0
  %8916 = vmatpush1.bf16.msra.mxu0 %v1485
  %8917 = vmatprep.subr.bf16.mxu0 0
  %8918 = vmatpush1.bf16.msra.mxu0 %v1486
  %8919 = vmatprep.subr.bf16.mxu0 0
  %8920 = vmatpush1.bf16.msra.mxu0 %v1487
  %8921 = vmatprep.subr.bf16.mxu0 0
  %8922 = vmatpush1.bf16.msra.mxu0 %v1488
  %8923 = vmatprep.subr.bf16.mxu0 0
  %8924 = vmatpush1.bf16.msra.mxu0 %v1489
  %8925 = vmatprep.mubr.bf16.mxu0 %v8552
  %8926 = vmatmul.mubr.bf16.gmra.mrb[0].mxu0 %v8551
  %v8927 = vpop.f32.mrb[0].mxu0
  %v8928 = vadd.f32 %v8815, %v8927
  %v8929 = vpop.f32.mrb[0].mxu0
  %v8930 = vpop.f32.mrb[0].mxu0
  %v8931 = vadd.f32 %v8818, %v8930
  %v8932 = vpop.f32.mrb[0].mxu0
  %8933 = vmatprep.mubr.bf16.mxu0 %v8558
  %8934 = vmatmul.mubr.bf16.gmra.mrb[0].mxu0 %v8557
  %v8935 = vpop.f32.mrb[0].mxu0
  %v8936 = vadd.f32 %v8823, %v8935
  %v8937 = vpop.f32.mrb[0].mxu0
  %v8938 = vpop.f32.mrb[0].mxu0
  %v8939 = vadd.f32 %v8826, %v8938
  %v8940 = vpop.f32.mrb[0].mxu0
  %8941 = vmatprep.mubr.bf16.mxu0 %v8564
  %8942 = vmatmul.mubr.bf16.gmra.mrb[0].mxu0 %v8563
  %v8943 = vpop.f32.mrb[0].mxu0
  %v8944 = vadd.f32 %v8831, %v8943
  %v8945 = vpop.f32.mrb[0].mxu0
  %v8946 = vpop.f32.mrb[0].mxu0
  %v8947 = vadd.f32 %v8834, %v8946
  %v8948 = vpop.f32.mrb[0].mxu0
  %8949 = vmatprep.mubr.bf16.mxu0 %v8570
  %8950 = vmatmul.mubr.bf16.gmra.mrb[0].mxu0 %v8569
  %v8951 = vpop.f32.mrb[0].mxu0
  %v8952 = vadd.f32 %v8839, %v8951
  %v8953 = vpop.f32.mrb[0].mxu0
  %v8954 = vpop.f32.mrb[0].mxu0
  %v8955 = vadd.f32 %v8842, %v8954
  %v8956 = vpop.f32.mrb[0].mxu0
  %8957 = vmatprep.mubr.bf16.mxu0 %v8576
  %8958 = vmatmul.mubr.bf16.gmra.mrb[0].mxu0 %v8575
  %v8959 = vpop.f32.mrb[0].mxu0
  %v8960 = vadd.f32 %v8847, %v8959
  %v8961 = vpop.f32.mrb[0].mxu0
  %v8962 = vpop.f32.mrb[0].mxu0
  %v8963 = vadd.f32 %v8850, %v8962
  %v8964 = vpop.f32.mrb[0].mxu0
  %8965 = vmatprep.mubr.bf16.mxu0 %v8582
  %8966 = vmatmul.mubr.bf16.gmra.mrb[0].mxu0 %v8581
  %v8967 = vpop.f32.mrb[0].mxu0
  %v8968 = vadd.f32 %v8855, %v8967
  %v8969 = vpop.f32.mrb[0].mxu0
  %v8970 = vpop.f32.mrb[0].mxu0
  %v8971 = vadd.f32 %v8858, %v8970
  %v8972 = vpop.f32.mrb[0].mxu0
  %8973 = vmatprep.mubr.bf16.mxu0 %v8588
  %8974 = vmatmul.mubr.bf16.gmra.mrb[0].mxu0 %v8587
  %v8975 = vpop.f32.mrb[0].mxu0
  %v8976 = vadd.f32 %v8863, %v8975
  %v8977 = vpop.f32.mrb[0].mxu0
  %v8978 = vpop.f32.mrb[0].mxu0
  %v8979 = vadd.f32 %v8866, %v8978
  %v8980 = vpop.f32.mrb[0].mxu0
  %8981 = vmatprep.mubr.bf16.mxu0 %v8594
  %8982 = vmatmul.mubr.bf16.gmra.mrb[0].mxu0 %v8593
  %v8983 = vpop.f32.mrb[0].mxu0
  %v8984 = vadd.f32 %v8871, %v8983
  %v8985 = vpop.f32.mrb[0].mxu0
  %v8986 = vpop.f32.mrb[0].mxu0
  %v8987 = vadd.f32 %v8874, %v8986
  %v8988 = vpop.f32.mrb[0].mxu0
  %8989 = vmatprep.mubr.bf16.mxu0 %v8600
  %8990 = vmatmul.mubr.bf16.gmra.mrb[0].mxu0 %v8599
  %v8991 = vpop.f32.mrb[0].mxu0
  %v8992 = vadd.f32 %v8879, %v8991
  %v8993 = vpop.f32.mrb[0].mxu0
  %v8994 = vpop.f32.mrb[0].mxu0
  %v8995 = vadd.f32 %v8882, %v8994
  %v8996 = vpop.f32.mrb[0].mxu0
  %8997 = vmatprep.mubr.bf16.mxu0 %v8606
  %8998 = vmatmul.mubr.bf16.gmra.mrb[0].mxu0 %v8605
  %v8999 = vpop.f32.mrb[0].mxu0
  %v9000 = vadd.f32 %v8887, %v8999
  %v9001 = vpop.f32.mrb[0].mxu0
  %v9002 = vpop.f32.mrb[0].mxu0
  %v9003 = vadd.f32 %v8890, %v9002
  %v9004 = vpop.f32.mrb[0].mxu0
  %9005 = vdwg.mxu0
  %v9006 = vadd.f32 %v8928, %v1881
  %v9007 = vadd.f32 %v8931, %v1881
  %v9008 = vadd.f32 %v8936, %v1881
  %v9009 = vadd.f32 %v8939, %v1881
  %v9010 = vadd.f32 %v8944, %v1881
  %v9011 = vadd.f32 %v8947, %v1881
  %v9012 = vadd.f32 %v8952, %v1881
  %v9013 = vadd.f32 %v8955, %v1881
  %v9014 = vadd.f32 %v8960, %v1881
  %v9015 = vadd.f32 %v8963, %v1881
  %v9016 = vadd.f32 %v8968, %v1881
  %v9017 = vadd.f32 %v8971, %v1881
  %v9018 = vadd.f32 %v8976, %v1881
  %v9019 = vadd.f32 %v8979, %v1881
  %v9020 = vadd.f32 %v8984, %v1881
  %v9021 = vadd.f32 %v8987, %v1881
  %v9022 = vadd.f32 %v8992, %v1881
  %v9023 = vadd.f32 %v8995, %v1881
  %v9024 = vadd.f32 %v9000, %v1881
  %v9025 = vadd.f32 %v9003, %v1881
  %v9026 = vmax.f32 %v9006, 0.0
  %v9027 = vmax.f32 %v9007, 0.0
  %v9028 = vmax.f32 %v9008, 0.0
  %v9029 = vmax.f32 %v9009, 0.0
  %v9030 = vmax.f32 %v9010, 0.0
  %v9031 = vmax.f32 %v9011, 0.0
  %v9032 = vmax.f32 %v9012, 0.0
  %v9033 = vmax.f32 %v9013, 0.0
  %v9034 = vmax.f32 %v9014, 0.0
  %v9035 = vmax.f32 %v9015, 0.0
  %v9036 = vmax.f32 %v9016, 0.0
  %v9037 = vmax.f32 %v9017, 0.0
  %v9038 = vmax.f32 %v9018, 0.0
  %v9039 = vmax.f32 %v9019, 0.0
  %v9040 = vmax.f32 %v9020, 0.0
  %v9041 = vmax.f32 %v9021, 0.0
  %v9042 = vmax.f32 %v9022, 0.0
  %v9043 = vmax.f32 %v9023, 0.0
  %v9044 = vmax.f32 %v9024, 0.0
  %v9045 = vmax.f32 %v9025, 0.0
  %v9046 = vpack.c.bf16 %v9027, %v9026
  %v9047 = vpack.c.bf16 %v9029, %v9028
  %v9048 = vpack.c.bf16 %v9031, %v9030
  %v9049 = vpack.c.bf16 %v9033, %v9032
  %v9050 = vpack.c.bf16 %v9035, %v9034
  %v9051 = vpack.c.bf16 %v9037, %v9036
  %v9052 = vpack.c.bf16 %v9039, %v9038
  %v9053 = vpack.c.bf16 %v9041, %v9040
  %v9054 = vpack.c.bf16 %v9043, %v9042
  %v9055 = vpack.c.bf16 %v9045, %v9044
  %s9056 = scalar_lea.vmem %s3, 1536
  %v9057 = vld [vmem:[%s9056] sm:$0xff]
  %v9058 = vld [vmem:[%s9056 + $0x8] sm:$0xf]
  %v9059 = vld [vmem:[%s9056 + $0xc] sm:$0xff]
  %v9060 = vld [vmem:[%s9056 + $0x14] sm:$0xf]
  %v9061 = vld [vmem:[%s9056 + $0x18] sm:$0xff]
  %v9062 = vld [vmem:[%s9056 + $0x20] sm:$0xf]
  %v9063 = vld [vmem:[%s9056 + $0x24] sm:$0xff]
  %v9064 = vld [vmem:[%s9056 + $0x2c] sm:$0xf]
  %v9065 = vld [vmem:[%s9056 + $0x30] sm:$0xff]
  %v9066 = vld [vmem:[%s9056 + $0x38] sm:$0xf]
  %v9067 = vld [vmem:[%s9056 + $0x3c] sm:$0xff]
  %v9068 = vld [vmem:[%s9056 + $0x44] sm:$0xf]
  %v9069 = vld [vmem:[%s9056 + $0x48] sm:$0xff]
  %v9070 = vld [vmem:[%s9056 + $0x50] sm:$0xf]
  %v9071 = vld [vmem:[%s9056 + $0x54] sm:$0xff]
  %v9072 = vld [vmem:[%s9056 + $0x5c] sm:$0xf]
  %v9073 = vld [vmem:[%s9056 + $0x60] sm:$0xff]
  %v9074 = vld [vmem:[%s9056 + $0x68] sm:$0xf]
  %v9075 = vld [vmem:[%s9056 + $0x6c] sm:$0xff]
  %v9076 = vld [vmem:[%s9056 + $0x74] sm:$0xf]
  %v9077 = vld [vmem:[%s9056 + $0x78] sm:$0xff]
  %v9078 = vld [vmem:[%s9056 + $0x80] sm:$0xf]
  %v9079 = vld [vmem:[%s9056 + $0x84] sm:$0xff]
  %v9080 = vld [vmem:[%s9056 + $0x8c] sm:$0xf]
  %v9081 = vld [vmem:[%s9056 + $0x90] sm:$0xff]
  %v9082 = vld [vmem:[%s9056 + $0x98] sm:$0xf]
  %v9083 = vld [vmem:[%s9056 + $0x9c] sm:$0xff]
  %v9084 = vld [vmem:[%s9056 + $0xa4] sm:$0xf]
  %v9085 = vld [vmem:[%s9056 + $0xa8] sm:$0xff]
  %v9086 = vld [vmem:[%s9056 + $0xb0] sm:$0xf]
  %v9087 = vld [vmem:[%s9056 + $0xb4] sm:$0xff]
  %v9088 = vld [vmem:[%s9056 + $0xbc] sm:$0xf]
  %v9089 = vld [vmem:[%s9056 + $0xc0] sm:$0xff]
  %v9090 = vld [vmem:[%s9056 + $0xc8] sm:$0xf]
  %v9091 = vld [vmem:[%s9056 + $0xcc] sm:$0xff]
  %v9092 = vld [vmem:[%s9056 + $0xd4] sm:$0xf]
  %v9093 = vld [vmem:[%s9056 + $0xd8] sm:$0xff]
  %v9094 = vld [vmem:[%s9056 + $0xe0] sm:$0xf]
  %v9095 = vld [vmem:[%s9056 + $0xe4] sm:$0xff]
  %v9096 = vld [vmem:[%s9056 + $0xec] sm:$0xf]
  %v9097 = vld [vmem:[%s9056 + $0xf0] sm:$0xff]
  %v9098 = vld [vmem:[%s9056 + $0xf8] sm:$0xf]
  %v9099 = vld [vmem:[%s9056 + $0xfc] sm:$0xff]
  %v9100 = vld [vmem:[%s9056 + $0x104] sm:$0xf]
  %v9101 = vld [vmem:[%s9056 + $0x108] sm:$0xff]
  %v9102 = vld [vmem:[%s9056 + $0x110] sm:$0xf]
  %v9103 = vld [vmem:[%s9056 + $0x114] sm:$0xff]
  %v9104 = vld [vmem:[%s9056 + $0x11c] sm:$0xf]
  %v9105 = vld [vmem:[%s9056 + $0x120] sm:$0xff]
  %v9106 = vld [vmem:[%s9056 + $0x128] sm:$0xf]
  %v9107 = vld [vmem:[%s9056 + $0x12c] sm:$0xff]
  %v9108 = vld [vmem:[%s9056 + $0x134] sm:$0xf]
  %v9109 = vld [vmem:[%s9056 + $0x138] sm:$0xff]
  %v9110 = vld [vmem:[%s9056 + $0x140] sm:$0xf]
  %v9111 = vld [vmem:[%s9056 + $0x144] sm:$0xff]
  %v9112 = vld [vmem:[%s9056 + $0x14c] sm:$0xf]
  %v9113 = vld [vmem:[%s9056 + $0x150] sm:$0xff]
  %v9114 = vld [vmem:[%s9056 + $0x158] sm:$0xf]
  %v9115 = vld [vmem:[%s9056 + $0x15c] sm:$0xff]
  %v9116 = vld [vmem:[%s9056 + $0x164] sm:$0xf]
  %v9117 = vld [vmem:[%s9056 + $0x168] sm:$0xff]
  %v9118 = vld [vmem:[%s9056 + $0x170] sm:$0xf]
  %v9119 = vld [vmem:[%s9056 + $0x174] sm:$0xff]
  %v9120 = vld [vmem:[%s9056 + $0x17c] sm:$0xf]
  %v9185 = vunpack.c.l.b16 %v9057
  %v9186 = vunpack.c.h.b16 %v9057
  %v9187 = vunpack.c.l.b16 %v9058
  %v9188 = vunpack.c.l.b16 %v9059
  %v9189 = vunpack.c.h.b16 %v9059
  %v9190 = vunpack.c.l.b16 %v9060
  %v9191 = vunpack.c.l.b16 %v9061
  %v9192 = vunpack.c.h.b16 %v9061
  %v9193 = vunpack.c.l.b16 %v9062
  %v9194 = vunpack.c.l.b16 %v9063
  %v9195 = vunpack.c.h.b16 %v9063
  %v9196 = vunpack.c.l.b16 %v9064
  %v9197 = vunpack.c.l.b16 %v9065
  %v9198 = vunpack.c.h.b16 %v9065
  %v9199 = vunpack.c.l.b16 %v9066
  %v9200 = vunpack.c.l.b16 %v9067
  %v9201 = vunpack.c.h.b16 %v9067
  %v9202 = vunpack.c.l.b16 %v9068
  %v9203 = vunpack.c.l.b16 %v9069
  %v9204 = vunpack.c.h.b16 %v9069
  %v9205 = vunpack.c.l.b16 %v9070
  %v9206 = vunpack.c.l.b16 %v9071
  %v9207 = vunpack.c.h.b16 %v9071
  %v9208 = vunpack.c.l.b16 %v9072
  %v9209 = vunpack.c.l.b16 %v9073
  %v9210 = vunpack.c.h.b16 %v9073
  %v9211 = vunpack.c.l.b16 %v9074
  %v9212 = vunpack.c.l.b16 %v9075
  %v9213 = vunpack.c.h.b16 %v9075
  %v9214 = vunpack.c.l.b16 %v9076
  %v9215 = vunpack.c.l.b16 %v9077
  %v9216 = vunpack.c.h.b16 %v9077
  %v9217 = vunpack.c.l.b16 %v9078
  %v9218 = vunpack.c.l.b16 %v9079
  %v9219 = vunpack.c.h.b16 %v9079
  %v9220 = vunpack.c.l.b16 %v9080
  %v9221 = vunpack.c.l.b16 %v9081
  %v9222 = vunpack.c.h.b16 %v9081
  %v9223 = vunpack.c.l.b16 %v9082
  %v9224 = vunpack.c.l.b16 %v9083
  %v9225 = vunpack.c.h.b16 %v9083
  %v9226 = vunpack.c.l.b16 %v9084
  %v9227 = vunpack.c.l.b16 %v9085
  %v9228 = vunpack.c.h.b16 %v9085
  %v9229 = vunpack.c.l.b16 %v9086
  %v9230 = vunpack.c.l.b16 %v9087
  %v9231 = vunpack.c.h.b16 %v9087
  %v9232 = vunpack.c.l.b16 %v9088
  %v9233 = vunpack.c.l.b16 %v9089
  %v9234 = vunpack.c.h.b16 %v9089
  %v9235 = vunpack.c.l.b16 %v9090
  %v9236 = vunpack.c.l.b16 %v9091
  %v9237 = vunpack.c.h.b16 %v9091
  %v9238 = vunpack.c.l.b16 %v9092
  %v9239 = vunpack.c.l.b16 %v9093
  %v9240 = vunpack.c.h.b16 %v9093
  %v9241 = vunpack.c.l.b16 %v9094
  %v9242 = vunpack.c.l.b16 %v9095
  %v9243 = vunpack.c.h.b16 %v9095
  %v9244 = vunpack.c.l.b16 %v9096
  %v9245 = vunpack.c.l.b16 %v9097
  %v9246 = vunpack.c.h.b16 %v9097
  %v9247 = vunpack.c.l.b16 %v9098
  %v9248 = vunpack.c.l.b16 %v9099
  %v9249 = vunpack.c.h.b16 %v9099
  %v9250 = vunpack.c.l.b16 %v9100
  %v9251 = vunpack.c.l.b16 %v9101
  %v9252 = vunpack.c.h.b16 %v9101
  %v9253 = vunpack.c.l.b16 %v9102
  %v9254 = vunpack.c.l.b16 %v9103
  %v9255 = vunpack.c.h.b16 %v9103
  %v9256 = vunpack.c.l.b16 %v9104
  %v9257 = vunpack.c.l.b16 %v9105
  %v9258 = vunpack.c.h.b16 %v9105
  %v9259 = vunpack.c.l.b16 %v9106
  %v9260 = vunpack.c.l.b16 %v9107
  %v9261 = vunpack.c.h.b16 %v9107
  %v9262 = vunpack.c.l.b16 %v9108
  %v9263 = vunpack.c.l.b16 %v9109
  %v9264 = vunpack.c.h.b16 %v9109
  %v9265 = vunpack.c.l.b16 %v9110
  %v9266 = vunpack.c.l.b16 %v9111
  %v9267 = vunpack.c.h.b16 %v9111
  %v9268 = vunpack.c.l.b16 %v9112
  %v9269 = vunpack.c.l.b16 %v9113
  %v9270 = vunpack.c.h.b16 %v9113
  %v9271 = vunpack.c.l.b16 %v9114
  %v9272 = vunpack.c.l.b16 %v9115
  %v9273 = vunpack.c.h.b16 %v9115
  %v9274 = vunpack.c.l.b16 %v9116
  %v9275 = vunpack.c.l.b16 %v9117
  %v9276 = vunpack.c.h.b16 %v9117
  %v9277 = vunpack.c.l.b16 %v9118
  %v9278 = vunpack.c.l.b16 %v9119
  %v9279 = vunpack.c.h.b16 %v9119
  %v9280 = vunpack.c.l.b16 %v9120
  %v9281 = vpack.c.b16 %v9188, %v9185
  %v9282 = vpack.c.b16 %v9189, %v9186
  %v9283 = vpack.c.b16 %v9190, %v9187
  %v9284 = vpack.c.b16 %v9194, %v9191
  %v9285 = vpack.c.b16 %v9195, %v9192
  %v9286 = vpack.c.b16 %v9196, %v9193
  %v9287 = vpack.c.b16 %v9200, %v9197
  %v9288 = vpack.c.b16 %v9201, %v9198
  %v9289 = vpack.c.b16 %v9202, %v9199
  %v9290 = vpack.c.b16 %v9206, %v9203
  %v9291 = vpack.c.b16 %v9207, %v9204
  %v9292 = vpack.c.b16 %v9208, %v9205
  %v9293 = vpack.c.b16 %v9212, %v9209
  %v9294 = vpack.c.b16 %v9213, %v9210
  %v9295 = vpack.c.b16 %v9214, %v9211
  %v9296 = vpack.c.b16 %v9218, %v9215
  %v9297 = vpack.c.b16 %v9219, %v9216
  %v9298 = vpack.c.b16 %v9220, %v9217
  %v9299 = vpack.c.b16 %v9224, %v9221
  %v9300 = vpack.c.b16 %v9225, %v9222
  %v9301 = vpack.c.b16 %v9226, %v9223
  %v9302 = vpack.c.b16 %v9230, %v9227
  %v9303 = vpack.c.b16 %v9231, %v9228
  %v9304 = vpack.c.b16 %v9232, %v9229
  %v9305 = vpack.c.b16 %v9236, %v9233
  %v9306 = vpack.c.b16 %v9237, %v9234
  %v9307 = vpack.c.b16 %v9238, %v9235
  %v9308 = vpack.c.b16 %v9242, %v9239
  %v9309 = vpack.c.b16 %v9243, %v9240
  %v9310 = vpack.c.b16 %v9244, %v9241
  %v9311 = vpack.c.b16 %v9248, %v9245
  %v9312 = vpack.c.b16 %v9249, %v9246
  %v9313 = vpack.c.b16 %v9250, %v9247
  %v9314 = vpack.c.b16 %v9254, %v9251
  %v9315 = vpack.c.b16 %v9255, %v9252
  %v9316 = vpack.c.b16 %v9256, %v9253
  %v9317 = vpack.c.b16 %v9260, %v9257
  %v9318 = vpack.c.b16 %v9261, %v9258
  %v9319 = vpack.c.b16 %v9262, %v9259
  %v9320 = vpack.c.b16 %v9266, %v9263
  %v9321 = vpack.c.b16 %v9267, %v9264
  %v9322 = vpack.c.b16 %v9268, %v9265
  %v9323 = vpack.c.b16 %v9272, %v9269
  %v9324 = vpack.c.b16 %v9273, %v9270
  %v9325 = vpack.c.b16 %v9274, %v9271
  %v9326 = vpack.c.b16 %v9278, %v9275
  %v9327 = vpack.c.b16 %v9279, %v9276
  %v9328 = vpack.c.b16 %v9280, %v9277
  %9377 = vmatprep.subr.bf16.mxu0 %v9282
  %9378 = vmatpush1.bf16.msra.mxu0 %v9281
  %9379 = vmatprep.subr.bf16.mxu0 %v9285
  %9380 = vmatpush1.bf16.msra.mxu0 %v9284
  %9381 = vmatprep.subr.bf16.mxu0 %v9288
  %9382 = vmatpush1.bf16.msra.mxu0 %v9287
  %9383 = vmatprep.subr.bf16.mxu0 %v9291
  %9384 = vmatpush1.bf16.msra.mxu0 %v9290
  %9385 = vmatprep.subr.bf16.mxu0 %v9294
  %9386 = vmatpush1.bf16.msra.mxu0 %v9293
  %9387 = vmatprep.subr.bf16.mxu0 %v9297
  %9388 = vmatpush1.bf16.msra.mxu0 %v9296
  %9389 = vmatprep.subr.bf16.mxu0 %v9300
  %9390 = vmatpush1.bf16.msra.mxu0 %v9299
  %9391 = vmatprep.subr.bf16.mxu0 %v9303
  %9392 = vmatpush1.bf16.msra.mxu0 %v9302
  %9393 = vmatprep.subr.bf16.mxu0 %v9306
  %9394 = vmatpush1.bf16.msra.mxu0 %v9305
  %9395 = vmatprep.subr.bf16.mxu0 %v9309
  %9396 = vmatpush1.bf16.msra.mxu0 %v9308
  %9397 = vmatprep.subr.bf16.mxu0 %v9312
  %9398 = vmatpush1.bf16.msra.mxu0 %v9311
  %9399 = vmatprep.subr.bf16.mxu0 %v9315
  %9400 = vmatpush1.bf16.msra.mxu0 %v9314
  %9401 = vmatprep.subr.bf16.mxu0 %v9318
  %9402 = vmatpush1.bf16.msra.mxu0 %v9317
  %9403 = vmatprep.subr.bf16.mxu0 %v9321
  %9404 = vmatpush1.bf16.msra.mxu0 %v9320
  %9405 = vmatprep.subr.bf16.mxu0 %v9324
  %9406 = vmatpush1.bf16.msra.mxu0 %v9323
  %9407 = vmatprep.subr.bf16.mxu0 %v9327
  %9408 = vmatpush1.bf16.msra.mxu0 %v9326
  %9409 = vmatprep.mubr.bf16.mxu0 %v9047
  %9410 = vmatmul.mubr.bf16.gmra.mrb[0].mxu0 %v9046
  %v9411 = vpop.f32.mrb[0].mxu0
  %v9412 = vadd.f32 0.0, %v9411
  %v9413 = vpop.f32.mrb[0].mxu0
  %v9414 = vadd.f32 0.0, %v9413
  %v9415 = vpop.f32.mrb[0].mxu0
  %v9416 = vadd.f32 0.0, %v9415
  %v9417 = vpop.f32.mrb[0].mxu0
  %v9418 = vadd.f32 0.0, %v9417
  %9419 = vmatprep.mubr.bf16.mxu0 %v9048
  %9420 = vmatmul.mubr.bf16.gmra.mrb[0].mxu0 %v9047
  %v9421 = vpop.f32.mrb[0].mxu0
  %v9422 = vadd.f32 0.0, %v9421
  %v9423 = vpop.f32.mrb[0].mxu0
  %v9424 = vadd.f32 0.0, %v9423
  %v9425 = vpop.f32.mrb[0].mxu0
  %v9426 = vadd.f32 0.0, %v9425
  %v9427 = vpop.f32.mrb[0].mxu0
  %v9428 = vadd.f32 0.0, %v9427
  %9429 = vmatprep.mubr.bf16.mxu0 %v9049
  %9430 = vmatmul.mubr.bf16.gmra.mrb[0].mxu0 %v9048
  %v9431 = vpop.f32.mrb[0].mxu0
  %v9432 = vadd.f32 0.0, %v9431
  %v9433 = vpop.f32.mrb[0].mxu0
  %v9434 = vadd.f32 0.0, %v9433
  %v9435 = vpop.f32.mrb[0].mxu0
  %v9436 = vadd.f32 0.0, %v9435
  %v9437 = vpop.f32.mrb[0].mxu0
  %v9438 = vadd.f32 0.0, %v9437
  %9439 = vmatprep.mubr.bf16.mxu0 %v9050
  %9440 = vmatmul.mubr.bf16.gmra.mrb[0].mxu0 %v9049
  %v9441 = vpop.f32.mrb[0].mxu0
  %v9442 = vadd.f32 0.0, %v9441
  %v9443 = vpop.f32.mrb[0].mxu0
  %v9444 = vadd.f32 0.0, %v9443
  %v9445 = vpop.f32.mrb[0].mxu0
  %v9446 = vadd.f32 0.0, %v9445
  %v9447 = vpop.f32.mrb[0].mxu0
  %v9448 = vadd.f32 0.0, %v9447
  %9449 = vmatprep.mubr.bf16.mxu0 %v9051
  %9450 = vmatmul.mubr.bf16.gmra.mrb[0].mxu0 %v9050
  %v9451 = vpop.f32.mrb[0].mxu0
  %v9452 = vadd.f32 0.0, %v9451
  %v9453 = vpop.f32.mrb[0].mxu0
  %v9454 = vadd.f32 0.0, %v9453
  %v9455 = vpop.f32.mrb[0].mxu0
  %v9456 = vadd.f32 0.0, %v9455
  %v9457 = vpop.f32.mrb[0].mxu0
  %v9458 = vadd.f32 0.0, %v9457
  %9459 = vmatprep.mubr.bf16.mxu0 %v9052
  %9460 = vmatmul.mubr.bf16.gmra.mrb[0].mxu0 %v9051
  %v9461 = vpop.f32.mrb[0].mxu0
  %v9462 = vadd.f32 0.0, %v9461
  %v9463 = vpop.f32.mrb[0].mxu0
  %v9464 = vadd.f32 0.0, %v9463
  %v9465 = vpop.f32.mrb[0].mxu0
  %v9466 = vadd.f32 0.0, %v9465
  %v9467 = vpop.f32.mrb[0].mxu0
  %v9468 = vadd.f32 0.0, %v9467
  %9469 = vmatprep.mubr.bf16.mxu0 %v9053
  %9470 = vmatmul.mubr.bf16.gmra.mrb[0].mxu0 %v9052
  %v9471 = vpop.f32.mrb[0].mxu0
  %v9472 = vadd.f32 0.0, %v9471
  %v9473 = vpop.f32.mrb[0].mxu0
  %v9474 = vadd.f32 0.0, %v9473
  %v9475 = vpop.f32.mrb[0].mxu0
  %v9476 = vadd.f32 0.0, %v9475
  %v9477 = vpop.f32.mrb[0].mxu0
  %v9478 = vadd.f32 0.0, %v9477
  %9479 = vmatprep.mubr.bf16.mxu0 %v9054
  %9480 = vmatmul.mubr.bf16.gmra.mrb[0].mxu0 %v9053
  %v9481 = vpop.f32.mrb[0].mxu0
  %v9482 = vadd.f32 0.0, %v9481
  %v9483 = vpop.f32.mrb[0].mxu0
  %v9484 = vadd.f32 0.0, %v9483
  %v9485 = vpop.f32.mrb[0].mxu0
  %v9486 = vadd.f32 0.0, %v9485
  %v9487 = vpop.f32.mrb[0].mxu0
  %v9488 = vadd.f32 0.0, %v9487
  %9489 = vmatprep.mubr.bf16.mxu0 %v9055
  %9490 = vmatmul.mubr.bf16.gmra.mrb[0].mxu0 %v9054
  %v9491 = vpop.f32.mrb[0].mxu0
  %v9492 = vadd.f32 0.0, %v9491
  %v9493 = vpop.f32.mrb[0].mxu0
  %v9494 = vadd.f32 0.0, %v9493
  %v9495 = vpop.f32.mrb[0].mxu0
  %v9496 = vadd.f32 0.0, %v9495
  %v9497 = vpop.f32.mrb[0].mxu0
  %v9498 = vadd.f32 0.0, %v9497
  %9499 = vdwg.mxu0
  %9500 = vmatprep.subr.bf16.mxu0 0
  %9501 = vmatpush1.bf16.msra.mxu0 %v9283
  %9502 = vmatprep.subr.bf16.mxu0 0
  %9503 = vmatpush1.bf16.msra.mxu0 %v9286
  %9504 = vmatprep.subr.bf16.mxu0 0
  %9505 = vmatpush1.bf16.msra.mxu0 %v9289
  %9506 = vmatprep.subr.bf16.mxu0 0
  %9507 = vmatpush1.bf16.msra.mxu0 %v9292
  %9508 = vmatprep.subr.bf16.mxu0 0
  %9509 = vmatpush1.bf16.msra.mxu0 %v9295
  %9510 = vmatprep.subr.bf16.mxu0 0
  %9511 = vmatpush1.bf16.msra.mxu0 %v9298
  %9512 = vmatprep.subr.bf16.mxu0 0
  %9513 = vmatpush1.bf16.msra.mxu0 %v9301
  %9514 = vmatprep.subr.bf16.mxu0 0
  %9515 = vmatpush1.bf16.msra.mxu0 %v9304
  %9516 = vmatprep.subr.bf16.mxu0 0
  %9517 = vmatpush1.bf16.msra.mxu0 %v9307
  %9518 = vmatprep.subr.bf16.mxu0 0
  %9519 = vmatpush1.bf16.msra.mxu0 %v9310
  %9520 = vmatprep.subr.bf16.mxu0 0
  %9521 = vmatpush1.bf16.msra.mxu0 %v9313
  %9522 = vmatprep.subr.bf16.mxu0 0
  %9523 = vmatpush1.bf16.msra.mxu0 %v9316
  %9524 = vmatprep.subr.bf16.mxu0 0
  %9525 = vmatpush1.bf16.msra.mxu0 %v9319
  %9526 = vmatprep.subr.bf16.mxu0 0
  %9527 = vmatpush1.bf16.msra.mxu0 %v9322
  %9528 = vmatprep.subr.bf16.mxu0 0
  %9529 = vmatpush1.bf16.msra.mxu0 %v9325
  %9530 = vmatprep.subr.bf16.mxu0 0
  %9531 = vmatpush1.bf16.msra.mxu0 %v9328
  %9532 = vmatprep.mubr.bf16.mxu0 %v9047
  %9533 = vmatmul.mubr.bf16.gmra.mrb[0].mxu0 %v9046
  %v9534 = vpop.f32.mrb[0].mxu0
  %v9535 = vadd.f32 0.0, %v9534
  %v9536 = vpop.f32.mrb[0].mxu0
  %v9537 = vpop.f32.mrb[0].mxu0
  %v9538 = vadd.f32 0.0, %v9537
  %v9539 = vpop.f32.mrb[0].mxu0
  %9540 = vmatprep.mubr.bf16.mxu0 %v9048
  %9541 = vmatmul.mubr.bf16.gmra.mrb[0].mxu0 %v9047
  %v9542 = vpop.f32.mrb[0].mxu0
  %v9543 = vadd.f32 0.0, %v9542
  %v9544 = vpop.f32.mrb[0].mxu0
  %v9545 = vpop.f32.mrb[0].mxu0
  %v9546 = vadd.f32 0.0, %v9545
  %v9547 = vpop.f32.mrb[0].mxu0
  %9548 = vmatprep.mubr.bf16.mxu0 %v9049
  %9549 = vmatmul.mubr.bf16.gmra.mrb[0].mxu0 %v9048
  %v9550 = vpop.f32.mrb[0].mxu0
  %v9551 = vadd.f32 0.0, %v9550
  %v9552 = vpop.f32.mrb[0].mxu0
  %v9553 = vpop.f32.mrb[0].mxu0
  %v9554 = vadd.f32 0.0, %v9553
  %v9555 = vpop.f32.mrb[0].mxu0
  %9556 = vmatprep.mubr.bf16.mxu0 %v9050
  %9557 = vmatmul.mubr.bf16.gmra.mrb[0].mxu0 %v9049
  %v9558 = vpop.f32.mrb[0].mxu0
  %v9559 = vadd.f32 0.0, %v9558
  %v9560 = vpop.f32.mrb[0].mxu0
  %v9561 = vpop.f32.mrb[0].mxu0
  %v9562 = vadd.f32 0.0, %v9561
  %v9563 = vpop.f32.mrb[0].mxu0
  %9564 = vmatprep.mubr.bf16.mxu0 %v9051
  %9565 = vmatmul.mubr.bf16.gmra.mrb[0].mxu0 %v9050
  %v9566 = vpop.f32.mrb[0].mxu0
  %v9567 = vadd.f32 0.0, %v9566
  %v9568 = vpop.f32.mrb[0].mxu0
  %v9569 = vpop.f32.mrb[0].mxu0
  %v9570 = vadd.f32 0.0, %v9569
  %v9571 = vpop.f32.mrb[0].mxu0
  %9572 = vmatprep.mubr.bf16.mxu0 %v9052
  %9573 = vmatmul.mubr.bf16.gmra.mrb[0].mxu0 %v9051
  %v9574 = vpop.f32.mrb[0].mxu0
  %v9575 = vadd.f32 0.0, %v9574
  %v9576 = vpop.f32.mrb[0].mxu0
  %v9577 = vpop.f32.mrb[0].mxu0
  %v9578 = vadd.f32 0.0, %v9577
  %v9579 = vpop.f32.mrb[0].mxu0
  %9580 = vmatprep.mubr.bf16.mxu0 %v9053
  %9581 = vmatmul.mubr.bf16.gmra.mrb[0].mxu0 %v9052
  %v9582 = vpop.f32.mrb[0].mxu0
  %v9583 = vadd.f32 0.0, %v9582
  %v9584 = vpop.f32.mrb[0].mxu0
  %v9585 = vpop.f32.mrb[0].mxu0
  %v9586 = vadd.f32 0.0, %v9585
  %v9587 = vpop.f32.mrb[0].mxu0
  %9588 = vmatprep.mubr.bf16.mxu0 %v9054
  %9589 = vmatmul.mubr.bf16.gmra.mrb[0].mxu0 %v9053
  %v9590 = vpop.f32.mrb[0].mxu0
  %v9591 = vadd.f32 0.0, %v9590
  %v9592 = vpop.f32.mrb[0].mxu0
  %v9593 = vpop.f32.mrb[0].mxu0
  %v9594 = vadd.f32 0.0, %v9593
  %v9595 = vpop.f32.mrb[0].mxu0
  %9596 = vmatprep.mubr.bf16.mxu0 %v9055
  %9597 = vmatmul.mubr.bf16.gmra.mrb[0].mxu0 %v9054
  %v9598 = vpop.f32.mrb[0].mxu0
  %v9599 = vadd.f32 0.0, %v9598
  %v9600 = vpop.f32.mrb[0].mxu0
  %v9601 = vpop.f32.mrb[0].mxu0
  %v9602 = vadd.f32 0.0, %v9601
  %v9603 = vpop.f32.mrb[0].mxu0
  %9604 = vdwg.mxu0
  %v9605 = vadd.f32 %v7554, %v9412
  %v9606 = vadd.f32 %v7555, %v9414
  %v9607 = vadd.f32 %v7556, %v9535
  %v9608 = vadd.f32 %v7557, %v9416
  %v9609 = vadd.f32 %v7558, %v9418
  %v9610 = vadd.f32 %v7559, %v9538
  %v9611 = vadd.f32 %v7560, %v9422
  %v9612 = vadd.f32 %v7561, %v9424
  %v9613 = vadd.f32 %v7562, %v9543
  %v9614 = vadd.f32 %v7563, %v9426
  %v9615 = vadd.f32 %v7564, %v9428
  %v9616 = vadd.f32 %v7565, %v9546
  %v9617 = vadd.f32 %v7566, %v9432
  %v9618 = vadd.f32 %v7567, %v9434
  %v9619 = vadd.f32 %v7568, %v9551
  %v9620 = vadd.f32 %v7569, %v9436
  %v9621 = vadd.f32 %v7570, %v9438
  %v9622 = vadd.f32 %v7571, %v9554
  %v9623 = vadd.f32 %v7572, %v9442
  %v9624 = vadd.f32 %v7573, %v9444
  %v9625 = vadd.f32 %v7574, %v9559
  %v9626 = vadd.f32 %v7575, %v9446
  %v9627 = vadd.f32 %v7576, %v9448
  %v9628 = vadd.f32 %v7577, %v9562
  %v9629 = vadd.f32 %v7578, %v9452
  %v9630 = vadd.f32 %v7579, %v9454
  %v9631 = vadd.f32 %v7580, %v9567
  %v9632 = vadd.f32 %v7581, %v9456
  %v9633 = vadd.f32 %v7582, %v9458
  %v9634 = vadd.f32 %v7583, %v9570
  %v9635 = vadd.f32 %v7584, %v9462
  %v9636 = vadd.f32 %v7585, %v9464
  %v9637 = vadd.f32 %v7586, %v9575
  %v9638 = vadd.f32 %v7587, %v9466
  %v9639 = vadd.f32 %v7588, %v9468
  %v9640 = vadd.f32 %v7589, %v9578
  %v9641 = vadd.f32 %v7590, %v9472
  %v9642 = vadd.f32 %v7591, %v9474
  %v9643 = vadd.f32 %v7592, %v9583
  %v9644 = vadd.f32 %v7593, %v9476
  %v9645 = vadd.f32 %v7594, %v9478
  %v9646 = vadd.f32 %v7595, %v9586
  %v9647 = vadd.f32 %v7596, %v9482
  %v9648 = vadd.f32 %v7597, %v9484
  %v9649 = vadd.f32 %v7598, %v9591
  %v9650 = vadd.f32 %v7599, %v9486
  %v9651 = vadd.f32 %v7600, %v9488
  %v9652 = vadd.f32 %v7601, %v9594
  %v9653 = vadd.f32 %v7602, %v9492
  %v9654 = vadd.f32 %v7603, %v9494
  %v9655 = vadd.f32 %v7604, %v9599
  %v9656 = vadd.f32 %v7605, %v9496
  %v9657 = vadd.f32 %v7606, %v9498
  %v9658 = vadd.f32 %v7607, %v9602
  %v9659 = vld [vmem:[%s4] sm:$0x7]
  %v9661 = vlaneseq
  %v9662 = vshrl.u32 %v9661, 7
  %v9663 = vsub.s32 0, %v9662
  %v9664 = vrot.slane %v9659, %v9663
  %v9665 = vlaneseq
  %v9666 = vshrl.u32 %v9665, 7
  %v9667 = vsub.s32 1, %v9666
  %v9668 = vrot.slane %v9659, %v9667
  %v9669 = vlaneseq
  %v9670 = vshrl.u32 %v9669, 7
  %v9671 = vsub.s32 2, %v9670
  %v9672 = vrot.slane %v9659, %v9671
  %v9676 = vadd.f32 %v9605, %v9664
  %v9677 = vadd.f32 %v9606, %v9668
  %v9678 = vadd.f32 %v9607, %v9672
  %v9679 = vadd.f32 %v9608, %v9664
  %v9680 = vadd.f32 %v9609, %v9668
  %v9681 = vadd.f32 %v9610, %v9672
  %v9682 = vadd.f32 %v9611, %v9664
  %v9683 = vadd.f32 %v9612, %v9668
  %v9684 = vadd.f32 %v9613, %v9672
  %v9685 = vadd.f32 %v9614, %v9664
  %v9686 = vadd.f32 %v9615, %v9668
  %v9687 = vadd.f32 %v9616, %v9672
  %v9688 = vadd.f32 %v9617, %v9664
  %v9689 = vadd.f32 %v9618, %v9668
  %v9690 = vadd.f32 %v9619, %v9672
  %v9691 = vadd.f32 %v9620, %v9664
  %v9692 = vadd.f32 %v9621, %v9668
  %v9693 = vadd.f32 %v9622, %v9672
  %v9694 = vadd.f32 %v9623, %v9664
  %v9695 = vadd.f32 %v9624, %v9668
  %v9696 = vadd.f32 %v9625, %v9672
  %v9697 = vadd.f32 %v9626, %v9664
  %v9698 = vadd.f32 %v9627, %v9668
  %v9699 = vadd.f32 %v9628, %v9672
  %v9700 = vadd.f32 %v9629, %v9664
  %v9701 = vadd.f32 %v9630, %v9668
  %v9702 = vadd.f32 %v9631, %v9672
  %v9703 = vadd.f32 %v9632, %v9664
  %v9704 = vadd.f32 %v9633, %v9668
  %v9705 = vadd.f32 %v9634, %v9672
  %v9706 = vadd.f32 %v9635, %v9664
  %v9707 = vadd.f32 %v9636, %v9668
  %v9708 = vadd.f32 %v9637, %v9672
  %v9709 = vadd.f32 %v9638, %v9664
  %v9710 = vadd.f32 %v9639, %v9668
  %v9711 = vadd.f32 %v9640, %v9672
  %v9712 = vadd.f32 %v9641, %v9664
  %v9713 = vadd.f32 %v9642, %v9668
  %v9714 = vadd.f32 %v9643, %v9672
  %v9715 = vadd.f32 %v9644, %v9664
  %v9716 = vadd.f32 %v9645, %v9668
  %v9717 = vadd.f32 %v9646, %v9672
  %v9718 = vadd.f32 %v9647, %v9664
  %v9719 = vadd.f32 %v9648, %v9668
  %v9720 = vadd.f32 %v9649, %v9672
  %v9721 = vadd.f32 %v9650, %v9664
  %v9722 = vadd.f32 %v9651, %v9668
  %v9723 = vadd.f32 %v9652, %v9672
  %v9724 = vadd.f32 %v9653, %v9664
  %v9725 = vadd.f32 %v9654, %v9668
  %v9726 = vadd.f32 %v9655, %v9672
  %v9727 = vadd.f32 %v9656, %v9664
  %v9728 = vadd.f32 %v9657, %v9668
  %v9729 = vadd.f32 %v9658, %v9672
  %v9730 = vmax.f32 %v9676, 0.0
  %v9731 = vmax.f32 %v9677, 0.0
  %v9732 = vmax.f32 %v9678, 0.0
  %v9733 = vmax.f32 %v9679, 0.0
  %v9734 = vmax.f32 %v9680, 0.0
  %v9735 = vmax.f32 %v9681, 0.0
  %v9736 = vmax.f32 %v9682, 0.0
  %v9737 = vmax.f32 %v9683, 0.0
  %v9738 = vmax.f32 %v9684, 0.0
  %v9739 = vmax.f32 %v9685, 0.0
  %v9740 = vmax.f32 %v9686, 0.0
  %v9741 = vmax.f32 %v9687, 0.0
  %v9742 = vmax.f32 %v9688, 0.0
  %v9743 = vmax.f32 %v9689, 0.0
  %v9744 = vmax.f32 %v9690, 0.0
  %v9745 = vmax.f32 %v9691, 0.0
  %v9746 = vmax.f32 %v9692, 0.0
  %v9747 = vmax.f32 %v9693, 0.0
  %v9748 = vmax.f32 %v9694, 0.0
  %v9749 = vmax.f32 %v9695, 0.0
  %v9750 = vmax.f32 %v9696, 0.0
  %v9751 = vmax.f32 %v9697, 0.0
  %v9752 = vmax.f32 %v9698, 0.0
  %v9753 = vmax.f32 %v9699, 0.0
  %v9754 = vmax.f32 %v9700, 0.0
  %v9755 = vmax.f32 %v9701, 0.0
  %v9756 = vmax.f32 %v9702, 0.0
  %v9757 = vmax.f32 %v9703, 0.0
  %v9758 = vmax.f32 %v9704, 0.0
  %v9759 = vmax.f32 %v9705, 0.0
  %v9760 = vmax.f32 %v9706, 0.0
  %v9761 = vmax.f32 %v9707, 0.0
  %v9762 = vmax.f32 %v9708, 0.0
  %v9763 = vmax.f32 %v9709, 0.0
  %v9764 = vmax.f32 %v9710, 0.0
  %v9765 = vmax.f32 %v9711, 0.0
  %v9766 = vmax.f32 %v9712, 0.0
  %v9767 = vmax.f32 %v9713, 0.0
  %v9768 = vmax.f32 %v9714, 0.0
  %v9769 = vmax.f32 %v9715, 0.0
  %v9770 = vmax.f32 %v9716, 0.0
  %v9771 = vmax.f32 %v9717, 0.0
  %v9772 = vmax.f32 %v9718, 0.0
  %v9773 = vmax.f32 %v9719, 0.0
  %v9774 = vmax.f32 %v9720, 0.0
  %v9775 = vmax.f32 %v9721, 0.0
  %v9776 = vmax.f32 %v9722, 0.0
  %v9777 = vmax.f32 %v9723, 0.0
  %v9778 = vmax.f32 %v9724, 0.0
  %v9779 = vmax.f32 %v9725, 0.0
  %v9780 = vmax.f32 %v9726, 0.0
  %v9781 = vmax.f32 %v9727, 0.0
  %v9782 = vmax.f32 %v9728, 0.0
  %v9783 = vmax.f32 %v9729, 0.0
  %v9784 = vpack.c.bf16 %v9733, %v9730
  %v9785 = vpack.c.bf16 %v9734, %v9731
  %v9786 = vpack.c.bf16 %v9735, %v9732
  %v9787 = vpack.c.bf16 %v9739, %v9736
  %v9788 = vpack.c.bf16 %v9740, %v9737
  %v9789 = vpack.c.bf16 %v9741, %v9738
  %v9790 = vpack.c.bf16 %v9745, %v9742
  %v9791 = vpack.c.bf16 %v9746, %v9743
  %v9792 = vpack.c.bf16 %v9747, %v9744
  %v9793 = vpack.c.bf16 %v9751, %v9748
  %v9794 = vpack.c.bf16 %v9752, %v9749
  %v9795 = vpack.c.bf16 %v9753, %v9750
  %v9796 = vpack.c.bf16 %v9757, %v9754
  %v9797 = vpack.c.bf16 %v9758, %v9755
  %v9798 = vpack.c.bf16 %v9759, %v9756
  %v9799 = vpack.c.bf16 %v9763, %v9760
  %v9800 = vpack.c.bf16 %v9764, %v9761
  %v9801 = vpack.c.bf16 %v9765, %v9762
  %v9802 = vpack.c.bf16 %v9769, %v9766
  %v9803 = vpack.c.bf16 %v9770, %v9767
  %v9804 = vpack.c.bf16 %v9771, %v9768
  %v9805 = vpack.c.bf16 %v9775, %v9772
  %v9806 = vpack.c.bf16 %v9776, %v9773
  %v9807 = vpack.c.bf16 %v9777, %v9774
  %v9808 = vpack.c.bf16 %v9781, %v9778
  %v9809 = vpack.c.bf16 %v9782, %v9779
  %v9810 = vpack.c.bf16 %v9783, %v9780
  %v9811 = vld [vmem:[%s5] sm:$0xff]
  %v9812 = vld [vmem:[%s5 + $0x8] sm:$0xff]
  %v9813 = vld [vmem:[%s5 + $0x10] sm:$0xff]
  %v9814 = vld [vmem:[%s5 + $0x18] sm:$0xff]
  %v9815 = vld [vmem:[%s5 + $0x20] sm:$0xff]
  %v9816 = vld [vmem:[%s5 + $0x28] sm:$0xff]
  %v9817 = vld [vmem:[%s5 + $0x30] sm:$0xff]
  %v9818 = vld [vmem:[%s5 + $0x38] sm:$0xff]
  %v9819 = vld [vmem:[%s5 + $0x40] sm:$0xff]
  %v9820 = vld [vmem:[%s5 + $0x48] sm:$0xff]
  %v9821 = vld [vmem:[%s5 + $0x50] sm:$0xff]
  %v9822 = vld [vmem:[%s5 + $0x58] sm:$0xff]
  %v9823 = vld [vmem:[%s5 + $0x60] sm:$0xff]
  %v9824 = vld [vmem:[%s5 + $0x68] sm:$0xff]
  %v9825 = vld [vmem:[%s5 + $0x70] sm:$0xff]
  %v9826 = vld [vmem:[%s5 + $0x78] sm:$0xff]
  %v9827 = vld [vmem:[%s5 + $0x80] sm:$0xff]
  %v9828 = vld [vmem:[%s5 + $0x88] sm:$0xff]
  %v9829 = vld [vmem:[%s5 + $0x90] sm:$0xff]
  %v9830 = vld [vmem:[%s5 + $0x98] sm:$0xff]
  %v9831 = vld [vmem:[%s5 + $0xa0] sm:$0xff]
  %v9832 = vld [vmem:[%s5 + $0xa8] sm:$0xff]
  %v9833 = vld [vmem:[%s5 + $0xb0] sm:$0xff]
  %v9834 = vld [vmem:[%s5 + $0xb8] sm:$0xff]
  %v9835 = vld [vmem:[%s5 + $0xc0] sm:$0xff]
  %v9836 = vld [vmem:[%s5 + $0xc8] sm:$0xff]
  %v9837 = vld [vmem:[%s5 + $0xd0] sm:$0xff]
  %v9838 = vld [vmem:[%s5 + $0xd8] sm:$0xff]
  %v9839 = vld [vmem:[%s5 + $0xe0] sm:$0xff]
  %v9840 = vld [vmem:[%s5 + $0xe8] sm:$0xff]
  %v9841 = vld [vmem:[%s5 + $0xf0] sm:$0xff]
  %v9842 = vld [vmem:[%s5 + $0xf8] sm:$0xff]
  %v9843 = vld [vmem:[%s5 + $0x100] sm:$0xff]
  %v9844 = vld [vmem:[%s5 + $0x108] sm:$0xff]
  %v9845 = vld [vmem:[%s5 + $0x110] sm:$0xff]
  %v9846 = vld [vmem:[%s5 + $0x118] sm:$0xff]
  %s9847 = scalar_lea.vmem %s5, 288
  %v9848 = vld [vmem:[%s9847] sm:$0xff]
  %v9849 = vld [vmem:[%s9847 + $0x8] sm:$0xff]
  %v9850 = vld [vmem:[%s9847 + $0x10] sm:$0xff]
  %v9851 = vld [vmem:[%s9847 + $0x18] sm:$0xff]
  %v9852 = vld [vmem:[%s9847 + $0x20] sm:$0xff]
  %v9853 = vld [vmem:[%s9847 + $0x28] sm:$0xff]
  %v9854 = vld [vmem:[%s9847 + $0x30] sm:$0xff]
  %v9855 = vld [vmem:[%s9847 + $0x38] sm:$0xff]
  %v9856 = vld [vmem:[%s9847 + $0x40] sm:$0xff]
  %v9857 = vld [vmem:[%s9847 + $0x48] sm:$0xff]
  %v9858 = vld [vmem:[%s9847 + $0x50] sm:$0xff]
  %v9859 = vld [vmem:[%s9847 + $0x58] sm:$0xff]
  %v9860 = vld [vmem:[%s9847 + $0x60] sm:$0xff]
  %v9861 = vld [vmem:[%s9847 + $0x68] sm:$0xff]
  %v9862 = vld [vmem:[%s9847 + $0x70] sm:$0xff]
  %v9863 = vld [vmem:[%s9847 + $0x78] sm:$0xff]
  %v9864 = vld [vmem:[%s9847 + $0x80] sm:$0xff]
  %v9865 = vld [vmem:[%s9847 + $0x88] sm:$0xff]
  %v9866 = vld [vmem:[%s9847 + $0x90] sm:$0xff]
  %v9867 = vld [vmem:[%s9847 + $0x98] sm:$0xff]
  %v9868 = vld [vmem:[%s9847 + $0xa0] sm:$0xff]
  %v9869 = vld [vmem:[%s9847 + $0xa8] sm:$0xff]
  %v9870 = vld [vmem:[%s9847 + $0xb0] sm:$0xff]
  %v9871 = vld [vmem:[%s9847 + $0xb8] sm:$0xff]
  %v9872 = vld [vmem:[%s9847 + $0xc0] sm:$0xff]
  %v9873 = vld [vmem:[%s9847 + $0xc8] sm:$0xff]
  %v9874 = vld [vmem:[%s9847 + $0xd0] sm:$0xff]
  %v9875 = vld [vmem:[%s9847 + $0xd8] sm:$0xff]
  %v9876 = vld [vmem:[%s9847 + $0xe0] sm:$0xff]
  %v9877 = vld [vmem:[%s9847 + $0xe8] sm:$0xff]
  %v9878 = vld [vmem:[%s9847 + $0xf0] sm:$0xff]
  %v9879 = vld [vmem:[%s9847 + $0xf8] sm:$0xff]
  %v9880 = vld [vmem:[%s9847 + $0x100] sm:$0xff]
  %v9881 = vld [vmem:[%s9847 + $0x108] sm:$0xff]
  %v9882 = vld [vmem:[%s9847 + $0x110] sm:$0xff]
  %v9883 = vld [vmem:[%s9847 + $0x118] sm:$0xff]
  %v9920 = vunpack.c.l.b16 %v9848
  %v9921 = vunpack.c.h.b16 %v9848
  %v9922 = vunpack.c.l.b16 %v9849
  %v9923 = vunpack.c.h.b16 %v9849
  %v9924 = vunpack.c.l.b16 %v9850
  %v9925 = vunpack.c.h.b16 %v9850
  %v9926 = vunpack.c.l.b16 %v9851
  %v9927 = vunpack.c.h.b16 %v9851
  %v9928 = vunpack.c.l.b16 %v9852
  %v9929 = vunpack.c.h.b16 %v9852
  %v9930 = vunpack.c.l.b16 %v9853
  %v9931 = vunpack.c.h.b16 %v9853
  %v9932 = vunpack.c.l.b16 %v9854
  %v9933 = vunpack.c.h.b16 %v9854
  %v9934 = vunpack.c.l.b16 %v9855
  %v9935 = vunpack.c.h.b16 %v9855
  %v9936 = vunpack.c.l.b16 %v9856
  %v9937 = vunpack.c.h.b16 %v9856
  %v9938 = vunpack.c.l.b16 %v9857
  %v9939 = vunpack.c.h.b16 %v9857
  %v9940 = vunpack.c.l.b16 %v9858
  %v9941 = vunpack.c.h.b16 %v9858
  %v9942 = vunpack.c.l.b16 %v9859
  %v9943 = vunpack.c.h.b16 %v9859
  %v9944 = vunpack.c.l.b16 %v9860
  %v9945 = vunpack.c.h.b16 %v9860
  %v9946 = vunpack.c.l.b16 %v9861
  %v9947 = vunpack.c.h.b16 %v9861
  %v9948 = vunpack.c.l.b16 %v9862
  %v9949 = vunpack.c.h.b16 %v9862
  %v9950 = vunpack.c.l.b16 %v9863
  %v9951 = vunpack.c.h.b16 %v9863
  %v9952 = vunpack.c.l.b16 %v9864
  %v9953 = vunpack.c.h.b16 %v9864
  %v9954 = vunpack.c.l.b16 %v9865
  %v9955 = vunpack.c.h.b16 %v9865
  %v9956 = vunpack.c.l.b16 %v9866
  %v9957 = vunpack.c.h.b16 %v9866
  %v9958 = vunpack.c.l.b16 %v9867
  %v9959 = vunpack.c.h.b16 %v9867
  %v9960 = vunpack.c.l.b16 %v9868
  %v9961 = vunpack.c.h.b16 %v9868
  %v9962 = vunpack.c.l.b16 %v9869
  %v9963 = vunpack.c.h.b16 %v9869
  %v9964 = vunpack.c.l.b16 %v9870
  %v9965 = vunpack.c.h.b16 %v9870
  %v9966 = vunpack.c.l.b16 %v9871
  %v9967 = vunpack.c.h.b16 %v9871
  %v9968 = vunpack.c.l.b16 %v9872
  %v9969 = vunpack.c.h.b16 %v9872
  %v9970 = vunpack.c.l.b16 %v9873
  %v9971 = vunpack.c.h.b16 %v9873
  %v9972 = vunpack.c.l.b16 %v9874
  %v9973 = vunpack.c.h.b16 %v9874
  %v9974 = vunpack.c.l.b16 %v9875
  %v9975 = vunpack.c.h.b16 %v9875
  %v9976 = vunpack.c.l.b16 %v9876
  %v9977 = vunpack.c.h.b16 %v9876
  %v9978 = vunpack.c.l.b16 %v9877
  %v9979 = vunpack.c.h.b16 %v9877
  %v9980 = vunpack.c.l.b16 %v9878
  %v9981 = vunpack.c.h.b16 %v9878
  %v9982 = vunpack.c.l.b16 %v9879
  %v9983 = vunpack.c.h.b16 %v9879
  %v9984 = vunpack.c.l.b16 %v9880
  %v9985 = vunpack.c.h.b16 %v9880
  %v9986 = vunpack.c.l.b16 %v9881
  %v9987 = vunpack.c.h.b16 %v9881
  %v9988 = vunpack.c.l.b16 %v9882
  %v9989 = vunpack.c.h.b16 %v9882
  %v9990 = vunpack.c.l.b16 %v9883
  %v9991 = vunpack.c.h.b16 %v9883
  %v9992 = vpack.c.b16 %v9922, %v9920
  %v9993 = vpack.c.b16 %v9923, %v9921
  %v9994 = vpack.c.b16 %v9926, %v9924
  %v9995 = vpack.c.b16 %v9927, %v9925
  %v9996 = vpack.c.b16 %v9930, %v9928
  %v9997 = vpack.c.b16 %v9931, %v9929
  %v9998 = vpack.c.b16 %v9934, %v9932
  %v9999 = vpack.c.b16 %v9935, %v9933
  %v10000 = vpack.c.b16 %v9938, %v9936
  %v10001 = vpack.c.b16 %v9939, %v9937
  %v10002 = vpack.c.b16 %v9942, %v9940
  %v10003 = vpack.c.b16 %v9943, %v9941
  %v10004 = vpack.c.b16 %v9946, %v9944
  %v10005 = vpack.c.b16 %v9947, %v9945
  %v10006 = vpack.c.b16 %v9950, %v9948
  %v10007 = vpack.c.b16 %v9951, %v9949
  %v10008 = vpack.c.b16 %v9954, %v9952
  %v10009 = vpack.c.b16 %v9955, %v9953
  %v10010 = vpack.c.b16 %v9958, %v9956
  %v10011 = vpack.c.b16 %v9959, %v9957
  %v10012 = vpack.c.b16 %v9962, %v9960
  %v10013 = vpack.c.b16 %v9963, %v9961
  %v10014 = vpack.c.b16 %v9966, %v9964
  %v10015 = vpack.c.b16 %v9967, %v9965
  %v10016 = vpack.c.b16 %v9970, %v9968
  %v10017 = vpack.c.b16 %v9971, %v9969
  %v10018 = vpack.c.b16 %v9974, %v9972
  %v10019 = vpack.c.b16 %v9975, %v9973
  %v10020 = vpack.c.b16 %v9978, %v9976
  %v10021 = vpack.c.b16 %v9979, %v9977
  %v10022 = vpack.c.b16 %v9982, %v9980
  %v10023 = vpack.c.b16 %v9983, %v9981
  %v10024 = vpack.c.b16 %v9986, %v9984
  %v10025 = vpack.c.b16 %v9987, %v9985
  %v10026 = vpack.c.b16 %v9990, %v9988
  %v10027 = vpack.c.b16 %v9991, %v9989
  %vm10064 = vcmask 261120
  %v10066 = vsel %vm10064, %v9789, 0
  %10068 = vmatprep.subr.bf16.mxu0 %v9993
  %10069 = vmatpush1.bf16.msra.mxu0 %v9992
  %10070 = vmatprep.subr.bf16.mxu0 %v9995
  %10071 = vmatpush1.bf16.msra.mxu0 %v9994
  %10072 = vmatprep.subr.bf16.mxu0 %v9997
  %10073 = vmatpush1.bf16.msra.mxu0 %v9996
  %10074 = vmatprep.subr.bf16.mxu0 %v9999
  %10075 = vmatpush1.bf16.msra.mxu0 %v9998
  %10076 = vmatprep.subr.bf16.mxu0 %v10001
  %10077 = vmatpush1.bf16.msra.mxu0 %v10000
  %10078 = vmatprep.subr.bf16.mxu0 %v10003
  %10079 = vmatpush1.bf16.msra.mxu0 %v10002
  %10080 = vmatprep.subr.bf16.mxu0 %v10005
  %10081 = vmatpush1.bf16.msra.mxu0 %v10004
  %10082 = vmatprep.subr.bf16.mxu0 %v10007
  %10083 = vmatpush1.bf16.msra.mxu0 %v10006
  %10084 = vmatprep.subr.bf16.mxu0 %v10009
  %10085 = vmatpush1.bf16.msra.mxu0 %v10008
  %10086 = vmatprep.subr.bf16.mxu0 %v10011
  %10087 = vmatpush1.bf16.msra.mxu0 %v10010
  %10088 = vmatprep.subr.bf16.mxu0 %v10013
  %10089 = vmatpush1.bf16.msra.mxu0 %v10012
  %10090 = vmatprep.subr.bf16.mxu0 %v10015
  %10091 = vmatpush1.bf16.msra.mxu0 %v10014
  %10092 = vmatprep.subr.bf16.mxu0 %v10017
  %10093 = vmatpush1.bf16.msra.mxu0 %v10016
  %10094 = vmatprep.subr.bf16.mxu0 %v10019
  %10095 = vmatpush1.bf16.msra.mxu0 %v10018
  %10096 = vmatprep.subr.bf16.mxu0 %v10021
  %10097 = vmatpush1.bf16.msra.mxu0 %v10020
  %10098 = vmatprep.subr.bf16.mxu0 %v10023
  %10099 = vmatpush1.bf16.msra.mxu0 %v10022
  %10100 = vmatprep.mubr.bf16.mxu0 %v9788
  %10101 = vmatmul.mubr.bf16.gmra.mrb[0].mxu0 %v9787
  %v10102 = vpop.f32.mrb[0].mxu0
  %v10103 = vadd.f32 0.0, %v10102
  %v10104 = vpop.f32.mrb[0].mxu0
  %v10105 = vadd.f32 0.0, %v10104
  %v10106 = vpop.f32.mrb[0].mxu0
  %v10107 = vadd.f32 0.0, %v10106
  %v10108 = vpop.f32.mrb[0].mxu0
  %v10109 = vadd.f32 0.0, %v10108
  %10110 = vdwg.mxu0
  %10111 = vmatprep.subr.bf16.mxu0 %v10025
  %10112 = vmatpush1.bf16.msra.mxu0 %v10024
  %10113 = vmatprep.subr.bf16.mxu0 %v10027
  %10114 = vmatpush1.bf16.msra.mxu0 %v10026
  %10115 = vmatprep.subr.bf16.mxu0 0
  %10116 = vmatpush1.bf16.msra.mxu0 0
  %10117 = vmatprep.subr.bf16.mxu0 0
  %10118 = vmatpush1.bf16.msra.mxu0 0
  %10119 = vmatprep.subr.bf16.mxu0 0
  %10120 = vmatpush1.bf16.msra.mxu0 0
  %10121 = vmatprep.subr.bf16.mxu0 0
  %10122 = vmatpush1.bf16.msra.mxu0 0
  %10123 = vmatprep.subr.bf16.mxu0 0
  %10124 = vmatpush1.bf16.msra.mxu0 0
  %10125 = vmatprep.subr.bf16.mxu0 0
  %10126 = vmatpush1.bf16.msra.mxu0 0
  %10127 = vmatprep.subr.bf16.mxu0 0
  %10128 = vmatpush1.bf16.msra.mxu0 0
  %10129 = vmatprep.subr.bf16.mxu0 0
  %10130 = vmatpush1.bf16.msra.mxu0 0
  %10131 = vmatprep.subr.bf16.mxu0 0
  %10132 = vmatpush1.bf16.msra.mxu0 0
  %10133 = vmatprep.subr.bf16.mxu0 0
  %10134 = vmatpush1.bf16.msra.mxu0 0
  %10135 = vmatprep.subr.bf16.mxu0 0
  %10136 = vmatpush1.bf16.msra.mxu0 0
  %10137 = vmatprep.subr.bf16.mxu0 0
  %10138 = vmatpush1.bf16.msra.mxu0 0
  %10139 = vmatprep.subr.bf16.mxu0 0
  %10140 = vmatpush1.bf16.msra.mxu0 0
  %10141 = vmatprep.subr.bf16.mxu0 0
  %10142 = vmatpush1.bf16.msra.mxu0 0
  %10143 = vmatprep.mubr.bf16.mxu0 0
  %10144 = vmatmul.mubr.bf16.gmra.mrb[0].mxu0 %v10066
  %v10145 = vpop.f32.mrb[0].mxu0
  %v10146 = vadd.f32 %v10103, %v10145
  %v10147 = vpop.f32.mrb[0].mxu0
  %v10148 = vadd.f32 %v10105, %v10147
  %v10149 = vpop.f32.mrb[0].mxu0
  %v10150 = vadd.f32 %v10107, %v10149
  %v10151 = vpop.f32.mrb[0].mxu0
  %v10152 = vadd.f32 %v10109, %v10151
  %10153 = vdwg.mxu0
  %v10190 = vunpack.c.l.b16 %v9811
  %v10191 = vunpack.c.h.b16 %v9811
  %v10192 = vunpack.c.l.b16 %v9812
  %v10193 = vunpack.c.h.b16 %v9812
  %v10194 = vunpack.c.l.b16 %v9813
  %v10195 = vunpack.c.h.b16 %v9813
  %v10196 = vunpack.c.l.b16 %v9814
  %v10197 = vunpack.c.h.b16 %v9814
  %v10198 = vunpack.c.l.b16 %v9815
  %v10199 = vunpack.c.h.b16 %v9815
  %v10200 = vunpack.c.l.b16 %v9816
  %v10201 = vunpack.c.h.b16 %v9816
  %v10202 = vunpack.c.l.b16 %v9817
  %v10203 = vunpack.c.h.b16 %v9817
  %v10204 = vunpack.c.l.b16 %v9818
  %v10205 = vunpack.c.h.b16 %v9818
  %v10206 = vunpack.c.l.b16 %v9819
  %v10207 = vunpack.c.h.b16 %v9819
  %v10208 = vunpack.c.l.b16 %v9820
  %v10209 = vunpack.c.h.b16 %v9820
  %v10210 = vunpack.c.l.b16 %v9821
  %v10211 = vunpack.c.h.b16 %v9821
  %v10212 = vunpack.c.l.b16 %v9822
  %v10213 = vunpack.c.h.b16 %v9822
  %v10214 = vunpack.c.l.b16 %v9823
  %v10215 = vunpack.c.h.b16 %v9823
  %v10216 = vunpack.c.l.b16 %v9824
  %v10217 = vunpack.c.h.b16 %v9824
  %v10218 = vunpack.c.l.b16 %v9825
  %v10219 = vunpack.c.h.b16 %v9825
  %v10220 = vunpack.c.l.b16 %v9826
  %v10221 = vunpack.c.h.b16 %v9826
  %v10222 = vunpack.c.l.b16 %v9827
  %v10223 = vunpack.c.h.b16 %v9827
  %v10224 = vunpack.c.l.b16 %v9828
  %v10225 = vunpack.c.h.b16 %v9828
  %v10226 = vunpack.c.l.b16 %v9829
  %v10227 = vunpack.c.h.b16 %v9829
  %v10228 = vunpack.c.l.b16 %v9830
  %v10229 = vunpack.c.h.b16 %v9830
  %v10230 = vunpack.c.l.b16 %v9831
  %v10231 = vunpack.c.h.b16 %v9831
  %v10232 = vunpack.c.l.b16 %v9832
  %v10233 = vunpack.c.h.b16 %v9832
  %v10234 = vunpack.c.l.b16 %v9833
  %v10235 = vunpack.c.h.b16 %v9833
  %v10236 = vunpack.c.l.b16 %v9834
  %v10237 = vunpack.c.h.b16 %v9834
  %v10238 = vunpack.c.l.b16 %v9835
  %v10239 = vunpack.c.h.b16 %v9835
  %v10240 = vunpack.c.l.b16 %v9836
  %v10241 = vunpack.c.h.b16 %v9836
  %v10242 = vunpack.c.l.b16 %v9837
  %v10243 = vunpack.c.h.b16 %v9837
  %v10244 = vunpack.c.l.b16 %v9838
  %v10245 = vunpack.c.h.b16 %v9838
  %v10246 = vunpack.c.l.b16 %v9839
  %v10247 = vunpack.c.h.b16 %v9839
  %v10248 = vunpack.c.l.b16 %v9840
  %v10249 = vunpack.c.h.b16 %v9840
  %v10250 = vunpack.c.l.b16 %v9841
  %v10251 = vunpack.c.h.b16 %v9841
  %v10252 = vunpack.c.l.b16 %v9842
  %v10253 = vunpack.c.h.b16 %v9842
  %v10254 = vunpack.c.l.b16 %v9843
  %v10255 = vunpack.c.h.b16 %v9843
  %v10256 = vunpack.c.l.b16 %v9844
  %v10257 = vunpack.c.h.b16 %v9844
  %v10258 = vunpack.c.l.b16 %v9845
  %v10259 = vunpack.c.h.b16 %v9845
  %v10260 = vunpack.c.l.b16 %v9846
  %v10261 = vunpack.c.h.b16 %v9846
  %v10262 = vpack.c.b16 %v10192, %v10190
  %v10263 = vpack.c.b16 %v10193, %v10191
  %v10264 = vpack.c.b16 %v10196, %v10194
  %v10265 = vpack.c.b16 %v10197, %v10195
  %v10266 = vpack.c.b16 %v10200, %v10198
  %v10267 = vpack.c.b16 %v10201, %v10199
  %v10268 = vpack.c.b16 %v10204, %v10202
  %v10269 = vpack.c.b16 %v10205, %v10203
  %v10270 = vpack.c.b16 %v10208, %v10206
  %v10271 = vpack.c.b16 %v10209, %v10207
  %v10272 = vpack.c.b16 %v10212, %v10210
  %v10273 = vpack.c.b16 %v10213, %v10211
  %v10274 = vpack.c.b16 %v10216, %v10214
  %v10275 = vpack.c.b16 %v10217, %v10215
  %v10276 = vpack.c.b16 %v10220, %v10218
  %v10277 = vpack.c.b16 %v10221, %v10219
  %v10278 = vpack.c.b16 %v10224, %v10222
  %v10279 = vpack.c.b16 %v10225, %v10223
  %v10280 = vpack.c.b16 %v10228, %v10226
  %v10281 = vpack.c.b16 %v10229, %v10227
  %v10282 = vpack.c.b16 %v10232, %v10230
  %v10283 = vpack.c.b16 %v10233, %v10231
  %v10284 = vpack.c.b16 %v10236, %v10234
  %v10285 = vpack.c.b16 %v10237, %v10235
  %v10286 = vpack.c.b16 %v10240, %v10238
  %v10287 = vpack.c.b16 %v10241, %v10239
  %v10288 = vpack.c.b16 %v10244, %v10242
  %v10289 = vpack.c.b16 %v10245, %v10243
  %v10290 = vpack.c.b16 %v10248, %v10246
  %v10291 = vpack.c.b16 %v10249, %v10247
  %v10292 = vpack.c.b16 %v10252, %v10250
  %v10293 = vpack.c.b16 %v10253, %v10251
  %v10294 = vpack.c.b16 %v10256, %v10254
  %v10295 = vpack.c.b16 %v10257, %v10255
  %v10296 = vpack.c.b16 %v10260, %v10258
  %v10297 = vpack.c.b16 %v10261, %v10259
  %v10335 = vsel %vm10064, %v9786, 0
  %10337 = vmatprep.subr.bf16.mxu0 %v10263
  %10338 = vmatpush1.bf16.msra.mxu0 %v10262
  %10339 = vmatprep.subr.bf16.mxu0 %v10265
  %10340 = vmatpush1.bf16.msra.mxu0 %v10264
  %10341 = vmatprep.subr.bf16.mxu0 %v10267
  %10342 = vmatpush1.bf16.msra.mxu0 %v10266
  %10343 = vmatprep.subr.bf16.mxu0 %v10269
  %10344 = vmatpush1.bf16.msra.mxu0 %v10268
  %10345 = vmatprep.subr.bf16.mxu0 %v10271
  %10346 = vmatpush1.bf16.msra.mxu0 %v10270
  %10347 = vmatprep.subr.bf16.mxu0 %v10273
  %10348 = vmatpush1.bf16.msra.mxu0 %v10272
  %10349 = vmatprep.subr.bf16.mxu0 %v10275
  %10350 = vmatpush1.bf16.msra.mxu0 %v10274
  %10351 = vmatprep.subr.bf16.mxu0 %v10277
  %10352 = vmatpush1.bf16.msra.mxu0 %v10276
  %10353 = vmatprep.subr.bf16.mxu0 %v10279
  %10354 = vmatpush1.bf16.msra.mxu0 %v10278
  %10355 = vmatprep.subr.bf16.mxu0 %v10281
  %10356 = vmatpush1.bf16.msra.mxu0 %v10280
  %10357 = vmatprep.subr.bf16.mxu0 %v10283
  %10358 = vmatpush1.bf16.msra.mxu0 %v10282
  %10359 = vmatprep.subr.bf16.mxu0 %v10285
  %10360 = vmatpush1.bf16.msra.mxu0 %v10284
  %10361 = vmatprep.subr.bf16.mxu0 %v10287
  %10362 = vmatpush1.bf16.msra.mxu0 %v10286
  %10363 = vmatprep.subr.bf16.mxu0 %v10289
  %10364 = vmatpush1.bf16.msra.mxu0 %v10288
  %10365 = vmatprep.subr.bf16.mxu0 %v10291
  %10366 = vmatpush1.bf16.msra.mxu0 %v10290
  %10367 = vmatprep.subr.bf16.mxu0 %v10293
  %10368 = vmatpush1.bf16.msra.mxu0 %v10292
  %10369 = vmatprep.mubr.bf16.mxu0 %v9785
  %10370 = vmatmul.mubr.bf16.gmra.mrb[0].mxu0 %v9784
  %v10371 = vpop.f32.mrb[0].mxu0
  %v10372 = vadd.f32 %v10146, %v10371
  %v10373 = vpop.f32.mrb[0].mxu0
  %v10374 = vadd.f32 %v10148, %v10373
  %v10375 = vpop.f32.mrb[0].mxu0
  %v10376 = vadd.f32 %v10150, %v10375
  %v10377 = vpop.f32.mrb[0].mxu0
  %v10378 = vadd.f32 %v10152, %v10377
  %10379 = vdwg.mxu0
  %10380 = vmatprep.subr.bf16.mxu0 %v10295
  %10381 = vmatpush1.bf16.msra.mxu0 %v10294
  %10382 = vmatprep.subr.bf16.mxu0 %v10297
  %10383 = vmatpush1.bf16.msra.mxu0 %v10296
  %10384 = vmatprep.subr.bf16.mxu0 0
  %10385 = vmatpush1.bf16.msra.mxu0 0
  %10386 = vmatprep.subr.bf16.mxu0 0
  %10387 = vmatpush1.bf16.msra.mxu0 0
  %10388 = vmatprep.subr.bf16.mxu0 0
  %10389 = vmatpush1.bf16.msra.mxu0 0
  %10390 = vmatprep.subr.bf16.mxu0 0
  %10391 = vmatpush1.bf16.msra.mxu0 0
  %10392 = vmatprep.subr.bf16.mxu0 0
  %10393 = vmatpush1.bf16.msra.mxu0 0
  %10394 = vmatprep.subr.bf16.mxu0 0
  %10395 = vmatpush1.bf16.msra.mxu0 0
  %10396 = vmatprep.subr.bf16.mxu0 0
  %10397 = vmatpush1.bf16.msra.mxu0 0
  %10398 = vmatprep.subr.bf16.mxu0 0
  %10399 = vmatpush1.bf16.msra.mxu0 0
  %10400 = vmatprep.subr.bf16.mxu0 0
  %10401 = vmatpush1.bf16.msra.mxu0 0
  %10402 = vmatprep.subr.bf16.mxu0 0
  %10403 = vmatpush1.bf16.msra.mxu0 0
  %10404 = vmatprep.subr.bf16.mxu0 0
  %10405 = vmatpush1.bf16.msra.mxu0 0
  %10406 = vmatprep.subr.bf16.mxu0 0
  %10407 = vmatpush1.bf16.msra.mxu0 0
  %10408 = vmatprep.subr.bf16.mxu0 0
  %10409 = vmatpush1.bf16.msra.mxu0 0
  %10410 = vmatprep.subr.bf16.mxu0 0
  %10411 = vmatpush1.bf16.msra.mxu0 0
  %10412 = vmatprep.mubr.bf16.mxu0 0
  %10413 = vmatmul.mubr.bf16.gmra.mrb[0].mxu0 %v10335
  %v10414 = vpop.f32.mrb[0].mxu0
  %v10415 = vadd.f32 %v10372, %v10414
  %v10416 = vpop.f32.mrb[0].mxu0
  %v10417 = vadd.f32 %v10374, %v10416
  %v10418 = vpop.f32.mrb[0].mxu0
  %v10419 = vadd.f32 %v10376, %v10418
  %v10420 = vpop.f32.mrb[0].mxu0
  %v10421 = vadd.f32 %v10378, %v10420
  %10422 = vdwg.mxu0
  %s10423 = scalar_lea.vmem %s5, 576
  %v10424 = vld [vmem:[%s10423] sm:$0xff]
  %v10425 = vld [vmem:[%s10423 + $0x8] sm:$0xff]
  %v10426 = vld [vmem:[%s10423 + $0x10] sm:$0xff]
  %v10427 = vld [vmem:[%s10423 + $0x18] sm:$0xff]
  %v10428 = vld [vmem:[%s10423 + $0x20] sm:$0xff]
  %v10429 = vld [vmem:[%s10423 + $0x28] sm:$0xff]
  %v10430 = vld [vmem:[%s10423 + $0x30] sm:$0xff]
  %v10431 = vld [vmem:[%s10423 + $0x38] sm:$0xff]
  %v10432 = vld [vmem:[%s10423 + $0x40] sm:$0xff]
  %v10433 = vld [vmem:[%s10423 + $0x48] sm:$0xff]
  %v10434 = vld [vmem:[%s10423 + $0x50] sm:$0xff]
  %v10435 = vld [vmem:[%s10423 + $0x58] sm:$0xff]
  %v10436 = vld [vmem:[%s10423 + $0x60] sm:$0xff]
  %v10437 = vld [vmem:[%s10423 + $0x68] sm:$0xff]
  %v10438 = vld [vmem:[%s10423 + $0x70] sm:$0xff]
  %v10439 = vld [vmem:[%s10423 + $0x78] sm:$0xff]
  %v10440 = vld [vmem:[%s10423 + $0x80] sm:$0xff]
  %v10441 = vld [vmem:[%s10423 + $0x88] sm:$0xff]
  %v10442 = vld [vmem:[%s10423 + $0x90] sm:$0xff]
  %v10443 = vld [vmem:[%s10423 + $0x98] sm:$0xff]
  %v10444 = vld [vmem:[%s10423 + $0xa0] sm:$0xff]
  %v10445 = vld [vmem:[%s10423 + $0xa8] sm:$0xff]
  %v10446 = vld [vmem:[%s10423 + $0xb0] sm:$0xff]
  %v10447 = vld [vmem:[%s10423 + $0xb8] sm:$0xff]
  %v10448 = vld [vmem:[%s10423 + $0xc0] sm:$0xff]
  %v10449 = vld [vmem:[%s10423 + $0xc8] sm:$0xff]
  %v10450 = vld [vmem:[%s10423 + $0xd0] sm:$0xff]
  %v10451 = vld [vmem:[%s10423 + $0xd8] sm:$0xff]
  %v10452 = vld [vmem:[%s10423 + $0xe0] sm:$0xff]
  %v10453 = vld [vmem:[%s10423 + $0xe8] sm:$0xff]
  %v10454 = vld [vmem:[%s10423 + $0xf0] sm:$0xff]
  %v10455 = vld [vmem:[%s10423 + $0xf8] sm:$0xff]
  %v10456 = vld [vmem:[%s10423 + $0x100] sm:$0xff]
  %v10457 = vld [vmem:[%s10423 + $0x108] sm:$0xff]
  %v10458 = vld [vmem:[%s10423 + $0x110] sm:$0xff]
  %v10459 = vld [vmem:[%s10423 + $0x118] sm:$0xff]
  %v10496 = vunpack.c.l.b16 %v10424
  %v10497 = vunpack.c.h.b16 %v10424
  %v10498 = vunpack.c.l.b16 %v10425
  %v10499 = vunpack.c.h.b16 %v10425
  %v10500 = vunpack.c.l.b16 %v10426
  %v10501 = vunpack.c.h.b16 %v10426
  %v10502 = vunpack.c.l.b16 %v10427
  %v10503 = vunpack.c.h.b16 %v10427
  %v10504 = vunpack.c.l.b16 %v10428
  %v10505 = vunpack.c.h.b16 %v10428
  %v10506 = vunpack.c.l.b16 %v10429
  %v10507 = vunpack.c.h.b16 %v10429
  %v10508 = vunpack.c.l.b16 %v10430
  %v10509 = vunpack.c.h.b16 %v10430
  %v10510 = vunpack.c.l.b16 %v10431
  %v10511 = vunpack.c.h.b16 %v10431
  %v10512 = vunpack.c.l.b16 %v10432
  %v10513 = vunpack.c.h.b16 %v10432
  %v10514 = vunpack.c.l.b16 %v10433
  %v10515 = vunpack.c.h.b16 %v10433
  %v10516 = vunpack.c.l.b16 %v10434
  %v10517 = vunpack.c.h.b16 %v10434
  %v10518 = vunpack.c.l.b16 %v10435
  %v10519 = vunpack.c.h.b16 %v10435
  %v10520 = vunpack.c.l.b16 %v10436
  %v10521 = vunpack.c.h.b16 %v10436
  %v10522 = vunpack.c.l.b16 %v10437
  %v10523 = vunpack.c.h.b16 %v10437
  %v10524 = vunpack.c.l.b16 %v10438
  %v10525 = vunpack.c.h.b16 %v10438
  %v10526 = vunpack.c.l.b16 %v10439
  %v10527 = vunpack.c.h.b16 %v10439
  %v10528 = vunpack.c.l.b16 %v10440
  %v10529 = vunpack.c.h.b16 %v10440
  %v10530 = vunpack.c.l.b16 %v10441
  %v10531 = vunpack.c.h.b16 %v10441
  %v10532 = vunpack.c.l.b16 %v10442
  %v10533 = vunpack.c.h.b16 %v10442
  %v10534 = vunpack.c.l.b16 %v10443
  %v10535 = vunpack.c.h.b16 %v10443
  %v10536 = vunpack.c.l.b16 %v10444
  %v10537 = vunpack.c.h.b16 %v10444
  %v10538 = vunpack.c.l.b16 %v10445
  %v10539 = vunpack.c.h.b16 %v10445
  %v10540 = vunpack.c.l.b16 %v10446
  %v10541 = vunpack.c.h.b16 %v10446
  %v10542 = vunpack.c.l.b16 %v10447
  %v10543 = vunpack.c.h.b16 %v10447
  %v10544 = vunpack.c.l.b16 %v10448
  %v10545 = vunpack.c.h.b16 %v10448
  %v10546 = vunpack.c.l.b16 %v10449
  %v10547 = vunpack.c.h.b16 %v10449
  %v10548 = vunpack.c.l.b16 %v10450
  %v10549 = vunpack.c.h.b16 %v10450
  %v10550 = vunpack.c.l.b16 %v10451
  %v10551 = vunpack.c.h.b16 %v10451
  %v10552 = vunpack.c.l.b16 %v10452
  %v10553 = vunpack.c.h.b16 %v10452
  %v10554 = vunpack.c.l.b16 %v10453
  %v10555 = vunpack.c.h.b16 %v10453
  %v10556 = vunpack.c.l.b16 %v10454
  %v10557 = vunpack.c.h.b16 %v10454
  %v10558 = vunpack.c.l.b16 %v10455
  %v10559 = vunpack.c.h.b16 %v10455
  %v10560 = vunpack.c.l.b16 %v10456
  %v10561 = vunpack.c.h.b16 %v10456
  %v10562 = vunpack.c.l.b16 %v10457
  %v10563 = vunpack.c.h.b16 %v10457
  %v10564 = vunpack.c.l.b16 %v10458
  %v10565 = vunpack.c.h.b16 %v10458
  %v10566 = vunpack.c.l.b16 %v10459
  %v10567 = vunpack.c.h.b16 %v10459
  %v10568 = vpack.c.b16 %v10498, %v10496
  %v10569 = vpack.c.b16 %v10499, %v10497
  %v10570 = vpack.c.b16 %v10502, %v10500
  %v10571 = vpack.c.b16 %v10503, %v10501
  %v10572 = vpack.c.b16 %v10506, %v10504
  %v10573 = vpack.c.b16 %v10507, %v10505
  %v10574 = vpack.c.b16 %v10510, %v10508
  %v10575 = vpack.c.b16 %v10511, %v10509
  %v10576 = vpack.c.b16 %v10514, %v10512
  %v10577 = vpack.c.b16 %v10515, %v10513
  %v10578 = vpack.c.b16 %v10518, %v10516
  %v10579 = vpack.c.b16 %v10519, %v10517
  %v10580 = vpack.c.b16 %v10522, %v10520
  %v10581 = vpack.c.b16 %v10523, %v10521
  %v10582 = vpack.c.b16 %v10526, %v10524
  %v10583 = vpack.c.b16 %v10527, %v10525
  %v10584 = vpack.c.b16 %v10530, %v10528
  %v10585 = vpack.c.b16 %v10531, %v10529
  %v10586 = vpack.c.b16 %v10534, %v10532
  %v10587 = vpack.c.b16 %v10535, %v10533
  %v10588 = vpack.c.b16 %v10538, %v10536
  %v10589 = vpack.c.b16 %v10539, %v10537
  %v10590 = vpack.c.b16 %v10542, %v10540
  %v10591 = vpack.c.b16 %v10543, %v10541
  %v10592 = vpack.c.b16 %v10546, %v10544
  %v10593 = vpack.c.b16 %v10547, %v10545
  %v10594 = vpack.c.b16 %v10550, %v10548
  %v10595 = vpack.c.b16 %v10551, %v10549
  %v10596 = vpack.c.b16 %v10554, %v10552
  %v10597 = vpack.c.b16 %v10555, %v10553
  %v10598 = vpack.c.b16 %v10558, %v10556
  %v10599 = vpack.c.b16 %v10559, %v10557
  %v10600 = vpack.c.b16 %v10562, %v10560
  %v10601 = vpack.c.b16 %v10563, %v10561
  %v10602 = vpack.c.b16 %v10566, %v10564
  %v10603 = vpack.c.b16 %v10567, %v10565
  %v10641 = vsel %vm10064, %v9792, 0
  %10643 = vmatprep.subr.bf16.mxu0 %v10569
  %10644 = vmatpush1.bf16.msra.mxu0 %v10568
  %10645 = vmatprep.subr.bf16.mxu0 %v10571
  %10646 = vmatpush1.bf16.msra.mxu0 %v10570
  %10647 = vmatprep.subr.bf16.mxu0 %v10573
  %10648 = vmatpush1.bf16.msra.mxu0 %v10572
  %10649 = vmatprep.subr.bf16.mxu0 %v10575
  %10650 = vmatpush1.bf16.msra.mxu0 %v10574
  %10651 = vmatprep.subr.bf16.mxu0 %v10577
  %10652 = vmatpush1.bf16.msra.mxu0 %v10576
  %10653 = vmatprep.subr.bf16.mxu0 %v10579
  %10654 = vmatpush1.bf16.msra.mxu0 %v10578
  %10655 = vmatprep.subr.bf16.mxu0 %v10581
  %10656 = vmatpush1.bf16.msra.mxu0 %v10580
  %10657 = vmatprep.subr.bf16.mxu0 %v10583
  %10658 = vmatpush1.bf16.msra.mxu0 %v10582
  %10659 = vmatprep.subr.bf16.mxu0 %v10585
  %10660 = vmatpush1.bf16.msra.mxu0 %v10584
  %10661 = vmatprep.subr.bf16.mxu0 %v10587
  %10662 = vmatpush1.bf16.msra.mxu0 %v10586
  %10663 = vmatprep.subr.bf16.mxu0 %v10589
  %10664 = vmatpush1.bf16.msra.mxu0 %v10588
  %10665 = vmatprep.subr.bf16.mxu0 %v10591
  %10666 = vmatpush1.bf16.msra.mxu0 %v10590
  %10667 = vmatprep.subr.bf16.mxu0 %v10593
  %10668 = vmatpush1.bf16.msra.mxu0 %v10592
  %10669 = vmatprep.subr.bf16.mxu0 %v10595
  %10670 = vmatpush1.bf16.msra.mxu0 %v10594
  %10671 = vmatprep.subr.bf16.mxu0 %v10597
  %10672 = vmatpush1.bf16.msra.mxu0 %v10596
  %10673 = vmatprep.subr.bf16.mxu0 %v10599
  %10674 = vmatpush1.bf16.msra.mxu0 %v10598
  %10675 = vmatprep.mubr.bf16.mxu0 %v9791
  %10676 = vmatmul.mubr.bf16.gmra.mrb[0].mxu0 %v9790
  %v10677 = vpop.f32.mrb[0].mxu0
  %v10678 = vadd.f32 0.0, %v10677
  %v10679 = vpop.f32.mrb[0].mxu0
  %v10680 = vadd.f32 0.0, %v10679
  %v10681 = vpop.f32.mrb[0].mxu0
  %v10682 = vadd.f32 0.0, %v10681
  %v10683 = vpop.f32.mrb[0].mxu0
  %v10684 = vadd.f32 0.0, %v10683
  %10685 = vdwg.mxu0
  %10686 = vmatprep.subr.bf16.mxu0 %v10601
  %10687 = vmatpush1.bf16.msra.mxu0 %v10600
  %10688 = vmatprep.subr.bf16.mxu0 %v10603
  %10689 = vmatpush1.bf16.msra.mxu0 %v10602
  %10690 = vmatprep.subr.bf16.mxu0 0
  %10691 = vmatpush1.bf16.msra.mxu0 0
  %10692 = vmatprep.subr.bf16.mxu0 0
  %10693 = vmatpush1.bf16.msra.mxu0 0
  %10694 = vmatprep.subr.bf16.mxu0 0
  %10695 = vmatpush1.bf16.msra.mxu0 0
  %10696 = vmatprep.subr.bf16.mxu0 0
  %10697 = vmatpush1.bf16.msra.mxu0 0
  %10698 = vmatprep.subr.bf16.mxu0 0
  %10699 = vmatpush1.bf16.msra.mxu0 0
  %10700 = vmatprep.subr.bf16.mxu0 0
  %10701 = vmatpush1.bf16.msra.mxu0 0
  %10702 = vmatprep.subr.bf16.mxu0 0
  %10703 = vmatpush1.bf16.msra.mxu0 0
  %10704 = vmatprep.subr.bf16.mxu0 0
  %10705 = vmatpush1.bf16.msra.mxu0 0
  %10706 = vmatprep.subr.bf16.mxu0 0
  %10707 = vmatpush1.bf16.msra.mxu0 0
  %10708 = vmatprep.subr.bf16.mxu0 0
  %10709 = vmatpush1.bf16.msra.mxu0 0
  %10710 = vmatprep.subr.bf16.mxu0 0
  %10711 = vmatpush1.bf16.msra.mxu0 0
  %10712 = vmatprep.subr.bf16.mxu0 0
  %10713 = vmatpush1.bf16.msra.mxu0 0
  %10714 = vmatprep.subr.bf16.mxu0 0
  %10715 = vmatpush1.bf16.msra.mxu0 0
  %10716 = vmatprep.subr.bf16.mxu0 0
  %10717 = vmatpush1.bf16.msra.mxu0 0
  %10718 = vmatprep.mubr.bf16.mxu0 0
  %10719 = vmatmul.mubr.bf16.gmra.mrb[0].mxu0 %v10641
  %v10720 = vpop.f32.mrb[0].mxu0
  %v10721 = vadd.f32 %v10678, %v10720
  %v10722 = vpop.f32.mrb[0].mxu0
  %v10723 = vadd.f32 %v10680, %v10722
  %v10724 = vpop.f32.mrb[0].mxu0
  %v10725 = vadd.f32 %v10682, %v10724
  %v10726 = vpop.f32.mrb[0].mxu0
  %v10727 = vadd.f32 %v10684, %v10726
  %10728 = vdwg.mxu0
  %v10729 = vadd.f32 %v10415, %v10721
  %v10730 = vadd.f32 %v10417, %v10723
  %v10731 = vadd.f32 %v10419, %v10725
  %v10732 = vadd.f32 %v10421, %v10727
  %s10733 = scalar_lea.vmem %s5, 864
  %v10734 = vld [vmem:[%s10733] sm:$0xff]
  %v10735 = vld [vmem:[%s10733 + $0x8] sm:$0xff]
  %v10736 = vld [vmem:[%s10733 + $0x10] sm:$0xff]
  %v10737 = vld [vmem:[%s10733 + $0x18] sm:$0xff]
  %v10738 = vld [vmem:[%s10733 + $0x20] sm:$0xff]
  %v10739 = vld [vmem:[%s10733 + $0x28] sm:$0xff]
  %v10740 = vld [vmem:[%s10733 + $0x30] sm:$0xff]
  %v10741 = vld [vmem:[%s10733 + $0x38] sm:$0xff]
  %v10742 = vld [vmem:[%s10733 + $0x40] sm:$0xff]
  %v10743 = vld [vmem:[%s10733 + $0x48] sm:$0xff]
  %v10744 = vld [vmem:[%s10733 + $0x50] sm:$0xff]
  %v10745 = vld [vmem:[%s10733 + $0x58] sm:$0xff]
  %v10746 = vld [vmem:[%s10733 + $0x60] sm:$0xff]
  %v10747 = vld [vmem:[%s10733 + $0x68] sm:$0xff]
  %v10748 = vld [vmem:[%s10733 + $0x70] sm:$0xff]
  %v10749 = vld [vmem:[%s10733 + $0x78] sm:$0xff]
  %v10750 = vld [vmem:[%s10733 + $0x80] sm:$0xff]
  %v10751 = vld [vmem:[%s10733 + $0x88] sm:$0xff]
  %v10752 = vld [vmem:[%s10733 + $0x90] sm:$0xff]
  %v10753 = vld [vmem:[%s10733 + $0x98] sm:$0xff]
  %v10754 = vld [vmem:[%s10733 + $0xa0] sm:$0xff]
  %v10755 = vld [vmem:[%s10733 + $0xa8] sm:$0xff]
  %v10756 = vld [vmem:[%s10733 + $0xb0] sm:$0xff]
  %v10757 = vld [vmem:[%s10733 + $0xb8] sm:$0xff]
  %v10758 = vld [vmem:[%s10733 + $0xc0] sm:$0xff]
  %v10759 = vld [vmem:[%s10733 + $0xc8] sm:$0xff]
  %v10760 = vld [vmem:[%s10733 + $0xd0] sm:$0xff]
  %v10761 = vld [vmem:[%s10733 + $0xd8] sm:$0xff]
  %v10762 = vld [vmem:[%s10733 + $0xe0] sm:$0xff]
  %v10763 = vld [vmem:[%s10733 + $0xe8] sm:$0xff]
  %v10764 = vld [vmem:[%s10733 + $0xf0] sm:$0xff]
  %v10765 = vld [vmem:[%s10733 + $0xf8] sm:$0xff]
  %v10766 = vld [vmem:[%s10733 + $0x100] sm:$0xff]
  %v10767 = vld [vmem:[%s10733 + $0x108] sm:$0xff]
  %v10768 = vld [vmem:[%s10733 + $0x110] sm:$0xff]
  %v10769 = vld [vmem:[%s10733 + $0x118] sm:$0xff]
  %v10806 = vunpack.c.l.b16 %v10734
  %v10807 = vunpack.c.h.b16 %v10734
  %v10808 = vunpack.c.l.b16 %v10735
  %v10809 = vunpack.c.h.b16 %v10735
  %v10810 = vunpack.c.l.b16 %v10736
  %v10811 = vunpack.c.h.b16 %v10736
  %v10812 = vunpack.c.l.b16 %v10737
  %v10813 = vunpack.c.h.b16 %v10737
  %v10814 = vunpack.c.l.b16 %v10738
  %v10815 = vunpack.c.h.b16 %v10738
  %v10816 = vunpack.c.l.b16 %v10739
  %v10817 = vunpack.c.h.b16 %v10739
  %v10818 = vunpack.c.l.b16 %v10740
  %v10819 = vunpack.c.h.b16 %v10740
  %v10820 = vunpack.c.l.b16 %v10741
  %v10821 = vunpack.c.h.b16 %v10741
  %v10822 = vunpack.c.l.b16 %v10742
  %v10823 = vunpack.c.h.b16 %v10742
  %v10824 = vunpack.c.l.b16 %v10743
  %v10825 = vunpack.c.h.b16 %v10743
  %v10826 = vunpack.c.l.b16 %v10744
  %v10827 = vunpack.c.h.b16 %v10744
  %v10828 = vunpack.c.l.b16 %v10745
  %v10829 = vunpack.c.h.b16 %v10745
  %v10830 = vunpack.c.l.b16 %v10746
  %v10831 = vunpack.c.h.b16 %v10746
  %v10832 = vunpack.c.l.b16 %v10747
  %v10833 = vunpack.c.h.b16 %v10747
  %v10834 = vunpack.c.l.b16 %v10748
  %v10835 = vunpack.c.h.b16 %v10748
  %v10836 = vunpack.c.l.b16 %v10749
  %v10837 = vunpack.c.h.b16 %v10749
  %v10838 = vunpack.c.l.b16 %v10750
  %v10839 = vunpack.c.h.b16 %v10750
  %v10840 = vunpack.c.l.b16 %v10751
  %v10841 = vunpack.c.h.b16 %v10751
  %v10842 = vunpack.c.l.b16 %v10752
  %v10843 = vunpack.c.h.b16 %v10752
  %v10844 = vunpack.c.l.b16 %v10753
  %v10845 = vunpack.c.h.b16 %v10753
  %v10846 = vunpack.c.l.b16 %v10754
  %v10847 = vunpack.c.h.b16 %v10754
  %v10848 = vunpack.c.l.b16 %v10755
  %v10849 = vunpack.c.h.b16 %v10755
  %v10850 = vunpack.c.l.b16 %v10756
  %v10851 = vunpack.c.h.b16 %v10756
  %v10852 = vunpack.c.l.b16 %v10757
  %v10853 = vunpack.c.h.b16 %v10757
  %v10854 = vunpack.c.l.b16 %v10758
  %v10855 = vunpack.c.h.b16 %v10758
  %v10856 = vunpack.c.l.b16 %v10759
  %v10857 = vunpack.c.h.b16 %v10759
  %v10858 = vunpack.c.l.b16 %v10760
  %v10859 = vunpack.c.h.b16 %v10760
  %v10860 = vunpack.c.l.b16 %v10761
  %v10861 = vunpack.c.h.b16 %v10761
  %v10862 = vunpack.c.l.b16 %v10762
  %v10863 = vunpack.c.h.b16 %v10762
  %v10864 = vunpack.c.l.b16 %v10763
  %v10865 = vunpack.c.h.b16 %v10763
  %v10866 = vunpack.c.l.b16 %v10764
  %v10867 = vunpack.c.h.b16 %v10764
  %v10868 = vunpack.c.l.b16 %v10765
  %v10869 = vunpack.c.h.b16 %v10765
  %v10870 = vunpack.c.l.b16 %v10766
  %v10871 = vunpack.c.h.b16 %v10766
  %v10872 = vunpack.c.l.b16 %v10767
  %v10873 = vunpack.c.h.b16 %v10767
  %v10874 = vunpack.c.l.b16 %v10768
  %v10875 = vunpack.c.h.b16 %v10768
  %v10876 = vunpack.c.l.b16 %v10769
  %v10877 = vunpack.c.h.b16 %v10769
  %v10878 = vpack.c.b16 %v10808, %v10806
  %v10879 = vpack.c.b16 %v10809, %v10807
  %v10880 = vpack.c.b16 %v10812, %v10810
  %v10881 = vpack.c.b16 %v10813, %v10811
  %v10882 = vpack.c.b16 %v10816, %v10814
  %v10883 = vpack.c.b16 %v10817, %v10815
  %v10884 = vpack.c.b16 %v10820, %v10818
  %v10885 = vpack.c.b16 %v10821, %v10819
  %v10886 = vpack.c.b16 %v10824, %v10822
  %v10887 = vpack.c.b16 %v10825, %v10823
  %v10888 = vpack.c.b16 %v10828, %v10826
  %v10889 = vpack.c.b16 %v10829, %v10827
  %v10890 = vpack.c.b16 %v10832, %v10830
  %v10891 = vpack.c.b16 %v10833, %v10831
  %v10892 = vpack.c.b16 %v10836, %v10834
  %v10893 = vpack.c.b16 %v10837, %v10835
  %v10894 = vpack.c.b16 %v10840, %v10838
  %v10895 = vpack.c.b16 %v10841, %v10839
  %v10896 = vpack.c.b16 %v10844, %v10842
  %v10897 = vpack.c.b16 %v10845, %v10843
  %v10898 = vpack.c.b16 %v10848, %v10846
  %v10899 = vpack.c.b16 %v10849, %v10847
  %v10900 = vpack.c.b16 %v10852, %v10850
  %v10901 = vpack.c.b16 %v10853, %v10851
  %v10902 = vpack.c.b16 %v10856, %v10854
  %v10903 = vpack.c.b16 %v10857, %v10855
  %v10904 = vpack.c.b16 %v10860, %v10858
  %v10905 = vpack.c.b16 %v10861, %v10859
  %v10906 = vpack.c.b16 %v10864, %v10862
  %v10907 = vpack.c.b16 %v10865, %v10863
  %v10908 = vpack.c.b16 %v10868, %v10866
  %v10909 = vpack.c.b16 %v10869, %v10867
  %v10910 = vpack.c.b16 %v10872, %v10870
  %v10911 = vpack.c.b16 %v10873, %v10871
  %v10912 = vpack.c.b16 %v10876, %v10874
  %v10913 = vpack.c.b16 %v10877, %v10875
  %v10951 = vsel %vm10064, %v9795, 0
  %10953 = vmatprep.subr.bf16.mxu0 %v10879
  %10954 = vmatpush1.bf16.msra.mxu0 %v10878
  %10955 = vmatprep.subr.bf16.mxu0 %v10881
  %10956 = vmatpush1.bf16.msra.mxu0 %v10880
  %10957 = vmatprep.subr.bf16.mxu0 %v10883
  %10958 = vmatpush1.bf16.msra.mxu0 %v10882
  %10959 = vmatprep.subr.bf16.mxu0 %v10885
  %10960 = vmatpush1.bf16.msra.mxu0 %v10884
  %10961 = vmatprep.subr.bf16.mxu0 %v10887
  %10962 = vmatpush1.bf16.msra.mxu0 %v10886
  %10963 = vmatprep.subr.bf16.mxu0 %v10889
  %10964 = vmatpush1.bf16.msra.mxu0 %v10888
  %10965 = vmatprep.subr.bf16.mxu0 %v10891
  %10966 = vmatpush1.bf16.msra.mxu0 %v10890
  %10967 = vmatprep.subr.bf16.mxu0 %v10893
  %10968 = vmatpush1.bf16.msra.mxu0 %v10892
  %10969 = vmatprep.subr.bf16.mxu0 %v10895
  %10970 = vmatpush1.bf16.msra.mxu0 %v10894
  %10971 = vmatprep.subr.bf16.mxu0 %v10897
  %10972 = vmatpush1.bf16.msra.mxu0 %v10896
  %10973 = vmatprep.subr.bf16.mxu0 %v10899
  %10974 = vmatpush1.bf16.msra.mxu0 %v10898
  %10975 = vmatprep.subr.bf16.mxu0 %v10901
  %10976 = vmatpush1.bf16.msra.mxu0 %v10900
  %10977 = vmatprep.subr.bf16.mxu0 %v10903
  %10978 = vmatpush1.bf16.msra.mxu0 %v10902
  %10979 = vmatprep.subr.bf16.mxu0 %v10905
  %10980 = vmatpush1.bf16.msra.mxu0 %v10904
  %10981 = vmatprep.subr.bf16.mxu0 %v10907
  %10982 = vmatpush1.bf16.msra.mxu0 %v10906
  %10983 = vmatprep.subr.bf16.mxu0 %v10909
  %10984 = vmatpush1.bf16.msra.mxu0 %v10908
  %10985 = vmatprep.mubr.bf16.mxu0 %v9794
  %10986 = vmatmul.mubr.bf16.gmra.mrb[0].mxu0 %v9793
  %v10987 = vpop.f32.mrb[0].mxu0
  %v10988 = vadd.f32 0.0, %v10987
  %v10989 = vpop.f32.mrb[0].mxu0
  %v10990 = vadd.f32 0.0, %v10989
  %v10991 = vpop.f32.mrb[0].mxu0
  %v10992 = vadd.f32 0.0, %v10991
  %v10993 = vpop.f32.mrb[0].mxu0
  %v10994 = vadd.f32 0.0, %v10993
  %10995 = vdwg.mxu0
  %10996 = vmatprep.subr.bf16.mxu0 %v10911
  %10997 = vmatpush1.bf16.msra.mxu0 %v10910
  %10998 = vmatprep.subr.bf16.mxu0 %v10913
  %10999 = vmatpush1.bf16.msra.mxu0 %v10912
  %11000 = vmatprep.subr.bf16.mxu0 0
  %11001 = vmatpush1.bf16.msra.mxu0 0
  %11002 = vmatprep.subr.bf16.mxu0 0
  %11003 = vmatpush1.bf16.msra.mxu0 0
  %11004 = vmatprep.subr.bf16.mxu0 0
  %11005 = vmatpush1.bf16.msra.mxu0 0
  %11006 = vmatprep.subr.bf16.mxu0 0
  %11007 = vmatpush1.bf16.msra.mxu0 0
  %11008 = vmatprep.subr.bf16.mxu0 0
  %11009 = vmatpush1.bf16.msra.mxu0 0
  %11010 = vmatprep.subr.bf16.mxu0 0
  %11011 = vmatpush1.bf16.msra.mxu0 0
  %11012 = vmatprep.subr.bf16.mxu0 0
  %11013 = vmatpush1.bf16.msra.mxu0 0
  %11014 = vmatprep.subr.bf16.mxu0 0
  %11015 = vmatpush1.bf16.msra.mxu0 0
  %11016 = vmatprep.subr.bf16.mxu0 0
  %11017 = vmatpush1.bf16.msra.mxu0 0
  %11018 = vmatprep.subr.bf16.mxu0 0
  %11019 = vmatpush1.bf16.msra.mxu0 0
  %11020 = vmatprep.subr.bf16.mxu0 0
  %11021 = vmatpush1.bf16.msra.mxu0 0
  %11022 = vmatprep.subr.bf16.mxu0 0
  %11023 = vmatpush1.bf16.msra.mxu0 0
  %11024 = vmatprep.subr.bf16.mxu0 0
  %11025 = vmatpush1.bf16.msra.mxu0 0
  %11026 = vmatprep.subr.bf16.mxu0 0
  %11027 = vmatpush1.bf16.msra.mxu0 0
  %11028 = vmatprep.mubr.bf16.mxu0 0
  %11029 = vmatmul.mubr.bf16.gmra.mrb[0].mxu0 %v10951
  %v11030 = vpop.f32.mrb[0].mxu0
  %v11031 = vadd.f32 %v10988, %v11030
  %v11032 = vpop.f32.mrb[0].mxu0
  %v11033 = vadd.f32 %v10990, %v11032
  %v11034 = vpop.f32.mrb[0].mxu0
  %v11035 = vadd.f32 %v10992, %v11034
  %v11036 = vpop.f32.mrb[0].mxu0
  %v11037 = vadd.f32 %v10994, %v11036
  %11038 = vdwg.mxu0
  %v11039 = vadd.f32 %v10729, %v11031
  %v11040 = vadd.f32 %v10730, %v11033
  %v11041 = vadd.f32 %v10731, %v11035
  %v11042 = vadd.f32 %v10732, %v11037
  %s11043 = scalar_lea.vmem %s5, 1152
  %v11044 = vld [vmem:[%s11043] sm:$0xff]
  %v11045 = vld [vmem:[%s11043 + $0x8] sm:$0xff]
  %v11046 = vld [vmem:[%s11043 + $0x10] sm:$0xff]
  %v11047 = vld [vmem:[%s11043 + $0x18] sm:$0xff]
  %v11048 = vld [vmem:[%s11043 + $0x20] sm:$0xff]
  %v11049 = vld [vmem:[%s11043 + $0x28] sm:$0xff]
  %v11050 = vld [vmem:[%s11043 + $0x30] sm:$0xff]
  %v11051 = vld [vmem:[%s11043 + $0x38] sm:$0xff]
  %v11052 = vld [vmem:[%s11043 + $0x40] sm:$0xff]
  %v11053 = vld [vmem:[%s11043 + $0x48] sm:$0xff]
  %v11054 = vld [vmem:[%s11043 + $0x50] sm:$0xff]
  %v11055 = vld [vmem:[%s11043 + $0x58] sm:$0xff]
  %v11056 = vld [vmem:[%s11043 + $0x60] sm:$0xff]
  %v11057 = vld [vmem:[%s11043 + $0x68] sm:$0xff]
  %v11058 = vld [vmem:[%s11043 + $0x70] sm:$0xff]
  %v11059 = vld [vmem:[%s11043 + $0x78] sm:$0xff]
  %v11060 = vld [vmem:[%s11043 + $0x80] sm:$0xff]
  %v11061 = vld [vmem:[%s11043 + $0x88] sm:$0xff]
  %v11062 = vld [vmem:[%s11043 + $0x90] sm:$0xff]
  %v11063 = vld [vmem:[%s11043 + $0x98] sm:$0xff]
  %v11064 = vld [vmem:[%s11043 + $0xa0] sm:$0xff]
  %v11065 = vld [vmem:[%s11043 + $0xa8] sm:$0xff]
  %v11066 = vld [vmem:[%s11043 + $0xb0] sm:$0xff]
  %v11067 = vld [vmem:[%s11043 + $0xb8] sm:$0xff]
  %v11068 = vld [vmem:[%s11043 + $0xc0] sm:$0xff]
  %v11069 = vld [vmem:[%s11043 + $0xc8] sm:$0xff]
  %v11070 = vld [vmem:[%s11043 + $0xd0] sm:$0xff]
  %v11071 = vld [vmem:[%s11043 + $0xd8] sm:$0xff]
  %v11072 = vld [vmem:[%s11043 + $0xe0] sm:$0xff]
  %v11073 = vld [vmem:[%s11043 + $0xe8] sm:$0xff]
  %v11074 = vld [vmem:[%s11043 + $0xf0] sm:$0xff]
  %v11075 = vld [vmem:[%s11043 + $0xf8] sm:$0xff]
  %v11076 = vld [vmem:[%s11043 + $0x100] sm:$0xff]
  %v11077 = vld [vmem:[%s11043 + $0x108] sm:$0xff]
  %v11078 = vld [vmem:[%s11043 + $0x110] sm:$0xff]
  %v11079 = vld [vmem:[%s11043 + $0x118] sm:$0xff]
  %v11116 = vunpack.c.l.b16 %v11044
  %v11117 = vunpack.c.h.b16 %v11044
  %v11118 = vunpack.c.l.b16 %v11045
  %v11119 = vunpack.c.h.b16 %v11045
  %v11120 = vunpack.c.l.b16 %v11046
  %v11121 = vunpack.c.h.b16 %v11046
  %v11122 = vunpack.c.l.b16 %v11047
  %v11123 = vunpack.c.h.b16 %v11047
  %v11124 = vunpack.c.l.b16 %v11048
  %v11125 = vunpack.c.h.b16 %v11048
  %v11126 = vunpack.c.l.b16 %v11049
  %v11127 = vunpack.c.h.b16 %v11049
  %v11128 = vunpack.c.l.b16 %v11050
  %v11129 = vunpack.c.h.b16 %v11050
  %v11130 = vunpack.c.l.b16 %v11051
  %v11131 = vunpack.c.h.b16 %v11051
  %v11132 = vunpack.c.l.b16 %v11052
  %v11133 = vunpack.c.h.b16 %v11052
  %v11134 = vunpack.c.l.b16 %v11053
  %v11135 = vunpack.c.h.b16 %v11053
  %v11136 = vunpack.c.l.b16 %v11054
  %v11137 = vunpack.c.h.b16 %v11054
  %v11138 = vunpack.c.l.b16 %v11055
  %v11139 = vunpack.c.h.b16 %v11055
  %v11140 = vunpack.c.l.b16 %v11056
  %v11141 = vunpack.c.h.b16 %v11056
  %v11142 = vunpack.c.l.b16 %v11057
  %v11143 = vunpack.c.h.b16 %v11057
  %v11144 = vunpack.c.l.b16 %v11058
  %v11145 = vunpack.c.h.b16 %v11058
  %v11146 = vunpack.c.l.b16 %v11059
  %v11147 = vunpack.c.h.b16 %v11059
  %v11148 = vunpack.c.l.b16 %v11060
  %v11149 = vunpack.c.h.b16 %v11060
  %v11150 = vunpack.c.l.b16 %v11061
  %v11151 = vunpack.c.h.b16 %v11061
  %v11152 = vunpack.c.l.b16 %v11062
  %v11153 = vunpack.c.h.b16 %v11062
  %v11154 = vunpack.c.l.b16 %v11063
  %v11155 = vunpack.c.h.b16 %v11063
  %v11156 = vunpack.c.l.b16 %v11064
  %v11157 = vunpack.c.h.b16 %v11064
  %v11158 = vunpack.c.l.b16 %v11065
  %v11159 = vunpack.c.h.b16 %v11065
  %v11160 = vunpack.c.l.b16 %v11066
  %v11161 = vunpack.c.h.b16 %v11066
  %v11162 = vunpack.c.l.b16 %v11067
  %v11163 = vunpack.c.h.b16 %v11067
  %v11164 = vunpack.c.l.b16 %v11068
  %v11165 = vunpack.c.h.b16 %v11068
  %v11166 = vunpack.c.l.b16 %v11069
  %v11167 = vunpack.c.h.b16 %v11069
  %v11168 = vunpack.c.l.b16 %v11070
  %v11169 = vunpack.c.h.b16 %v11070
  %v11170 = vunpack.c.l.b16 %v11071
  %v11171 = vunpack.c.h.b16 %v11071
  %v11172 = vunpack.c.l.b16 %v11072
  %v11173 = vunpack.c.h.b16 %v11072
  %v11174 = vunpack.c.l.b16 %v11073
  %v11175 = vunpack.c.h.b16 %v11073
  %v11176 = vunpack.c.l.b16 %v11074
  %v11177 = vunpack.c.h.b16 %v11074
  %v11178 = vunpack.c.l.b16 %v11075
  %v11179 = vunpack.c.h.b16 %v11075
  %v11180 = vunpack.c.l.b16 %v11076
  %v11181 = vunpack.c.h.b16 %v11076
  %v11182 = vunpack.c.l.b16 %v11077
  %v11183 = vunpack.c.h.b16 %v11077
  %v11184 = vunpack.c.l.b16 %v11078
  %v11185 = vunpack.c.h.b16 %v11078
  %v11186 = vunpack.c.l.b16 %v11079
  %v11187 = vunpack.c.h.b16 %v11079
  %v11188 = vpack.c.b16 %v11118, %v11116
  %v11189 = vpack.c.b16 %v11119, %v11117
  %v11190 = vpack.c.b16 %v11122, %v11120
  %v11191 = vpack.c.b16 %v11123, %v11121
  %v11192 = vpack.c.b16 %v11126, %v11124
  %v11193 = vpack.c.b16 %v11127, %v11125
  %v11194 = vpack.c.b16 %v11130, %v11128
  %v11195 = vpack.c.b16 %v11131, %v11129
  %v11196 = vpack.c.b16 %v11134, %v11132
  %v11197 = vpack.c.b16 %v11135, %v11133
  %v11198 = vpack.c.b16 %v11138, %v11136
  %v11199 = vpack.c.b16 %v11139, %v11137
  %v11200 = vpack.c.b16 %v11142, %v11140
  %v11201 = vpack.c.b16 %v11143, %v11141
  %v11202 = vpack.c.b16 %v11146, %v11144
  %v11203 = vpack.c.b16 %v11147, %v11145
  %v11204 = vpack.c.b16 %v11150, %v11148
  %v11205 = vpack.c.b16 %v11151, %v11149
  %v11206 = vpack.c.b16 %v11154, %v11152
  %v11207 = vpack.c.b16 %v11155, %v11153
  %v11208 = vpack.c.b16 %v11158, %v11156
  %v11209 = vpack.c.b16 %v11159, %v11157
  %v11210 = vpack.c.b16 %v11162, %v11160
  %v11211 = vpack.c.b16 %v11163, %v11161
  %v11212 = vpack.c.b16 %v11166, %v11164
  %v11213 = vpack.c.b16 %v11167, %v11165
  %v11214 = vpack.c.b16 %v11170, %v11168
  %v11215 = vpack.c.b16 %v11171, %v11169
  %v11216 = vpack.c.b16 %v11174, %v11172
  %v11217 = vpack.c.b16 %v11175, %v11173
  %v11218 = vpack.c.b16 %v11178, %v11176
  %v11219 = vpack.c.b16 %v11179, %v11177
  %v11220 = vpack.c.b16 %v11182, %v11180
  %v11221 = vpack.c.b16 %v11183, %v11181
  %v11222 = vpack.c.b16 %v11186, %v11184
  %v11223 = vpack.c.b16 %v11187, %v11185
  %v11261 = vsel %vm10064, %v9798, 0
  %11263 = vmatprep.subr.bf16.mxu0 %v11189
  %11264 = vmatpush1.bf16.msra.mxu0 %v11188
  %11265 = vmatprep.subr.bf16.mxu0 %v11191
  %11266 = vmatpush1.bf16.msra.mxu0 %v11190
  %11267 = vmatprep.subr.bf16.mxu0 %v11193
  %11268 = vmatpush1.bf16.msra.mxu0 %v11192
  %11269 = vmatprep.subr.bf16.mxu0 %v11195
  %11270 = vmatpush1.bf16.msra.mxu0 %v11194
  %11271 = vmatprep.subr.bf16.mxu0 %v11197
  %11272 = vmatpush1.bf16.msra.mxu0 %v11196
  %11273 = vmatprep.subr.bf16.mxu0 %v11199
  %11274 = vmatpush1.bf16.msra.mxu0 %v11198
  %11275 = vmatprep.subr.bf16.mxu0 %v11201
  %11276 = vmatpush1.bf16.msra.mxu0 %v11200
  %11277 = vmatprep.subr.bf16.mxu0 %v11203
  %11278 = vmatpush1.bf16.msra.mxu0 %v11202
  %11279 = vmatprep.subr.bf16.mxu0 %v11205
  %11280 = vmatpush1.bf16.msra.mxu0 %v11204
  %11281 = vmatprep.subr.bf16.mxu0 %v11207
  %11282 = vmatpush1.bf16.msra.mxu0 %v11206
  %11283 = vmatprep.subr.bf16.mxu0 %v11209
  %11284 = vmatpush1.bf16.msra.mxu0 %v11208
  %11285 = vmatprep.subr.bf16.mxu0 %v11211
  %11286 = vmatpush1.bf16.msra.mxu0 %v11210
  %11287 = vmatprep.subr.bf16.mxu0 %v11213
  %11288 = vmatpush1.bf16.msra.mxu0 %v11212
  %11289 = vmatprep.subr.bf16.mxu0 %v11215
  %11290 = vmatpush1.bf16.msra.mxu0 %v11214
  %11291 = vmatprep.subr.bf16.mxu0 %v11217
  %11292 = vmatpush1.bf16.msra.mxu0 %v11216
  %11293 = vmatprep.subr.bf16.mxu0 %v11219
  %11294 = vmatpush1.bf16.msra.mxu0 %v11218
  %11295 = vmatprep.mubr.bf16.mxu0 %v9797
  %11296 = vmatmul.mubr.bf16.gmra.mrb[0].mxu0 %v9796
  %v11297 = vpop.f32.mrb[0].mxu0
  %v11298 = vadd.f32 0.0, %v11297
  %v11299 = vpop.f32.mrb[0].mxu0
  %v11300 = vadd.f32 0.0, %v11299
  %v11301 = vpop.f32.mrb[0].mxu0
  %v11302 = vadd.f32 0.0, %v11301
  %v11303 = vpop.f32.mrb[0].mxu0
  %v11304 = vadd.f32 0.0, %v11303
  %11305 = vdwg.mxu0
  %11306 = vmatprep.subr.bf16.mxu0 %v11221
  %11307 = vmatpush1.bf16.msra.mxu0 %v11220
  %11308 = vmatprep.subr.bf16.mxu0 %v11223
  %11309 = vmatpush1.bf16.msra.mxu0 %v11222
  %11310 = vmatprep.subr.bf16.mxu0 0
  %11311 = vmatpush1.bf16.msra.mxu0 0
  %11312 = vmatprep.subr.bf16.mxu0 0
  %11313 = vmatpush1.bf16.msra.mxu0 0
  %11314 = vmatprep.subr.bf16.mxu0 0
  %11315 = vmatpush1.bf16.msra.mxu0 0
  %11316 = vmatprep.subr.bf16.mxu0 0
  %11317 = vmatpush1.bf16.msra.mxu0 0
  %11318 = vmatprep.subr.bf16.mxu0 0
  %11319 = vmatpush1.bf16.msra.mxu0 0
  %11320 = vmatprep.subr.bf16.mxu0 0
  %11321 = vmatpush1.bf16.msra.mxu0 0
  %11322 = vmatprep.subr.bf16.mxu0 0
  %11323 = vmatpush1.bf16.msra.mxu0 0
  %11324 = vmatprep.subr.bf16.mxu0 0
  %11325 = vmatpush1.bf16.msra.mxu0 0
  %11326 = vmatprep.subr.bf16.mxu0 0
  %11327 = vmatpush1.bf16.msra.mxu0 0
  %11328 = vmatprep.subr.bf16.mxu0 0
  %11329 = vmatpush1.bf16.msra.mxu0 0
  %11330 = vmatprep.subr.bf16.mxu0 0
  %11331 = vmatpush1.bf16.msra.mxu0 0
  %11332 = vmatprep.subr.bf16.mxu0 0
  %11333 = vmatpush1.bf16.msra.mxu0 0
  %11334 = vmatprep.subr.bf16.mxu0 0
  %11335 = vmatpush1.bf16.msra.mxu0 0
  %11336 = vmatprep.subr.bf16.mxu0 0
  %11337 = vmatpush1.bf16.msra.mxu0 0
  %11338 = vmatprep.mubr.bf16.mxu0 0
  %11339 = vmatmul.mubr.bf16.gmra.mrb[0].mxu0 %v11261
  %v11340 = vpop.f32.mrb[0].mxu0
  %v11341 = vadd.f32 %v11298, %v11340
  %v11342 = vpop.f32.mrb[0].mxu0
  %v11343 = vadd.f32 %v11300, %v11342
  %v11344 = vpop.f32.mrb[0].mxu0
  %v11345 = vadd.f32 %v11302, %v11344
  %v11346 = vpop.f32.mrb[0].mxu0
  %v11347 = vadd.f32 %v11304, %v11346
  %11348 = vdwg.mxu0
  %v11349 = vadd.f32 %v11039, %v11341
  %v11350 = vadd.f32 %v11040, %v11343
  %v11351 = vadd.f32 %v11041, %v11345
  %v11352 = vadd.f32 %v11042, %v11347
  %s11353 = scalar_lea.vmem %s5, 1440
  %v11354 = vld [vmem:[%s11353] sm:$0xff]
  %v11355 = vld [vmem:[%s11353 + $0x8] sm:$0xff]
  %v11356 = vld [vmem:[%s11353 + $0x10] sm:$0xff]
  %v11357 = vld [vmem:[%s11353 + $0x18] sm:$0xff]
  %v11358 = vld [vmem:[%s11353 + $0x20] sm:$0xff]
  %v11359 = vld [vmem:[%s11353 + $0x28] sm:$0xff]
  %v11360 = vld [vmem:[%s11353 + $0x30] sm:$0xff]
  %v11361 = vld [vmem:[%s11353 + $0x38] sm:$0xff]
  %v11362 = vld [vmem:[%s11353 + $0x40] sm:$0xff]
  %v11363 = vld [vmem:[%s11353 + $0x48] sm:$0xff]
  %v11364 = vld [vmem:[%s11353 + $0x50] sm:$0xff]
  %v11365 = vld [vmem:[%s11353 + $0x58] sm:$0xff]
  %v11366 = vld [vmem:[%s11353 + $0x60] sm:$0xff]
  %v11367 = vld [vmem:[%s11353 + $0x68] sm:$0xff]
  %v11368 = vld [vmem:[%s11353 + $0x70] sm:$0xff]
  %v11369 = vld [vmem:[%s11353 + $0x78] sm:$0xff]
  %v11370 = vld [vmem:[%s11353 + $0x80] sm:$0xff]
  %v11371 = vld [vmem:[%s11353 + $0x88] sm:$0xff]
  %v11372 = vld [vmem:[%s11353 + $0x90] sm:$0xff]
  %v11373 = vld [vmem:[%s11353 + $0x98] sm:$0xff]
  %v11374 = vld [vmem:[%s11353 + $0xa0] sm:$0xff]
  %v11375 = vld [vmem:[%s11353 + $0xa8] sm:$0xff]
  %v11376 = vld [vmem:[%s11353 + $0xb0] sm:$0xff]
  %v11377 = vld [vmem:[%s11353 + $0xb8] sm:$0xff]
  %v11378 = vld [vmem:[%s11353 + $0xc0] sm:$0xff]
  %v11379 = vld [vmem:[%s11353 + $0xc8] sm:$0xff]
  %v11380 = vld [vmem:[%s11353 + $0xd0] sm:$0xff]
  %v11381 = vld [vmem:[%s11353 + $0xd8] sm:$0xff]
  %v11382 = vld [vmem:[%s11353 + $0xe0] sm:$0xff]
  %v11383 = vld [vmem:[%s11353 + $0xe8] sm:$0xff]
  %v11384 = vld [vmem:[%s11353 + $0xf0] sm:$0xff]
  %v11385 = vld [vmem:[%s11353 + $0xf8] sm:$0xff]
  %v11386 = vld [vmem:[%s11353 + $0x100] sm:$0xff]
  %v11387 = vld [vmem:[%s11353 + $0x108] sm:$0xff]
  %v11388 = vld [vmem:[%s11353 + $0x110] sm:$0xff]
  %v11389 = vld [vmem:[%s11353 + $0x118] sm:$0xff]
  %v11426 = vunpack.c.l.b16 %v11354
  %v11427 = vunpack.c.h.b16 %v11354
  %v11428 = vunpack.c.l.b16 %v11355
  %v11429 = vunpack.c.h.b16 %v11355
  %v11430 = vunpack.c.l.b16 %v11356
  %v11431 = vunpack.c.h.b16 %v11356
  %v11432 = vunpack.c.l.b16 %v11357
  %v11433 = vunpack.c.h.b16 %v11357
  %v11434 = vunpack.c.l.b16 %v11358
  %v11435 = vunpack.c.h.b16 %v11358
  %v11436 = vunpack.c.l.b16 %v11359
  %v11437 = vunpack.c.h.b16 %v11359
  %v11438 = vunpack.c.l.b16 %v11360
  %v11439 = vunpack.c.h.b16 %v11360
  %v11440 = vunpack.c.l.b16 %v11361
  %v11441 = vunpack.c.h.b16 %v11361
  %v11442 = vunpack.c.l.b16 %v11362
  %v11443 = vunpack.c.h.b16 %v11362
  %v11444 = vunpack.c.l.b16 %v11363
  %v11445 = vunpack.c.h.b16 %v11363
  %v11446 = vunpack.c.l.b16 %v11364
  %v11447 = vunpack.c.h.b16 %v11364
  %v11448 = vunpack.c.l.b16 %v11365
  %v11449 = vunpack.c.h.b16 %v11365
  %v11450 = vunpack.c.l.b16 %v11366
  %v11451 = vunpack.c.h.b16 %v11366
  %v11452 = vunpack.c.l.b16 %v11367
  %v11453 = vunpack.c.h.b16 %v11367
  %v11454 = vunpack.c.l.b16 %v11368
  %v11455 = vunpack.c.h.b16 %v11368
  %v11456 = vunpack.c.l.b16 %v11369
  %v11457 = vunpack.c.h.b16 %v11369
  %v11458 = vunpack.c.l.b16 %v11370
  %v11459 = vunpack.c.h.b16 %v11370
  %v11460 = vunpack.c.l.b16 %v11371
  %v11461 = vunpack.c.h.b16 %v11371
  %v11462 = vunpack.c.l.b16 %v11372
  %v11463 = vunpack.c.h.b16 %v11372
  %v11464 = vunpack.c.l.b16 %v11373
  %v11465 = vunpack.c.h.b16 %v11373
  %v11466 = vunpack.c.l.b16 %v11374
  %v11467 = vunpack.c.h.b16 %v11374
  %v11468 = vunpack.c.l.b16 %v11375
  %v11469 = vunpack.c.h.b16 %v11375
  %v11470 = vunpack.c.l.b16 %v11376
  %v11471 = vunpack.c.h.b16 %v11376
  %v11472 = vunpack.c.l.b16 %v11377
  %v11473 = vunpack.c.h.b16 %v11377
  %v11474 = vunpack.c.l.b16 %v11378
  %v11475 = vunpack.c.h.b16 %v11378
  %v11476 = vunpack.c.l.b16 %v11379
  %v11477 = vunpack.c.h.b16 %v11379
  %v11478 = vunpack.c.l.b16 %v11380
  %v11479 = vunpack.c.h.b16 %v11380
  %v11480 = vunpack.c.l.b16 %v11381
  %v11481 = vunpack.c.h.b16 %v11381
  %v11482 = vunpack.c.l.b16 %v11382
  %v11483 = vunpack.c.h.b16 %v11382
  %v11484 = vunpack.c.l.b16 %v11383
  %v11485 = vunpack.c.h.b16 %v11383
  %v11486 = vunpack.c.l.b16 %v11384
  %v11487 = vunpack.c.h.b16 %v11384
  %v11488 = vunpack.c.l.b16 %v11385
  %v11489 = vunpack.c.h.b16 %v11385
  %v11490 = vunpack.c.l.b16 %v11386
  %v11491 = vunpack.c.h.b16 %v11386
  %v11492 = vunpack.c.l.b16 %v11387
  %v11493 = vunpack.c.h.b16 %v11387
  %v11494 = vunpack.c.l.b16 %v11388
  %v11495 = vunpack.c.h.b16 %v11388
  %v11496 = vunpack.c.l.b16 %v11389
  %v11497 = vunpack.c.h.b16 %v11389
  %v11498 = vpack.c.b16 %v11428, %v11426
  %v11499 = vpack.c.b16 %v11429, %v11427
  %v11500 = vpack.c.b16 %v11432, %v11430
  %v11501 = vpack.c.b16 %v11433, %v11431
  %v11502 = vpack.c.b16 %v11436, %v11434
  %v11503 = vpack.c.b16 %v11437, %v11435
  %v11504 = vpack.c.b16 %v11440, %v11438
  %v11505 = vpack.c.b16 %v11441, %v11439
  %v11506 = vpack.c.b16 %v11444, %v11442
  %v11507 = vpack.c.b16 %v11445, %v11443
  %v11508 = vpack.c.b16 %v11448, %v11446
  %v11509 = vpack.c.b16 %v11449, %v11447
  %v11510 = vpack.c.b16 %v11452, %v11450
  %v11511 = vpack.c.b16 %v11453, %v11451
  %v11512 = vpack.c.b16 %v11456, %v11454
  %v11513 = vpack.c.b16 %v11457, %v11455
  %v11514 = vpack.c.b16 %v11460, %v11458
  %v11515 = vpack.c.b16 %v11461, %v11459
  %v11516 = vpack.c.b16 %v11464, %v11462
  %v11517 = vpack.c.b16 %v11465, %v11463
  %v11518 = vpack.c.b16 %v11468, %v11466
  %v11519 = vpack.c.b16 %v11469, %v11467
  %v11520 = vpack.c.b16 %v11472, %v11470
  %v11521 = vpack.c.b16 %v11473, %v11471
  %v11522 = vpack.c.b16 %v11476, %v11474
  %v11523 = vpack.c.b16 %v11477, %v11475
  %v11524 = vpack.c.b16 %v11480, %v11478
  %v11525 = vpack.c.b16 %v11481, %v11479
  %v11526 = vpack.c.b16 %v11484, %v11482
  %v11527 = vpack.c.b16 %v11485, %v11483
  %v11528 = vpack.c.b16 %v11488, %v11486
  %v11529 = vpack.c.b16 %v11489, %v11487
  %v11530 = vpack.c.b16 %v11492, %v11490
  %v11531 = vpack.c.b16 %v11493, %v11491
  %v11532 = vpack.c.b16 %v11496, %v11494
  %v11533 = vpack.c.b16 %v11497, %v11495
  %v11571 = vsel %vm10064, %v9801, 0
  %11573 = vmatprep.subr.bf16.mxu0 %v11499
  %11574 = vmatpush1.bf16.msra.mxu0 %v11498
  %11575 = vmatprep.subr.bf16.mxu0 %v11501
  %11576 = vmatpush1.bf16.msra.mxu0 %v11500
  %11577 = vmatprep.subr.bf16.mxu0 %v11503
  %11578 = vmatpush1.bf16.msra.mxu0 %v11502
  %11579 = vmatprep.subr.bf16.mxu0 %v11505
  %11580 = vmatpush1.bf16.msra.mxu0 %v11504
  %11581 = vmatprep.subr.bf16.mxu0 %v11507
  %11582 = vmatpush1.bf16.msra.mxu0 %v11506
  %11583 = vmatprep.subr.bf16.mxu0 %v11509
  %11584 = vmatpush1.bf16.msra.mxu0 %v11508
  %11585 = vmatprep.subr.bf16.mxu0 %v11511
  %11586 = vmatpush1.bf16.msra.mxu0 %v11510
  %11587 = vmatprep.subr.bf16.mxu0 %v11513
  %11588 = vmatpush1.bf16.msra.mxu0 %v11512
  %11589 = vmatprep.subr.bf16.mxu0 %v11515
  %11590 = vmatpush1.bf16.msra.mxu0 %v11514
  %11591 = vmatprep.subr.bf16.mxu0 %v11517
  %11592 = vmatpush1.bf16.msra.mxu0 %v11516
  %11593 = vmatprep.subr.bf16.mxu0 %v11519
  %11594 = vmatpush1.bf16.msra.mxu0 %v11518
  %11595 = vmatprep.subr.bf16.mxu0 %v11521
  %11596 = vmatpush1.bf16.msra.mxu0 %v11520
  %11597 = vmatprep.subr.bf16.mxu0 %v11523
  %11598 = vmatpush1.bf16.msra.mxu0 %v11522
  %11599 = vmatprep.subr.bf16.mxu0 %v11525
  %11600 = vmatpush1.bf16.msra.mxu0 %v11524
  %11601 = vmatprep.subr.bf16.mxu0 %v11527
  %11602 = vmatpush1.bf16.msra.mxu0 %v11526
  %11603 = vmatprep.subr.bf16.mxu0 %v11529
  %11604 = vmatpush1.bf16.msra.mxu0 %v11528
  %11605 = vmatprep.mubr.bf16.mxu0 %v9800
  %11606 = vmatmul.mubr.bf16.gmra.mrb[0].mxu0 %v9799
  %v11607 = vpop.f32.mrb[0].mxu0
  %v11608 = vadd.f32 0.0, %v11607
  %v11609 = vpop.f32.mrb[0].mxu0
  %v11610 = vadd.f32 0.0, %v11609
  %v11611 = vpop.f32.mrb[0].mxu0
  %v11612 = vadd.f32 0.0, %v11611
  %v11613 = vpop.f32.mrb[0].mxu0
  %v11614 = vadd.f32 0.0, %v11613
  %11615 = vdwg.mxu0
  %11616 = vmatprep.subr.bf16.mxu0 %v11531
  %11617 = vmatpush1.bf16.msra.mxu0 %v11530
  %11618 = vmatprep.subr.bf16.mxu0 %v11533
  %11619 = vmatpush1.bf16.msra.mxu0 %v11532
  %11620 = vmatprep.subr.bf16.mxu0 0
  %11621 = vmatpush1.bf16.msra.mxu0 0
  %11622 = vmatprep.subr.bf16.mxu0 0
  %11623 = vmatpush1.bf16.msra.mxu0 0
  %11624 = vmatprep.subr.bf16.mxu0 0
  %11625 = vmatpush1.bf16.msra.mxu0 0
  %11626 = vmatprep.subr.bf16.mxu0 0
  %11627 = vmatpush1.bf16.msra.mxu0 0
  %11628 = vmatprep.subr.bf16.mxu0 0
  %11629 = vmatpush1.bf16.msra.mxu0 0
  %11630 = vmatprep.subr.bf16.mxu0 0
  %11631 = vmatpush1.bf16.msra.mxu0 0
  %11632 = vmatprep.subr.bf16.mxu0 0
  %11633 = vmatpush1.bf16.msra.mxu0 0
  %11634 = vmatprep.subr.bf16.mxu0 0
  %11635 = vmatpush1.bf16.msra.mxu0 0
  %11636 = vmatprep.subr.bf16.mxu0 0
  %11637 = vmatpush1.bf16.msra.mxu0 0
  %11638 = vmatprep.subr.bf16.mxu0 0
  %11639 = vmatpush1.bf16.msra.mxu0 0
  %11640 = vmatprep.subr.bf16.mxu0 0
  %11641 = vmatpush1.bf16.msra.mxu0 0
  %11642 = vmatprep.subr.bf16.mxu0 0
  %11643 = vmatpush1.bf16.msra.mxu0 0
  %11644 = vmatprep.subr.bf16.mxu0 0
  %11645 = vmatpush1.bf16.msra.mxu0 0
  %11646 = vmatprep.subr.bf16.mxu0 0
  %11647 = vmatpush1.bf16.msra.mxu0 0
  %11648 = vmatprep.mubr.bf16.mxu0 0
  %11649 = vmatmul.mubr.bf16.gmra.mrb[0].mxu0 %v11571
  %v11650 = vpop.f32.mrb[0].mxu0
  %v11651 = vadd.f32 %v11608, %v11650
  %v11652 = vpop.f32.mrb[0].mxu0
  %v11653 = vadd.f32 %v11610, %v11652
  %v11654 = vpop.f32.mrb[0].mxu0
  %v11655 = vadd.f32 %v11612, %v11654
  %v11656 = vpop.f32.mrb[0].mxu0
  %v11657 = vadd.f32 %v11614, %v11656
  %11658 = vdwg.mxu0
  %v11659 = vadd.f32 %v11349, %v11651
  %v11660 = vadd.f32 %v11350, %v11653
  %v11661 = vadd.f32 %v11351, %v11655
  %v11662 = vadd.f32 %v11352, %v11657
  %s11663 = scalar_lea.vmem %s5, 1728
  %v11664 = vld [vmem:[%s11663] sm:$0xff]
  %v11665 = vld [vmem:[%s11663 + $0x8] sm:$0xff]
  %v11666 = vld [vmem:[%s11663 + $0x10] sm:$0xff]
  %v11667 = vld [vmem:[%s11663 + $0x18] sm:$0xff]
  %v11668 = vld [vmem:[%s11663 + $0x20] sm:$0xff]
  %v11669 = vld [vmem:[%s11663 + $0x28] sm:$0xff]
  %v11670 = vld [vmem:[%s11663 + $0x30] sm:$0xff]
  %v11671 = vld [vmem:[%s11663 + $0x38] sm:$0xff]
  %v11672 = vld [vmem:[%s11663 + $0x40] sm:$0xff]
  %v11673 = vld [vmem:[%s11663 + $0x48] sm:$0xff]
  %v11674 = vld [vmem:[%s11663 + $0x50] sm:$0xff]
  %v11675 = vld [vmem:[%s11663 + $0x58] sm:$0xff]
  %v11676 = vld [vmem:[%s11663 + $0x60] sm:$0xff]
  %v11677 = vld [vmem:[%s11663 + $0x68] sm:$0xff]
  %v11678 = vld [vmem:[%s11663 + $0x70] sm:$0xff]
  %v11679 = vld [vmem:[%s11663 + $0x78] sm:$0xff]
  %v11680 = vld [vmem:[%s11663 + $0x80] sm:$0xff]
  %v11681 = vld [vmem:[%s11663 + $0x88] sm:$0xff]
  %v11682 = vld [vmem:[%s11663 + $0x90] sm:$0xff]
  %v11683 = vld [vmem:[%s11663 + $0x98] sm:$0xff]
  %v11684 = vld [vmem:[%s11663 + $0xa0] sm:$0xff]
  %v11685 = vld [vmem:[%s11663 + $0xa8] sm:$0xff]
  %v11686 = vld [vmem:[%s11663 + $0xb0] sm:$0xff]
  %v11687 = vld [vmem:[%s11663 + $0xb8] sm:$0xff]
  %v11688 = vld [vmem:[%s11663 + $0xc0] sm:$0xff]
  %v11689 = vld [vmem:[%s11663 + $0xc8] sm:$0xff]
  %v11690 = vld [vmem:[%s11663 + $0xd0] sm:$0xff]
  %v11691 = vld [vmem:[%s11663 + $0xd8] sm:$0xff]
  %v11692 = vld [vmem:[%s11663 + $0xe0] sm:$0xff]
  %v11693 = vld [vmem:[%s11663 + $0xe8] sm:$0xff]
  %v11694 = vld [vmem:[%s11663 + $0xf0] sm:$0xff]
  %v11695 = vld [vmem:[%s11663 + $0xf8] sm:$0xff]
  %v11696 = vld [vmem:[%s11663 + $0x100] sm:$0xff]
  %v11697 = vld [vmem:[%s11663 + $0x108] sm:$0xff]
  %v11698 = vld [vmem:[%s11663 + $0x110] sm:$0xff]
  %v11699 = vld [vmem:[%s11663 + $0x118] sm:$0xff]
  %v11736 = vunpack.c.l.b16 %v11664
  %v11737 = vunpack.c.h.b16 %v11664
  %v11738 = vunpack.c.l.b16 %v11665
  %v11739 = vunpack.c.h.b16 %v11665
  %v11740 = vunpack.c.l.b16 %v11666
  %v11741 = vunpack.c.h.b16 %v11666
  %v11742 = vunpack.c.l.b16 %v11667
  %v11743 = vunpack.c.h.b16 %v11667
  %v11744 = vunpack.c.l.b16 %v11668
  %v11745 = vunpack.c.h.b16 %v11668
  %v11746 = vunpack.c.l.b16 %v11669
  %v11747 = vunpack.c.h.b16 %v11669
  %v11748 = vunpack.c.l.b16 %v11670
  %v11749 = vunpack.c.h.b16 %v11670
  %v11750 = vunpack.c.l.b16 %v11671
  %v11751 = vunpack.c.h.b16 %v11671
  %v11752 = vunpack.c.l.b16 %v11672
  %v11753 = vunpack.c.h.b16 %v11672
  %v11754 = vunpack.c.l.b16 %v11673
  %v11755 = vunpack.c.h.b16 %v11673
  %v11756 = vunpack.c.l.b16 %v11674
  %v11757 = vunpack.c.h.b16 %v11674
  %v11758 = vunpack.c.l.b16 %v11675
  %v11759 = vunpack.c.h.b16 %v11675
  %v11760 = vunpack.c.l.b16 %v11676
  %v11761 = vunpack.c.h.b16 %v11676
  %v11762 = vunpack.c.l.b16 %v11677
  %v11763 = vunpack.c.h.b16 %v11677
  %v11764 = vunpack.c.l.b16 %v11678
  %v11765 = vunpack.c.h.b16 %v11678
  %v11766 = vunpack.c.l.b16 %v11679
  %v11767 = vunpack.c.h.b16 %v11679
  %v11768 = vunpack.c.l.b16 %v11680
  %v11769 = vunpack.c.h.b16 %v11680
  %v11770 = vunpack.c.l.b16 %v11681
  %v11771 = vunpack.c.h.b16 %v11681
  %v11772 = vunpack.c.l.b16 %v11682
  %v11773 = vunpack.c.h.b16 %v11682
  %v11774 = vunpack.c.l.b16 %v11683
  %v11775 = vunpack.c.h.b16 %v11683
  %v11776 = vunpack.c.l.b16 %v11684
  %v11777 = vunpack.c.h.b16 %v11684
  %v11778 = vunpack.c.l.b16 %v11685
  %v11779 = vunpack.c.h.b16 %v11685
  %v11780 = vunpack.c.l.b16 %v11686
  %v11781 = vunpack.c.h.b16 %v11686
  %v11782 = vunpack.c.l.b16 %v11687
  %v11783 = vunpack.c.h.b16 %v11687
  %v11784 = vunpack.c.l.b16 %v11688
  %v11785 = vunpack.c.h.b16 %v11688
  %v11786 = vunpack.c.l.b16 %v11689
  %v11787 = vunpack.c.h.b16 %v11689
  %v11788 = vunpack.c.l.b16 %v11690
  %v11789 = vunpack.c.h.b16 %v11690
  %v11790 = vunpack.c.l.b16 %v11691
  %v11791 = vunpack.c.h.b16 %v11691
  %v11792 = vunpack.c.l.b16 %v11692
  %v11793 = vunpack.c.h.b16 %v11692
  %v11794 = vunpack.c.l.b16 %v11693
  %v11795 = vunpack.c.h.b16 %v11693
  %v11796 = vunpack.c.l.b16 %v11694
  %v11797 = vunpack.c.h.b16 %v11694
  %v11798 = vunpack.c.l.b16 %v11695
  %v11799 = vunpack.c.h.b16 %v11695
  %v11800 = vunpack.c.l.b16 %v11696
  %v11801 = vunpack.c.h.b16 %v11696
  %v11802 = vunpack.c.l.b16 %v11697
  %v11803 = vunpack.c.h.b16 %v11697
  %v11804 = vunpack.c.l.b16 %v11698
  %v11805 = vunpack.c.h.b16 %v11698
  %v11806 = vunpack.c.l.b16 %v11699
  %v11807 = vunpack.c.h.b16 %v11699
  %v11808 = vpack.c.b16 %v11738, %v11736
  %v11809 = vpack.c.b16 %v11739, %v11737
  %v11810 = vpack.c.b16 %v11742, %v11740
  %v11811 = vpack.c.b16 %v11743, %v11741
  %v11812 = vpack.c.b16 %v11746, %v11744
  %v11813 = vpack.c.b16 %v11747, %v11745
  %v11814 = vpack.c.b16 %v11750, %v11748
  %v11815 = vpack.c.b16 %v11751, %v11749
  %v11816 = vpack.c.b16 %v11754, %v11752
  %v11817 = vpack.c.b16 %v11755, %v11753
  %v11818 = vpack.c.b16 %v11758, %v11756
  %v11819 = vpack.c.b16 %v11759, %v11757
  %v11820 = vpack.c.b16 %v11762, %v11760
  %v11821 = vpack.c.b16 %v11763, %v11761
  %v11822 = vpack.c.b16 %v11766, %v11764
  %v11823 = vpack.c.b16 %v11767, %v11765
  %v11824 = vpack.c.b16 %v11770, %v11768
  %v11825 = vpack.c.b16 %v11771, %v11769
  %v11826 = vpack.c.b16 %v11774, %v11772
  %v11827 = vpack.c.b16 %v11775, %v11773
  %v11828 = vpack.c.b16 %v11778, %v11776
  %v11829 = vpack.c.b16 %v11779, %v11777
  %v11830 = vpack.c.b16 %v11782, %v11780
  %v11831 = vpack.c.b16 %v11783, %v11781
  %v11832 = vpack.c.b16 %v11786, %v11784
  %v11833 = vpack.c.b16 %v11787, %v11785
  %v11834 = vpack.c.b16 %v11790, %v11788
  %v11835 = vpack.c.b16 %v11791, %v11789
  %v11836 = vpack.c.b16 %v11794, %v11792
  %v11837 = vpack.c.b16 %v11795, %v11793
  %v11838 = vpack.c.b16 %v11798, %v11796
  %v11839 = vpack.c.b16 %v11799, %v11797
  %v11840 = vpack.c.b16 %v11802, %v11800
  %v11841 = vpack.c.b16 %v11803, %v11801
  %v11842 = vpack.c.b16 %v11806, %v11804
  %v11843 = vpack.c.b16 %v11807, %v11805
  %v11881 = vsel %vm10064, %v9804, 0
  %11883 = vmatprep.subr.bf16.mxu0 %v11809
  %11884 = vmatpush1.bf16.msra.mxu0 %v11808
  %11885 = vmatprep.subr.bf16.mxu0 %v11811
  %11886 = vmatpush1.bf16.msra.mxu0 %v11810
  %11887 = vmatprep.subr.bf16.mxu0 %v11813
  %11888 = vmatpush1.bf16.msra.mxu0 %v11812
  %11889 = vmatprep.subr.bf16.mxu0 %v11815
  %11890 = vmatpush1.bf16.msra.mxu0 %v11814
  %11891 = vmatprep.subr.bf16.mxu0 %v11817
  %11892 = vmatpush1.bf16.msra.mxu0 %v11816
  %11893 = vmatprep.subr.bf16.mxu0 %v11819
  %11894 = vmatpush1.bf16.msra.mxu0 %v11818
  %11895 = vmatprep.subr.bf16.mxu0 %v11821
  %11896 = vmatpush1.bf16.msra.mxu0 %v11820
  %11897 = vmatprep.subr.bf16.mxu0 %v11823
  %11898 = vmatpush1.bf16.msra.mxu0 %v11822
  %11899 = vmatprep.subr.bf16.mxu0 %v11825
  %11900 = vmatpush1.bf16.msra.mxu0 %v11824
  %11901 = vmatprep.subr.bf16.mxu0 %v11827
  %11902 = vmatpush1.bf16.msra.mxu0 %v11826
  %11903 = vmatprep.subr.bf16.mxu0 %v11829
  %11904 = vmatpush1.bf16.msra.mxu0 %v11828
  %11905 = vmatprep.subr.bf16.mxu0 %v11831
  %11906 = vmatpush1.bf16.msra.mxu0 %v11830
  %11907 = vmatprep.subr.bf16.mxu0 %v11833
  %11908 = vmatpush1.bf16.msra.mxu0 %v11832
  %11909 = vmatprep.subr.bf16.mxu0 %v11835
  %11910 = vmatpush1.bf16.msra.mxu0 %v11834
  %11911 = vmatprep.subr.bf16.mxu0 %v11837
  %11912 = vmatpush1.bf16.msra.mxu0 %v11836
  %11913 = vmatprep.subr.bf16.mxu0 %v11839
  %11914 = vmatpush1.bf16.msra.mxu0 %v11838
  %11915 = vmatprep.mubr.bf16.mxu0 %v9803
  %11916 = vmatmul.mubr.bf16.gmra.mrb[0].mxu0 %v9802
  %v11917 = vpop.f32.mrb[0].mxu0
  %v11918 = vadd.f32 0.0, %v11917
  %v11919 = vpop.f32.mrb[0].mxu0
  %v11920 = vadd.f32 0.0, %v11919
  %v11921 = vpop.f32.mrb[0].mxu0
  %v11922 = vadd.f32 0.0, %v11921
  %v11923 = vpop.f32.mrb[0].mxu0
  %v11924 = vadd.f32 0.0, %v11923
  %11925 = vdwg.mxu0
  %11926 = vmatprep.subr.bf16.mxu0 %v11841
  %11927 = vmatpush1.bf16.msra.mxu0 %v11840
  %11928 = vmatprep.subr.bf16.mxu0 %v11843
  %11929 = vmatpush1.bf16.msra.mxu0 %v11842
  %11930 = vmatprep.subr.bf16.mxu0 0
  %11931 = vmatpush1.bf16.msra.mxu0 0
  %11932 = vmatprep.subr.bf16.mxu0 0
  %11933 = vmatpush1.bf16.msra.mxu0 0
  %11934 = vmatprep.subr.bf16.mxu0 0
  %11935 = vmatpush1.bf16.msra.mxu0 0
  %11936 = vmatprep.subr.bf16.mxu0 0
  %11937 = vmatpush1.bf16.msra.mxu0 0
  %11938 = vmatprep.subr.bf16.mxu0 0
  %11939 = vmatpush1.bf16.msra.mxu0 0
  %11940 = vmatprep.subr.bf16.mxu0 0
  %11941 = vmatpush1.bf16.msra.mxu0 0
  %11942 = vmatprep.subr.bf16.mxu0 0
  %11943 = vmatpush1.bf16.msra.mxu0 0
  %11944 = vmatprep.subr.bf16.mxu0 0
  %11945 = vmatpush1.bf16.msra.mxu0 0
  %11946 = vmatprep.subr.bf16.mxu0 0
  %11947 = vmatpush1.bf16.msra.mxu0 0
  %11948 = vmatprep.subr.bf16.mxu0 0
  %11949 = vmatpush1.bf16.msra.mxu0 0
  %11950 = vmatprep.subr.bf16.mxu0 0
  %11951 = vmatpush1.bf16.msra.mxu0 0
  %11952 = vmatprep.subr.bf16.mxu0 0
  %11953 = vmatpush1.bf16.msra.mxu0 0
  %11954 = vmatprep.subr.bf16.mxu0 0
  %11955 = vmatpush1.bf16.msra.mxu0 0
  %11956 = vmatprep.subr.bf16.mxu0 0
  %11957 = vmatpush1.bf16.msra.mxu0 0
  %11958 = vmatprep.mubr.bf16.mxu0 0
  %11959 = vmatmul.mubr.bf16.gmra.mrb[0].mxu0 %v11881
  %v11960 = vpop.f32.mrb[0].mxu0
  %v11961 = vadd.f32 %v11918, %v11960
  %v11962 = vpop.f32.mrb[0].mxu0
  %v11963 = vadd.f32 %v11920, %v11962
  %v11964 = vpop.f32.mrb[0].mxu0
  %v11965 = vadd.f32 %v11922, %v11964
  %v11966 = vpop.f32.mrb[0].mxu0
  %v11967 = vadd.f32 %v11924, %v11966
  %11968 = vdwg.mxu0
  %v11969 = vadd.f32 %v11659, %v11961
  %v11970 = vadd.f32 %v11660, %v11963
  %v11971 = vadd.f32 %v11661, %v11965
  %v11972 = vadd.f32 %v11662, %v11967
  %s11973 = scalar_lea.vmem %s5, 2016
  %v11974 = vld [vmem:[%s11973] sm:$0xff]
  %v11975 = vld [vmem:[%s11973 + $0x8] sm:$0xff]
  %v11976 = vld [vmem:[%s11973 + $0x10] sm:$0xff]
  %v11977 = vld [vmem:[%s11973 + $0x18] sm:$0xff]
  %v11978 = vld [vmem:[%s11973 + $0x20] sm:$0xff]
  %v11979 = vld [vmem:[%s11973 + $0x28] sm:$0xff]
  %v11980 = vld [vmem:[%s11973 + $0x30] sm:$0xff]
  %v11981 = vld [vmem:[%s11973 + $0x38] sm:$0xff]
  %v11982 = vld [vmem:[%s11973 + $0x40] sm:$0xff]
  %v11983 = vld [vmem:[%s11973 + $0x48] sm:$0xff]
  %v11984 = vld [vmem:[%s11973 + $0x50] sm:$0xff]
  %v11985 = vld [vmem:[%s11973 + $0x58] sm:$0xff]
  %v11986 = vld [vmem:[%s11973 + $0x60] sm:$0xff]
  %v11987 = vld [vmem:[%s11973 + $0x68] sm:$0xff]
  %v11988 = vld [vmem:[%s11973 + $0x70] sm:$0xff]
  %v11989 = vld [vmem:[%s11973 + $0x78] sm:$0xff]
  %v11990 = vld [vmem:[%s11973 + $0x80] sm:$0xff]
  %v11991 = vld [vmem:[%s11973 + $0x88] sm:$0xff]
  %v11992 = vld [vmem:[%s11973 + $0x90] sm:$0xff]
  %v11993 = vld [vmem:[%s11973 + $0x98] sm:$0xff]
  %v11994 = vld [vmem:[%s11973 + $0xa0] sm:$0xff]
  %v11995 = vld [vmem:[%s11973 + $0xa8] sm:$0xff]
  %v11996 = vld [vmem:[%s11973 + $0xb0] sm:$0xff]
  %v11997 = vld [vmem:[%s11973 + $0xb8] sm:$0xff]
  %v11998 = vld [vmem:[%s11973 + $0xc0] sm:$0xff]
  %v11999 = vld [vmem:[%s11973 + $0xc8] sm:$0xff]
  %v12000 = vld [vmem:[%s11973 + $0xd0] sm:$0xff]
  %v12001 = vld [vmem:[%s11973 + $0xd8] sm:$0xff]
  %v12002 = vld [vmem:[%s11973 + $0xe0] sm:$0xff]
  %v12003 = vld [vmem:[%s11973 + $0xe8] sm:$0xff]
  %v12004 = vld [vmem:[%s11973 + $0xf0] sm:$0xff]
  %v12005 = vld [vmem:[%s11973 + $0xf8] sm:$0xff]
  %v12006 = vld [vmem:[%s11973 + $0x100] sm:$0xff]
  %v12007 = vld [vmem:[%s11973 + $0x108] sm:$0xff]
  %v12008 = vld [vmem:[%s11973 + $0x110] sm:$0xff]
  %v12009 = vld [vmem:[%s11973 + $0x118] sm:$0xff]
  %v12046 = vunpack.c.l.b16 %v11974
  %v12047 = vunpack.c.h.b16 %v11974
  %v12048 = vunpack.c.l.b16 %v11975
  %v12049 = vunpack.c.h.b16 %v11975
  %v12050 = vunpack.c.l.b16 %v11976
  %v12051 = vunpack.c.h.b16 %v11976
  %v12052 = vunpack.c.l.b16 %v11977
  %v12053 = vunpack.c.h.b16 %v11977
  %v12054 = vunpack.c.l.b16 %v11978
  %v12055 = vunpack.c.h.b16 %v11978
  %v12056 = vunpack.c.l.b16 %v11979
  %v12057 = vunpack.c.h.b16 %v11979
  %v12058 = vunpack.c.l.b16 %v11980
  %v12059 = vunpack.c.h.b16 %v11980
  %v12060 = vunpack.c.l.b16 %v11981
  %v12061 = vunpack.c.h.b16 %v11981
  %v12062 = vunpack.c.l.b16 %v11982
  %v12063 = vunpack.c.h.b16 %v11982
  %v12064 = vunpack.c.l.b16 %v11983
  %v12065 = vunpack.c.h.b16 %v11983
  %v12066 = vunpack.c.l.b16 %v11984
  %v12067 = vunpack.c.h.b16 %v11984
  %v12068 = vunpack.c.l.b16 %v11985
  %v12069 = vunpack.c.h.b16 %v11985
  %v12070 = vunpack.c.l.b16 %v11986
  %v12071 = vunpack.c.h.b16 %v11986
  %v12072 = vunpack.c.l.b16 %v11987
  %v12073 = vunpack.c.h.b16 %v11987
  %v12074 = vunpack.c.l.b16 %v11988
  %v12075 = vunpack.c.h.b16 %v11988
  %v12076 = vunpack.c.l.b16 %v11989
  %v12077 = vunpack.c.h.b16 %v11989
  %v12078 = vunpack.c.l.b16 %v11990
  %v12079 = vunpack.c.h.b16 %v11990
  %v12080 = vunpack.c.l.b16 %v11991
  %v12081 = vunpack.c.h.b16 %v11991
  %v12082 = vunpack.c.l.b16 %v11992
  %v12083 = vunpack.c.h.b16 %v11992
  %v12084 = vunpack.c.l.b16 %v11993
  %v12085 = vunpack.c.h.b16 %v11993
  %v12086 = vunpack.c.l.b16 %v11994
  %v12087 = vunpack.c.h.b16 %v11994
  %v12088 = vunpack.c.l.b16 %v11995
  %v12089 = vunpack.c.h.b16 %v11995
  %v12090 = vunpack.c.l.b16 %v11996
  %v12091 = vunpack.c.h.b16 %v11996
  %v12092 = vunpack.c.l.b16 %v11997
  %v12093 = vunpack.c.h.b16 %v11997
  %v12094 = vunpack.c.l.b16 %v11998
  %v12095 = vunpack.c.h.b16 %v11998
  %v12096 = vunpack.c.l.b16 %v11999
  %v12097 = vunpack.c.h.b16 %v11999
  %v12098 = vunpack.c.l.b16 %v12000
  %v12099 = vunpack.c.h.b16 %v12000
  %v12100 = vunpack.c.l.b16 %v12001
  %v12101 = vunpack.c.h.b16 %v12001
  %v12102 = vunpack.c.l.b16 %v12002
  %v12103 = vunpack.c.h.b16 %v12002
  %v12104 = vunpack.c.l.b16 %v12003
  %v12105 = vunpack.c.h.b16 %v12003
  %v12106 = vunpack.c.l.b16 %v12004
  %v12107 = vunpack.c.h.b16 %v12004
  %v12108 = vunpack.c.l.b16 %v12005
  %v12109 = vunpack.c.h.b16 %v12005
  %v12110 = vunpack.c.l.b16 %v12006
  %v12111 = vunpack.c.h.b16 %v12006
  %v12112 = vunpack.c.l.b16 %v12007
  %v12113 = vunpack.c.h.b16 %v12007
  %v12114 = vunpack.c.l.b16 %v12008
  %v12115 = vunpack.c.h.b16 %v12008
  %v12116 = vunpack.c.l.b16 %v12009
  %v12117 = vunpack.c.h.b16 %v12009
  %v12118 = vpack.c.b16 %v12048, %v12046
  %v12119 = vpack.c.b16 %v12049, %v12047
  %v12120 = vpack.c.b16 %v12052, %v12050
  %v12121 = vpack.c.b16 %v12053, %v12051
  %v12122 = vpack.c.b16 %v12056, %v12054
  %v12123 = vpack.c.b16 %v12057, %v12055
  %v12124 = vpack.c.b16 %v12060, %v12058
  %v12125 = vpack.c.b16 %v12061, %v12059
  %v12126 = vpack.c.b16 %v12064, %v12062
  %v12127 = vpack.c.b16 %v12065, %v12063
  %v12128 = vpack.c.b16 %v12068, %v12066
  %v12129 = vpack.c.b16 %v12069, %v12067
  %v12130 = vpack.c.b16 %v12072, %v12070
  %v12131 = vpack.c.b16 %v12073, %v12071
  %v12132 = vpack.c.b16 %v12076, %v12074
  %v12133 = vpack.c.b16 %v12077, %v12075
  %v12134 = vpack.c.b16 %v12080, %v12078
  %v12135 = vpack.c.b16 %v12081, %v12079
  %v12136 = vpack.c.b16 %v12084, %v12082
  %v12137 = vpack.c.b16 %v12085, %v12083
  %v12138 = vpack.c.b16 %v12088, %v12086
  %v12139 = vpack.c.b16 %v12089, %v12087
  %v12140 = vpack.c.b16 %v12092, %v12090
  %v12141 = vpack.c.b16 %v12093, %v12091
  %v12142 = vpack.c.b16 %v12096, %v12094
  %v12143 = vpack.c.b16 %v12097, %v12095
  %v12144 = vpack.c.b16 %v12100, %v12098
  %v12145 = vpack.c.b16 %v12101, %v12099
  %v12146 = vpack.c.b16 %v12104, %v12102
  %v12147 = vpack.c.b16 %v12105, %v12103
  %v12148 = vpack.c.b16 %v12108, %v12106
  %v12149 = vpack.c.b16 %v12109, %v12107
  %v12150 = vpack.c.b16 %v12112, %v12110
  %v12151 = vpack.c.b16 %v12113, %v12111
  %v12152 = vpack.c.b16 %v12116, %v12114
  %v12153 = vpack.c.b16 %v12117, %v12115
  %v12191 = vsel %vm10064, %v9807, 0
  %12193 = vmatprep.subr.bf16.mxu0 %v12119
  %12194 = vmatpush1.bf16.msra.mxu0 %v12118
  %12195 = vmatprep.subr.bf16.mxu0 %v12121
  %12196 = vmatpush1.bf16.msra.mxu0 %v12120
  %12197 = vmatprep.subr.bf16.mxu0 %v12123
  %12198 = vmatpush1.bf16.msra.mxu0 %v12122
  %12199 = vmatprep.subr.bf16.mxu0 %v12125
  %12200 = vmatpush1.bf16.msra.mxu0 %v12124
  %12201 = vmatprep.subr.bf16.mxu0 %v12127
  %12202 = vmatpush1.bf16.msra.mxu0 %v12126
  %12203 = vmatprep.subr.bf16.mxu0 %v12129
  %12204 = vmatpush1.bf16.msra.mxu0 %v12128
  %12205 = vmatprep.subr.bf16.mxu0 %v12131
  %12206 = vmatpush1.bf16.msra.mxu0 %v12130
  %12207 = vmatprep.subr.bf16.mxu0 %v12133
  %12208 = vmatpush1.bf16.msra.mxu0 %v12132
  %12209 = vmatprep.subr.bf16.mxu0 %v12135
  %12210 = vmatpush1.bf16.msra.mxu0 %v12134
  %12211 = vmatprep.subr.bf16.mxu0 %v12137
  %12212 = vmatpush1.bf16.msra.mxu0 %v12136
  %12213 = vmatprep.subr.bf16.mxu0 %v12139
  %12214 = vmatpush1.bf16.msra.mxu0 %v12138
  %12215 = vmatprep.subr.bf16.mxu0 %v12141
  %12216 = vmatpush1.bf16.msra.mxu0 %v12140
  %12217 = vmatprep.subr.bf16.mxu0 %v12143
  %12218 = vmatpush1.bf16.msra.mxu0 %v12142
  %12219 = vmatprep.subr.bf16.mxu0 %v12145
  %12220 = vmatpush1.bf16.msra.mxu0 %v12144
  %12221 = vmatprep.subr.bf16.mxu0 %v12147
  %12222 = vmatpush1.bf16.msra.mxu0 %v12146
  %12223 = vmatprep.subr.bf16.mxu0 %v12149
  %12224 = vmatpush1.bf16.msra.mxu0 %v12148
  %12225 = vmatprep.mubr.bf16.mxu0 %v9806
  %12226 = vmatmul.mubr.bf16.gmra.mrb[0].mxu0 %v9805
  %v12227 = vpop.f32.mrb[0].mxu0
  %v12228 = vadd.f32 0.0, %v12227
  %v12229 = vpop.f32.mrb[0].mxu0
  %v12230 = vadd.f32 0.0, %v12229
  %v12231 = vpop.f32.mrb[0].mxu0
  %v12232 = vadd.f32 0.0, %v12231
  %v12233 = vpop.f32.mrb[0].mxu0
  %v12234 = vadd.f32 0.0, %v12233
  %12235 = vdwg.mxu0
  %12236 = vmatprep.subr.bf16.mxu0 %v12151
  %12237 = vmatpush1.bf16.msra.mxu0 %v12150
  %12238 = vmatprep.subr.bf16.mxu0 %v12153
  %12239 = vmatpush1.bf16.msra.mxu0 %v12152
  %12240 = vmatprep.subr.bf16.mxu0 0
  %12241 = vmatpush1.bf16.msra.mxu0 0
  %12242 = vmatprep.subr.bf16.mxu0 0
  %12243 = vmatpush1.bf16.msra.mxu0 0
  %12244 = vmatprep.subr.bf16.mxu0 0
  %12245 = vmatpush1.bf16.msra.mxu0 0
  %12246 = vmatprep.subr.bf16.mxu0 0
  %12247 = vmatpush1.bf16.msra.mxu0 0
  %12248 = vmatprep.subr.bf16.mxu0 0
  %12249 = vmatpush1.bf16.msra.mxu0 0
  %12250 = vmatprep.subr.bf16.mxu0 0
  %12251 = vmatpush1.bf16.msra.mxu0 0
  %12252 = vmatprep.subr.bf16.mxu0 0
  %12253 = vmatpush1.bf16.msra.mxu0 0
  %12254 = vmatprep.subr.bf16.mxu0 0
  %12255 = vmatpush1.bf16.msra.mxu0 0
  %12256 = vmatprep.subr.bf16.mxu0 0
  %12257 = vmatpush1.bf16.msra.mxu0 0
  %12258 = vmatprep.subr.bf16.mxu0 0
  %12259 = vmatpush1.bf16.msra.mxu0 0
  %12260 = vmatprep.subr.bf16.mxu0 0
  %12261 = vmatpush1.bf16.msra.mxu0 0
  %12262 = vmatprep.subr.bf16.mxu0 0
  %12263 = vmatpush1.bf16.msra.mxu0 0
  %12264 = vmatprep.subr.bf16.mxu0 0
  %12265 = vmatpush1.bf16.msra.mxu0 0
  %12266 = vmatprep.subr.bf16.mxu0 0
  %12267 = vmatpush1.bf16.msra.mxu0 0
  %12268 = vmatprep.mubr.bf16.mxu0 0
  %12269 = vmatmul.mubr.bf16.gmra.mrb[0].mxu0 %v12191
  %v12270 = vpop.f32.mrb[0].mxu0
  %v12271 = vadd.f32 %v12228, %v12270
  %v12272 = vpop.f32.mrb[0].mxu0
  %v12273 = vadd.f32 %v12230, %v12272
  %v12274 = vpop.f32.mrb[0].mxu0
  %v12275 = vadd.f32 %v12232, %v12274
  %v12276 = vpop.f32.mrb[0].mxu0
  %v12277 = vadd.f32 %v12234, %v12276
  %12278 = vdwg.mxu0
  %v12279 = vadd.f32 %v11969, %v12271
  %v12280 = vadd.f32 %v11970, %v12273
  %v12281 = vadd.f32 %v11971, %v12275
  %v12282 = vadd.f32 %v11972, %v12277
  %s12283 = scalar_lea.vmem %s5, 2304
  %v12284 = vld [vmem:[%s12283] sm:$0xff]
  %v12285 = vld [vmem:[%s12283 + $0x8] sm:$0xff]
  %v12286 = vld [vmem:[%s12283 + $0x10] sm:$0xff]
  %v12287 = vld [vmem:[%s12283 + $0x18] sm:$0xff]
  %v12288 = vld [vmem:[%s12283 + $0x20] sm:$0xff]
  %v12289 = vld [vmem:[%s12283 + $0x28] sm:$0xff]
  %v12290 = vld [vmem:[%s12283 + $0x30] sm:$0xff]
  %v12291 = vld [vmem:[%s12283 + $0x38] sm:$0xff]
  %v12292 = vld [vmem:[%s12283 + $0x40] sm:$0xff]
  %v12293 = vld [vmem:[%s12283 + $0x48] sm:$0xff]
  %v12294 = vld [vmem:[%s12283 + $0x50] sm:$0xff]
  %v12295 = vld [vmem:[%s12283 + $0x58] sm:$0xff]
  %v12296 = vld [vmem:[%s12283 + $0x60] sm:$0xff]
  %v12297 = vld [vmem:[%s12283 + $0x68] sm:$0xff]
  %v12298 = vld [vmem:[%s12283 + $0x70] sm:$0xff]
  %v12299 = vld [vmem:[%s12283 + $0x78] sm:$0xff]
  %v12300 = vld [vmem:[%s12283 + $0x80] sm:$0xff]
  %v12301 = vld [vmem:[%s12283 + $0x88] sm:$0xff]
  %v12302 = vld [vmem:[%s12283 + $0x90] sm:$0xff]
  %v12303 = vld [vmem:[%s12283 + $0x98] sm:$0xff]
  %v12304 = vld [vmem:[%s12283 + $0xa0] sm:$0xff]
  %v12305 = vld [vmem:[%s12283 + $0xa8] sm:$0xff]
  %v12306 = vld [vmem:[%s12283 + $0xb0] sm:$0xff]
  %v12307 = vld [vmem:[%s12283 + $0xb8] sm:$0xff]
  %v12308 = vld [vmem:[%s12283 + $0xc0] sm:$0xff]
  %v12309 = vld [vmem:[%s12283 + $0xc8] sm:$0xff]
  %v12310 = vld [vmem:[%s12283 + $0xd0] sm:$0xff]
  %v12311 = vld [vmem:[%s12283 + $0xd8] sm:$0xff]
  %v12312 = vld [vmem:[%s12283 + $0xe0] sm:$0xff]
  %v12313 = vld [vmem:[%s12283 + $0xe8] sm:$0xff]
  %v12314 = vld [vmem:[%s12283 + $0xf0] sm:$0xff]
  %v12315 = vld [vmem:[%s12283 + $0xf8] sm:$0xff]
  %v12316 = vld [vmem:[%s12283 + $0x100] sm:$0xff]
  %v12317 = vld [vmem:[%s12283 + $0x108] sm:$0xff]
  %v12318 = vld [vmem:[%s12283 + $0x110] sm:$0xff]
  %v12319 = vld [vmem:[%s12283 + $0x118] sm:$0xff]
  %v12356 = vunpack.c.l.b16 %v12284
  %v12357 = vunpack.c.h.b16 %v12284
  %v12358 = vunpack.c.l.b16 %v12285
  %v12359 = vunpack.c.h.b16 %v12285
  %v12360 = vunpack.c.l.b16 %v12286
  %v12361 = vunpack.c.h.b16 %v12286
  %v12362 = vunpack.c.l.b16 %v12287
  %v12363 = vunpack.c.h.b16 %v12287
  %v12364 = vunpack.c.l.b16 %v12288
  %v12365 = vunpack.c.h.b16 %v12288
  %v12366 = vunpack.c.l.b16 %v12289
  %v12367 = vunpack.c.h.b16 %v12289
  %v12368 = vunpack.c.l.b16 %v12290
  %v12369 = vunpack.c.h.b16 %v12290
  %v12370 = vunpack.c.l.b16 %v12291
  %v12371 = vunpack.c.h.b16 %v12291
  %v12372 = vunpack.c.l.b16 %v12292
  %v12373 = vunpack.c.h.b16 %v12292
  %v12374 = vunpack.c.l.b16 %v12293
  %v12375 = vunpack.c.h.b16 %v12293
  %v12376 = vunpack.c.l.b16 %v12294
  %v12377 = vunpack.c.h.b16 %v12294
  %v12378 = vunpack.c.l.b16 %v12295
  %v12379 = vunpack.c.h.b16 %v12295
  %v12380 = vunpack.c.l.b16 %v12296
  %v12381 = vunpack.c.h.b16 %v12296
  %v12382 = vunpack.c.l.b16 %v12297
  %v12383 = vunpack.c.h.b16 %v12297
  %v12384 = vunpack.c.l.b16 %v12298
  %v12385 = vunpack.c.h.b16 %v12298
  %v12386 = vunpack.c.l.b16 %v12299
  %v12387 = vunpack.c.h.b16 %v12299
  %v12388 = vunpack.c.l.b16 %v12300
  %v12389 = vunpack.c.h.b16 %v12300
  %v12390 = vunpack.c.l.b16 %v12301
  %v12391 = vunpack.c.h.b16 %v12301
  %v12392 = vunpack.c.l.b16 %v12302
  %v12393 = vunpack.c.h.b16 %v12302
  %v12394 = vunpack.c.l.b16 %v12303
  %v12395 = vunpack.c.h.b16 %v12303
  %v12396 = vunpack.c.l.b16 %v12304
  %v12397 = vunpack.c.h.b16 %v12304
  %v12398 = vunpack.c.l.b16 %v12305
  %v12399 = vunpack.c.h.b16 %v12305
  %v12400 = vunpack.c.l.b16 %v12306
  %v12401 = vunpack.c.h.b16 %v12306
  %v12402 = vunpack.c.l.b16 %v12307
  %v12403 = vunpack.c.h.b16 %v12307
  %v12404 = vunpack.c.l.b16 %v12308
  %v12405 = vunpack.c.h.b16 %v12308
  %v12406 = vunpack.c.l.b16 %v12309
  %v12407 = vunpack.c.h.b16 %v12309
  %v12408 = vunpack.c.l.b16 %v12310
  %v12409 = vunpack.c.h.b16 %v12310
  %v12410 = vunpack.c.l.b16 %v12311
  %v12411 = vunpack.c.h.b16 %v12311
  %v12412 = vunpack.c.l.b16 %v12312
  %v12413 = vunpack.c.h.b16 %v12312
  %v12414 = vunpack.c.l.b16 %v12313
  %v12415 = vunpack.c.h.b16 %v12313
  %v12416 = vunpack.c.l.b16 %v12314
  %v12417 = vunpack.c.h.b16 %v12314
  %v12418 = vunpack.c.l.b16 %v12315
  %v12419 = vunpack.c.h.b16 %v12315
  %v12420 = vunpack.c.l.b16 %v12316
  %v12421 = vunpack.c.h.b16 %v12316
  %v12422 = vunpack.c.l.b16 %v12317
  %v12423 = vunpack.c.h.b16 %v12317
  %v12424 = vunpack.c.l.b16 %v12318
  %v12425 = vunpack.c.h.b16 %v12318
  %v12426 = vunpack.c.l.b16 %v12319
  %v12427 = vunpack.c.h.b16 %v12319
  %v12428 = vpack.c.b16 %v12358, %v12356
  %v12429 = vpack.c.b16 %v12359, %v12357
  %v12430 = vpack.c.b16 %v12362, %v12360
  %v12431 = vpack.c.b16 %v12363, %v12361
  %v12432 = vpack.c.b16 %v12366, %v12364
  %v12433 = vpack.c.b16 %v12367, %v12365
  %v12434 = vpack.c.b16 %v12370, %v12368
  %v12435 = vpack.c.b16 %v12371, %v12369
  %v12436 = vpack.c.b16 %v12374, %v12372
  %v12437 = vpack.c.b16 %v12375, %v12373
  %v12438 = vpack.c.b16 %v12378, %v12376
  %v12439 = vpack.c.b16 %v12379, %v12377
  %v12440 = vpack.c.b16 %v12382, %v12380
  %v12441 = vpack.c.b16 %v12383, %v12381
  %v12442 = vpack.c.b16 %v12386, %v12384
  %v12443 = vpack.c.b16 %v12387, %v12385
  %v12444 = vpack.c.b16 %v12390, %v12388
  %v12445 = vpack.c.b16 %v12391, %v12389
  %v12446 = vpack.c.b16 %v12394, %v12392
  %v12447 = vpack.c.b16 %v12395, %v12393
  %v12448 = vpack.c.b16 %v12398, %v12396
  %v12449 = vpack.c.b16 %v12399, %v12397
  %v12450 = vpack.c.b16 %v12402, %v12400
  %v12451 = vpack.c.b16 %v12403, %v12401
  %v12452 = vpack.c.b16 %v12406, %v12404
  %v12453 = vpack.c.b16 %v12407, %v12405
  %v12454 = vpack.c.b16 %v12410, %v12408
  %v12455 = vpack.c.b16 %v12411, %v12409
  %v12456 = vpack.c.b16 %v12414, %v12412
  %v12457 = vpack.c.b16 %v12415, %v12413
  %v12458 = vpack.c.b16 %v12418, %v12416
  %v12459 = vpack.c.b16 %v12419, %v12417
  %v12460 = vpack.c.b16 %v12422, %v12420
  %v12461 = vpack.c.b16 %v12423, %v12421
  %v12462 = vpack.c.b16 %v12426, %v12424
  %v12463 = vpack.c.b16 %v12427, %v12425
  %v12501 = vsel %vm10064, %v9810, 0
  %12503 = vmatprep.subr.bf16.mxu0 %v12429
  %12504 = vmatpush1.bf16.msra.mxu0 %v12428
  %12505 = vmatprep.subr.bf16.mxu0 %v12431
  %12506 = vmatpush1.bf16.msra.mxu0 %v12430
  %12507 = vmatprep.subr.bf16.mxu0 %v12433
  %12508 = vmatpush1.bf16.msra.mxu0 %v12432
  %12509 = vmatprep.subr.bf16.mxu0 %v12435
  %12510 = vmatpush1.bf16.msra.mxu0 %v12434
  %12511 = vmatprep.subr.bf16.mxu0 %v12437
  %12512 = vmatpush1.bf16.msra.mxu0 %v12436
  %12513 = vmatprep.subr.bf16.mxu0 %v12439
  %12514 = vmatpush1.bf16.msra.mxu0 %v12438
  %12515 = vmatprep.subr.bf16.mxu0 %v12441
  %12516 = vmatpush1.bf16.msra.mxu0 %v12440
  %12517 = vmatprep.subr.bf16.mxu0 %v12443
  %12518 = vmatpush1.bf16.msra.mxu0 %v12442
  %12519 = vmatprep.subr.bf16.mxu0 %v12445
  %12520 = vmatpush1.bf16.msra.mxu0 %v12444
  %12521 = vmatprep.subr.bf16.mxu0 %v12447
  %12522 = vmatpush1.bf16.msra.mxu0 %v12446
  %12523 = vmatprep.subr.bf16.mxu0 %v12449
  %12524 = vmatpush1.bf16.msra.mxu0 %v12448
  %12525 = vmatprep.subr.bf16.mxu0 %v12451
  %12526 = vmatpush1.bf16.msra.mxu0 %v12450
  %12527 = vmatprep.subr.bf16.mxu0 %v12453
  %12528 = vmatpush1.bf16.msra.mxu0 %v12452
  %12529 = vmatprep.subr.bf16.mxu0 %v12455
  %12530 = vmatpush1.bf16.msra.mxu0 %v12454
  %12531 = vmatprep.subr.bf16.mxu0 %v12457
  %12532 = vmatpush1.bf16.msra.mxu0 %v12456
  %12533 = vmatprep.subr.bf16.mxu0 %v12459
  %12534 = vmatpush1.bf16.msra.mxu0 %v12458
  %12535 = vmatprep.mubr.bf16.mxu0 %v9809
  %12536 = vmatmul.mubr.bf16.gmra.mrb[0].mxu0 %v9808
  %v12537 = vpop.f32.mrb[0].mxu0
  %v12538 = vadd.f32 0.0, %v12537
  %v12539 = vpop.f32.mrb[0].mxu0
  %v12540 = vadd.f32 0.0, %v12539
  %v12541 = vpop.f32.mrb[0].mxu0
  %v12542 = vadd.f32 0.0, %v12541
  %v12543 = vpop.f32.mrb[0].mxu0
  %v12544 = vadd.f32 0.0, %v12543
  %12545 = vdwg.mxu0
  %12546 = vmatprep.subr.bf16.mxu0 %v12461
  %12547 = vmatpush1.bf16.msra.mxu0 %v12460
  %12548 = vmatprep.subr.bf16.mxu0 %v12463
  %12549 = vmatpush1.bf16.msra.mxu0 %v12462
  %12550 = vmatprep.subr.bf16.mxu0 0
  %12551 = vmatpush1.bf16.msra.mxu0 0
  %12552 = vmatprep.subr.bf16.mxu0 0
  %12553 = vmatpush1.bf16.msra.mxu0 0
  %12554 = vmatprep.subr.bf16.mxu0 0
  %12555 = vmatpush1.bf16.msra.mxu0 0
  %12556 = vmatprep.subr.bf16.mxu0 0
  %12557 = vmatpush1.bf16.msra.mxu0 0
  %12558 = vmatprep.subr.bf16.mxu0 0
  %12559 = vmatpush1.bf16.msra.mxu0 0
  %12560 = vmatprep.subr.bf16.mxu0 0
  %12561 = vmatpush1.bf16.msra.mxu0 0
  %12562 = vmatprep.subr.bf16.mxu0 0
  %12563 = vmatpush1.bf16.msra.mxu0 0
  %12564 = vmatprep.subr.bf16.mxu0 0
  %12565 = vmatpush1.bf16.msra.mxu0 0
  %12566 = vmatprep.subr.bf16.mxu0 0
  %12567 = vmatpush1.bf16.msra.mxu0 0
  %12568 = vmatprep.subr.bf16.mxu0 0
  %12569 = vmatpush1.bf16.msra.mxu0 0
  %12570 = vmatprep.subr.bf16.mxu0 0
  %12571 = vmatpush1.bf16.msra.mxu0 0
  %12572 = vmatprep.subr.bf16.mxu0 0
  %12573 = vmatpush1.bf16.msra.mxu0 0
  %12574 = vmatprep.subr.bf16.mxu0 0
  %12575 = vmatpush1.bf16.msra.mxu0 0
  %12576 = vmatprep.subr.bf16.mxu0 0
  %12577 = vmatpush1.bf16.msra.mxu0 0
  %12578 = vmatprep.mubr.bf16.mxu0 0
  %12579 = vmatmul.mubr.bf16.gmra.mrb[0].mxu0 %v12501
  %v12580 = vpop.f32.mrb[0].mxu0
  %v12581 = vadd.f32 %v12538, %v12580
  %v12582 = vpop.f32.mrb[0].mxu0
  %v12583 = vadd.f32 %v12540, %v12582
  %v12584 = vpop.f32.mrb[0].mxu0
  %v12585 = vadd.f32 %v12542, %v12584
  %v12586 = vpop.f32.mrb[0].mxu0
  %v12587 = vadd.f32 %v12544, %v12586
  %12588 = vdwg.mxu0
  %v12589 = vadd.f32 %v12279, %v12581
  %v12590 = vadd.f32 %v12280, %v12583
  %v12591 = vadd.f32 %v12281, %v12585
  %v12592 = vadd.f32 %v12282, %v12587
  %v12593 = vld [vmem:[%s6] sm:$0x3]
  %v12595 = vlaneseq
  %v12596 = vshrl.u32 %v12595, 7
  %v12597 = vsub.s32 0, %v12596
  %v12598 = vrot.slane %v12593, %v12597
  %v12599 = vlaneseq
  %v12600 = vshrl.u32 %v12599, 7
  %v12601 = vsub.s32 1, %v12600
  %v12602 = vrot.slane %v12593, %v12601
  %v12605 = vadd.f32 %v12589, %v12598
  %v12606 = vadd.f32 %v12590, %v12602
  %v12607 = vadd.f32 %v12591, %v12598
  %v12608 = vadd.f32 %v12592, %v12602
  %v12609 = vmax.f32 %v12605, 0.0
  %v12610 = vmax.f32 %v12606, 0.0
  %v12611 = vmax.f32 %v12607, 0.0
  %v12612 = vmax.f32 %v12608, 0.0
  %v12613 = vpack.c.bf16 %v12611, %v12609
  %v12614 = vpack.c.bf16 %v12612, %v12610
  %v12615 = vld [vmem:[%s7] sm:$0xf]
  %v12616 = vld [vmem:[%s7 + $0x4] sm:$0xf]
  %v12617 = vld [vmem:[%s7 + $0x8] sm:$0xf]
  %v12618 = vld [vmem:[%s7 + $0xc] sm:$0xf]
  %v12619 = vld [vmem:[%s7 + $0x10] sm:$0xf]
  %v12620 = vld [vmem:[%s7 + $0x14] sm:$0xf]
  %v12621 = vld [vmem:[%s7 + $0x18] sm:$0xf]
  %v12622 = vld [vmem:[%s7 + $0x1c] sm:$0xf]
  %v12623 = vld [vmem:[%s7 + $0x20] sm:$0xf]
  %v12624 = vld [vmem:[%s7 + $0x24] sm:$0xf]
  %v12625 = vld [vmem:[%s7 + $0x28] sm:$0xf]
  %v12626 = vld [vmem:[%s7 + $0x2c] sm:$0xf]
  %v12627 = vld [vmem:[%s7 + $0x30] sm:$0xf]
  %v12628 = vld [vmem:[%s7 + $0x34] sm:$0xf]
  %v12629 = vld [vmem:[%s7 + $0x38] sm:$0xf]
  %v12630 = vld [vmem:[%s7 + $0x3c] sm:$0xf]
  %v12631 = vld [vmem:[%s7 + $0x40] sm:$0xf]
  %v12632 = vld [vmem:[%s7 + $0x44] sm:$0xf]
  %v12633 = vld [vmem:[%s7 + $0x48] sm:$0xf]
  %v12634 = vld [vmem:[%s7 + $0x4c] sm:$0xf]
  %v12635 = vld [vmem:[%s7 + $0x50] sm:$0xf]
  %v12636 = vld [vmem:[%s7 + $0x54] sm:$0xf]
  %v12637 = vld [vmem:[%s7 + $0x58] sm:$0xf]
  %v12638 = vld [vmem:[%s7 + $0x5c] sm:$0xf]
  %v12639 = vld [vmem:[%s7 + $0x60] sm:$0xf]
  %v12640 = vld [vmem:[%s7 + $0x64] sm:$0xf]
  %v12641 = vld [vmem:[%s7 + $0x68] sm:$0xf]
  %v12642 = vld [vmem:[%s7 + $0x6c] sm:$0xf]
  %v12643 = vld [vmem:[%s7 + $0x70] sm:$0xf]
  %v12644 = vld [vmem:[%s7 + $0x74] sm:$0xf]
  %v12645 = vld [vmem:[%s7 + $0x78] sm:$0xf]
  %v12646 = vld [vmem:[%s7 + $0x7c] sm:$0xf]
  %v12647 = vld [vmem:[%s8] sm:$0x1]
  %v12649 = vlaneseq
  %v12650 = vshrl.u32 %v12649, 7
  %v12651 = vsub.s32 0, %v12650
  %v12652 = vrot.slane %v12647, %v12651
  %v12686 = vunpack.c.l.b16 %v12615
  %v12687 = vunpack.c.l.b16 %v12616
  %v12688 = vunpack.c.l.b16 %v12617
  %v12689 = vunpack.c.l.b16 %v12618
  %v12690 = vunpack.c.l.b16 %v12619
  %v12691 = vunpack.c.l.b16 %v12620
  %v12692 = vunpack.c.l.b16 %v12621
  %v12693 = vunpack.c.l.b16 %v12622
  %v12694 = vunpack.c.l.b16 %v12623
  %v12695 = vunpack.c.l.b16 %v12624
  %v12696 = vunpack.c.l.b16 %v12625
  %v12697 = vunpack.c.l.b16 %v12626
  %v12698 = vunpack.c.l.b16 %v12627
  %v12699 = vunpack.c.l.b16 %v12628
  %v12700 = vunpack.c.l.b16 %v12629
  %v12701 = vunpack.c.l.b16 %v12630
  %v12702 = vunpack.c.l.b16 %v12631
  %v12703 = vunpack.c.l.b16 %v12632
  %v12704 = vunpack.c.l.b16 %v12633
  %v12705 = vunpack.c.l.b16 %v12634
  %v12706 = vunpack.c.l.b16 %v12635
  %v12707 = vunpack.c.l.b16 %v12636
  %v12708 = vunpack.c.l.b16 %v12637
  %v12709 = vunpack.c.l.b16 %v12638
  %v12710 = vunpack.c.l.b16 %v12639
  %v12711 = vunpack.c.l.b16 %v12640
  %v12712 = vunpack.c.l.b16 %v12641
  %v12713 = vunpack.c.l.b16 %v12642
  %v12714 = vunpack.c.l.b16 %v12643
  %v12715 = vunpack.c.l.b16 %v12644
  %v12716 = vunpack.c.l.b16 %v12645
  %v12717 = vunpack.c.l.b16 %v12646
  %v12718 = vpack.c.b16 %v12687, %v12686
  %v12719 = vpack.c.b16 %v12689, %v12688
  %v12720 = vpack.c.b16 %v12691, %v12690
  %v12721 = vpack.c.b16 %v12693, %v12692
  %v12722 = vpack.c.b16 %v12695, %v12694
  %v12723 = vpack.c.b16 %v12697, %v12696
  %v12724 = vpack.c.b16 %v12699, %v12698
  %v12725 = vpack.c.b16 %v12701, %v12700
  %v12726 = vpack.c.b16 %v12703, %v12702
  %v12727 = vpack.c.b16 %v12705, %v12704
  %v12728 = vpack.c.b16 %v12707, %v12706
  %v12729 = vpack.c.b16 %v12709, %v12708
  %v12730 = vpack.c.b16 %v12711, %v12710
  %v12731 = vpack.c.b16 %v12713, %v12712
  %v12732 = vpack.c.b16 %v12715, %v12714
  %v12733 = vpack.c.b16 %v12717, %v12716
  %12750 = vmatprep.subr.bf16.mxu0 0
  %12751 = vmatpush1.bf16.msra.mxu0 %v12718
  %12752 = vmatprep.subr.bf16.mxu0 0
  %12753 = vmatpush1.bf16.msra.mxu0 %v12719
  %12754 = vmatprep.subr.bf16.mxu0 0
  %12755 = vmatpush1.bf16.msra.mxu0 %v12720
  %12756 = vmatprep.subr.bf16.mxu0 0
  %12757 = vmatpush1.bf16.msra.mxu0 %v12721
  %12758 = vmatprep.subr.bf16.mxu0 0
  %12759 = vmatpush1.bf16.msra.mxu0 %v12722
  %12760 = vmatprep.subr.bf16.mxu0 0
  %12761 = vmatpush1.bf16.msra.mxu0 %v12723
  %12762 = vmatprep.subr.bf16.mxu0 0
  %12763 = vmatpush1.bf16.msra.mxu0 %v12724
  %12764 = vmatprep.subr.bf16.mxu0 0
  %12765 = vmatpush1.bf16.msra.mxu0 %v12725
  %12766 = vmatprep.subr.bf16.mxu0 0
  %12767 = vmatpush1.bf16.msra.mxu0 %v12726
  %12768 = vmatprep.subr.bf16.mxu0 0
  %12769 = vmatpush1.bf16.msra.mxu0 %v12727
  %12770 = vmatprep.subr.bf16.mxu0 0
  %12771 = vmatpush1.bf16.msra.mxu0 %v12728
  %12772 = vmatprep.subr.bf16.mxu0 0
  %12773 = vmatpush1.bf16.msra.mxu0 %v12729
  %12774 = vmatprep.subr.bf16.mxu0 0
  %12775 = vmatpush1.bf16.msra.mxu0 %v12730
  %12776 = vmatprep.subr.bf16.mxu0 0
  %12777 = vmatpush1.bf16.msra.mxu0 %v12731
  %12778 = vmatprep.subr.bf16.mxu0 0
  %12779 = vmatpush1.bf16.msra.mxu0 %v12732
  %12780 = vmatprep.subr.bf16.mxu0 0
  %12781 = vmatpush1.bf16.msra.mxu0 %v12733
  %12782 = vmatprep.mubr.bf16.mxu0 %v12614
  %12783 = vmatmul.mubr.bf16.gmra.mrb[0].mxu0 %v12613
  %v12784 = vpop.f32.mrb[0].mxu0
  %v12785 = vadd.f32 %v12652, %v12784
  %v12786 = vpop.f32.mrb[0].mxu0
  %v12787 = vpop.f32.mrb[0].mxu0
  %v12788 = vadd.f32 %v12652, %v12787
  %v12789 = vpop.f32.mrb[0].mxu0
  %12790 = vdwg.mxu0
  %12791 = vst [vmem:[%s9] sm:$0xff] %v12785
  %12792 = vst [vmem:[%s9 + $0x8] sm:$0xff] %v12788
  // Predicated region
  $region38: #{dqn_forward.1} parent=0 // pred_check
    _
  $region39: #{dqn_forward.1} parent=0 // pred_check_branch
    %12794 = sbr.rel (0) target = $region41
  $region40: #{dqn_forward.1} parent=0 // pred_region
    _
  $region41: #{dqn_forward.1} parent=0 // pred_fallthru
    _
  // Predicated region
  $region42: #{dqn_forward.1} parent=0 // pred_check
    _
  $region43: #{dqn_forward.1} parent=0 // pred_check_branch
    %12796 = sbr.rel (0) target = $region45
  $region44: #{dqn_forward.1} parent=0 // pred_region
    _
  $region45: #{dqn_forward.1} parent=0 // pred_fallthru
    _

</llo_original>
